<compile_context>
chip_gen: v7x
topology: tpu7x:2x2x1
jax: 0.10.0
libtpu: 0.0.40
codegen_flags: <defaults>
</compile_context>

<pallas_src>
import functools

import jax
import jax.numpy as jnp
from jax.experimental import pallas as pl
from jax.experimental.pallas import tpu as pltpu

LANE = 128                       # channel width carried between kernels (lane-dense)
VMEM_LIMIT = 48 * 1024 * 1024


# ----------------------------------------------------------------------------
# small padding helpers (weights only; activations are never M-padded)
# ----------------------------------------------------------------------------
def _pad_last(a, target):
    d = target - a.shape[-1]
    if d == 0:
        return a
    return jnp.pad(a, [(0, 0)] * (a.ndim - 1) + [(0, d)])


def _pad_axis(a, axis, target):
    d = target - a.shape[axis]
    if d == 0:
        return a
    cfg = [(0, 0)] * a.ndim
    cfg[axis] = (0, d)
    return jnp.pad(a, cfg)


# ----------------------------------------------------------------------------
# Generic stride-1 conv kernel: per-tap accumulation over shifted windows of the
# VMEM-resident padded input block (f32 accumulator, bias + activation epilogue).
# ----------------------------------------------------------------------------
def _conv_tap_kernel(x_ref, w_ref, b_ref, o_ref, *, kh, kw, act):
    # x_ref: (Hz, Wz, Cin)   w_ref: (kh*kw*Cin, Cout)   b_ref: (1, Cout)
    # o_ref: (Ho, Wo, Cout) with Ho = Hz-kh+1, Wo = Wz-kw+1 (stride 1).
    ho, wo, cout = o_ref.shape
    cin = x_ref.shape[-1]
    acc = jnp.zeros((ho * wo, cout), jnp.float32)
    for di in range(kh):                      # static tap loop -> f32 accumulation
        for dj in range(kw):
            win = x_ref[di:di + ho, dj:dj + wo, :].reshape(ho * wo, cin)
            t = di * kw + dj
            acc += jnp.dot(win, w_ref[t * cin:(t + 1) * cin, :],
                           preferred_element_type=jnp.float32)
    y = acc + b_ref[...]
    if act == "relu":
        y = jnp.maximum(y, 0.0)
    o_ref[...] = y.reshape(ho, wo, cout).astype(o_ref.dtype)


def _conv_stride1(z, w, b, kh, kw, act="relu"):
    n, hz, wz, cin = z.shape
    ho, wo = hz - kh + 1, wz - kw + 1
    cout = w.shape[1]
    flops = 2 * n * ho * wo * kh * kw * cin * cout
    bytes_accessed = (z.size * z.dtype.itemsize + w.size * w.dtype.itemsize
                      + b.size * 4 + n * ho * wo * cout * 2)
    return pl.pallas_call(
        functools.partial(_conv_tap_kernel, kh=kh, kw=kw, act=act),
        out_shape=jax.ShapeDtypeStruct((n, ho, wo, cout), jnp.bfloat16),
        grid=(n,),
        in_specs=[
            pl.BlockSpec((None, hz, wz, cin), lambda i: (i, 0, 0, 0)),
            pl.BlockSpec((kh * kw * cin, cout), lambda i: (0, 0)),
            pl.BlockSpec((1, cout), lambda i: (0, 0)),
        ],
        out_specs=pl.BlockSpec((None, ho, wo, cout), lambda i: (i, 0, 0, 0)),
        compiler_params=pltpu.CompilerParams(
            dimension_semantics=("parallel",), vmem_limit_bytes=VMEM_LIMIT),
        cost_estimate=pl.CostEstimate(flops=int(flops), transcendentals=0,
                                      bytes_accessed=int(bytes_accessed)),
    )(z, w, b)


def conv3x3_s2(x, w_s2d, b, act="relu"):
    """3x3 / stride-2 / pad-1 conv as a stride-1 2x2 conv over a space-to-depth
    view of the zero-padded input (one wrapper layout pass, no 9x im2col slab)."""
    n, h, w, c = x.shape
    xp = jnp.pad(x, ((0, 0), (1, 1), (1, 1), (0, 0)))
    hp, wp = h + 2, w + 2
    z = xp.reshape(n, hp // 2, 2, wp // 2, 2, c)
    z = jnp.transpose(z, (0, 1, 3, 2, 4, 5)).reshape(n, hp // 2, wp // 2, 4 * c)
    return _conv_stride1(z, w_s2d, b, kh=2, kw=2, act=act)


# ----------------------------------------------------------------------------
# midnet (transform_segnet stand-in): fused 1x1 projection + ReLU + HW mean-pool
# (pool = attention-gate input, emitted as a second lane-dense output)
# ----------------------------------------------------------------------------
def _midnet_kernel(x_ref, w_ref, b_ref, ft_ref, pool_ref):
    th, tw, cin = x_ref.shape
    cout = ft_ref.shape[-1]
    x = x_ref[...].reshape(th * tw, cin)
    h = jnp.dot(x, w_ref[...], preferred_element_type=jnp.float32) + b_ref[...]
    h = jnp.maximum(h, 0.0)
    ft_ref[...] = h.reshape(th, tw, cout).astype(ft_ref.dtype)
    # fused HW mean-pool; broadcast to 8 rows so the store stays (8,128)-tiled.
    pooled = jnp.sum(h, axis=0, keepdims=True) * (1.0 / (th * tw))
    pool_ref[...] = jnp.broadcast_to(pooled, pool_ref.shape).astype(pool_ref.dtype)


def midnet_project(cat, w, b):
    n, th, tw, cin = cat.shape
    cout = w.shape[1]
    ft, pooled = pl.pallas_call(
        _midnet_kernel,
        out_shape=(jax.ShapeDtypeStruct((n, th, tw, cout), jnp.bfloat16),
                   jax.ShapeDtypeStruct((n, 8, cout), jnp.float32)),
        grid=(n,),
        in_specs=[
            pl.BlockSpec((None, th, tw, cin), lambda i: (i, 0, 0, 0)),
            pl.BlockSpec((cin, cout), lambda i: (0, 0)),
            pl.BlockSpec((1, cout), lambda i: (0, 0)),
        ],
        out_specs=(pl.BlockSpec((None, th, tw, cout), lambda i: (i, 0, 0, 0)),
                   pl.BlockSpec((None, 8, cout), lambda i: (i, 0, 0))),
        compiler_params=pltpu.CompilerParams(
            dimension_semantics=("parallel",), vmem_limit_bytes=VMEM_LIMIT),
        cost_estimate=pl.CostEstimate(
            flops=int(2 * n * th * tw * cin * cout), transcendentals=0,
            bytes_accessed=int(cat.size * 2 + w.size * 2 + b.size * 4
                               + n * th * tw * cout * 2 + n * 8 * cout * 4)),
    )(cat, w, b)
    return ft, pooled


# ----------------------------------------------------------------------------
# Fused decoder kernel (per image):
#   attention FC + sigmoid gate -> gate * ft -> 3x3 conv (single K=9*C dot over a
#   lane-aligned in-VMEM tap slab) -> ReLU -> 1x1 classifier.
# ----------------------------------------------------------------------------
def _decoder_kernel(ftp_ref, pool_ref, aw_ref, ab_ref, w0_ref, b0_ref,
                    w1_ref, b1_ref, o_ref, *, kh, kw):
    hp, wp, c = ftp_ref.shape
    ho, wo = hp - kh + 1, wp - kw + 1
    # AttentionLayer (SE-style stand-in): per-image / per-channel gate.
    pooled = pool_ref[0:1, :].astype(jnp.bfloat16)                    # (1, C)
    g = jax.nn.sigmoid(jnp.dot(pooled, aw_ref[...],
                               preferred_element_type=jnp.float32) + ab_ref[...])
    # NOTE(correctness): the gate is spatially constant (per image, per channel)
    # and the conv padding is zero, so gating the padded tile == conv3x3(g * ft).
    xg = ftp_ref[...] * g.reshape(1, 1, c).astype(ftp_ref.dtype)      # (Hp, Wp, C)
    # Single K = kh*kw*C dot over a lane-aligned (128-wide chunks) tap slab.
    cols = [xg[di:di + ho, dj:dj + wo, :].reshape(ho * wo, c)
            for di in range(kh) for dj in range(kw)]
    slab = jnp.concatenate(cols, axis=-1)                             # (Ho*Wo, kh*kw*C)
    h = jnp.dot(slab, w0_ref[...], preferred_element_type=jnp.float32) + b0_ref[...]
    h = jnp.maximum(h, 0.0).astype(jnp.bfloat16)
    y = jnp.dot(h, w1_ref[...], preferred_element_type=jnp.float32) + b1_ref[...]
    o_ref[...] = y.astype(o_ref.dtype)


def decoder_fused(ftp, pooled, aw, ab, w0, b0, w1, b1):
    n, hp, wp, c = ftp.shape
    kh = kw = 3
    ho, wo = hp - kh + 1, wp - kw + 1
    cmid = w0.shape[1]
    ncls = w1.shape[1]
    return pl.pallas_call(
        functools.partial(_decoder_kernel, kh=kh, kw=kw),
        out_shape=jax.ShapeDtypeStruct((n, ho * wo, ncls), jnp.float32),
        grid=(n,),
        in_specs=[
            pl.BlockSpec((None, hp, wp, c), lambda i: (i, 0, 0, 0)),
            pl.BlockSpec((None, 8, c), lambda i: (i, 0, 0)),
            pl.BlockSpec((c, c), lambda i: (0, 0)),
            pl.BlockSpec((1, c), lambda i: (0, 0)),
            pl.BlockSpec((kh * kw * c, cmid), lambda i: (0, 0)),
            pl.BlockSpec((1, cmid), lambda i: (0, 0)),
            pl.BlockSpec((cmid, ncls), lambda i: (0, 0)),
            pl.BlockSpec((1, ncls), lambda i: (0, 0)),
        ],
        out_specs=pl.BlockSpec((None, ho * wo, ncls), lambda i: (i, 0, 0)),
        compiler_params=pltpu.CompilerParams(
            dimension_semantics=("parallel",), vmem_limit_bytes=VMEM_LIMIT),
        cost_estimate=pl.CostEstimate(
            flops=int(2 * n * (c * c + ho * wo * (kh * kw * c * cmid + cmid * ncls))),
            transcendentals=int(n * c),
            bytes_accessed=int(ftp.size * 2 + pooled.size * 4 + aw.size * 2
                               + w0.size * 2 + w1.size * 2
                               + n * ho * wo * ncls * 4)),
    )(ftp, pooled, aw, ab, w0, b0, w1, b1)


# ----------------------------------------------------------------------------
# parameters (kernel-ready layout: bf16 weights, lane-padded output channels,
# input-channel rows padded with zeros to the carried LANE width; f32 biases)
# ----------------------------------------------------------------------------
def _s2d_weight(w3):
    """(3,3,Ci,Co) conv weight -> (2*2*4*Ci, Co) weight for the stride-1 2x2 conv
    over the space-to-depth input (channel order (p, q, c) matches conv3x3_s2)."""
    kh, kw, ci, co = w3.shape
    w2 = jnp.zeros((2, 2, 2, 2, ci, co), w3.dtype)
    for u in range(2):
        for v in range(2):
            for p in range(2):
                for q in range(2):
                    di, dj = 2 * u + p, 2 * v + q
                    if di < kh and dj < kw:
                        w2 = w2.at[u, v, p, q].set(w3[di, dj])
    return w2.reshape(2 * 2 * 2 * 2 * ci, co)


def init_params(key, in_ch, class_number):
    # TODO(synk): backbone / transform_segnet / AttentionLayer / get_suffix_net are
    # not defined in the reference source; deterministic synthetic stand-ins with
    # the same dataflow (multi-scale backbone, 1x1 merge, SE channel gate,
    # conv3x3+relu+1x1 decoder) are used.
    chans = [8, 16, 32]
    mid_c = chans[-1]                 # midnet_out_channels at upsample_layer = 3
    p = {}
    k = key

    def nrm(kk, shape, scale=0.1):
        return jax.random.normal(kk, shape, jnp.float32) * scale

    c_prev, carried = in_ch, in_ch
    for s, c in enumerate(chans):
        k, k1, k2 = jax.random.split(k, 3)
        w3 = _pad_axis(nrm(k1, (3, 3, c_prev, c)), 2, carried)
        p[f"bb_w{s}"] = _pad_last(_s2d_weight(w3), LANE).astype(jnp.bfloat16)
        p[f"bb_b{s}"] = _pad_last(nrm(k2, (1, c), 0.01), LANE)
        c_prev, carried = c, LANE

    # midnet 1x1 projection over the concat of the 3 (LANE-padded) levels.
    wm = jnp.zeros((3 * LANE, mid_c), jnp.float32)
    for lvl, c in enumerate(chans):
        k, kk = jax.random.split(k)
        wm = wm.at[lvl * LANE:lvl * LANE + c, :].set(nrm(kk, (c, mid_c)))
    k, k2 = jax.random.split(k)
    p["mid_w"] = _pad_last(wm, LANE).astype(jnp.bfloat16)
    p["mid_b"] = _pad_last(nrm(k2, (1, mid_c), 0.01), LANE)

    # AttentionLayer: SE-style channel gate.
    k, k1, k2 = jax.random.split(k, 3)
    p["att_w"] = _pad_last(_pad_axis(nrm(k1, (mid_c, mid_c)), 0, LANE),
                           LANE).astype(jnp.bfloat16)
    p["att_b"] = _pad_last(nrm(k2, (1, mid_c), 0.01), LANE)

    # decoder: 3x3 conv + ReLU, then 1x1 classifier.
    k, k1, k2, k3, k4 = jax.random.split(k, 5)
    w0 = _pad_axis(nrm(k1, (3, 3, mid_c, mid_c)), 2, LANE)            # (3,3,LANE,mid_c)
    p["dec_w0"] = _pad_last(w0.reshape(9 * LANE, mid_c), LANE).astype(jnp.bfloat16)
    p["dec_b0"] = _pad_last(nrm(k2, (1, mid_c), 0.01), LANE)
    p["dec_w1"] = _pad_last(_pad_axis(nrm(k3, (mid_c, class_number)), 0, LANE),
                            LANE).astype(jnp.bfloat16)
    p["dec_b1"] = _pad_last(nrm(k4, (1, class_number), 0.01), LANE)
    return p


# ----------------------------------------------------------------------------
# motionnet forward
# ----------------------------------------------------------------------------
def motionnet_forward(params, x_nchw, config):
    n = x_nchw.shape[0]
    cls = config["class_number"]
    in_h, in_w = config["input_shape"]

    x = jnp.transpose(x_nchw, (0, 2, 3, 1)).astype(jnp.bfloat16)      # NCHW -> NHWC

    # --- backbone.forward_layers: 3 stride-2 stages, per-stage feature maps ---
    feats = []
    h = x
    for s in range(3):
        h = conv3x3_s2(h, params[f"bb_w{s}"], params[f"bb_b{s}"])
        feats.append(h)

    # --- midnet: align levels to the coarsest grid, fused 1x1 proj + pool -----
    # TODO(synk): jax.image.resize kept as XLA glue (tiny tensors at this size).
    th, tw = feats[-1].shape[1:3]
    aligned = [f if f.shape[1:3] == (th, tw)
               else jax.image.resize(f, (n, th, tw, f.shape[-1]), method="nearest")
               for f in feats]
    cat = jnp.concatenate(aligned, axis=-1).astype(jnp.bfloat16)      # (n,th,tw,3*LANE)
    ft, pooled = midnet_project(cat, params["mid_w"], params["mid_b"])

    # --- attention + decoder, fused into one kernel per image -----------------
    ftp = jnp.pad(ft, ((0, 0), (1, 1), (1, 1), (0, 0)))               # zero pad (3x3)
    logits = decoder_fused(ftp, pooled, params["att_w"], params["att_b"],
                           params["dec_w0"], params["dec_b0"],
                           params["dec_w1"], params["dec_b1"])        # (n, th*tw, LANE)
    logits = logits.reshape(n, th, tw, LANE)[..., :cls]
    logits = jax.image.resize(logits, (n, in_h, in_w, cls), method="bilinear")
    return jnp.transpose(logits, (0, 3, 1, 2))                        # NHWC -> NCHW


# ----------------------------------------------------------------------------
if __name__ == "__main__":
    config = dict(
        class_number=5,
        input_shape=(16, 16),
        upsample_layer=3,
        upsample_type="bilinear",
        dataset_name="synthetic",
        ignore_index=255,
        use_none_layer=False,
    )

    key = jax.random.PRNGKey(0)
    kx, kp = jax.random.split(key)
    x = jax.random.normal(kx, (2, 4, 16, 16), jnp.float32)            # NCHW input
    params = init_params(kp, in_ch=4, class_number=config["class_number"])

    fwd = jax.jit(lambda p, xx: motionnet_forward(p, xx, config))
    y = jax.block_until_ready(fwd(params, x))

    assert y.shape == (2, config["class_number"], 16, 16), y.shape
    assert bool(jnp.all(jnp.isfinite(y)))
    print("KERNEL_OK")
</pallas_src>

<mosaic_0001>
module attributes {stable_mosaic.version = 11 : i64} {
  func.func @_conv_tap_kernel(%arg0: i32, %arg1: memref<1x9x9x16xbf16, #tpu.memory_space<vmem>>, %arg2: memref<64x128xbf16, #tpu.memory_space<vmem>>, %arg3: memref<1x128xf32, #tpu.memory_space<vmem>>, %arg4: memref<1x8x8x128xbf16, #tpu.memory_space<vmem>>) attributes {dimension_semantics = [#tpu.dimension_semantics<parallel>], iteration_bounds = array<i64: 2>, scalar_prefetch = 0 : i64, scratch_operands = 0 : i64, tpu.core_type = #tpu.core_type<tc>, window_params = [{transform_indices = @transform_0, window_bounds = array<i64: 1, 9, 9, 16>}, {pipeline_mode = #tpu.pipeline_mode<synchronous>, transform_indices = @transform_1, window_bounds = array<i64: 64, 128>}, {pipeline_mode = #tpu.pipeline_mode<synchronous>, transform_indices = @transform_2, window_bounds = array<i64: 1, 128>}, {transform_indices = @transform_3, window_bounds = array<i64: 1, 8, 8, 128>}]} {
    %cst = arith.constant 0.000000e+00 : f32
    %0 = vector.broadcast %cst : f32 to vector<64x128xf32>
    %c0 = arith.constant 0 : index
    %c0_0 = arith.constant 0 : index
    %c0_1 = arith.constant 0 : index
    %c0_2 = arith.constant 0 : index
    %1 = vector.load %arg1[%c0, %c0_0, %c0_1, %c0_2] : memref<1x9x9x16xbf16, #tpu.memory_space<vmem>>, vector<1x8x8x16xbf16>
    %2 = vector.shape_cast %1 : vector<1x8x8x16xbf16> to vector<8x8x16xbf16>
    %3 = vector.shape_cast %2 : vector<8x8x16xbf16> to vector<64x16xbf16>
    %c0_3 = arith.constant 0 : index
    %c0_4 = arith.constant 0 : index
    %4 = vector.load %arg2[%c0_3, %c0_4] : memref<64x128xbf16, #tpu.memory_space<vmem>>, vector<16x128xbf16>
    %cst_5 = arith.constant dense<0.000000e+00> : vector<64x128xf32>
    %5 = tpu.matmul %3, %4, %cst_5 {dimension_numbers = #tpu.dot_dimension_numbers<[1], [0], [0], [1], [0, 0, 1, 1], [], []>} : vector<64x16xbf16>, vector<16x128xbf16>, vector<64x128xf32> -> vector<64x128xf32>
    %6 = arith.addf %0, %5 : vector<64x128xf32>
    %c0_6 = arith.constant 0 : index
    %c0_7 = arith.constant 0 : index
    %c1 = arith.constant 1 : index
    %c0_8 = arith.constant 0 : index
    %7 = vector.load %arg1[%c0_6, %c0_7, %c1, %c0_8] : memref<1x9x9x16xbf16, #tpu.memory_space<vmem>>, vector<1x8x8x16xbf16>
    %8 = vector.shape_cast %7 : vector<1x8x8x16xbf16> to vector<8x8x16xbf16>
    %9 = vector.shape_cast %8 : vector<8x8x16xbf16> to vector<64x16xbf16>
    %c16 = arith.constant 16 : index
    %c0_9 = arith.constant 0 : index
    %10 = vector.load %arg2[%c16, %c0_9] : memref<64x128xbf16, #tpu.memory_space<vmem>>, vector<16x128xbf16>
    %cst_10 = arith.constant dense<0.000000e+00> : vector<64x128xf32>
    %11 = tpu.matmul %9, %10, %cst_10 {dimension_numbers = #tpu.dot_dimension_numbers<[1], [0], [0], [1], [0, 0, 1, 1], [], []>} : vector<64x16xbf16>, vector<16x128xbf16>, vector<64x128xf32> -> vector<64x128xf32>
    %12 = arith.addf %6, %11 : vector<64x128xf32>
    %c0_11 = arith.constant 0 : index
    %c1_12 = arith.constant 1 : index
    %c0_13 = arith.constant 0 : index
    %c0_14 = arith.constant 0 : index
    %13 = vector.load %arg1[%c0_11, %c1_12, %c0_13, %c0_14] : memref<1x9x9x16xbf16, #tpu.memory_space<vmem>>, vector<1x8x8x16xbf16>
    %14 = vector.shape_cast %13 : vector<1x8x8x16xbf16> to vector<8x8x16xbf16>
    %15 = vector.shape_cast %14 : vector<8x8x16xbf16> to vector<64x16xbf16>
    %c32 = arith.constant 32 : index
    %c0_15 = arith.constant 0 : index
    %16 = vector.load %arg2[%c32, %c0_15] : memref<64x128xbf16, #tpu.memory_space<vmem>>, vector<16x128xbf16>
    %cst_16 = arith.constant dense<0.000000e+00> : vector<64x128xf32>
    %17 = tpu.matmul %15, %16, %cst_16 {dimension_numbers = #tpu.dot_dimension_numbers<[1], [0], [0], [1], [0, 0, 1, 1], [], []>} : vector<64x16xbf16>, vector<16x128xbf16>, vector<64x128xf32> -> vector<64x128xf32>
    %18 = arith.addf %12, %17 : vector<64x128xf32>
    %c0_17 = arith.constant 0 : index
    %c1_18 = arith.constant 1 : index
    %c1_19 = arith.constant 1 : index
    %c0_20 = arith.constant 0 : index
    %19 = vector.load %arg1[%c0_17, %c1_18, %c1_19, %c0_20] : memref<1x9x9x16xbf16, #tpu.memory_space<vmem>>, vector<1x8x8x16xbf16>
    %20 = vector.shape_cast %19 : vector<1x8x8x16xbf16> to vector<8x8x16xbf16>
    %21 = vector.shape_cast %20 : vector<8x8x16xbf16> to vector<64x16xbf16>
    %c48 = arith.constant 48 : index
    %c0_21 = arith.constant 0 : index
    %22 = vector.load %arg2[%c48, %c0_21] : memref<64x128xbf16, #tpu.memory_space<vmem>>, vector<16x128xbf16>
    %cst_22 = arith.constant dense<0.000000e+00> : vector<64x128xf32>
    %23 = tpu.matmul %21, %22, %cst_22 {dimension_numbers = #tpu.dot_dimension_numbers<[1], [0], [0], [1], [0, 0, 1, 1], [], []>} : vector<64x16xbf16>, vector<16x128xbf16>, vector<64x128xf32> -> vector<64x128xf32>
    %24 = arith.addf %18, %23 : vector<64x128xf32>
    %c0_23 = arith.constant 0 : index
    %c0_24 = arith.constant 0 : index
    %25 = vector.load %arg3[%c0_23, %c0_24] : memref<1x128xf32, #tpu.memory_space<vmem>>, vector<1x128xf32>
    %26 = vector.broadcast %25 : vector<1x128xf32> to vector<64x128xf32>
    %27 = arith.addf %24, %26 : vector<64x128xf32>
    %cst_25 = arith.constant 0.000000e+00 : f32
    %28 = vector.broadcast %cst_25 : f32 to vector<64x128xf32>
    %29 = arith.maximumf %27, %28 : vector<64x128xf32>
    %30 = vector.shape_cast %29 : vector<64x128xf32> to vector<8x8x128xf32>
    %31 = arith.truncf %30 : vector<8x8x128xf32> to vector<8x8x128xbf16>
    %c0_26 = arith.constant 0 : index
    %c0_27 = arith.constant 0 : index
    %c0_28 = arith.constant 0 : index
    %c0_29 = arith.constant 0 : index
    %32 = vector.load %arg4[%c0_26, %c0_27, %c0_28, %c0_29] : memref<1x8x8x128xbf16, #tpu.memory_space<vmem>>, vector<1x8x8x128xbf16>
    %33 = vector.shape_cast %32 : vector<1x8x8x128xbf16> to vector<8x8x128xbf16>
    %34 = vector.shape_cast %31 : vector<8x8x128xbf16> to vector<1x8x8x128xbf16>
    tpu.vector_store %arg4[%c0_26, %c0_27, %c0_28, %c0_29], %34 {strides = array<i32>} : memref<1x8x8x128xbf16, #tpu.memory_space<vmem>>, vector<1x8x8x128xbf16>,
    return
  }
  func.func @transform_0(%arg0: i32) -> (i32, i32, i32, i32) {
    %c0_i32 = arith.constant 0 : i32
    %c0_i32_0 = arith.constant 0 : i32
    %c0_i32_1 = arith.constant 0 : i32
    %c0_i32_2 = arith.constant 0 : i32
    return %arg0, %c0_i32, %c0_i32_0, %c0_i32_1 : i32, i32, i32, i32
  }
  func.func @transform_1(%arg0: i32) -> (i32, i32) {
    %c0_i32 = arith.constant 0 : i32
    %c0_i32_0 = arith.constant 0 : i32
    %c0_i32_1 = arith.constant 0 : i32
    return %c0_i32, %c0_i32_0 : i32, i32
  }
  func.func @transform_2(%arg0: i32) -> (i32, i32) {
    %c0_i32 = arith.constant 0 : i32
    %c0_i32_0 = arith.constant 0 : i32
    %c0_i32_1 = arith.constant 0 : i32
    return %c0_i32, %c0_i32_0 : i32, i32
  }
  func.func @transform_3(%arg0: i32) -> (i32, i32, i32, i32) {
    %c0_i32 = arith.constant 0 : i32
    %c0_i32_0 = arith.constant 0 : i32
    %c0_i32_1 = arith.constant 0 : i32
    %c0_i32_2 = arith.constant 0 : i32
    return %arg0, %c0_i32, %c0_i32_0, %c0_i32_1 : i32, i32, i32, i32
  }
}

module attributes {stable_mosaic.version = 11 : i64} {
  func.func @_conv_tap_kernel(%arg0: i32, %arg1: memref<1x5x5x512xbf16, #tpu.memory_space<vmem>>, %arg2: memref<2048x128xbf16, #tpu.memory_space<vmem>>, %arg3: memref<1x128xf32, #tpu.memory_space<vmem>>, %arg4: memref<1x4x4x128xbf16, #tpu.memory_space<vmem>>) attributes {dimension_semantics = [#tpu.dimension_semantics<parallel>], iteration_bounds = array<i64: 2>, scalar_prefetch = 0 : i64, scratch_operands = 0 : i64, tpu.core_type = #tpu.core_type<tc>, window_params = [{transform_indices = @transform_0, window_bounds = array<i64: 1, 5, 5, 512>}, {pipeline_mode = #tpu.pipeline_mode<synchronous>, transform_indices = @transform_1, window_bounds = array<i64: 2048, 128>}, {pipeline_mode = #tpu.pipeline_mode<synchronous>, transform_indices = @transform_2, window_bounds = array<i64: 1, 128>}, {transform_indices = @transform_3, window_bounds = array<i64: 1, 4, 4, 128>}]} {
    %cst = arith.constant 0.000000e+00 : f32
    %0 = vector.broadcast %cst : f32 to vector<16x128xf32>
    %c0 = arith.constant 0 : index
    %c0_0 = arith.constant 0 : index
    %c0_1 = arith.constant 0 : index
    %c0_2 = arith.constant 0 : index
    %1 = vector.load %arg1[%c0, %c0_0, %c0_1, %c0_2] : memref<1x5x5x512xbf16, #tpu.memory_space<vmem>>, vector<1x4x4x512xbf16>
    %2 = vector.shape_cast %1 : vector<1x4x4x512xbf16> to vector<4x4x512xbf16>
    %3 = vector.shape_cast %2 : vector<4x4x512xbf16> to vector<16x512xbf16>
    %c0_3 = arith.constant 0 : index
    %c0_4 = arith.constant 0 : index
    %4 = vector.load %arg2[%c0_3, %c0_4] : memref<2048x128xbf16, #tpu.memory_space<vmem>>, vector<512x128xbf16>
    %cst_5 = arith.constant dense<0.000000e+00> : vector<16x128xf32>
    %5 = tpu.matmul %3, %4, %cst_5 {dimension_numbers = #tpu.dot_dimension_numbers<[1], [0], [0], [1], [0, 0, 1, 1], [], []>} : vector<16x512xbf16>, vector<512x128xbf16>, vector<16x128xf32> -> vector<16x128xf32>
    %6 = arith.addf %0, %5 : vector<16x128xf32>
    %c0_6 = arith.constant 0 : index
    %c0_7 = arith.constant 0 : index
    %c1 = arith.constant 1 : index
    %c0_8 = arith.constant 0 : index
    %7 = vector.load %arg1[%c0_6, %c0_7, %c1, %c0_8] : memref<1x5x5x512xbf16, #tpu.memory_space<vmem>>, vector<1x4x4x512xbf16>
    %8 = vector.shape_cast %7 : vector<1x4x4x512xbf16> to vector<4x4x512xbf16>
    %9 = vector.shape_cast %8 : vector<4x4x512xbf16> to vector<16x512xbf16>
    %c512 = arith.constant 512 : index
    %c0_9 = arith.constant 0 : index
    %10 = vector.load %arg2[%c512, %c0_9] : memref<2048x128xbf16, #tpu.memory_space<vmem>>, vector<512x128xbf16>
    %cst_10 = arith.constant dense<0.000000e+00> : vector<16x128xf32>
    %11 = tpu.matmul %9, %10, %cst_10 {dimension_numbers = #tpu.dot_dimension_numbers<[1], [0], [0], [1], [0, 0, 1, 1], [], []>} : vector<16x512xbf16>, vector<512x128xbf16>, vector<16x128xf32> -> vector<16x128xf32>
    %12 = arith.addf %6, %11 : vector<16x128xf32>
    %c0_11 = arith.constant 0 : index
    %c1_12 = arith.constant 1 : index
    %c0_13 = arith.constant 0 : index
    %c0_14 = arith.constant 0 : index
    %13 = vector.load %arg1[%c0_11, %c1_12, %c0_13, %c0_14] : memref<1x5x5x512xbf16, #tpu.memory_space<vmem>>, vector<1x4x4x512xbf16>
    %14 = vector.shape_cast %13 : vector<1x4x4x512xbf16> to vector<4x4x512xbf16>
    %15 = vector.shape_cast %14 : vector<4x4x512xbf16> to vector<16x512xbf16>
    %c1024 = arith.constant 1024 : index
    %c0_15 = arith.constant 0 : index
    %16 = vector.load %arg2[%c1024, %c0_15] : memref<2048x128xbf16, #tpu.memory_space<vmem>>, vector<512x128xbf16>
    %cst_16 = arith.constant dense<0.000000e+00> : vector<16x128xf32>
    %17 = tpu.matmul %15, %16, %cst_16 {dimension_numbers = #tpu.dot_dimension_numbers<[1], [0], [0], [1], [0, 0, 1, 1], [], []>} : vector<16x512xbf16>, vector<512x128xbf16>, vector<16x128xf32> -> vector<16x128xf32>
    %18 = arith.addf %12, %17 : vector<16x128xf32>
    %c0_17 = arith.constant 0 : index
    %c1_18 = arith.constant 1 : index
    %c1_19 = arith.constant 1 : index
    %c0_20 = arith.constant 0 : index
    %19 = vector.load %arg1[%c0_17, %c1_18, %c1_19, %c0_20] : memref<1x5x5x512xbf16, #tpu.memory_space<vmem>>, vector<1x4x4x512xbf16>
    %20 = vector.shape_cast %19 : vector<1x4x4x512xbf16> to vector<4x4x512xbf16>
    %21 = vector.shape_cast %20 : vector<4x4x512xbf16> to vector<16x512xbf16>
    %c1536 = arith.constant 1536 : index
    %c0_21 = arith.constant 0 : index
    %22 = vector.load %arg2[%c1536, %c0_21] : memref<2048x128xbf16, #tpu.memory_space<vmem>>, vector<512x128xbf16>
    %cst_22 = arith.constant dense<0.000000e+00> : vector<16x128xf32>
    %23 = tpu.matmul %21, %22, %cst_22 {dimension_numbers = #tpu.dot_dimension_numbers<[1], [0], [0], [1], [0, 0, 1, 1], [], []>} : vector<16x512xbf16>, vector<512x128xbf16>, vector<16x128xf32> -> vector<16x128xf32>
    %24 = arith.addf %18, %23 : vector<16x128xf32>
    %c0_23 = arith.constant 0 : index
    %c0_24 = arith.constant 0 : index
    %25 = vector.load %arg3[%c0_23, %c0_24] : memref<1x128xf32, #tpu.memory_space<vmem>>, vector<1x128xf32>
    %26 = vector.broadcast %25 : vector<1x128xf32> to vector<16x128xf32>
    %27 = arith.addf %24, %26 : vector<16x128xf32>
    %cst_25 = arith.constant 0.000000e+00 : f32
    %28 = vector.broadcast %cst_25 : f32 to vector<16x128xf32>
    %29 = arith.maximumf %27, %28 : vector<16x128xf32>
    %30 = vector.shape_cast %29 : vector<16x128xf32> to vector<4x4x128xf32>
    %31 = arith.truncf %30 : vector<4x4x128xf32> to vector<4x4x128xbf16>
    %c0_26 = arith.constant 0 : index
    %c0_27 = arith.constant 0 : index
    %c0_28 = arith.constant 0 : index
    %c0_29 = arith.constant 0 : index
    %32 = vector.load %arg4[%c0_26, %c0_27, %c0_28, %c0_29] : memref<1x4x4x128xbf16, #tpu.memory_space<vmem>>, vector<1x4x4x128xbf16>
    %33 = vector.shape_cast %32 : vector<1x4x4x128xbf16> to vector<4x4x128xbf16>
    %34 = vector.shape_cast %31 : vector<4x4x128xbf16> to vector<1x4x4x128xbf16>
    tpu.vector_store %arg4[%c0_26, %c0_27, %c0_28, %c0_29], %34 {strides = array<i32>} : memref<1x4x4x128xbf16, #tpu.memory_space<vmem>>, vector<1x4x4x128xbf16>,
    return
  }
  func.func @transform_0(%arg0: i32) -> (i32, i32, i32, i32) {
    %c0_i32 = arith.constant 0 : i32
    %c0_i32_0 = arith.constant 0 : i32
    %c0_i32_1 = arith.constant 0 : i32
    %c0_i32_2 = arith.constant 0 : i32
    return %arg0, %c0_i32, %c0_i32_0, %c0_i32_1 : i32, i32, i32, i32
  }
  func.func @transform_1(%arg0: i32) -> (i32, i32) {
    %c0_i32 = arith.constant 0 : i32
    %c0_i32_0 = arith.constant 0 : i32
    %c0_i32_1 = arith.constant 0 : i32
    return %c0_i32, %c0_i32_0 : i32, i32
  }
  func.func @transform_2(%arg0: i32) -> (i32, i32) {
    %c0_i32 = arith.constant 0 : i32
    %c0_i32_0 = arith.constant 0 : i32
    %c0_i32_1 = arith.constant 0 : i32
    return %c0_i32, %c0_i32_0 : i32, i32
  }
  func.func @transform_3(%arg0: i32) -> (i32, i32, i32, i32) {
    %c0_i32 = arith.constant 0 : i32
    %c0_i32_0 = arith.constant 0 : i32
    %c0_i32_1 = arith.constant 0 : i32
    %c0_i32_2 = arith.constant 0 : i32
    return %arg0, %c0_i32, %c0_i32_0, %c0_i32_1 : i32, i32, i32, i32
  }
}

module attributes {stable_mosaic.version = 11 : i64} {
  func.func @_midnet_kernel(%arg0: i32, %arg1: memref<1x2x2x384xbf16, #tpu.memory_space<vmem>>, %arg2: memref<384x128xbf16, #tpu.memory_space<vmem>>, %arg3: memref<1x128xf32, #tpu.memory_space<vmem>>, %arg4: memref<1x2x2x128xbf16, #tpu.memory_space<vmem>>, %arg5: memref<1x8x128xf32, #tpu.memory_space<vmem>>) attributes {dimension_semantics = [#tpu.dimension_semantics<parallel>], iteration_bounds = array<i64: 2>, scalar_prefetch = 0 : i64, scratch_operands = 0 : i64, tpu.core_type = #tpu.core_type<tc>, window_params = [{transform_indices = @transform_0, window_bounds = array<i64: 1, 2, 2, 384>}, {pipeline_mode = #tpu.pipeline_mode<synchronous>, transform_indices = @transform_1, window_bounds = array<i64: 384, 128>}, {pipeline_mode = #tpu.pipeline_mode<synchronous>, transform_indices = @transform_2, window_bounds = array<i64: 1, 128>}, {transform_indices = @transform_3, window_bounds = array<i64: 1, 2, 2, 128>}, {transform_indices = @transform_4, window_bounds = array<i64: 1, 8, 128>}]} {
    %c0 = arith.constant 0 : index
    %c0_0 = arith.constant 0 : index
    %c0_1 = arith.constant 0 : index
    %c0_2 = arith.constant 0 : index
    %0 = vector.load %arg1[%c0, %c0_0, %c0_1, %c0_2] : memref<1x2x2x384xbf16, #tpu.memory_space<vmem>>, vector<1x2x2x384xbf16>
    %1 = vector.shape_cast %0 : vector<1x2x2x384xbf16> to vector<2x2x384xbf16>
    %2 = vector.shape_cast %1 : vector<2x2x384xbf16> to vector<4x384xbf16>
    %c0_3 = arith.constant 0 : index
    %c0_4 = arith.constant 0 : index
    %3 = vector.load %arg2[%c0_3, %c0_4] : memref<384x128xbf16, #tpu.memory_space<vmem>>, vector<384x128xbf16>
    %cst = arith.constant dense<0.000000e+00> : vector<4x128xf32>
    %4 = tpu.matmul %2, %3, %cst {dimension_numbers = #tpu.dot_dimension_numbers<[1], [0], [0], [1], [0, 0, 1, 1], [], []>} : vector<4x384xbf16>, vector<384x128xbf16>, vector<4x128xf32> -> vector<4x128xf32>
    %c0_5 = arith.constant 0 : index
    %c0_6 = arith.constant 0 : index
    %5 = vector.load %arg3[%c0_5, %c0_6] : memref<1x128xf32, #tpu.memory_space<vmem>>, vector<1x128xf32>
    %6 = vector.broadcast %5 : vector<1x128xf32> to vector<4x128xf32>
    %7 = arith.addf %4, %6 : vector<4x128xf32>
    %cst_7 = arith.constant 0.000000e+00 : f32
    %8 = vector.broadcast %cst_7 : f32 to vector<4x128xf32>
    %9 = arith.maximumf %7, %8 : vector<4x128xf32>
    %10 = vector.shape_cast %9 : vector<4x128xf32> to vector<2x2x128xf32>
    %11 = arith.truncf %10 : vector<2x2x128xf32> to vector<2x2x128xbf16>
    %c0_8 = arith.constant 0 : index
    %c0_9 = arith.constant 0 : index
    %c0_10 = arith.constant 0 : index
    %c0_11 = arith.constant 0 : index
    %12 = vector.load %arg4[%c0_8, %c0_9, %c0_10, %c0_11] : memref<1x2x2x128xbf16, #tpu.memory_space<vmem>>, vector<1x2x2x128xbf16>
    %13 = vector.shape_cast %12 : vector<1x2x2x128xbf16> to vector<2x2x128xbf16>
    %14 = vector.shape_cast %11 : vector<2x2x128xbf16> to vector<1x2x2x128xbf16>
    tpu.vector_store %arg4[%c0_8, %c0_9, %c0_10, %c0_11], %14 {strides = array<i32>} : memref<1x2x2x128xbf16, #tpu.memory_space<vmem>>, vector<1x2x2x128xbf16>,
    %cst_12 = arith.constant dense<0.000000e+00> : vector<128xf32>
    %15 = vector.multi_reduction <add>, %9, %cst_12 [0] : vector<4x128xf32> to vector<128xf32>
    %16 = vector.shape_cast %15 : vector<128xf32> to vector<1x128xf32>
    %cst_13 = arith.constant 2.500000e-01 : f32
    %17 = vector.broadcast %cst_13 : f32 to vector<1x128xf32>
    %18 = arith.mulf %16, %17 : vector<1x128xf32>
    %19 = vector.shape_cast %18 : vector<1x128xf32> to vector<1x128xf32>
    %20 = vector.broadcast %19 : vector<1x128xf32> to vector<8x128xf32>
    %c0_14 = arith.constant 0 : index
    %c0_15 = arith.constant 0 : index
    %c0_16 = arith.constant 0 : index
    %21 = vector.load %arg5[%c0_14, %c0_15, %c0_16] : memref<1x8x128xf32, #tpu.memory_space<vmem>>, vector<1x8x128xf32>
    %22 = vector.shape_cast %21 : vector<1x8x128xf32> to vector<8x128xf32>
    %23 = vector.shape_cast %20 : vector<8x128xf32> to vector<1x8x128xf32>
    tpu.vector_store %arg5[%c0_14, %c0_15, %c0_16], %23 {strides = array<i32>} : memref<1x8x128xf32, #tpu.memory_space<vmem>>, vector<1x8x128xf32>,
    return
  }
  func.func @transform_0(%arg0: i32) -> (i32, i32, i32, i32) {
    %c0_i32 = arith.constant 0 : i32
    %c0_i32_0 = arith.constant 0 : i32
    %c0_i32_1 = arith.constant 0 : i32
    %c0_i32_2 = arith.constant 0 : i32
    return %arg0, %c0_i32, %c0_i32_0, %c0_i32_1 : i32, i32, i32, i32
  }
  func.func @transform_1(%arg0: i32) -> (i32, i32) {
    %c0_i32 = arith.constant 0 : i32
    %c0_i32_0 = arith.constant 0 : i32
    %c0_i32_1 = arith.constant 0 : i32
    return %c0_i32, %c0_i32_0 : i32, i32
  }
  func.func @transform_2(%arg0: i32) -> (i32, i32) {
    %c0_i32 = arith.constant 0 : i32
    %c0_i32_0 = arith.constant 0 : i32
    %c0_i32_1 = arith.constant 0 : i32
    return %c0_i32, %c0_i32_0 : i32, i32
  }
  func.func @transform_3(%arg0: i32) -> (i32, i32, i32, i32) {
    %c0_i32 = arith.constant 0 : i32
    %c0_i32_0 = arith.constant 0 : i32
    %c0_i32_1 = arith.constant 0 : i32
    %c0_i32_2 = arith.constant 0 : i32
    return %arg0, %c0_i32, %c0_i32_0, %c0_i32_1 : i32, i32, i32, i32
  }
  func.func @transform_4(%arg0: i32) -> (i32, i32, i32) {
    %c0_i32 = arith.constant 0 : i32
    %c0_i32_0 = arith.constant 0 : i32
    %c0_i32_1 = arith.constant 0 : i32
    return %arg0, %c0_i32, %c0_i32_0 : i32, i32, i32
  }
}

module attributes {stable_mosaic.version = 11 : i64} {
  func.func @_conv_tap_kernel(%arg0: i32, %arg1: memref<1x3x3x512xbf16, #tpu.memory_space<vmem>>, %arg2: memref<2048x128xbf16, #tpu.memory_space<vmem>>, %arg3: memref<1x128xf32, #tpu.memory_space<vmem>>, %arg4: memref<1x2x2x128xbf16, #tpu.memory_space<vmem>>) attributes {dimension_semantics = [#tpu.dimension_semantics<parallel>], iteration_bounds = array<i64: 2>, scalar_prefetch = 0 : i64, scratch_operands = 0 : i64, tpu.core_type = #tpu.core_type<tc>, window_params = [{transform_indices = @transform_0, window_bounds = array<i64: 1, 3, 3, 512>}, {pipeline_mode = #tpu.pipeline_mode<synchronous>, transform_indices = @transform_1, window_bounds = array<i64: 2048, 128>}, {pipeline_mode = #tpu.pipeline_mode<synchronous>, transform_indices = @transform_2, window_bounds = array<i64: 1, 128>}, {transform_indices = @transform_3, window_bounds = array<i64: 1, 2, 2, 128>}]} {
    %cst = arith.constant 0.000000e+00 : f32
    %0 = vector.broadcast %cst : f32 to vector<4x128xf32>
    %c0 = arith.constant 0 : index
    %c0_0 = arith.constant 0 : index
    %c0_1 = arith.constant 0 : index
    %c0_2 = arith.constant 0 : index
    %1 = vector.load %arg1[%c0, %c0_0, %c0_1, %c0_2] : memref<1x3x3x512xbf16, #tpu.memory_space<vmem>>, vector<1x2x2x512xbf16>
    %2 = vector.shape_cast %1 : vector<1x2x2x512xbf16> to vector<2x2x512xbf16>
    %3 = vector.shape_cast %2 : vector<2x2x512xbf16> to vector<4x512xbf16>
    %c0_3 = arith.constant 0 : index
    %c0_4 = arith.constant 0 : index
    %4 = vector.load %arg2[%c0_3, %c0_4] : memref<2048x128xbf16, #tpu.memory_space<vmem>>, vector<512x128xbf16>
    %cst_5 = arith.constant dense<0.000000e+00> : vector<4x128xf32>
    %5 = tpu.matmul %3, %4, %cst_5 {dimension_numbers = #tpu.dot_dimension_numbers<[1], [0], [0], [1], [0, 0, 1, 1], [], []>} : vector<4x512xbf16>, vector<512x128xbf16>, vector<4x128xf32> -> vector<4x128xf32>
    %6 = arith.addf %0, %5 : vector<4x128xf32>
    %c0_6 = arith.constant 0 : index
    %c0_7 = arith.constant 0 : index
    %c1 = arith.constant 1 : index
    %c0_8 = arith.constant 0 : index
    %7 = vector.load %arg1[%c0_6, %c0_7, %c1, %c0_8] : memref<1x3x3x512xbf16, #tpu.memory_space<vmem>>, vector<1x2x2x512xbf16>
    %8 = vector.shape_cast %7 : vector<1x2x2x512xbf16> to vector<2x2x512xbf16>
    %9 = vector.shape_cast %8 : vector<2x2x512xbf16> to vector<4x512xbf16>
    %c512 = arith.constant 512 : index
    %c0_9 = arith.constant 0 : index
    %10 = vector.load %arg2[%c512, %c0_9] : memref<2048x128xbf16, #tpu.memory_space<vmem>>, vector<512x128xbf16>
    %cst_10 = arith.constant dense<0.000000e+00> : vector<4x128xf32>
    %11 = tpu.matmul %9, %10, %cst_10 {dimension_numbers = #tpu.dot_dimension_numbers<[1], [0], [0], [1], [0, 0, 1, 1], [], []>} : vector<4x512xbf16>, vector<512x128xbf16>, vector<4x128xf32> -> vector<4x128xf32>
    %12 = arith.addf %6, %11 : vector<4x128xf32>
    %c0_11 = arith.constant 0 : index
    %c1_12 = arith.constant 1 : index
    %c0_13 = arith.constant 0 : index
    %c0_14 = arith.constant 0 : index
    %13 = vector.load %arg1[%c0_11, %c1_12, %c0_13, %c0_14] : memref<1x3x3x512xbf16, #tpu.memory_space<vmem>>, vector<1x2x2x512xbf16>
    %14 = vector.shape_cast %13 : vector<1x2x2x512xbf16> to vector<2x2x512xbf16>
    %15 = vector.shape_cast %14 : vector<2x2x512xbf16> to vector<4x512xbf16>
    %c1024 = arith.constant 1024 : index
    %c0_15 = arith.constant 0 : index
    %16 = vector.load %arg2[%c1024, %c0_15] : memref<2048x128xbf16, #tpu.memory_space<vmem>>, vector<512x128xbf16>
    %cst_16 = arith.constant dense<0.000000e+00> : vector<4x128xf32>
    %17 = tpu.matmul %15, %16, %cst_16 {dimension_numbers = #tpu.dot_dimension_numbers<[1], [0], [0], [1], [0, 0, 1, 1], [], []>} : vector<4x512xbf16>, vector<512x128xbf16>, vector<4x128xf32> -> vector<4x128xf32>
    %18 = arith.addf %12, %17 : vector<4x128xf32>
    %c0_17 = arith.constant 0 : index
    %c1_18 = arith.constant 1 : index
    %c1_19 = arith.constant 1 : index
    %c0_20 = arith.constant 0 : index
    %19 = vector.load %arg1[%c0_17, %c1_18, %c1_19, %c0_20] : memref<1x3x3x512xbf16, #tpu.memory_space<vmem>>, vector<1x2x2x512xbf16>
    %20 = vector.shape_cast %19 : vector<1x2x2x512xbf16> to vector<2x2x512xbf16>
    %21 = vector.shape_cast %20 : vector<2x2x512xbf16> to vector<4x512xbf16>
    %c1536 = arith.constant 1536 : index
    %c0_21 = arith.constant 0 : index
    %22 = vector.load %arg2[%c1536, %c0_21] : memref<2048x128xbf16, #tpu.memory_space<vmem>>, vector<512x128xbf16>
    %cst_22 = arith.constant dense<0.000000e+00> : vector<4x128xf32>
    %23 = tpu.matmul %21, %22, %cst_22 {dimension_numbers = #tpu.dot_dimension_numbers<[1], [0], [0], [1], [0, 0, 1, 1], [], []>} : vector<4x512xbf16>, vector<512x128xbf16>, vector<4x128xf32> -> vector<4x128xf32>
    %24 = arith.addf %18, %23 : vector<4x128xf32>
    %c0_23 = arith.constant 0 : index
    %c0_24 = arith.constant 0 : index
    %25 = vector.load %arg3[%c0_23, %c0_24] : memref<1x128xf32, #tpu.memory_space<vmem>>, vector<1x128xf32>
    %26 = vector.broadcast %25 : vector<1x128xf32> to vector<4x128xf32>
    %27 = arith.addf %24, %26 : vector<4x128xf32>
    %cst_25 = arith.constant 0.000000e+00 : f32
    %28 = vector.broadcast %cst_25 : f32 to vector<4x128xf32>
    %29 = arith.maximumf %27, %28 : vector<4x128xf32>
    %30 = vector.shape_cast %29 : vector<4x128xf32> to vector<2x2x128xf32>
    %31 = arith.truncf %30 : vector<2x2x128xf32> to vector<2x2x128xbf16>
    %c0_26 = arith.constant 0 : index
    %c0_27 = arith.constant 0 : index
    %c0_28 = arith.constant 0 : index
    %c0_29 = arith.constant 0 : index
    %32 = vector.load %arg4[%c0_26, %c0_27, %c0_28, %c0_29] : memref<1x2x2x128xbf16, #tpu.memory_space<vmem>>, vector<1x2x2x128xbf16>
    %33 = vector.shape_cast %32 : vector<1x2x2x128xbf16> to vector<2x2x128xbf16>
    %34 = vector.shape_cast %31 : vector<2x2x128xbf16> to vector<1x2x2x128xbf16>
    tpu.vector_store %arg4[%c0_26, %c0_27, %c0_28, %c0_29], %34 {strides = array<i32>} : memref<1x2x2x128xbf16, #tpu.memory_space<vmem>>, vector<1x2x2x128xbf16>,
    return
  }
  func.func @transform_0(%arg0: i32) -> (i32, i32, i32, i32) {
    %c0_i32 = arith.constant 0 : i32
    %c0_i32_0 = arith.constant 0 : i32
    %c0_i32_1 = arith.constant 0 : i32
    %c0_i32_2 = arith.constant 0 : i32
    return %arg0, %c0_i32, %c0_i32_0, %c0_i32_1 : i32, i32, i32, i32
  }
  func.func @transform_1(%arg0: i32) -> (i32, i32) {
    %c0_i32 = arith.constant 0 : i32
    %c0_i32_0 = arith.constant 0 : i32
    %c0_i32_1 = arith.constant 0 : i32
    return %c0_i32, %c0_i32_0 : i32, i32
  }
  func.func @transform_2(%arg0: i32) -> (i32, i32) {
    %c0_i32 = arith.constant 0 : i32
    %c0_i32_0 = arith.constant 0 : i32
    %c0_i32_1 = arith.constant 0 : i32
    return %c0_i32, %c0_i32_0 : i32, i32
  }
  func.func @transform_3(%arg0: i32) -> (i32, i32, i32, i32) {
    %c0_i32 = arith.constant 0 : i32
    %c0_i32_0 = arith.constant 0 : i32
    %c0_i32_1 = arith.constant 0 : i32
    %c0_i32_2 = arith.constant 0 : i32
    return %arg0, %c0_i32, %c0_i32_0, %c0_i32_1 : i32, i32, i32, i32
  }
}

module attributes {stable_mosaic.version = 11 : i64} {
  func.func @_decoder_kernel(%arg0: i32, %arg1: memref<1x4x4x128xbf16, #tpu.memory_space<vmem>>, %arg2: memref<1x8x128xf32, #tpu.memory_space<vmem>>, %arg3: memref<128x128xbf16, #tpu.memory_space<vmem>>, %arg4: memref<1x128xf32, #tpu.memory_space<vmem>>, %arg5: memref<1152x128xbf16, #tpu.memory_space<vmem>>, %arg6: memref<1x128xf32, #tpu.memory_space<vmem>>, %arg7: memref<128x128xbf16, #tpu.memory_space<vmem>>, %arg8: memref<1x128xf32, #tpu.memory_space<vmem>>, %arg9: memref<1x4x128xf32, #tpu.memory_space<vmem>>) attributes {dimension_semantics = [#tpu.dimension_semantics<parallel>], iteration_bounds = array<i64: 2>, scalar_prefetch = 0 : i64, scratch_operands = 0 : i64, tpu.core_type = #tpu.core_type<tc>, window_params = [{transform_indices = @transform_0, window_bounds = array<i64: 1, 4, 4, 128>}, {transform_indices = @transform_1, window_bounds = array<i64: 1, 8, 128>}, {pipeline_mode = #tpu.pipeline_mode<synchronous>, transform_indices = @transform_2, window_bounds = array<i64: 128, 128>}, {pipeline_mode = #tpu.pipeline_mode<synchronous>, transform_indices = @transform_3, window_bounds = array<i64: 1, 128>}, {pipeline_mode = #tpu.pipeline_mode<synchronous>, transform_indices = @transform_4, window_bounds = array<i64: 1152, 128>}, {pipeline_mode = #tpu.pipeline_mode<synchronous>, transform_indices = @transform_5, window_bounds = array<i64: 1, 128>}, {pipeline_mode = #tpu.pipeline_mode<synchronous>, transform_indices = @transform_6, window_bounds = array<i64: 128, 128>}, {pipeline_mode = #tpu.pipeline_mode<synchronous>, transform_indices = @transform_7, window_bounds = array<i64: 1, 128>}, {transform_indices = @transform_8, window_bounds = array<i64: 1, 4, 128>}]} {
    %c0 = arith.constant 0 : index
    %c0_0 = arith.constant 0 : index
    %c0_1 = arith.constant 0 : index
    %0 = vector.load %arg2[%c0, %c0_0, %c0_1] : memref<1x8x128xf32, #tpu.memory_space<vmem>>, vector<1x1x128xf32>
    %1 = vector.shape_cast %0 : vector<1x1x128xf32> to vector<1x128xf32>
    %2 = arith.truncf %1 : vector<1x128xf32> to vector<1x128xbf16>
    %c0_2 = arith.constant 0 : index
    %c0_3 = arith.constant 0 : index
    %3 = vector.load %arg3[%c0_2, %c0_3] : memref<128x128xbf16, #tpu.memory_space<vmem>>, vector<128x128xbf16>
    %cst = arith.constant dense<0.000000e+00> : vector<1x128xf32>
    %4 = tpu.matmul %2, %3, %cst {dimension_numbers = #tpu.dot_dimension_numbers<[1], [0], [0], [1], [0, 0, 1, 1], [], []>} : vector<1x128xbf16>, vector<128x128xbf16>, vector<1x128xf32> -> vector<1x128xf32>
    %c0_4 = arith.constant 0 : index
    %c0_5 = arith.constant 0 : index
    %5 = vector.load %arg4[%c0_4, %c0_5] : memref<1x128xf32, #tpu.memory_space<vmem>>, vector<1x128xf32>
    %6 = arith.addf %4, %5 : vector<1x128xf32>
    %7 = arith.negf %6 : vector<1x128xf32>
    %8 = math.exp %7 : vector<1x128xf32>
    %cst_6 = arith.constant 1.000000e+00 : f32
    %9 = vector.broadcast %cst_6 : f32 to vector<1x128xf32>
    %10 = arith.addf %9, %8 : vector<1x128xf32>
    %11 = arith.divf %9, %10 : vector<1x128xf32>
    %c0_7 = arith.constant 0 : index
    %c0_8 = arith.constant 0 : index
    %c0_9 = arith.constant 0 : index
    %c0_10 = arith.constant 0 : index
    %12 = vector.load %arg1[%c0_7, %c0_8, %c0_9, %c0_10] : memref<1x4x4x128xbf16, #tpu.memory_space<vmem>>, vector<1x4x4x128xbf16>
    %13 = vector.shape_cast %12 : vector<1x4x4x128xbf16> to vector<4x4x128xbf16>
    %14 = vector.shape_cast %11 : vector<1x128xf32> to vector<1x1x128xf32>
    %15 = arith.truncf %14 : vector<1x1x128xf32> to vector<1x1x128xbf16>
    %16 = vector.broadcast %15 : vector<1x1x128xbf16> to vector<4x4x128xbf16>
    %17 = arith.mulf %13, %16 : vector<4x4x128xbf16>
    %18 = vector.extract_strided_slice %17 {offsets = [0, 0, 0], sizes = [2, 2, 128], strides = [1, 1, 1]} : vector<4x4x128xbf16> to vector<2x2x128xbf16>
    %19 = vector.shape_cast %18 : vector<2x2x128xbf16> to vector<4x128xbf16>
    %20 = vector.extract_strided_slice %17 {offsets = [0, 1, 0], sizes = [2, 2, 128], strides = [1, 1, 1]} : vector<4x4x128xbf16> to vector<2x2x128xbf16>
    %21 = vector.shape_cast %20 : vector<2x2x128xbf16> to vector<4x128xbf16>
    %22 = vector.extract_strided_slice %17 {offsets = [0, 2, 0], sizes = [2, 2, 128], strides = [1, 1, 1]} : vector<4x4x128xbf16> to vector<2x2x128xbf16>
    %23 = vector.shape_cast %22 : vector<2x2x128xbf16> to vector<4x128xbf16>
    %24 = vector.extract_strided_slice %17 {offsets = [1, 0, 0], sizes = [2, 2, 128], strides = [1, 1, 1]} : vector<4x4x128xbf16> to vector<2x2x128xbf16>
    %25 = vector.shape_cast %24 : vector<2x2x128xbf16> to vector<4x128xbf16>
    %26 = vector.extract_strided_slice %17 {offsets = [1, 1, 0], sizes = [2, 2, 128], strides = [1, 1, 1]} : vector<4x4x128xbf16> to vector<2x2x128xbf16>
    %27 = vector.shape_cast %26 : vector<2x2x128xbf16> to vector<4x128xbf16>
    %28 = vector.extract_strided_slice %17 {offsets = [1, 2, 0], sizes = [2, 2, 128], strides = [1, 1, 1]} : vector<4x4x128xbf16> to vector<2x2x128xbf16>
    %29 = vector.shape_cast %28 : vector<2x2x128xbf16> to vector<4x128xbf16>
    %30 = vector.extract_strided_slice %17 {offsets = [2, 0, 0], sizes = [2, 2, 128], strides = [1, 1, 1]} : vector<4x4x128xbf16> to vector<2x2x128xbf16>
    %31 = vector.shape_cast %30 : vector<2x2x128xbf16> to vector<4x128xbf16>
    %32 = vector.extract_strided_slice %17 {offsets = [2, 1, 0], sizes = [2, 2, 128], strides = [1, 1, 1]} : vector<4x4x128xbf16> to vector<2x2x128xbf16>
    %33 = vector.shape_cast %32 : vector<2x2x128xbf16> to vector<4x128xbf16>
    %34 = vector.extract_strided_slice %17 {offsets = [2, 2, 0], sizes = [2, 2, 128], strides = [1, 1, 1]} : vector<4x4x128xbf16> to vector<2x2x128xbf16>
    %35 = vector.shape_cast %34 : vector<2x2x128xbf16> to vector<4x128xbf16>
    %36 = tpu.concatenate %19, %21, %23, %25, %27, %29, %31, %33, %35 in 1 : vector<4x128xbf16>, vector<4x128xbf16>, vector<4x128xbf16>, vector<4x128xbf16>, vector<4x128xbf16>, vector<4x128xbf16>, vector<4x128xbf16>, vector<4x128xbf16>, vector<4x128xbf16> -> vector<4x1152xbf16>
    %c0_11 = arith.constant 0 : index
    %c0_12 = arith.constant 0 : index
    %37 = vector.load %arg5[%c0_11, %c0_12] : memref<1152x128xbf16, #tpu.memory_space<vmem>>, vector<1152x128xbf16>
    %cst_13 = arith.constant dense<0.000000e+00> : vector<4x128xf32>
    %38 = tpu.matmul %36, %37, %cst_13 {dimension_numbers = #tpu.dot_dimension_numbers<[1], [0], [0], [1], [0, 0, 1, 1], [], []>} : vector<4x1152xbf16>, vector<1152x128xbf16>, vector<4x128xf32> -> vector<4x128xf32>
    %c0_14 = arith.constant 0 : index
    %c0_15 = arith.constant 0 : index
    %39 = vector.load %arg6[%c0_14, %c0_15] : memref<1x128xf32, #tpu.memory_space<vmem>>, vector<1x128xf32>
    %40 = vector.broadcast %39 : vector<1x128xf32> to vector<4x128xf32>
    %41 = arith.addf %38, %40 : vector<4x128xf32>
    %cst_16 = arith.constant 0.000000e+00 : f32
    %42 = vector.broadcast %cst_16 : f32 to vector<4x128xf32>
    %43 = arith.maximumf %41, %42 : vector<4x128xf32>
    %44 = arith.truncf %43 : vector<4x128xf32> to vector<4x128xbf16>
    %c0_17 = arith.constant 0 : index
    %c0_18 = arith.constant 0 : index
    %45 = vector.load %arg7[%c0_17, %c0_18] : memref<128x128xbf16, #tpu.memory_space<vmem>>, vector<128x128xbf16>
    %cst_19 = arith.constant dense<0.000000e+00> : vector<4x128xf32>
    %46 = tpu.matmul %44, %45, %cst_19 {dimension_numbers = #tpu.dot_dimension_numbers<[1], [0], [0], [1], [0, 0, 1, 1], [], []>} : vector<4x128xbf16>, vector<128x128xbf16>, vector<4x128xf32> -> vector<4x128xf32>
    %c0_20 = arith.constant 0 : index
    %c0_21 = arith.constant 0 : index
    %47 = vector.load %arg8[%c0_20, %c0_21] : memref<1x128xf32, #tpu.memory_space<vmem>>, vector<1x128xf32>
    %48 = vector.broadcast %47 : vector<1x128xf32> to vector<4x128xf32>
    %49 = arith.addf %46, %48 : vector<4x128xf32>
    %c0_22 = arith.constant 0 : index
    %c0_23 = arith.constant 0 : index
    %c0_24 = arith.constant 0 : index
    %50 = vector.load %arg9[%c0_22, %c0_23, %c0_24] : memref<1x4x128xf32, #tpu.memory_space<vmem>>, vector<1x4x128xf32>
    %51 = vector.shape_cast %50 : vector<1x4x128xf32> to vector<4x128xf32>
    %52 = vector.shape_cast %49 : vector<4x128xf32> to vector<1x4x128xf32>
    tpu.vector_store %arg9[%c0_22, %c0_23, %c0_24], %52 {strides = array<i32>} : memref<1x4x128xf32, #tpu.memory_space<vmem>>, vector<1x4x128xf32>,
    return
  }
  func.func @transform_0(%arg0: i32) -> (i32, i32, i32, i32) {
    %c0_i32 = arith.constant 0 : i32
    %c0_i32_0 = arith.constant 0 : i32
    %c0_i32_1 = arith.constant 0 : i32
    %c0_i32_2 = arith.constant 0 : i32
    return %arg0, %c0_i32, %c0_i32_0, %c0_i32_1 : i32, i32, i32, i32
  }
  func.func @transform_1(%arg0: i32) -> (i32, i32, i32) {
    %c0_i32 = arith.constant 0 : i32
    %c0_i32_0 = arith.constant 0 : i32
    %c0_i32_1 = arith.constant 0 : i32
    return %arg0, %c0_i32, %c0_i32_0 : i32, i32, i32
  }
  func.func @transform_2(%arg0: i32) -> (i32, i32) {
    %c0_i32 = arith.constant 0 : i32
    %c0_i32_0 = arith.constant 0 : i32
    %c0_i32_1 = arith.constant 0 : i32
    return %c0_i32, %c0_i32_0 : i32, i32
  }
  func.func @transform_3(%arg0: i32) -> (i32, i32) {
    %c0_i32 = arith.constant 0 : i32
    %c0_i32_0 = arith.constant 0 : i32
    %c0_i32_1 = arith.constant 0 : i32
    return %c0_i32, %c0_i32_0 : i32, i32
  }
  func.func @transform_4(%arg0: i32) -> (i32, i32) {
    %c0_i32 = arith.constant 0 : i32
    %c0_i32_0 = arith.constant 0 : i32
    %c0_i32_1 = arith.constant 0 : i32
    return %c0_i32, %c0_i32_0 : i32, i32
  }
  func.func @transform_5(%arg0: i32) -> (i32, i32) {
    %c0_i32 = arith.constant 0 : i32
    %c0_i32_0 = arith.constant 0 : i32
    %c0_i32_1 = arith.constant 0 : i32
    return %c0_i32, %c0_i32_0 : i32, i32
  }
  func.func @transform_6(%arg0: i32) -> (i32, i32) {
    %c0_i32 = arith.constant 0 : i32
    %c0_i32_0 = arith.constant 0 : i32
    %c0_i32_1 = arith.constant 0 : i32
    return %c0_i32, %c0_i32_0 : i32, i32
  }
  func.func @transform_7(%arg0: i32) -> (i32, i32) {
    %c0_i32 = arith.constant 0 : i32
    %c0_i32_0 = arith.constant 0 : i32
    %c0_i32_1 = arith.constant 0 : i32
    return %c0_i32, %c0_i32_0 : i32, i32
  }
  func.func @transform_8(%arg0: i32) -> (i32, i32, i32) {
    %c0_i32 = arith.constant 0 : i32
    %c0_i32_0 = arith.constant 0 : i32
    %c0_i32_1 = arith.constant 0 : i32
    return %arg0, %c0_i32, %c0_i32_0 : i32, i32, i32
  }
}

</mosaic_0001>

<llo_original>
// kernel: _lambda_.5
$region0: #{_lambda_.5}
  #allocation0 [shape = 'u32[]', space=smem, size = 0x4, offset = 0x4, fixed_abs, tag = 'smem constant byte address 0x4 - core index']
  #allocation1 [shape = 'u32[144,128]{1,0:T(1,128)}', space=vmem, size = 0x12000, scoped, tag = 'internal scratch']
  %s0 = inlined_call_operand.vmem [shape: bf16[2,9,9,16], index: 0, kind: input, shape index: {}]
  %s1 = inlined_call_operand.vmem [shape: bf16[64,128], index: 1, kind: input, shape index: {}]
  %s2 = inlined_call_operand.vmem [shape: f32[1,128], index: 2, kind: input, shape index: {}]
  %s3 = inlined_call_operand.vmem [shape: bf16[2,8,8,128], index: 3, kind: output, shape index: {}]
  %s4 = sld [smem:[#allocation0]]
  $region45: #{_lambda_.5} parent=0
    _
  %s6 = ssub.s32 1, %s4
  %s7 = scalar_select 0, %s6, %s4
  loop: start=0, step=1, limit=4
  $region2: #{_lambda_.5} parent=0 // loop_pre_header
    _
  $region3: #{_lambda_.5} parent=0 // loop_header
    %s9 = sphi 0, %s13
    %p10 = scmp.ge.s32.totalorder %s9, 4
    %s19 = sphi 0, %s21
    %s22 = sphi 0, %s19
    %s23 = sphi 0, %s22
    %s39 = sphi 0, %s23
    %s43 = sphi 0, %s43
    %s45 = sphi 0, %s43
    %s46 = sphi 0, %s45
    %s60 = sphi 0, %s46
    %s64 = sphi 0, %s64
    %s66 = sphi 0, %s64
    %s67 = sphi 0, %s66
    %s81 = sphi 0, %s67
    %s87 = sphi 0, %s89
    %s90 = sphi 0, %s87
    %s91 = sphi 0, %s90
    %s107 = sphi 0, %s91
  $region4: #{_lambda_.5} parent=0 // loop_header_branch
    %12 = sbr.rel (%p10) target = $region8
  $region5: #{_lambda_.5} parent=0 // loop_body
    %s14 = ssub.s32 %s9, 1
    %s15 = ssub.s32 %s9, 2
    %s16 = sadd.s32 %s9, 1
    %s17 = ssub.s32 %s9, %s16
    %p18 = scmp.eq.s32.totalorder %s17, 0
    %s20 = sadd.s32 %s19, 1
    %s21 = scalar_select %p18, %s19, %s20
    %p24 = pneg %p18
    %p25 = scmp.eq.s32.totalorder %s9, 1
    %p26 = por %p24, %p25
    %p27 = scmp.ne.s32.totalorder %s19, %s22
    %p28 = scmp.eq.s32.totalorder %s9, 0
    %p29 = por %p27, %p28
    %p30 = scmp.ne.s32.totalorder %s19, %s22
    %p31 = scmp.eq.s32.totalorder %s14, 1
    %p32 = por %p30, %p31
    %p33 = scmp.ne.s32.totalorder %s22, %s23
    %p34 = scmp.eq.s32.totalorder %s14, 0
    %p35 = por %p33, %p34
    %p36 = scmp.ne.s32.totalorder %s22, %s23
    %p37 = scmp.eq.s32.totalorder %s15, 1
    %p38 = por %p36, %p37
    %p40 = scmp.ne.s32.totalorder %s23, %s39
    %p41 = scmp.eq.s32.totalorder %s15, 0
    %p42 = por %p40, %p41
    %s44 = sadd.s32 %s43, 1
    %p47 = scmp.eq.s32.totalorder %s9, 1
    %p48 = scmp.ne.s32.totalorder %s43, %s45
    %p49 = scmp.eq.s32.totalorder %s9, 0
    %p50 = por %p48, %p49
    %p51 = scmp.ne.s32.totalorder %s43, %s45
    %p52 = scmp.eq.s32.totalorder %s14, 1
    %p53 = por %p51, %p52
    %p54 = scmp.ne.s32.totalorder %s45, %s46
    %p55 = scmp.eq.s32.totalorder %s14, 0
    %p56 = por %p54, %p55
    %p57 = scmp.ne.s32.totalorder %s45, %s46
    %p58 = scmp.eq.s32.totalorder %s15, 1
    %p59 = por %p57, %p58
    %p61 = scmp.ne.s32.totalorder %s46, %s60
    %p62 = scmp.eq.s32.totalorder %s15, 0
    %p63 = por %p61, %p62
    %s65 = sadd.s32 %s64, 1
    %p68 = scmp.eq.s32.totalorder %s9, 1
    %p69 = scmp.ne.s32.totalorder %s64, %s66
    %p70 = scmp.eq.s32.totalorder %s9, 0
    %p71 = por %p69, %p70
    %p72 = scmp.ne.s32.totalorder %s64, %s66
    %p73 = scmp.eq.s32.totalorder %s14, 1
    %p74 = por %p72, %p73
    %p75 = scmp.ne.s32.totalorder %s66, %s67
    %p76 = scmp.eq.s32.totalorder %s14, 0
    %p77 = por %p75, %p76
    %p78 = scmp.ne.s32.totalorder %s66, %s67
    %p79 = scmp.eq.s32.totalorder %s15, 1
    %p80 = por %p78, %p79
    %p82 = scmp.ne.s32.totalorder %s67, %s81
    %p83 = scmp.eq.s32.totalorder %s15, 0
    %p84 = por %p82, %p83
    %s85 = ssub.s32 %s9, %s16
    %p86 = scmp.eq.s32.totalorder %s85, 0
    %s88 = sadd.s32 %s87, 1
    %s89 = scalar_select %p86, %s87, %s88
    %p92 = pneg %p86
    %p93 = scmp.eq.s32.totalorder %s9, 1
    %p94 = por %p92, %p93
    %p95 = scmp.ne.s32.totalorder %s87, %s90
    %p96 = scmp.eq.s32.totalorder %s9, 0
    %p97 = por %p95, %p96
    %p98 = scmp.ne.s32.totalorder %s87, %s90
    %p99 = scmp.eq.s32.totalorder %s14, 1
    %p100 = por %p98, %p99
    %p101 = scmp.ne.s32.totalorder %s90, %s91
    %p102 = scmp.eq.s32.totalorder %s14, 0
    %p103 = por %p101, %p102
    %p104 = scmp.ne.s32.totalorder %s90, %s91
    %p105 = scmp.eq.s32.totalorder %s15, 1
    %p106 = por %p104, %p105
    %p108 = scmp.ne.s32.totalorder %s91, %s107
    %p109 = scmp.eq.s32.totalorder %s15, 0
    %p110 = por %p108, %p109
    %p111 = scmp.le.s32.totalorder 1, %s9
    %p112 = scmp.lt.s32.totalorder %s9, 3
    %p113 = pnand %p111, %p112
    %p114 = pneg %p113
    // Predicated region
    $region9: #{_lambda_.5} parent=5 // pred_check
      _
    $region10: #{_lambda_.5} parent=5 // pred_check_branch
      %116 = sbr.rel (%p113) target = $region12
    $region11: #{_lambda_.5} parent=5 // pred_region
      %s117 = ssub.s32 %s9, 1
      // Predicated region
      $region13: #{_lambda_.5} parent=11 // pred_check
        %p118 = pneg %p56
      $region14: #{_lambda_.5} parent=11 // pred_check_branch
        %120 = sbr.rel (%p118) target = $region16
      $region15: #{_lambda_.5} parent=11 // pred_region
        _
      $region16: #{_lambda_.5} parent=11 // pred_fallthru
        _
      // Predicated region
      $region17: #{_lambda_.5} parent=11 // pred_check
        %p121 = pneg %p77
      $region18: #{_lambda_.5} parent=11 // pred_check_branch
        %123 = sbr.rel (%p121) target = $region20
      $region19: #{_lambda_.5} parent=11 // pred_region
        _
      $region20: #{_lambda_.5} parent=11 // pred_fallthru
        _
    $region12: #{_lambda_.5} parent=5 // pred_fallthru
      _
    %p124 = scmp.lt.s32.totalorder %s9, 2
    // Predicated region
    $region21: #{_lambda_.5} parent=5 // pred_check
      %p125 = pneg %p124
    $region22: #{_lambda_.5} parent=5 // pred_check_branch
      %127 = sbr.rel (%p125) target = $region24
    $region23: #{_lambda_.5} parent=5 // pred_region
      // Predicated region
      $region25: #{_lambda_.5} parent=23 // pred_check
        %p128 = pneg %p29
      $region26: #{_lambda_.5} parent=23 // pred_check_branch
        %130 = sbr.rel (%p128) target = $region28
      $region27: #{_lambda_.5} parent=23 // pred_region
        %p131 = scmp.lt.s32.totalorder %s9, 1
        %s132 = scalar_select %p131, %s9, 1
        %s133 = smul.addr %s132, 18
        %s134 = smul.addr %s133, 4
        %s135 = scalar_lea.vmem %s0, %s134
      $region28: #{_lambda_.5} parent=23 // pred_fallthru
        _
    $region24: #{_lambda_.5} parent=5 // pred_fallthru
      _
    %p136 = scmp.le.s32.totalorder 1, %s9
    %p137 = scmp.lt.s32.totalorder %s9, 3
    %p138 = pnand %p136, %p137
    %p139 = pneg %p138
    // Predicated region
    $region29: #{_lambda_.5} parent=5 // pred_check
      _
    $region30: #{_lambda_.5} parent=5 // pred_check_branch
      %141 = sbr.rel (%p138) target = $region32
    $region31: #{_lambda_.5} parent=5 // pred_region
      %s142 = ssub.s32 %s9, 1
      %p143 = scmp.lt.s32.totalorder %s14, 1
      %s144 = scalar_select %p143, %s14, 1
      %s145 = smul.addr %s144, 18
      %s146 = smul.addr %s145, 4
      %s147 = scalar_lea.vmem %s0, %s146
      %p148 = pneg %p35
      %p149 = pneg %p32
      %p150 = pneg %p56
      %p151 = pneg %p53
      %p152 = pneg %p77
      %p153 = pneg %p74
      %p154 = pneg %p103
      %p155 = pneg %p100
      %p156 = scmp.lt.s32.totalorder %s14, 1
      %s157 = scalar_select %p156, %s14, 1
      %s158 = smul.addr %s157, 8
      %s159 = smul.addr %s158, 4
      %s160 = scalar_lea.vmem %s3, %s159
      %p161 = scmp.lt.s32.totalorder %s14, 1
      %s162 = scalar_select %p161, %s14, 1
      %s163 = smul.addr %s162, 18
      %s164 = smul.addr %s163, 4
      %s165 = scalar_lea.vmem %s0, %s164
      %p166 = scmp.lt.s32.totalorder %s14, 1
      %s167 = scalar_select %p166, %s14, 1
      %s168 = smul.addr %s167, 8
      %s169 = smul.addr %s168, 4
      %s170 = scalar_lea.vmem %s3, %s169
      %v172 = vld [vmem:[%s165] sm:$0xf]
      %v173 = vld [vmem:[%s165 + $0x8] sm:$0xf]
      %v174 = vld [vmem:[%s165 + $0x10] sm:$0xf]
      %v175 = vld [vmem:[%s165 + $0x18] sm:$0xf]
      %v176 = vld [vmem:[%s165 + $0x20] sm:$0xf]
      %v177 = vld [vmem:[%s165 + $0x28] sm:$0xf]
      %v178 = vld [vmem:[%s165 + $0x30] sm:$0xf]
      %v179 = vld [vmem:[%s165 + $0x38] sm:$0xf]
      %v180 = vld [vmem:[%s1] sm:$0xf]
      %v181 = vld [vmem:[%s1 + $0x4] sm:$0xf]
      %v182 = vld [vmem:[%s165 + $0x4] sm:$0x1]
      %v183 = vld [vmem:[%s165 + $0xc] sm:$0x1]
      %v184 = vld [vmem:[%s165 + $0x14] sm:$0x1]
      %v185 = vld [vmem:[%s165 + $0x1c] sm:$0x1]
      %v186 = vld [vmem:[%s165 + $0x24] sm:$0x1]
      %v187 = vld [vmem:[%s165 + $0x2c] sm:$0x1]
      %v188 = vld [vmem:[%s165 + $0x34] sm:$0x1]
      %v189 = vld [vmem:[%s165 + $0x3c] sm:$0x1]
      %vm190 = vsmask.f32 3328
      %vm191 = vsmask.f32 7440
      %vm192 = vmor %vm190, %vm191
      %v194 = vshrl.u32 %v172, 16
      %v196 = vrot.slane %v194, 4
      %v197 = vshll.u32 %v172, 16
      %v199 = vrot.slane %v197, 5
      %v200 = vor.u32 %v196, %v199
      %v201 = vrot.slane %v200, 4
      %v203 = vshll.u32 %v182, 16
      %v205 = vrot.slane %v203, 5
      %v206 = vsel %vm192, %v201, %v205
      %v208 = vshrl.u32 %v173, 16
      %v210 = vrot.slane %v208, 4
      %v211 = vshll.u32 %v173, 16
      %v213 = vrot.slane %v211, 5
      %v214 = vor.u32 %v210, %v213
      %v215 = vrot.slane %v214, 4
      %v217 = vshll.u32 %v183, 16
      %v219 = vrot.slane %v217, 5
      %v220 = vsel %vm192, %v215, %v219
      %v222 = vshrl.u32 %v174, 16
      %v224 = vrot.slane %v222, 4
      %v225 = vshll.u32 %v174, 16
      %v227 = vrot.slane %v225, 5
      %v228 = vor.u32 %v224, %v227
      %v229 = vrot.slane %v228, 4
      %v231 = vshll.u32 %v184, 16
      %v233 = vrot.slane %v231, 5
      %v234 = vsel %vm192, %v229, %v233
      %v236 = vshrl.u32 %v175, 16
      %v238 = vrot.slane %v236, 4
      %v239 = vshll.u32 %v175, 16
      %v241 = vrot.slane %v239, 5
      %v242 = vor.u32 %v238, %v241
      %v243 = vrot.slane %v242, 4
      %v245 = vshll.u32 %v185, 16
      %v247 = vrot.slane %v245, 5
      %v248 = vsel %vm192, %v243, %v247
      %v250 = vshrl.u32 %v176, 16
      %v252 = vrot.slane %v250, 4
      %v253 = vshll.u32 %v176, 16
      %v255 = vrot.slane %v253, 5
      %v256 = vor.u32 %v252, %v255
      %v257 = vrot.slane %v256, 4
      %v259 = vshll.u32 %v186, 16
      %v261 = vrot.slane %v259, 5
      %v262 = vsel %vm192, %v257, %v261
      %v264 = vshrl.u32 %v177, 16
      %v266 = vrot.slane %v264, 4
      %v267 = vshll.u32 %v177, 16
      %v269 = vrot.slane %v267, 5
      %v270 = vor.u32 %v266, %v269
      %v271 = vrot.slane %v270, 4
      %v273 = vshll.u32 %v187, 16
      %v275 = vrot.slane %v273, 5
      %v276 = vsel %vm192, %v271, %v275
      %v278 = vshrl.u32 %v178, 16
      %v280 = vrot.slane %v278, 4
      %v281 = vshll.u32 %v178, 16
      %v283 = vrot.slane %v281, 5
      %v284 = vor.u32 %v280, %v283
      %v285 = vrot.slane %v284, 4
      %v287 = vshll.u32 %v188, 16
      %v289 = vrot.slane %v287, 5
      %v290 = vsel %vm192, %v285, %v289
      %v292 = vshrl.u32 %v179, 16
      %v294 = vrot.slane %v292, 4
      %v295 = vshll.u32 %v179, 16
      %v297 = vrot.slane %v295, 5
      %v298 = vor.u32 %v294, %v297
      %v299 = vrot.slane %v298, 4
      %v301 = vshll.u32 %v189, 16
      %v303 = vrot.slane %v301, 5
      %v304 = vsel %vm192, %v299, %v303
      %v305 = vld [vmem:[%s1 + $0x8] sm:$0xf]
      %v306 = vld [vmem:[%s1 + $0xc] sm:$0xf]
      %v307 = vunpack.c.l.b16 %v206
      %v308 = vunpack.c.l.b16 %v220
      %v309 = vunpack.c.l.b16 %v234
      %v310 = vunpack.c.l.b16 %v248
      %v311 = vunpack.c.l.b16 %v262
      %v312 = vunpack.c.l.b16 %v276
      %v313 = vunpack.c.l.b16 %v290
      %v314 = vunpack.c.l.b16 %v304
      %v315 = vpack.c.b16 %v308, %v307
      %v316 = vpack.c.b16 %v310, %v309
      %v317 = vpack.c.b16 %v312, %v311
      %v318 = vpack.c.b16 %v314, %v313
      %v321 = vunpack.c.l.b16 %v305
      %v322 = vunpack.c.l.b16 %v306
      %v323 = vpack.c.b16 %v322, %v321
      %vm325 = vcmask 130048
      %v327 = vsel %vm325, %v315, 0
      %v330 = vsel %vm325, %v316, 0
      %v333 = vsel %vm325, %v317, 0
      %v336 = vsel %vm325, %v318, 0
      %338 = vmatprep.subr.bf16.mxu0 0
      %339 = vmatpush1.bf16.msra.mxu0 %v323
      %340 = vmatprep.subr.bf16.mxu0 0
      %341 = vmatpush1.bf16.msra.mxu0 0
      %342 = vmatprep.subr.bf16.mxu0 0
      %343 = vmatpush1.bf16.msra.mxu0 0
      %344 = vmatprep.subr.bf16.mxu0 0
      %345 = vmatpush1.bf16.msra.mxu0 0
      %346 = vmatprep.subr.bf16.mxu0 0
      %347 = vmatpush1.bf16.msra.mxu0 0
      %348 = vmatprep.subr.bf16.mxu0 0
      %349 = vmatpush1.bf16.msra.mxu0 0
      %350 = vmatprep.subr.bf16.mxu0 0
      %351 = vmatpush1.bf16.msra.mxu0 0
      %352 = vmatprep.subr.bf16.mxu0 0
      %353 = vmatpush1.bf16.msra.mxu0 0
      %354 = vmatprep.subr.bf16.mxu0 0
      %355 = vmatpush1.bf16.msra.mxu0 0
      %356 = vmatprep.subr.bf16.mxu0 0
      %357 = vmatpush1.bf16.msra.mxu0 0
      %358 = vmatprep.subr.bf16.mxu0 0
      %359 = vmatpush1.bf16.msra.mxu0 0
      %360 = vmatprep.subr.bf16.mxu0 0
      %361 = vmatpush1.bf16.msra.mxu0 0
      %362 = vmatprep.subr.bf16.mxu0 0
      %363 = vmatpush1.bf16.msra.mxu0 0
      %364 = vmatprep.subr.bf16.mxu0 0
      %365 = vmatpush1.bf16.msra.mxu0 0
      %366 = vmatprep.subr.bf16.mxu0 0
      %367 = vmatpush1.bf16.msra.mxu0 0
      %368 = vmatprep.subr.bf16.mxu0 0
      %369 = vmatpush1.bf16.msra.mxu0 0
      %370 = vmatprep.mubr.bf16.mxu0 0
      %371 = vmatmul.mubr.bf16.gmra.mrb[0].mxu0 %v327
      %v372 = vpop.f32.mrb[0].mxu0
      %v373 = vadd.f32 0.0, %v372
      %v374 = vpop.f32.mrb[0].mxu0
      %v375 = vpop.f32.mrb[0].mxu0
      %v376 = vadd.f32 0.0, %v375
      %v377 = vpop.f32.mrb[0].mxu0
      %378 = vmatprep.mubr.bf16.mxu0 0
      %379 = vmatmul.mubr.bf16.gmra.mrb[0].mxu0 %v330
      %v380 = vpop.f32.mrb[0].mxu0
      %v381 = vadd.f32 0.0, %v380
      %v382 = vpop.f32.mrb[0].mxu0
      %v383 = vpop.f32.mrb[0].mxu0
      %v384 = vadd.f32 0.0, %v383
      %v385 = vpop.f32.mrb[0].mxu0
      %386 = vmatprep.mubr.bf16.mxu0 0
      %387 = vmatmul.mubr.bf16.gmra.mrb[0].mxu0 %v333
      %v388 = vpop.f32.mrb[0].mxu0
      %v389 = vadd.f32 0.0, %v388
      %v390 = vpop.f32.mrb[0].mxu0
      %v391 = vpop.f32.mrb[0].mxu0
      %v392 = vadd.f32 0.0, %v391
      %v393 = vpop.f32.mrb[0].mxu0
      %394 = vmatprep.mubr.bf16.mxu0 0
      %395 = vmatmul.mubr.bf16.gmra.mrb[0].mxu0 %v336
      %v396 = vpop.f32.mrb[0].mxu0
      %v397 = vadd.f32 0.0, %v396
      %v398 = vpop.f32.mrb[0].mxu0
      %v399 = vpop.f32.mrb[0].mxu0
      %v400 = vadd.f32 0.0, %v399
      %v401 = vpop.f32.mrb[0].mxu0
      %402 = vdwg.mxu0
      %v411 = vunpack.c.l.b16 %v172
      %v412 = vunpack.c.l.b16 %v173
      %v413 = vunpack.c.l.b16 %v174
      %v414 = vunpack.c.l.b16 %v175
      %v415 = vunpack.c.l.b16 %v176
      %v416 = vunpack.c.l.b16 %v177
      %v417 = vunpack.c.l.b16 %v178
      %v418 = vunpack.c.l.b16 %v179
      %v419 = vpack.c.b16 %v412, %v411
      %v420 = vpack.c.b16 %v414, %v413
      %v421 = vpack.c.b16 %v416, %v415
      %v422 = vpack.c.b16 %v418, %v417
      %v425 = vunpack.c.l.b16 %v180
      %v426 = vunpack.c.l.b16 %v181
      %v427 = vpack.c.b16 %v426, %v425
      %v430 = vsel %vm325, %v419, 0
      %v433 = vsel %vm325, %v420, 0
      %v436 = vsel %vm325, %v421, 0
      %v439 = vsel %vm325, %v422, 0
      %441 = vmatprep.subr.bf16.mxu0 0
      %442 = vmatpush1.bf16.msra.mxu0 %v427
      %443 = vmatprep.subr.bf16.mxu0 0
      %444 = vmatpush1.bf16.msra.mxu0 0
      %445 = vmatprep.subr.bf16.mxu0 0
      %446 = vmatpush1.bf16.msra.mxu0 0
      %447 = vmatprep.subr.bf16.mxu0 0
      %448 = vmatpush1.bf16.msra.mxu0 0
      %449 = vmatprep.subr.bf16.mxu0 0
      %450 = vmatpush1.bf16.msra.mxu0 0
      %451 = vmatprep.subr.bf16.mxu0 0
      %452 = vmatpush1.bf16.msra.mxu0 0
      %453 = vmatprep.subr.bf16.mxu0 0
      %454 = vmatpush1.bf16.msra.mxu0 0
      %455 = vmatprep.subr.bf16.mxu0 0
      %456 = vmatpush1.bf16.msra.mxu0 0
      %457 = vmatprep.subr.bf16.mxu0 0
      %458 = vmatpush1.bf16.msra.mxu0 0
      %459 = vmatprep.subr.bf16.mxu0 0
      %460 = vmatpush1.bf16.msra.mxu0 0
      %461 = vmatprep.subr.bf16.mxu0 0
      %462 = vmatpush1.bf16.msra.mxu0 0
      %463 = vmatprep.subr.bf16.mxu0 0
      %464 = vmatpush1.bf16.msra.mxu0 0
      %465 = vmatprep.subr.bf16.mxu0 0
      %466 = vmatpush1.bf16.msra.mxu0 0
      %467 = vmatprep.subr.bf16.mxu0 0
      %468 = vmatpush1.bf16.msra.mxu0 0
      %469 = vmatprep.subr.bf16.mxu0 0
      %470 = vmatpush1.bf16.msra.mxu0 0
      %471 = vmatprep.subr.bf16.mxu0 0
      %472 = vmatpush1.bf16.msra.mxu0 0
      %473 = vmatprep.mubr.bf16.mxu0 0
      %474 = vmatmul.mubr.bf16.gmra.mrb[0].mxu0 %v430
      %v475 = vpop.f32.mrb[0].mxu0
      %v476 = vadd.f32 %v373, %v475
      %v477 = vpop.f32.mrb[0].mxu0
      %v478 = vpop.f32.mrb[0].mxu0
      %v479 = vadd.f32 %v376, %v478
      %v480 = vpop.f32.mrb[0].mxu0
      %481 = vmatprep.mubr.bf16.mxu0 0
      %482 = vmatmul.mubr.bf16.gmra.mrb[0].mxu0 %v433
      %v483 = vpop.f32.mrb[0].mxu0
      %v484 = vadd.f32 %v381, %v483
      %v485 = vpop.f32.mrb[0].mxu0
      %v486 = vpop.f32.mrb[0].mxu0
      %v487 = vadd.f32 %v384, %v486
      %v488 = vpop.f32.mrb[0].mxu0
      %489 = vmatprep.mubr.bf16.mxu0 0
      %490 = vmatmul.mubr.bf16.gmra.mrb[0].mxu0 %v436
      %v491 = vpop.f32.mrb[0].mxu0
      %v492 = vadd.f32 %v389, %v491
      %v493 = vpop.f32.mrb[0].mxu0
      %v494 = vpop.f32.mrb[0].mxu0
      %v495 = vadd.f32 %v392, %v494
      %v496 = vpop.f32.mrb[0].mxu0
      %497 = vmatprep.mubr.bf16.mxu0 0
      %498 = vmatmul.mubr.bf16.gmra.mrb[0].mxu0 %v439
      %v499 = vpop.f32.mrb[0].mxu0
      %v500 = vadd.f32 %v397, %v499
      %v501 = vpop.f32.mrb[0].mxu0
      %v502 = vpop.f32.mrb[0].mxu0
      %v503 = vadd.f32 %v400, %v502
      %v504 = vpop.f32.mrb[0].mxu0
      %505 = vdwg.mxu0
      %s506 = scalar_lea.vmem %s165, 8
      %v507 = vld [vmem:[%s506] sm:$0xf]
      %v508 = vld [vmem:[%s506 + $0x8] sm:$0xf]
      %v509 = vld [vmem:[%s506 + $0x10] sm:$0xf]
      %v510 = vld [vmem:[%s506 + $0x18] sm:$0xf]
      %v511 = vld [vmem:[%s506 + $0x20] sm:$0xf]
      %v512 = vld [vmem:[%s506 + $0x28] sm:$0xf]
      %v513 = vld [vmem:[%s506 + $0x30] sm:$0xf]
      %v514 = vld [vmem:[%s506 + $0x38] sm:$0xf]
      %v515 = vld [vmem:[%s1 + $0x10] sm:$0xf]
      %v516 = vld [vmem:[%s1 + $0x14] sm:$0xf]
      %v525 = vunpack.c.l.b16 %v507
      %v526 = vunpack.c.l.b16 %v508
      %v527 = vunpack.c.l.b16 %v509
      %v528 = vunpack.c.l.b16 %v510
      %v529 = vunpack.c.l.b16 %v511
      %v530 = vunpack.c.l.b16 %v512
      %v531 = vunpack.c.l.b16 %v513
      %v532 = vunpack.c.l.b16 %v514
      %v533 = vpack.c.b16 %v526, %v525
      %v534 = vpack.c.b16 %v528, %v527
      %v535 = vpack.c.b16 %v530, %v529
      %v536 = vpack.c.b16 %v532, %v531
      %v539 = vunpack.c.l.b16 %v515
      %v540 = vunpack.c.l.b16 %v516
      %v541 = vpack.c.b16 %v540, %v539
      %v544 = vsel %vm325, %v533, 0
      %v547 = vsel %vm325, %v534, 0
      %v550 = vsel %vm325, %v535, 0
      %v553 = vsel %vm325, %v536, 0
      %555 = vmatprep.subr.bf16.mxu0 0
      %556 = vmatpush1.bf16.msra.mxu0 %v541
      %557 = vmatprep.subr.bf16.mxu0 0
      %558 = vmatpush1.bf16.msra.mxu0 0
      %559 = vmatprep.subr.bf16.mxu0 0
      %560 = vmatpush1.bf16.msra.mxu0 0
      %561 = vmatprep.subr.bf16.mxu0 0
      %562 = vmatpush1.bf16.msra.mxu0 0
      %563 = vmatprep.subr.bf16.mxu0 0
      %564 = vmatpush1.bf16.msra.mxu0 0
      %565 = vmatprep.subr.bf16.mxu0 0
      %566 = vmatpush1.bf16.msra.mxu0 0
      %567 = vmatprep.subr.bf16.mxu0 0
      %568 = vmatpush1.bf16.msra.mxu0 0
      %569 = vmatprep.subr.bf16.mxu0 0
      %570 = vmatpush1.bf16.msra.mxu0 0
      %571 = vmatprep.subr.bf16.mxu0 0
      %572 = vmatpush1.bf16.msra.mxu0 0
      %573 = vmatprep.subr.bf16.mxu0 0
      %574 = vmatpush1.bf16.msra.mxu0 0
      %575 = vmatprep.subr.bf16.mxu0 0
      %576 = vmatpush1.bf16.msra.mxu0 0
      %577 = vmatprep.subr.bf16.mxu0 0
      %578 = vmatpush1.bf16.msra.mxu0 0
      %579 = vmatprep.subr.bf16.mxu0 0
      %580 = vmatpush1.bf16.msra.mxu0 0
      %581 = vmatprep.subr.bf16.mxu0 0
      %582 = vmatpush1.bf16.msra.mxu0 0
      %583 = vmatprep.subr.bf16.mxu0 0
      %584 = vmatpush1.bf16.msra.mxu0 0
      %585 = vmatprep.subr.bf16.mxu0 0
      %586 = vmatpush1.bf16.msra.mxu0 0
      %587 = vmatprep.mubr.bf16.mxu0 0
      %588 = vmatmul.mubr.bf16.gmra.mrb[0].mxu0 %v544
      %v589 = vpop.f32.mrb[0].mxu0
      %v590 = vadd.f32 0.0, %v589
      %v591 = vpop.f32.mrb[0].mxu0
      %v592 = vpop.f32.mrb[0].mxu0
      %v593 = vadd.f32 0.0, %v592
      %v594 = vpop.f32.mrb[0].mxu0
      %595 = vmatprep.mubr.bf16.mxu0 0
      %596 = vmatmul.mubr.bf16.gmra.mrb[0].mxu0 %v547
      %v597 = vpop.f32.mrb[0].mxu0
      %v598 = vadd.f32 0.0, %v597
      %v599 = vpop.f32.mrb[0].mxu0
      %v600 = vpop.f32.mrb[0].mxu0
      %v601 = vadd.f32 0.0, %v600
      %v602 = vpop.f32.mrb[0].mxu0
      %603 = vmatprep.mubr.bf16.mxu0 0
      %604 = vmatmul.mubr.bf16.gmra.mrb[0].mxu0 %v550
      %v605 = vpop.f32.mrb[0].mxu0
      %v606 = vadd.f32 0.0, %v605
      %v607 = vpop.f32.mrb[0].mxu0
      %v608 = vpop.f32.mrb[0].mxu0
      %v609 = vadd.f32 0.0, %v608
      %v610 = vpop.f32.mrb[0].mxu0
      %611 = vmatprep.mubr.bf16.mxu0 0
      %612 = vmatmul.mubr.bf16.gmra.mrb[0].mxu0 %v553
      %v613 = vpop.f32.mrb[0].mxu0
      %v614 = vadd.f32 0.0, %v613
      %v615 = vpop.f32.mrb[0].mxu0
      %v616 = vpop.f32.mrb[0].mxu0
      %v617 = vadd.f32 0.0, %v616
      %v618 = vpop.f32.mrb[0].mxu0
      %619 = vdwg.mxu0
      %v620 = vadd.f32 %v476, %v590
      %v621 = vadd.f32 %v479, %v593
      %v622 = vadd.f32 %v484, %v598
      %v623 = vadd.f32 %v487, %v601
      %v624 = vadd.f32 %v492, %v606
      %v625 = vadd.f32 %v495, %v609
      %v626 = vadd.f32 %v500, %v614
      %v627 = vadd.f32 %v503, %v617
      %v628 = vld [vmem:[%s506] sm:$0xf]
      %v629 = vld [vmem:[%s506 + $0x4] sm:$0x1]
      %v630 = vld [vmem:[%s506 + $0x8] sm:$0xf]
      %v631 = vld [vmem:[%s506 + $0xc] sm:$0x1]
      %v632 = vld [vmem:[%s506 + $0x10] sm:$0xf]
      %v633 = vld [vmem:[%s506 + $0x14] sm:$0x1]
      %v634 = vld [vmem:[%s506 + $0x18] sm:$0xf]
      %v635 = vld [vmem:[%s506 + $0x1c] sm:$0x1]
      %v636 = vld [vmem:[%s506 + $0x20] sm:$0xf]
      %v637 = vld [vmem:[%s506 + $0x24] sm:$0x1]
      %v638 = vld [vmem:[%s506 + $0x28] sm:$0xf]
      %v639 = vld [vmem:[%s506 + $0x2c] sm:$0x1]
      %v640 = vld [vmem:[%s506 + $0x30] sm:$0xf]
      %v641 = vld [vmem:[%s506 + $0x34] sm:$0x1]
      %v642 = vld [vmem:[%s506 + $0x38] sm:$0xf]
      %v643 = vld [vmem:[%s506 + $0x3c] sm:$0x1]
      %v645 = vshrl.u32 %v628, 16
      %v647 = vrot.slane %v645, 4
      %v648 = vshll.u32 %v628, 16
      %v650 = vrot.slane %v648, 5
      %v651 = vor.u32 %v647, %v650
      %v652 = vrot.slane %v651, 4
      %v654 = vshll.u32 %v629, 16
      %v656 = vrot.slane %v654, 5
      %v657 = vsel %vm192, %v652, %v656
      %v659 = vshrl.u32 %v630, 16
      %v661 = vrot.slane %v659, 4
      %v662 = vshll.u32 %v630, 16
      %v664 = vrot.slane %v662, 5
      %v665 = vor.u32 %v661, %v664
      %v666 = vrot.slane %v665, 4
      %v668 = vshll.u32 %v631, 16
      %v670 = vrot.slane %v668, 5
      %v671 = vsel %vm192, %v666, %v670
      %v673 = vshrl.u32 %v632, 16
      %v675 = vrot.slane %v673, 4
      %v676 = vshll.u32 %v632, 16
      %v678 = vrot.slane %v676, 5
      %v679 = vor.u32 %v675, %v678
      %v680 = vrot.slane %v679, 4
      %v682 = vshll.u32 %v633, 16
      %v684 = vrot.slane %v682, 5
      %v685 = vsel %vm192, %v680, %v684
      %v687 = vshrl.u32 %v634, 16
      %v689 = vrot.slane %v687, 4
      %v690 = vshll.u32 %v634, 16
      %v692 = vrot.slane %v690, 5
      %v693 = vor.u32 %v689, %v692
      %v694 = vrot.slane %v693, 4
      %v696 = vshll.u32 %v635, 16
      %v698 = vrot.slane %v696, 5
      %v699 = vsel %vm192, %v694, %v698
      %v701 = vshrl.u32 %v636, 16
      %v703 = vrot.slane %v701, 4
      %v704 = vshll.u32 %v636, 16
      %v706 = vrot.slane %v704, 5
      %v707 = vor.u32 %v703, %v706
      %v708 = vrot.slane %v707, 4
      %v710 = vshll.u32 %v637, 16
      %v712 = vrot.slane %v710, 5
      %v713 = vsel %vm192, %v708, %v712
      %v715 = vshrl.u32 %v638, 16
      %v717 = vrot.slane %v715, 4
      %v718 = vshll.u32 %v638, 16
      %v720 = vrot.slane %v718, 5
      %v721 = vor.u32 %v717, %v720
      %v722 = vrot.slane %v721, 4
      %v724 = vshll.u32 %v639, 16
      %v726 = vrot.slane %v724, 5
      %v727 = vsel %vm192, %v722, %v726
      %v729 = vshrl.u32 %v640, 16
      %v731 = vrot.slane %v729, 4
      %v732 = vshll.u32 %v640, 16
      %v734 = vrot.slane %v732, 5
      %v735 = vor.u32 %v731, %v734
      %v736 = vrot.slane %v735, 4
      %v738 = vshll.u32 %v641, 16
      %v740 = vrot.slane %v738, 5
      %v741 = vsel %vm192, %v736, %v740
      %v743 = vshrl.u32 %v642, 16
      %v745 = vrot.slane %v743, 4
      %v746 = vshll.u32 %v642, 16
      %v748 = vrot.slane %v746, 5
      %v749 = vor.u32 %v745, %v748
      %v750 = vrot.slane %v749, 4
      %v752 = vshll.u32 %v643, 16
      %v754 = vrot.slane %v752, 5
      %v755 = vsel %vm192, %v750, %v754
      %v756 = vld [vmem:[%s1 + $0x18] sm:$0xf]
      %v757 = vld [vmem:[%s1 + $0x1c] sm:$0xf]
      %v758 = vunpack.c.l.b16 %v657
      %v759 = vunpack.c.l.b16 %v671
      %v760 = vunpack.c.l.b16 %v685
      %v761 = vunpack.c.l.b16 %v699
      %v762 = vunpack.c.l.b16 %v713
      %v763 = vunpack.c.l.b16 %v727
      %v764 = vunpack.c.l.b16 %v741
      %v765 = vunpack.c.l.b16 %v755
      %v766 = vpack.c.b16 %v759, %v758
      %v767 = vpack.c.b16 %v761, %v760
      %v768 = vpack.c.b16 %v763, %v762
      %v769 = vpack.c.b16 %v765, %v764
      %v772 = vunpack.c.l.b16 %v756
      %v773 = vunpack.c.l.b16 %v757
      %v774 = vpack.c.b16 %v773, %v772
      %v777 = vsel %vm325, %v766, 0
      %v780 = vsel %vm325, %v767, 0
      %v783 = vsel %vm325, %v768, 0
      %v786 = vsel %vm325, %v769, 0
      %788 = vmatprep.subr.bf16.mxu0 0
      %789 = vmatpush1.bf16.msra.mxu0 %v774
      %790 = vmatprep.subr.bf16.mxu0 0
      %791 = vmatpush1.bf16.msra.mxu0 0
      %792 = vmatprep.subr.bf16.mxu0 0
      %793 = vmatpush1.bf16.msra.mxu0 0
      %794 = vmatprep.subr.bf16.mxu0 0
      %795 = vmatpush1.bf16.msra.mxu0 0
      %796 = vmatprep.subr.bf16.mxu0 0
      %797 = vmatpush1.bf16.msra.mxu0 0
      %798 = vmatprep.subr.bf16.mxu0 0
      %799 = vmatpush1.bf16.msra.mxu0 0
      %800 = vmatprep.subr.bf16.mxu0 0
      %801 = vmatpush1.bf16.msra.mxu0 0
      %802 = vmatprep.subr.bf16.mxu0 0
      %803 = vmatpush1.bf16.msra.mxu0 0
      %804 = vmatprep.subr.bf16.mxu0 0
      %805 = vmatpush1.bf16.msra.mxu0 0
      %806 = vmatprep.subr.bf16.mxu0 0
      %807 = vmatpush1.bf16.msra.mxu0 0
      %808 = vmatprep.subr.bf16.mxu0 0
      %809 = vmatpush1.bf16.msra.mxu0 0
      %810 = vmatprep.subr.bf16.mxu0 0
      %811 = vmatpush1.bf16.msra.mxu0 0
      %812 = vmatprep.subr.bf16.mxu0 0
      %813 = vmatpush1.bf16.msra.mxu0 0
      %814 = vmatprep.subr.bf16.mxu0 0
      %815 = vmatpush1.bf16.msra.mxu0 0
      %816 = vmatprep.subr.bf16.mxu0 0
      %817 = vmatpush1.bf16.msra.mxu0 0
      %818 = vmatprep.subr.bf16.mxu0 0
      %819 = vmatpush1.bf16.msra.mxu0 0
      %820 = vmatprep.mubr.bf16.mxu0 0
      %821 = vmatmul.mubr.bf16.gmra.mrb[0].mxu0 %v777
      %v822 = vpop.f32.mrb[0].mxu0
      %v823 = vadd.f32 0.0, %v822
      %v824 = vpop.f32.mrb[0].mxu0
      %v825 = vpop.f32.mrb[0].mxu0
      %v826 = vadd.f32 0.0, %v825
      %v827 = vpop.f32.mrb[0].mxu0
      %828 = vmatprep.mubr.bf16.mxu0 0
      %829 = vmatmul.mubr.bf16.gmra.mrb[0].mxu0 %v780
      %v830 = vpop.f32.mrb[0].mxu0
      %v831 = vadd.f32 0.0, %v830
      %v832 = vpop.f32.mrb[0].mxu0
      %v833 = vpop.f32.mrb[0].mxu0
      %v834 = vadd.f32 0.0, %v833
      %v835 = vpop.f32.mrb[0].mxu0
      %836 = vmatprep.mubr.bf16.mxu0 0
      %837 = vmatmul.mubr.bf16.gmra.mrb[0].mxu0 %v783
      %v838 = vpop.f32.mrb[0].mxu0
      %v839 = vadd.f32 0.0, %v838
      %v840 = vpop.f32.mrb[0].mxu0
      %v841 = vpop.f32.mrb[0].mxu0
      %v842 = vadd.f32 0.0, %v841
      %v843 = vpop.f32.mrb[0].mxu0
      %844 = vmatprep.mubr.bf16.mxu0 0
      %845 = vmatmul.mubr.bf16.gmra.mrb[0].mxu0 %v786
      %v846 = vpop.f32.mrb[0].mxu0
      %v847 = vadd.f32 0.0, %v846
      %v848 = vpop.f32.mrb[0].mxu0
      %v849 = vpop.f32.mrb[0].mxu0
      %v850 = vadd.f32 0.0, %v849
      %v851 = vpop.f32.mrb[0].mxu0
      %852 = vdwg.mxu0
      %v853 = vadd.f32 %v620, %v823
      %v854 = vadd.f32 %v621, %v826
      %v855 = vadd.f32 %v622, %v831
      %v856 = vadd.f32 %v623, %v834
      %v857 = vadd.f32 %v624, %v839
      %v858 = vadd.f32 %v625, %v842
      %v859 = vadd.f32 %v626, %v847
      %v860 = vadd.f32 %v627, %v850
      %v861 = vld [vmem:[%s2] sm:$0x1]
      %v863 = vlaneseq
      %v864 = vshrl.u32 %v863, 7
      %v865 = vsub.s32 0, %v864
      %v866 = vrot.slane %v861, %v865
      %v868 = vadd.f32 %v853, %v866
      %v869 = vadd.f32 %v854, %v866
      %v870 = vadd.f32 %v855, %v866
      %v871 = vadd.f32 %v856, %v866
      %v872 = vadd.f32 %v857, %v866
      %v873 = vadd.f32 %v858, %v866
      %v874 = vadd.f32 %v859, %v866
      %v875 = vadd.f32 %v860, %v866
      %v876 = vmax.f32 %v868, 0.0
      %v877 = vmax.f32 %v869, 0.0
      %v878 = vmax.f32 %v870, 0.0
      %v879 = vmax.f32 %v871, 0.0
      %v880 = vmax.f32 %v872, 0.0
      %v881 = vmax.f32 %v873, 0.0
      %v882 = vmax.f32 %v874, 0.0
      %v883 = vmax.f32 %v875, 0.0
      %v884 = vpack.c.bf16 %v876, %v876
      %v885 = vpack.c.bf16 %v877, %v877
      %v886 = vpack.c.bf16 %v878, %v878
      %v887 = vpack.c.bf16 %v879, %v879
      %v888 = vpack.c.bf16 %v880, %v880
      %v889 = vpack.c.bf16 %v881, %v881
      %v890 = vpack.c.bf16 %v882, %v882
      %v891 = vpack.c.bf16 %v883, %v883
      %892 = vst [vmem:[%s170] sm:$0xf] %v884
      %893 = vst [vmem:[%s170 + $0x4] sm:$0xf] %v885
      %894 = vst [vmem:[%s170 + $0x8] sm:$0xf] %v886
      %895 = vst [vmem:[%s170 + $0xc] sm:$0xf] %v887
      %896 = vst [vmem:[%s170 + $0x10] sm:$0xf] %v888
      %897 = vst [vmem:[%s170 + $0x14] sm:$0xf] %v889
      %898 = vst [vmem:[%s170 + $0x18] sm:$0xf] %v890
      %899 = vst [vmem:[%s170 + $0x1c] sm:$0xf] %v891
      %p900 = scmp.lt.s32.totalorder %s14, 1
      %s901 = scalar_select %p900, %s14, 1
      %s902 = smul.addr %s901, 8
      %s903 = smul.addr %s902, 4
      %s904 = scalar_lea.vmem %s3, %s903
      // Predicated region
      $region33: #{_lambda_.5} parent=31 // pred_check
        %p905 = pneg %p100
      $region34: #{_lambda_.5} parent=31 // pred_check_branch
        %907 = sbr.rel (%p905) target = $region36
      $region35: #{_lambda_.5} parent=31 // pred_region
        _
      $region36: #{_lambda_.5} parent=31 // pred_fallthru
        _
    $region32: #{_lambda_.5} parent=5 // pred_fallthru
      _
    %p908 = scmp.le.s32.totalorder 2, %s9
    // Predicated region
    $region37: #{_lambda_.5} parent=5 // pred_check
      %p909 = pneg %p908
    $region38: #{_lambda_.5} parent=5 // pred_check_branch
      %911 = sbr.rel (%p909) target = $region40
    $region39: #{_lambda_.5} parent=5 // pred_region
      %s912 = ssub.s32 %s9, 2
      // Predicated region
      $region41: #{_lambda_.5} parent=39 // pred_check
        %p913 = pneg %p106
      $region42: #{_lambda_.5} parent=39 // pred_check_branch
        %915 = sbr.rel (%p913) target = $region44
      $region43: #{_lambda_.5} parent=39 // pred_region
        %p916 = scmp.lt.s32.totalorder %s15, 1
        %s917 = scalar_select %p916, %s15, 1
        %s918 = smul.addr %s917, 8
        %s919 = smul.addr %s918, 4
        %s920 = scalar_lea.vmem %s3, %s919
      $region44: #{_lambda_.5} parent=39 // pred_fallthru
        _
    $region40: #{_lambda_.5} parent=5 // pred_fallthru
      _
  $region6: #{_lambda_.5} parent=0 // loop_footer
    %s13 = sadd.s32 1, %s9
  $region7: #{_lambda_.5} parent=0 // loop_footer_branch
    %8 = sbr.rel target = $region3
  $region8: #{_lambda_.5} parent=0 // loop_exit
    _

// kernel: _lambda_.8
$region0: #{_lambda_.8}
  #allocation0 [shape = 'u32[]', space=smem, size = 0x4, offset = 0x4, fixed_abs, tag = 'smem constant byte address 0x4 - core index']
  #allocation1 [shape = 'u32[144,128]{1,0:T(1,128)}', space=vmem, size = 0x12000, scoped, tag = 'internal scratch']
  %s0 = inlined_call_operand.vmem [shape: bf16[2,2,2,384], index: 0, kind: input, shape index: {}]
  %s1 = inlined_call_operand.vmem [shape: bf16[384,128], index: 1, kind: input, shape index: {}]
  %s2 = inlined_call_operand.vmem [shape: f32[1,128], index: 2, kind: input, shape index: {}]
  %s3 = inlined_call_operand.vmem [shape: bf16[2,2,2,128], index: 3, kind: output, shape index: {0}]
  %s4 = inlined_call_operand.vmem [shape: f32[2,8,128], index: 4, kind: output, shape index: {1}]
  %5 = xla_tuple %s3, %s4
  %s6 = sld [smem:[#allocation0]]
  $region53: #{_lambda_.8} parent=0
    _
  %s8 = ssub.s32 1, %s6
  %s9 = scalar_select 0, %s8, %s6
  loop: start=0, step=1, limit=4
  $region2: #{_lambda_.8} parent=0 // loop_pre_header
    _
  $region3: #{_lambda_.8} parent=0 // loop_header
    %s11 = sphi 0, %s15
    %p12 = scmp.ge.s32.totalorder %s11, 4
    %s21 = sphi 0, %s23
    %s24 = sphi 0, %s21
    %s25 = sphi 0, %s24
    %s41 = sphi 0, %s25
    %s45 = sphi 0, %s45
    %s47 = sphi 0, %s45
    %s48 = sphi 0, %s47
    %s62 = sphi 0, %s48
    %s66 = sphi 0, %s66
    %s68 = sphi 0, %s66
    %s69 = sphi 0, %s68
    %s83 = sphi 0, %s69
    %s89 = sphi 0, %s91
    %s92 = sphi 0, %s89
    %s93 = sphi 0, %s92
    %s109 = sphi 0, %s93
    %s115 = sphi 0, %s117
    %s118 = sphi 0, %s115
    %s119 = sphi 0, %s118
    %s135 = sphi 0, %s119
  $region4: #{_lambda_.8} parent=0 // loop_header_branch
    %14 = sbr.rel (%p12) target = $region8
  $region5: #{_lambda_.8} parent=0 // loop_body
    %s16 = ssub.s32 %s11, 1
    %s17 = ssub.s32 %s11, 2
    %s18 = sadd.s32 %s11, 1
    %s19 = ssub.s32 %s11, %s18
    %p20 = scmp.eq.s32.totalorder %s19, 0
    %s22 = sadd.s32 %s21, 1
    %s23 = scalar_select %p20, %s21, %s22
    %p26 = pneg %p20
    %p27 = scmp.eq.s32.totalorder %s11, 1
    %p28 = por %p26, %p27
    %p29 = scmp.ne.s32.totalorder %s21, %s24
    %p30 = scmp.eq.s32.totalorder %s11, 0
    %p31 = por %p29, %p30
    %p32 = scmp.ne.s32.totalorder %s21, %s24
    %p33 = scmp.eq.s32.totalorder %s16, 1
    %p34 = por %p32, %p33
    %p35 = scmp.ne.s32.totalorder %s24, %s25
    %p36 = scmp.eq.s32.totalorder %s16, 0
    %p37 = por %p35, %p36
    %p38 = scmp.ne.s32.totalorder %s24, %s25
    %p39 = scmp.eq.s32.totalorder %s17, 1
    %p40 = por %p38, %p39
    %p42 = scmp.ne.s32.totalorder %s25, %s41
    %p43 = scmp.eq.s32.totalorder %s17, 0
    %p44 = por %p42, %p43
    %s46 = sadd.s32 %s45, 1
    %p49 = scmp.eq.s32.totalorder %s11, 1
    %p50 = scmp.ne.s32.totalorder %s45, %s47
    %p51 = scmp.eq.s32.totalorder %s11, 0
    %p52 = por %p50, %p51
    %p53 = scmp.ne.s32.totalorder %s45, %s47
    %p54 = scmp.eq.s32.totalorder %s16, 1
    %p55 = por %p53, %p54
    %p56 = scmp.ne.s32.totalorder %s47, %s48
    %p57 = scmp.eq.s32.totalorder %s16, 0
    %p58 = por %p56, %p57
    %p59 = scmp.ne.s32.totalorder %s47, %s48
    %p60 = scmp.eq.s32.totalorder %s17, 1
    %p61 = por %p59, %p60
    %p63 = scmp.ne.s32.totalorder %s48, %s62
    %p64 = scmp.eq.s32.totalorder %s17, 0
    %p65 = por %p63, %p64
    %s67 = sadd.s32 %s66, 1
    %p70 = scmp.eq.s32.totalorder %s11, 1
    %p71 = scmp.ne.s32.totalorder %s66, %s68
    %p72 = scmp.eq.s32.totalorder %s11, 0
    %p73 = por %p71, %p72
    %p74 = scmp.ne.s32.totalorder %s66, %s68
    %p75 = scmp.eq.s32.totalorder %s16, 1
    %p76 = por %p74, %p75
    %p77 = scmp.ne.s32.totalorder %s68, %s69
    %p78 = scmp.eq.s32.totalorder %s16, 0
    %p79 = por %p77, %p78
    %p80 = scmp.ne.s32.totalorder %s68, %s69
    %p81 = scmp.eq.s32.totalorder %s17, 1
    %p82 = por %p80, %p81
    %p84 = scmp.ne.s32.totalorder %s69, %s83
    %p85 = scmp.eq.s32.totalorder %s17, 0
    %p86 = por %p84, %p85
    %s87 = ssub.s32 %s11, %s18
    %p88 = scmp.eq.s32.totalorder %s87, 0
    %s90 = sadd.s32 %s89, 1
    %s91 = scalar_select %p88, %s89, %s90
    %p94 = pneg %p88
    %p95 = scmp.eq.s32.totalorder %s11, 1
    %p96 = por %p94, %p95
    %p97 = scmp.ne.s32.totalorder %s89, %s92
    %p98 = scmp.eq.s32.totalorder %s11, 0
    %p99 = por %p97, %p98
    %p100 = scmp.ne.s32.totalorder %s89, %s92
    %p101 = scmp.eq.s32.totalorder %s16, 1
    %p102 = por %p100, %p101
    %p103 = scmp.ne.s32.totalorder %s92, %s93
    %p104 = scmp.eq.s32.totalorder %s16, 0
    %p105 = por %p103, %p104
    %p106 = scmp.ne.s32.totalorder %s92, %s93
    %p107 = scmp.eq.s32.totalorder %s17, 1
    %p108 = por %p106, %p107
    %p110 = scmp.ne.s32.totalorder %s93, %s109
    %p111 = scmp.eq.s32.totalorder %s17, 0
    %p112 = por %p110, %p111
    %s113 = ssub.s32 %s11, %s18
    %p114 = scmp.eq.s32.totalorder %s113, 0
    %s116 = sadd.s32 %s115, 1
    %s117 = scalar_select %p114, %s115, %s116
    %p120 = pneg %p114
    %p121 = scmp.eq.s32.totalorder %s11, 1
    %p122 = por %p120, %p121
    %p123 = scmp.ne.s32.totalorder %s115, %s118
    %p124 = scmp.eq.s32.totalorder %s11, 0
    %p125 = por %p123, %p124
    %p126 = scmp.ne.s32.totalorder %s115, %s118
    %p127 = scmp.eq.s32.totalorder %s16, 1
    %p128 = por %p126, %p127
    %p129 = scmp.ne.s32.totalorder %s118, %s119
    %p130 = scmp.eq.s32.totalorder %s16, 0
    %p131 = por %p129, %p130
    %p132 = scmp.ne.s32.totalorder %s118, %s119
    %p133 = scmp.eq.s32.totalorder %s17, 1
    %p134 = por %p132, %p133
    %p136 = scmp.ne.s32.totalorder %s119, %s135
    %p137 = scmp.eq.s32.totalorder %s17, 0
    %p138 = por %p136, %p137
    %p139 = scmp.le.s32.totalorder 1, %s11
    %p140 = scmp.lt.s32.totalorder %s11, 3
    %p141 = pnand %p139, %p140
    %p142 = pneg %p141
    // Predicated region
    $region9: #{_lambda_.8} parent=5 // pred_check
      _
    $region10: #{_lambda_.8} parent=5 // pred_check_branch
      %144 = sbr.rel (%p141) target = $region12
    $region11: #{_lambda_.8} parent=5 // pred_region
      %s145 = ssub.s32 %s11, 1
      // Predicated region
      $region13: #{_lambda_.8} parent=11 // pred_check
        %p146 = pneg %p58
      $region14: #{_lambda_.8} parent=11 // pred_check_branch
        %148 = sbr.rel (%p146) target = $region16
      $region15: #{_lambda_.8} parent=11 // pred_region
        _
      $region16: #{_lambda_.8} parent=11 // pred_fallthru
        _
      // Predicated region
      $region17: #{_lambda_.8} parent=11 // pred_check
        %p149 = pneg %p79
      $region18: #{_lambda_.8} parent=11 // pred_check_branch
        %151 = sbr.rel (%p149) target = $region20
      $region19: #{_lambda_.8} parent=11 // pred_region
        _
      $region20: #{_lambda_.8} parent=11 // pred_fallthru
        _
    $region12: #{_lambda_.8} parent=5 // pred_fallthru
      _
    %p152 = scmp.lt.s32.totalorder %s11, 2
    // Predicated region
    $region21: #{_lambda_.8} parent=5 // pred_check
      %p153 = pneg %p152
    $region22: #{_lambda_.8} parent=5 // pred_check_branch
      %155 = sbr.rel (%p153) target = $region24
    $region23: #{_lambda_.8} parent=5 // pred_region
      // Predicated region
      $region25: #{_lambda_.8} parent=23 // pred_check
        %p156 = pneg %p31
      $region26: #{_lambda_.8} parent=23 // pred_check_branch
        %158 = sbr.rel (%p156) target = $region28
      $region27: #{_lambda_.8} parent=23 // pred_region
        %p159 = scmp.lt.s32.totalorder %s11, 1
        %s160 = scalar_select %p159, %s11, 1
        %s161 = smul.addr %s160, 6
        %s162 = scalar_lea.vmem %s0, %s161
      $region28: #{_lambda_.8} parent=23 // pred_fallthru
        _
    $region24: #{_lambda_.8} parent=5 // pred_fallthru
      _
    %p163 = scmp.le.s32.totalorder 1, %s11
    %p164 = scmp.lt.s32.totalorder %s11, 3
    %p165 = pnand %p163, %p164
    %p166 = pneg %p165
    // Predicated region
    $region29: #{_lambda_.8} parent=5 // pred_check
      _
    $region30: #{_lambda_.8} parent=5 // pred_check_branch
      %168 = sbr.rel (%p165) target = $region32
    $region31: #{_lambda_.8} parent=5 // pred_region
      %s169 = ssub.s32 %s11, 1
      %p170 = scmp.lt.s32.totalorder %s16, 1
      %s171 = scalar_select %p170, %s16, 1
      %s172 = smul.addr %s171, 6
      %s173 = scalar_lea.vmem %s0, %s172
      %p174 = pneg %p37
      %p175 = pneg %p34
      %p176 = pneg %p58
      %p177 = pneg %p55
      %p178 = pneg %p79
      %p179 = pneg %p76
      %p180 = pneg %p105
      %p181 = pneg %p102
      %p182 = scmp.lt.s32.totalorder %s16, 1
      %s183 = scalar_select %p182, %s16, 1
      %s184 = smul.addr %s183, 2
      %s185 = scalar_lea.vmem %s3, %s184
      %p186 = pneg %p131
      %p187 = pneg %p128
      %p188 = scmp.lt.s32.totalorder %s16, 1
      %s189 = scalar_select %p188, %s16, 1
      %s190 = smul.addr %s189, 8
      %s191 = scalar_lea.vmem %s4, %s190
      %p192 = scmp.lt.s32.totalorder %s16, 1
      %s193 = scalar_select %p192, %s16, 1
      %s194 = smul.addr %s193, 6
      %s195 = scalar_lea.vmem %s0, %s194
      %p196 = scmp.lt.s32.totalorder %s16, 1
      %s197 = scalar_select %p196, %s16, 1
      %s198 = smul.addr %s197, 2
      %s199 = scalar_lea.vmem %s3, %s198
      %p200 = scmp.lt.s32.totalorder %s16, 1
      %s201 = scalar_select %p200, %s16, 1
      %s202 = smul.addr %s201, 8
      %s203 = scalar_lea.vmem %s4, %s202
      %v205 = vld [vmem:[%s195] sm:$0x7]
      %v206 = vld [vmem:[%s195 + $0x3] sm:$0x7]
      %v207 = vld [vmem:[%s1] sm:$0xf]
      %v208 = vld [vmem:[%s1 + $0x4] sm:$0xf]
      %v209 = vld [vmem:[%s1 + $0x8] sm:$0xf]
      %v210 = vld [vmem:[%s1 + $0xc] sm:$0xf]
      %v211 = vld [vmem:[%s1 + $0x10] sm:$0xf]
      %v212 = vld [vmem:[%s1 + $0x14] sm:$0xf]
      %v213 = vld [vmem:[%s1 + $0x18] sm:$0xf]
      %v214 = vld [vmem:[%s1 + $0x1c] sm:$0xf]
      %v215 = vld [vmem:[%s1 + $0x20] sm:$0xf]
      %v216 = vld [vmem:[%s1 + $0x24] sm:$0xf]
      %v217 = vld [vmem:[%s1 + $0x28] sm:$0xf]
      %v218 = vld [vmem:[%s1 + $0x2c] sm:$0xf]
      %v219 = vld [vmem:[%s1 + $0x30] sm:$0xf]
      %v220 = vld [vmem:[%s1 + $0x34] sm:$0xf]
      %v221 = vld [vmem:[%s1 + $0x38] sm:$0xf]
      %v222 = vld [vmem:[%s1 + $0x3c] sm:$0xf]
      %v223 = vld [vmem:[%s1 + $0x40] sm:$0xf]
      %v224 = vld [vmem:[%s1 + $0x44] sm:$0xf]
      %v225 = vld [vmem:[%s1 + $0x48] sm:$0xf]
      %v226 = vld [vmem:[%s1 + $0x4c] sm:$0xf]
      %v227 = vld [vmem:[%s1 + $0x50] sm:$0xf]
      %v228 = vld [vmem:[%s1 + $0x54] sm:$0xf]
      %v229 = vld [vmem:[%s1 + $0x58] sm:$0xf]
      %v230 = vld [vmem:[%s1 + $0x5c] sm:$0xf]
      %v231 = vld [vmem:[%s1 + $0x60] sm:$0xf]
      %v232 = vld [vmem:[%s1 + $0x64] sm:$0xf]
      %v233 = vld [vmem:[%s1 + $0x68] sm:$0xf]
      %v234 = vld [vmem:[%s1 + $0x6c] sm:$0xf]
      %v235 = vld [vmem:[%s1 + $0x70] sm:$0xf]
      %v236 = vld [vmem:[%s1 + $0x74] sm:$0xf]
      %v237 = vld [vmem:[%s1 + $0x78] sm:$0xf]
      %v238 = vld [vmem:[%s1 + $0x7c] sm:$0xf]
      %v239 = vld [vmem:[%s1 + $0x80] sm:$0xf]
      %v240 = vld [vmem:[%s1 + $0x84] sm:$0xf]
      %v241 = vld [vmem:[%s1 + $0x88] sm:$0xf]
      %v242 = vld [vmem:[%s1 + $0x8c] sm:$0xf]
      %v243 = vld [vmem:[%s1 + $0x90] sm:$0xf]
      %v244 = vld [vmem:[%s1 + $0x94] sm:$0xf]
      %v245 = vld [vmem:[%s1 + $0x98] sm:$0xf]
      %v246 = vld [vmem:[%s1 + $0x9c] sm:$0xf]
      %v247 = vld [vmem:[%s1 + $0xa0] sm:$0xf]
      %v248 = vld [vmem:[%s1 + $0xa4] sm:$0xf]
      %v249 = vld [vmem:[%s1 + $0xa8] sm:$0xf]
      %v250 = vld [vmem:[%s1 + $0xac] sm:$0xf]
      %v251 = vld [vmem:[%s1 + $0xb0] sm:$0xf]
      %v252 = vld [vmem:[%s1 + $0xb4] sm:$0xf]
      %v253 = vld [vmem:[%s1 + $0xb8] sm:$0xf]
      %v254 = vld [vmem:[%s1 + $0xbc] sm:$0xf]
      %v255 = vld [vmem:[%s2] sm:$0x1]
      %v257 = vlaneseq
      %v258 = vshrl.u32 %v257, 7
      %v259 = vsub.s32 0, %v258
      %v260 = vrot.slane %v255, %v259
      %v264 = vcombine.low %v205, %v206
      %v266 = vunpack.c.l.s4 1966171168
      %v267 = vunpack.c.0.s8 %v266
      %v268 = vlaneseq
      %v269 = vshrl.u32 %v268, 7
      %v270 = vsub.s32 %v267, %v269
      %v271 = vrot.slane %v264, %v270
      %v272 = vcombine.high %v271, %v271
      %v274 = vunpack.c.l.s4 1966171168
      %v275 = vunpack.c.0.s8 %v274
      %v276 = vlaneseq
      %v277 = vshrl.u32 %v276, 7
      %v278 = vsub.s32 %v275, %v277
      %v279 = vrot.slane %v271, %v278
      %v281 = vunpack.c.l.s4 1966171168
      %v282 = vunpack.c.0.s8 %v281
      %v283 = vlaneseq
      %v284 = vshrl.u32 %v283, 7
      %v285 = vsub.s32 %v282, %v284
      %v286 = vrot.slane %v272, %v285
      %v287 = vcombine.high %v279, %v279
      %v339 = vunpack.c.l.b16 %v207
      %v340 = vunpack.c.l.b16 %v208
      %v341 = vunpack.c.l.b16 %v209
      %v342 = vunpack.c.l.b16 %v210
      %v343 = vunpack.c.l.b16 %v211
      %v344 = vunpack.c.l.b16 %v212
      %v345 = vunpack.c.l.b16 %v213
      %v346 = vunpack.c.l.b16 %v214
      %v347 = vunpack.c.l.b16 %v215
      %v348 = vunpack.c.l.b16 %v216
      %v349 = vunpack.c.l.b16 %v217
      %v350 = vunpack.c.l.b16 %v218
      %v351 = vunpack.c.l.b16 %v219
      %v352 = vunpack.c.l.b16 %v220
      %v353 = vunpack.c.l.b16 %v221
      %v354 = vunpack.c.l.b16 %v222
      %v355 = vunpack.c.l.b16 %v223
      %v356 = vunpack.c.l.b16 %v224
      %v357 = vunpack.c.l.b16 %v225
      %v358 = vunpack.c.l.b16 %v226
      %v359 = vunpack.c.l.b16 %v227
      %v360 = vunpack.c.l.b16 %v228
      %v361 = vunpack.c.l.b16 %v229
      %v362 = vunpack.c.l.b16 %v230
      %v363 = vunpack.c.l.b16 %v231
      %v364 = vunpack.c.l.b16 %v232
      %v365 = vunpack.c.l.b16 %v233
      %v366 = vunpack.c.l.b16 %v234
      %v367 = vunpack.c.l.b16 %v235
      %v368 = vunpack.c.l.b16 %v236
      %v369 = vunpack.c.l.b16 %v237
      %v370 = vunpack.c.l.b16 %v238
      %v371 = vunpack.c.l.b16 %v239
      %v372 = vunpack.c.l.b16 %v240
      %v373 = vunpack.c.l.b16 %v241
      %v374 = vunpack.c.l.b16 %v242
      %v375 = vunpack.c.l.b16 %v243
      %v376 = vunpack.c.l.b16 %v244
      %v377 = vunpack.c.l.b16 %v245
      %v378 = vunpack.c.l.b16 %v246
      %v379 = vunpack.c.l.b16 %v247
      %v380 = vunpack.c.l.b16 %v248
      %v381 = vunpack.c.l.b16 %v249
      %v382 = vunpack.c.l.b16 %v250
      %v383 = vunpack.c.l.b16 %v251
      %v384 = vunpack.c.l.b16 %v252
      %v385 = vunpack.c.l.b16 %v253
      %v386 = vunpack.c.l.b16 %v254
      %v387 = vpack.c.b16 %v340, %v339
      %v388 = vpack.c.b16 %v342, %v341
      %v389 = vpack.c.b16 %v344, %v343
      %v390 = vpack.c.b16 %v346, %v345
      %v391 = vpack.c.b16 %v348, %v347
      %v392 = vpack.c.b16 %v350, %v349
      %v393 = vpack.c.b16 %v352, %v351
      %v394 = vpack.c.b16 %v354, %v353
      %v395 = vpack.c.b16 %v356, %v355
      %v396 = vpack.c.b16 %v358, %v357
      %v397 = vpack.c.b16 %v360, %v359
      %v398 = vpack.c.b16 %v362, %v361
      %v399 = vpack.c.b16 %v364, %v363
      %v400 = vpack.c.b16 %v366, %v365
      %v401 = vpack.c.b16 %v368, %v367
      %v402 = vpack.c.b16 %v370, %v369
      %v403 = vpack.c.b16 %v372, %v371
      %v404 = vpack.c.b16 %v374, %v373
      %v405 = vpack.c.b16 %v376, %v375
      %v406 = vpack.c.b16 %v378, %v377
      %v407 = vpack.c.b16 %v380, %v379
      %v408 = vpack.c.b16 %v382, %v381
      %v409 = vpack.c.b16 %v384, %v383
      %v410 = vpack.c.b16 %v386, %v385
      %435 = vmatprep.subr.bf16.mxu0 0
      %436 = vmatpush1.bf16.msra.mxu0 %v387
      %437 = vmatprep.subr.bf16.mxu0 0
      %438 = vmatpush1.bf16.msra.mxu0 %v388
      %439 = vmatprep.subr.bf16.mxu0 0
      %440 = vmatpush1.bf16.msra.mxu0 %v389
      %441 = vmatprep.subr.bf16.mxu0 0
      %442 = vmatpush1.bf16.msra.mxu0 %v390
      %443 = vmatprep.subr.bf16.mxu0 0
      %444 = vmatpush1.bf16.msra.mxu0 %v391
      %445 = vmatprep.subr.bf16.mxu0 0
      %446 = vmatpush1.bf16.msra.mxu0 %v392
      %447 = vmatprep.subr.bf16.mxu0 0
      %448 = vmatpush1.bf16.msra.mxu0 %v393
      %449 = vmatprep.subr.bf16.mxu0 0
      %450 = vmatpush1.bf16.msra.mxu0 %v394
      %451 = vmatprep.subr.bf16.mxu0 0
      %452 = vmatpush1.bf16.msra.mxu0 %v395
      %453 = vmatprep.subr.bf16.mxu0 0
      %454 = vmatpush1.bf16.msra.mxu0 %v396
      %455 = vmatprep.subr.bf16.mxu0 0
      %456 = vmatpush1.bf16.msra.mxu0 %v397
      %457 = vmatprep.subr.bf16.mxu0 0
      %458 = vmatpush1.bf16.msra.mxu0 %v398
      %459 = vmatprep.subr.bf16.mxu0 0
      %460 = vmatpush1.bf16.msra.mxu0 %v399
      %461 = vmatprep.subr.bf16.mxu0 0
      %462 = vmatpush1.bf16.msra.mxu0 %v400
      %463 = vmatprep.subr.bf16.mxu0 0
      %464 = vmatpush1.bf16.msra.mxu0 %v401
      %465 = vmatprep.subr.bf16.mxu0 0
      %466 = vmatpush1.bf16.msra.mxu0 %v402
      %467 = vmatprep.mubr.bf16.mxu0 %v286
      %468 = vmatmul.mubr.bf16.gmra.mrb[0].mxu0 %v279
      %v469 = vpop.f32.mrb[0].mxu0
      %v470 = vadd.f32 %v260, %v469
      %v471 = vpop.f32.mrb[0].mxu0
      %v472 = vpop.f32.mrb[0].mxu0
      %v473 = vpop.f32.mrb[0].mxu0
      %474 = vdwg.mxu0
      %475 = vmatprep.subr.bf16.mxu0 0
      %476 = vmatpush1.bf16.msra.mxu0 %v403
      %477 = vmatprep.subr.bf16.mxu0 0
      %478 = vmatpush1.bf16.msra.mxu0 %v404
      %479 = vmatprep.subr.bf16.mxu0 0
      %480 = vmatpush1.bf16.msra.mxu0 %v405
      %481 = vmatprep.subr.bf16.mxu0 0
      %482 = vmatpush1.bf16.msra.mxu0 %v406
      %483 = vmatprep.subr.bf16.mxu0 0
      %484 = vmatpush1.bf16.msra.mxu0 %v407
      %485 = vmatprep.subr.bf16.mxu0 0
      %486 = vmatpush1.bf16.msra.mxu0 %v408
      %487 = vmatprep.subr.bf16.mxu0 0
      %488 = vmatpush1.bf16.msra.mxu0 %v409
      %489 = vmatprep.subr.bf16.mxu0 0
      %490 = vmatpush1.bf16.msra.mxu0 %v410
      %491 = vmatprep.subr.bf16.mxu0 0
      %492 = vmatpush1.bf16.msra.mxu0 0
      %493 = vmatprep.subr.bf16.mxu0 0
      %494 = vmatpush1.bf16.msra.mxu0 0
      %495 = vmatprep.subr.bf16.mxu0 0
      %496 = vmatpush1.bf16.msra.mxu0 0
      %497 = vmatprep.subr.bf16.mxu0 0
      %498 = vmatpush1.bf16.msra.mxu0 0
      %499 = vmatprep.subr.bf16.mxu0 0
      %500 = vmatpush1.bf16.msra.mxu0 0
      %501 = vmatprep.subr.bf16.mxu0 0
      %502 = vmatpush1.bf16.msra.mxu0 0
      %503 = vmatprep.subr.bf16.mxu0 0
      %504 = vmatpush1.bf16.msra.mxu0 0
      %505 = vmatprep.subr.bf16.mxu0 0
      %506 = vmatpush1.bf16.msra.mxu0 0
      %507 = vmatprep.mubr.bf16.mxu0 0
      %508 = vmatmul.mubr.bf16.gmra.mrb[0].mxu0 %v287
      %v509 = vpop.f32.mrb[0].mxu0
      %v510 = vadd.f32 %v470, %v509
      %v511 = vpop.f32.mrb[0].mxu0
      %v512 = vpop.f32.mrb[0].mxu0
      %v513 = vpop.f32.mrb[0].mxu0
      %514 = vdwg.mxu0
      %v515 = vmax.f32 %v510, 0.0
      %v518 = vunpack.c.l.s4 1983009808
      %v519 = vunpack.c.0.s8 %v518
      %v520 = vlaneseq
      %v521 = vshrl.u32 %v520, 7
      %v522 = vsub.s32 %v519, %v521
      %v523 = vrot.slane %v515, %v522
      %v524 = vcombine.high %v523, %v523
      %v527 = vpack.c.bf16 %v523, %v523
      %v528 = vpack.c.bf16 %v524, %v524
      %529 = vst [vmem:[%s199] sm:$0x1] %v527
      %530 = vst [vmem:[%s199 + $0x1] sm:$0x1] %v528
      %vm531 = vcmask 1043456
      %v532 = vsel %vm531, %v515, 0.0
      %v533 = vrot.slane %v532, 4
      %v534 = vadd.f32 %v532, %v533
      %v535 = vrot.slane %v534, 2
      %v536 = vadd.f32 %v534, %v535
      %v537 = vrot.slane %v536, 1
      %v538 = vadd.f32 %v536, %v537
      %v539 = vmul.f32 %v538, 0.25
      %540 = vst [vmem:[%s203] sm:$0xff] %v539
      %p541 = scmp.lt.s32.totalorder %s16, 1
      %s542 = scalar_select %p541, %s16, 1
      %s543 = smul.addr %s542, 2
      %s544 = scalar_lea.vmem %s3, %s543
      %p545 = scmp.lt.s32.totalorder %s16, 1
      %s546 = scalar_select %p545, %s16, 1
      %s547 = smul.addr %s546, 8
      %s548 = scalar_lea.vmem %s4, %s547
      // Predicated region
      $region33: #{_lambda_.8} parent=31 // pred_check
        %p549 = pneg %p102
      $region34: #{_lambda_.8} parent=31 // pred_check_branch
        %551 = sbr.rel (%p549) target = $region36
      $region35: #{_lambda_.8} parent=31 // pred_region
        _
      $region36: #{_lambda_.8} parent=31 // pred_fallthru
        _
      // Predicated region
      $region37: #{_lambda_.8} parent=31 // pred_check
        %p552 = pneg %p128
      $region38: #{_lambda_.8} parent=31 // pred_check_branch
        %554 = sbr.rel (%p552) target = $region40
      $region39: #{_lambda_.8} parent=31 // pred_region
        _
      $region40: #{_lambda_.8} parent=31 // pred_fallthru
        _
    $region32: #{_lambda_.8} parent=5 // pred_fallthru
      _
    %p555 = scmp.le.s32.totalorder 2, %s11
    // Predicated region
    $region41: #{_lambda_.8} parent=5 // pred_check
      %p556 = pneg %p555
    $region42: #{_lambda_.8} parent=5 // pred_check_branch
      %558 = sbr.rel (%p556) target = $region44
    $region43: #{_lambda_.8} parent=5 // pred_region
      %s559 = ssub.s32 %s11, 2
      // Predicated region
      $region45: #{_lambda_.8} parent=43 // pred_check
        %p560 = pneg %p108
      $region46: #{_lambda_.8} parent=43 // pred_check_branch
        %562 = sbr.rel (%p560) target = $region48
      $region47: #{_lambda_.8} parent=43 // pred_region
        %p563 = scmp.lt.s32.totalorder %s17, 1
        %s564 = scalar_select %p563, %s17, 1
        %s565 = smul.addr %s564, 2
        %s566 = scalar_lea.vmem %s3, %s565
      $region48: #{_lambda_.8} parent=43 // pred_fallthru
        _
      // Predicated region
      $region49: #{_lambda_.8} parent=43 // pred_check
        %p567 = pneg %p134
      $region50: #{_lambda_.8} parent=43 // pred_check_branch
        %569 = sbr.rel (%p567) target = $region52
      $region51: #{_lambda_.8} parent=43 // pred_region
        %p570 = scmp.lt.s32.totalorder %s17, 1
        %s571 = scalar_select %p570, %s17, 1
        %s572 = smul.addr %s571, 8
        %s573 = scalar_lea.vmem %s4, %s572
      $region52: #{_lambda_.8} parent=43 // pred_fallthru
        _
    $region44: #{_lambda_.8} parent=5 // pred_fallthru
      _
  $region6: #{_lambda_.8} parent=0 // loop_footer
    %s15 = sadd.s32 1, %s11
  $region7: #{_lambda_.8} parent=0 // loop_footer_branch
    %10 = sbr.rel target = $region3
  $region8: #{_lambda_.8} parent=0 // loop_exit
    _

// kernel: _lambda_.6
$region0: #{_lambda_.6}
  #allocation0 [shape = 'u32[]', space=smem, size = 0x4, offset = 0x4, fixed_abs, tag = 'smem constant byte address 0x4 - core index']
  #allocation1 [shape = 'u32[144,128]{1,0:T(1,128)}', space=vmem, size = 0x12000, scoped, tag = 'internal scratch']
  %s0 = inlined_call_operand.vmem [shape: bf16[2,5,5,512], index: 0, kind: input, shape index: {}]
  %s1 = inlined_call_operand.vmem [shape: bf16[2048,128], index: 1, kind: input, shape index: {}]
  %s2 = inlined_call_operand.vmem [shape: f32[1,128], index: 2, kind: input, shape index: {}]
  %s3 = inlined_call_operand.vmem [shape: bf16[2,4,4,128], index: 3, kind: output, shape index: {}]
  %s4 = sld [smem:[#allocation0]]
  $region45: #{_lambda_.6} parent=0
    _
  %s6 = ssub.s32 1, %s4
  %s7 = scalar_select 0, %s6, %s4
  loop: start=0, step=1, limit=4
  $region2: #{_lambda_.6} parent=0 // loop_pre_header
    _
  $region3: #{_lambda_.6} parent=0 // loop_header
    %s9 = sphi 0, %s13
    %p10 = scmp.ge.s32.totalorder %s9, 4
    %s19 = sphi 0, %s21
    %s22 = sphi 0, %s19
    %s23 = sphi 0, %s22
    %s39 = sphi 0, %s23
    %s43 = sphi 0, %s43
    %s45 = sphi 0, %s43
    %s46 = sphi 0, %s45
    %s60 = sphi 0, %s46
    %s64 = sphi 0, %s64
    %s66 = sphi 0, %s64
    %s67 = sphi 0, %s66
    %s81 = sphi 0, %s67
    %s87 = sphi 0, %s89
    %s90 = sphi 0, %s87
    %s91 = sphi 0, %s90
    %s107 = sphi 0, %s91
  $region4: #{_lambda_.6} parent=0 // loop_header_branch
    %12 = sbr.rel (%p10) target = $region8
  $region5: #{_lambda_.6} parent=0 // loop_body
    %s14 = ssub.s32 %s9, 1
    %s15 = ssub.s32 %s9, 2
    %s16 = sadd.s32 %s9, 1
    %s17 = ssub.s32 %s9, %s16
    %p18 = scmp.eq.s32.totalorder %s17, 0
    %s20 = sadd.s32 %s19, 1
    %s21 = scalar_select %p18, %s19, %s20
    %p24 = pneg %p18
    %p25 = scmp.eq.s32.totalorder %s9, 1
    %p26 = por %p24, %p25
    %p27 = scmp.ne.s32.totalorder %s19, %s22
    %p28 = scmp.eq.s32.totalorder %s9, 0
    %p29 = por %p27, %p28
    %p30 = scmp.ne.s32.totalorder %s19, %s22
    %p31 = scmp.eq.s32.totalorder %s14, 1
    %p32 = por %p30, %p31
    %p33 = scmp.ne.s32.totalorder %s22, %s23
    %p34 = scmp.eq.s32.totalorder %s14, 0
    %p35 = por %p33, %p34
    %p36 = scmp.ne.s32.totalorder %s22, %s23
    %p37 = scmp.eq.s32.totalorder %s15, 1
    %p38 = por %p36, %p37
    %p40 = scmp.ne.s32.totalorder %s23, %s39
    %p41 = scmp.eq.s32.totalorder %s15, 0
    %p42 = por %p40, %p41
    %s44 = sadd.s32 %s43, 1
    %p47 = scmp.eq.s32.totalorder %s9, 1
    %p48 = scmp.ne.s32.totalorder %s43, %s45
    %p49 = scmp.eq.s32.totalorder %s9, 0
    %p50 = por %p48, %p49
    %p51 = scmp.ne.s32.totalorder %s43, %s45
    %p52 = scmp.eq.s32.totalorder %s14, 1
    %p53 = por %p51, %p52
    %p54 = scmp.ne.s32.totalorder %s45, %s46
    %p55 = scmp.eq.s32.totalorder %s14, 0
    %p56 = por %p54, %p55
    %p57 = scmp.ne.s32.totalorder %s45, %s46
    %p58 = scmp.eq.s32.totalorder %s15, 1
    %p59 = por %p57, %p58
    %p61 = scmp.ne.s32.totalorder %s46, %s60
    %p62 = scmp.eq.s32.totalorder %s15, 0
    %p63 = por %p61, %p62
    %s65 = sadd.s32 %s64, 1
    %p68 = scmp.eq.s32.totalorder %s9, 1
    %p69 = scmp.ne.s32.totalorder %s64, %s66
    %p70 = scmp.eq.s32.totalorder %s9, 0
    %p71 = por %p69, %p70
    %p72 = scmp.ne.s32.totalorder %s64, %s66
    %p73 = scmp.eq.s32.totalorder %s14, 1
    %p74 = por %p72, %p73
    %p75 = scmp.ne.s32.totalorder %s66, %s67
    %p76 = scmp.eq.s32.totalorder %s14, 0
    %p77 = por %p75, %p76
    %p78 = scmp.ne.s32.totalorder %s66, %s67
    %p79 = scmp.eq.s32.totalorder %s15, 1
    %p80 = por %p78, %p79
    %p82 = scmp.ne.s32.totalorder %s67, %s81
    %p83 = scmp.eq.s32.totalorder %s15, 0
    %p84 = por %p82, %p83
    %s85 = ssub.s32 %s9, %s16
    %p86 = scmp.eq.s32.totalorder %s85, 0
    %s88 = sadd.s32 %s87, 1
    %s89 = scalar_select %p86, %s87, %s88
    %p92 = pneg %p86
    %p93 = scmp.eq.s32.totalorder %s9, 1
    %p94 = por %p92, %p93
    %p95 = scmp.ne.s32.totalorder %s87, %s90
    %p96 = scmp.eq.s32.totalorder %s9, 0
    %p97 = por %p95, %p96
    %p98 = scmp.ne.s32.totalorder %s87, %s90
    %p99 = scmp.eq.s32.totalorder %s14, 1
    %p100 = por %p98, %p99
    %p101 = scmp.ne.s32.totalorder %s90, %s91
    %p102 = scmp.eq.s32.totalorder %s14, 0
    %p103 = por %p101, %p102
    %p104 = scmp.ne.s32.totalorder %s90, %s91
    %p105 = scmp.eq.s32.totalorder %s15, 1
    %p106 = por %p104, %p105
    %p108 = scmp.ne.s32.totalorder %s91, %s107
    %p109 = scmp.eq.s32.totalorder %s15, 0
    %p110 = por %p108, %p109
    %p111 = scmp.le.s32.totalorder 1, %s9
    %p112 = scmp.lt.s32.totalorder %s9, 3
    %p113 = pnand %p111, %p112
    %p114 = pneg %p113
    // Predicated region
    $region9: #{_lambda_.6} parent=5 // pred_check
      _
    $region10: #{_lambda_.6} parent=5 // pred_check_branch
      %116 = sbr.rel (%p113) target = $region12
    $region11: #{_lambda_.6} parent=5 // pred_region
      %s117 = ssub.s32 %s9, 1
      // Predicated region
      $region13: #{_lambda_.6} parent=11 // pred_check
        %p118 = pneg %p56
      $region14: #{_lambda_.6} parent=11 // pred_check_branch
        %120 = sbr.rel (%p118) target = $region16
      $region15: #{_lambda_.6} parent=11 // pred_region
        _
      $region16: #{_lambda_.6} parent=11 // pred_fallthru
        _
      // Predicated region
      $region17: #{_lambda_.6} parent=11 // pred_check
        %p121 = pneg %p77
      $region18: #{_lambda_.6} parent=11 // pred_check_branch
        %123 = sbr.rel (%p121) target = $region20
      $region19: #{_lambda_.6} parent=11 // pred_region
        _
      $region20: #{_lambda_.6} parent=11 // pred_fallthru
        _
    $region12: #{_lambda_.6} parent=5 // pred_fallthru
      _
    %p124 = scmp.lt.s32.totalorder %s9, 2
    // Predicated region
    $region21: #{_lambda_.6} parent=5 // pred_check
      %p125 = pneg %p124
    $region22: #{_lambda_.6} parent=5 // pred_check_branch
      %127 = sbr.rel (%p125) target = $region24
    $region23: #{_lambda_.6} parent=5 // pred_region
      // Predicated region
      $region25: #{_lambda_.6} parent=23 // pred_check
        %p128 = pneg %p29
      $region26: #{_lambda_.6} parent=23 // pred_check_branch
        %130 = sbr.rel (%p128) target = $region28
      $region27: #{_lambda_.6} parent=23 // pred_region
        %p131 = scmp.lt.s32.totalorder %s9, 1
        %s132 = scalar_select %p131, %s9, 1
        %s133 = smul.addr %s132, 20
        %s134 = smul.addr %s133, 4
        %s135 = scalar_lea.vmem %s0, %s134
      $region28: #{_lambda_.6} parent=23 // pred_fallthru
        _
    $region24: #{_lambda_.6} parent=5 // pred_fallthru
      _
    %p136 = scmp.le.s32.totalorder 1, %s9
    %p137 = scmp.lt.s32.totalorder %s9, 3
    %p138 = pnand %p136, %p137
    %p139 = pneg %p138
    // Predicated region
    $region29: #{_lambda_.6} parent=5 // pred_check
      _
    $region30: #{_lambda_.6} parent=5 // pred_check_branch
      %141 = sbr.rel (%p138) target = $region32
    $region31: #{_lambda_.6} parent=5 // pred_region
      %s142 = ssub.s32 %s9, 1
      %p143 = scmp.lt.s32.totalorder %s14, 1
      %s144 = scalar_select %p143, %s14, 1
      %s145 = smul.addr %s144, 20
      %s146 = smul.addr %s145, 4
      %s147 = scalar_lea.vmem %s0, %s146
      %p148 = pneg %p35
      %p149 = pneg %p32
      %p150 = pneg %p56
      %p151 = pneg %p53
      %p152 = pneg %p77
      %p153 = pneg %p74
      %p154 = pneg %p103
      %p155 = pneg %p100
      %p156 = scmp.lt.s32.totalorder %s14, 1
      %s157 = scalar_select %p156, %s14, 1
      %s158 = smul.addr %s157, 4
      %s159 = smul.addr %s158, 2
      %s160 = scalar_lea.vmem %s3, %s159
      %p161 = scmp.lt.s32.totalorder %s14, 1
      %s162 = scalar_select %p161, %s14, 1
      %s163 = smul.addr %s162, 20
      %s164 = smul.addr %s163, 4
      %s165 = scalar_lea.vmem %s0, %s164
      %p166 = scmp.lt.s32.totalorder %s14, 1
      %s167 = scalar_select %p166, %s14, 1
      %s168 = smul.addr %s167, 4
      %s169 = smul.addr %s168, 2
      %s170 = scalar_lea.vmem %s3, %s169
      %v172 = vld [vmem:[%s165] sm:$0x33]
      %v173 = vld [vmem:[%s165 + $0x8] sm:$0x33]
      %v174 = vld [vmem:[%s165 + $0x10] sm:$0x33]
      %v175 = vld [vmem:[%s165 + $0x18] sm:$0x33]
      %v176 = vld [vmem:[%s165 + $0x20] sm:$0x33]
      %v177 = vld [vmem:[%s165 + $0x28] sm:$0x33]
      %v178 = vld [vmem:[%s165 + $0x30] sm:$0x33]
      %v179 = vld [vmem:[%s165 + $0x38] sm:$0x33]
      %v189 = vunpack.c.l.s4 1983009808
      %v190 = vunpack.c.0.s8 %v189
      %v191 = vlaneseq
      %v192 = vshrl.u32 %v191, 7
      %v193 = vsub.s32 %v190, %v192
      %v194 = vrot.slane %v172, %v193
      %v196 = vunpack.c.l.s4 1983009808
      %v197 = vunpack.c.0.s8 %v196
      %v198 = vlaneseq
      %v199 = vshrl.u32 %v198, 7
      %v200 = vsub.s32 %v197, %v199
      %v201 = vrot.slane %v173, %v200
      %v202 = vcombine.low %v194, %v201
      %v204 = vunpack.c.l.s4 1983009808
      %v205 = vunpack.c.0.s8 %v204
      %v206 = vlaneseq
      %v207 = vshrl.u32 %v206, 7
      %v208 = vsub.s32 %v205, %v207
      %v209 = vrot.slane %v174, %v208
      %v211 = vunpack.c.l.s4 1983009808
      %v212 = vunpack.c.0.s8 %v211
      %v213 = vlaneseq
      %v214 = vshrl.u32 %v213, 7
      %v215 = vsub.s32 %v212, %v214
      %v216 = vrot.slane %v175, %v215
      %v217 = vcombine.low %v209, %v216
      %v219 = vunpack.c.l.s4 1983009808
      %v220 = vunpack.c.0.s8 %v219
      %v221 = vlaneseq
      %v222 = vshrl.u32 %v221, 7
      %v223 = vsub.s32 %v220, %v222
      %v224 = vrot.slane %v176, %v223
      %v226 = vunpack.c.l.s4 1983009808
      %v227 = vunpack.c.0.s8 %v226
      %v228 = vlaneseq
      %v229 = vshrl.u32 %v228, 7
      %v230 = vsub.s32 %v227, %v229
      %v231 = vrot.slane %v177, %v230
      %v232 = vcombine.low %v224, %v231
      %v234 = vunpack.c.l.s4 1983009808
      %v235 = vunpack.c.0.s8 %v234
      %v236 = vlaneseq
      %v237 = vshrl.u32 %v236, 7
      %v238 = vsub.s32 %v235, %v237
      %v239 = vrot.slane %v178, %v238
      %v241 = vunpack.c.l.s4 1983009808
      %v242 = vunpack.c.0.s8 %v241
      %v243 = vlaneseq
      %v244 = vshrl.u32 %v243, 7
      %v245 = vsub.s32 %v242, %v244
      %v246 = vrot.slane %v179, %v245
      %v247 = vcombine.low %v239, %v246
      %v248 = vld [vmem:[%s1] sm:$0xf]
      %v249 = vld [vmem:[%s1 + $0x4] sm:$0xf]
      %v250 = vld [vmem:[%s1 + $0x8] sm:$0xf]
      %v251 = vld [vmem:[%s1 + $0xc] sm:$0xf]
      %v252 = vld [vmem:[%s1 + $0x10] sm:$0xf]
      %v253 = vld [vmem:[%s1 + $0x14] sm:$0xf]
      %v254 = vld [vmem:[%s1 + $0x18] sm:$0xf]
      %v255 = vld [vmem:[%s1 + $0x1c] sm:$0xf]
      %v256 = vld [vmem:[%s1 + $0x20] sm:$0xf]
      %v257 = vld [vmem:[%s1 + $0x24] sm:$0xf]
      %v258 = vld [vmem:[%s1 + $0x28] sm:$0xf]
      %v259 = vld [vmem:[%s1 + $0x2c] sm:$0xf]
      %v260 = vld [vmem:[%s1 + $0x30] sm:$0xf]
      %v261 = vld [vmem:[%s1 + $0x34] sm:$0xf]
      %v262 = vld [vmem:[%s1 + $0x38] sm:$0xf]
      %v263 = vld [vmem:[%s1 + $0x3c] sm:$0xf]
      %v264 = vld [vmem:[%s1 + $0x40] sm:$0xf]
      %v265 = vld [vmem:[%s1 + $0x44] sm:$0xf]
      %v266 = vld [vmem:[%s1 + $0x48] sm:$0xf]
      %v267 = vld [vmem:[%s1 + $0x4c] sm:$0xf]
      %v268 = vld [vmem:[%s1 + $0x50] sm:$0xf]
      %v269 = vld [vmem:[%s1 + $0x54] sm:$0xf]
      %v270 = vld [vmem:[%s1 + $0x58] sm:$0xf]
      %v271 = vld [vmem:[%s1 + $0x5c] sm:$0xf]
      %v272 = vld [vmem:[%s1 + $0x60] sm:$0xf]
      %v273 = vld [vmem:[%s1 + $0x64] sm:$0xf]
      %v274 = vld [vmem:[%s1 + $0x68] sm:$0xf]
      %v275 = vld [vmem:[%s1 + $0x6c] sm:$0xf]
      %v276 = vld [vmem:[%s1 + $0x70] sm:$0xf]
      %v277 = vld [vmem:[%s1 + $0x74] sm:$0xf]
      %v278 = vld [vmem:[%s1 + $0x78] sm:$0xf]
      %v279 = vld [vmem:[%s1 + $0x7c] sm:$0xf]
      %v280 = vld [vmem:[%s1 + $0x80] sm:$0xf]
      %v281 = vld [vmem:[%s1 + $0x84] sm:$0xf]
      %v282 = vld [vmem:[%s1 + $0x88] sm:$0xf]
      %v283 = vld [vmem:[%s1 + $0x8c] sm:$0xf]
      %v284 = vld [vmem:[%s1 + $0x90] sm:$0xf]
      %v285 = vld [vmem:[%s1 + $0x94] sm:$0xf]
      %v286 = vld [vmem:[%s1 + $0x98] sm:$0xf]
      %v287 = vld [vmem:[%s1 + $0x9c] sm:$0xf]
      %v288 = vld [vmem:[%s1 + $0xa0] sm:$0xf]
      %v289 = vld [vmem:[%s1 + $0xa4] sm:$0xf]
      %v290 = vld [vmem:[%s1 + $0xa8] sm:$0xf]
      %v291 = vld [vmem:[%s1 + $0xac] sm:$0xf]
      %v292 = vld [vmem:[%s1 + $0xb0] sm:$0xf]
      %v293 = vld [vmem:[%s1 + $0xb4] sm:$0xf]
      %v294 = vld [vmem:[%s1 + $0xb8] sm:$0xf]
      %v295 = vld [vmem:[%s1 + $0xbc] sm:$0xf]
      %v296 = vld [vmem:[%s1 + $0xc0] sm:$0xf]
      %v297 = vld [vmem:[%s1 + $0xc4] sm:$0xf]
      %v298 = vld [vmem:[%s1 + $0xc8] sm:$0xf]
      %v299 = vld [vmem:[%s1 + $0xcc] sm:$0xf]
      %v300 = vld [vmem:[%s1 + $0xd0] sm:$0xf]
      %v301 = vld [vmem:[%s1 + $0xd4] sm:$0xf]
      %v302 = vld [vmem:[%s1 + $0xd8] sm:$0xf]
      %v303 = vld [vmem:[%s1 + $0xdc] sm:$0xf]
      %v304 = vld [vmem:[%s1 + $0xe0] sm:$0xf]
      %v305 = vld [vmem:[%s1 + $0xe4] sm:$0xf]
      %v306 = vld [vmem:[%s1 + $0xe8] sm:$0xf]
      %v307 = vld [vmem:[%s1 + $0xec] sm:$0xf]
      %v308 = vld [vmem:[%s1 + $0xf0] sm:$0xf]
      %v309 = vld [vmem:[%s1 + $0xf4] sm:$0xf]
      %v310 = vld [vmem:[%s1 + $0xf8] sm:$0xf]
      %v311 = vld [vmem:[%s1 + $0xfc] sm:$0xf]
      %v312 = vld [vmem:[%s165] sm:$0x77]
      %v313 = vld [vmem:[%s165 + $0x8] sm:$0x77]
      %v314 = vld [vmem:[%s165 + $0x10] sm:$0x77]
      %v315 = vld [vmem:[%s165 + $0x18] sm:$0x77]
      %v316 = vld [vmem:[%s165 + $0x20] sm:$0x77]
      %v317 = vld [vmem:[%s165 + $0x28] sm:$0x77]
      %v318 = vld [vmem:[%s165 + $0x30] sm:$0x77]
      %v319 = vld [vmem:[%s165 + $0x38] sm:$0x77]
      %v329 = vunpack.c.l.s4 1983009808
      %v330 = vunpack.c.0.s8 %v329
      %v331 = vlaneseq
      %v332 = vshrl.u32 %v331, 7
      %v333 = vsub.s32 %v330, %v332
      %v334 = vrot.slane %v312, %v333
      %v336 = vunpack.c.l.s4 1983009808
      %v337 = vunpack.c.0.s8 %v336
      %v338 = vlaneseq
      %v339 = vshrl.u32 %v338, 7
      %v340 = vsub.s32 %v337, %v339
      %v341 = vrot.slane %v313, %v340
      %v342 = vcombine.low %v334, %v341
      %v343 = vcombine.high %v334, %v341
      %v345 = vunpack.c.l.s4 1983009808
      %v346 = vunpack.c.0.s8 %v345
      %v347 = vlaneseq
      %v348 = vshrl.u32 %v347, 7
      %v349 = vsub.s32 %v346, %v348
      %v350 = vrot.slane %v314, %v349
      %v352 = vunpack.c.l.s4 1983009808
      %v353 = vunpack.c.0.s8 %v352
      %v354 = vlaneseq
      %v355 = vshrl.u32 %v354, 7
      %v356 = vsub.s32 %v353, %v355
      %v357 = vrot.slane %v315, %v356
      %v358 = vcombine.low %v350, %v357
      %v359 = vcombine.high %v350, %v357
      %v361 = vunpack.c.l.s4 1983009808
      %v362 = vunpack.c.0.s8 %v361
      %v363 = vlaneseq
      %v364 = vshrl.u32 %v363, 7
      %v365 = vsub.s32 %v362, %v364
      %v366 = vrot.slane %v316, %v365
      %v368 = vunpack.c.l.s4 1983009808
      %v369 = vunpack.c.0.s8 %v368
      %v370 = vlaneseq
      %v371 = vshrl.u32 %v370, 7
      %v372 = vsub.s32 %v369, %v371
      %v373 = vrot.slane %v317, %v372
      %v374 = vcombine.low %v366, %v373
      %v375 = vcombine.high %v366, %v373
      %v377 = vunpack.c.l.s4 1983009808
      %v378 = vunpack.c.0.s8 %v377
      %v379 = vlaneseq
      %v380 = vshrl.u32 %v379, 7
      %v381 = vsub.s32 %v378, %v380
      %v382 = vrot.slane %v318, %v381
      %v384 = vunpack.c.l.s4 1983009808
      %v385 = vunpack.c.0.s8 %v384
      %v386 = vlaneseq
      %v387 = vshrl.u32 %v386, 7
      %v388 = vsub.s32 %v385, %v387
      %v389 = vrot.slane %v319, %v388
      %v390 = vcombine.low %v382, %v389
      %v391 = vcombine.high %v382, %v389
      %vm392 = vsmask.f32 1280
      %vm393 = vsmask.f32 3336
      %vm394 = vmor %vm392, %vm393
      %vm395 = vsmask.f32 5392
      %vm396 = vmor %vm394, %vm395
      %vm397 = vsmask.f32 7448
      %vm398 = vmor %vm396, %vm397
      %v400 = vshrl.u32 %v342, 16
      %v402 = vrot.slane %v400, 6
      %v403 = vshll.u32 %v342, 16
      %v405 = vrot.slane %v403, 7
      %v406 = vor.u32 %v402, %v405
      %v407 = vrot.slane %v406, 2
      %v409 = vshll.u32 %v343, 16
      %v411 = vrot.slane %v409, 7
      %v412 = vsel %vm398, %v407, %v411
      %v414 = vshrl.u32 %v358, 16
      %v416 = vrot.slane %v414, 6
      %v417 = vshll.u32 %v358, 16
      %v419 = vrot.slane %v417, 7
      %v420 = vor.u32 %v416, %v419
      %v421 = vrot.slane %v420, 2
      %v423 = vshll.u32 %v359, 16
      %v425 = vrot.slane %v423, 7
      %v426 = vsel %vm398, %v421, %v425
      %v428 = vshrl.u32 %v374, 16
      %v430 = vrot.slane %v428, 6
      %v431 = vshll.u32 %v374, 16
      %v433 = vrot.slane %v431, 7
      %v434 = vor.u32 %v430, %v433
      %v435 = vrot.slane %v434, 2
      %v437 = vshll.u32 %v375, 16
      %v439 = vrot.slane %v437, 7
      %v440 = vsel %vm398, %v435, %v439
      %v442 = vshrl.u32 %v390, 16
      %v444 = vrot.slane %v442, 6
      %v445 = vshll.u32 %v390, 16
      %v447 = vrot.slane %v445, 7
      %v448 = vor.u32 %v444, %v447
      %v449 = vrot.slane %v448, 2
      %v451 = vshll.u32 %v391, 16
      %v453 = vrot.slane %v451, 7
      %v454 = vsel %vm398, %v449, %v453
      %v455 = vld [vmem:[%s1 + $0x100] sm:$0xf]
      %v456 = vld [vmem:[%s1 + $0x104] sm:$0xf]
      %v457 = vld [vmem:[%s1 + $0x108] sm:$0xf]
      %v458 = vld [vmem:[%s1 + $0x10c] sm:$0xf]
      %v459 = vld [vmem:[%s1 + $0x110] sm:$0xf]
      %v460 = vld [vmem:[%s1 + $0x114] sm:$0xf]
      %v461 = vld [vmem:[%s1 + $0x118] sm:$0xf]
      %v462 = vld [vmem:[%s1 + $0x11c] sm:$0xf]
      %v463 = vld [vmem:[%s1 + $0x120] sm:$0xf]
      %v464 = vld [vmem:[%s1 + $0x124] sm:$0xf]
      %v465 = vld [vmem:[%s1 + $0x128] sm:$0xf]
      %v466 = vld [vmem:[%s1 + $0x12c] sm:$0xf]
      %v467 = vld [vmem:[%s1 + $0x130] sm:$0xf]
      %v468 = vld [vmem:[%s1 + $0x134] sm:$0xf]
      %v469 = vld [vmem:[%s1 + $0x138] sm:$0xf]
      %v470 = vld [vmem:[%s1 + $0x13c] sm:$0xf]
      %v471 = vld [vmem:[%s1 + $0x140] sm:$0xf]
      %v472 = vld [vmem:[%s1 + $0x144] sm:$0xf]
      %v473 = vld [vmem:[%s1 + $0x148] sm:$0xf]
      %v474 = vld [vmem:[%s1 + $0x14c] sm:$0xf]
      %v475 = vld [vmem:[%s1 + $0x150] sm:$0xf]
      %v476 = vld [vmem:[%s1 + $0x154] sm:$0xf]
      %v477 = vld [vmem:[%s1 + $0x158] sm:$0xf]
      %v478 = vld [vmem:[%s1 + $0x15c] sm:$0xf]
      %v479 = vld [vmem:[%s1 + $0x160] sm:$0xf]
      %v480 = vld [vmem:[%s1 + $0x164] sm:$0xf]
      %v481 = vld [vmem:[%s1 + $0x168] sm:$0xf]
      %v482 = vld [vmem:[%s1 + $0x16c] sm:$0xf]
      %v483 = vld [vmem:[%s1 + $0x170] sm:$0xf]
      %v484 = vld [vmem:[%s1 + $0x174] sm:$0xf]
      %v485 = vld [vmem:[%s1 + $0x178] sm:$0xf]
      %v486 = vld [vmem:[%s1 + $0x17c] sm:$0xf]
      %v487 = vld [vmem:[%s1 + $0x180] sm:$0xf]
      %v488 = vld [vmem:[%s1 + $0x184] sm:$0xf]
      %v489 = vld [vmem:[%s1 + $0x188] sm:$0xf]
      %v490 = vld [vmem:[%s1 + $0x18c] sm:$0xf]
      %v491 = vld [vmem:[%s1 + $0x190] sm:$0xf]
      %v492 = vld [vmem:[%s1 + $0x194] sm:$0xf]
      %v493 = vld [vmem:[%s1 + $0x198] sm:$0xf]
      %v494 = vld [vmem:[%s1 + $0x19c] sm:$0xf]
      %v495 = vld [vmem:[%s1 + $0x1a0] sm:$0xf]
      %v496 = vld [vmem:[%s1 + $0x1a4] sm:$0xf]
      %v497 = vld [vmem:[%s1 + $0x1a8] sm:$0xf]
      %v498 = vld [vmem:[%s1 + $0x1ac] sm:$0xf]
      %v499 = vld [vmem:[%s1 + $0x1b0] sm:$0xf]
      %v500 = vld [vmem:[%s1 + $0x1b4] sm:$0xf]
      %v501 = vld [vmem:[%s1 + $0x1b8] sm:$0xf]
      %v502 = vld [vmem:[%s1 + $0x1bc] sm:$0xf]
      %v503 = vld [vmem:[%s1 + $0x1c0] sm:$0xf]
      %v504 = vld [vmem:[%s1 + $0x1c4] sm:$0xf]
      %v505 = vld [vmem:[%s1 + $0x1c8] sm:$0xf]
      %v506 = vld [vmem:[%s1 + $0x1cc] sm:$0xf]
      %v507 = vld [vmem:[%s1 + $0x1d0] sm:$0xf]
      %v508 = vld [vmem:[%s1 + $0x1d4] sm:$0xf]
      %v509 = vld [vmem:[%s1 + $0x1d8] sm:$0xf]
      %v510 = vld [vmem:[%s1 + $0x1dc] sm:$0xf]
      %v511 = vld [vmem:[%s1 + $0x1e0] sm:$0xf]
      %v512 = vld [vmem:[%s1 + $0x1e4] sm:$0xf]
      %v513 = vld [vmem:[%s1 + $0x1e8] sm:$0xf]
      %v514 = vld [vmem:[%s1 + $0x1ec] sm:$0xf]
      %v515 = vld [vmem:[%s1 + $0x1f0] sm:$0xf]
      %v516 = vld [vmem:[%s1 + $0x1f4] sm:$0xf]
      %v517 = vld [vmem:[%s1 + $0x1f8] sm:$0xf]
      %v518 = vld [vmem:[%s1 + $0x1fc] sm:$0xf]
      %v519 = vcombine.low %v412, %v426
      %v520 = vcombine.high %v412, %v426
      %v521 = vcombine.low %v440, %v454
      %v522 = vcombine.high %v440, %v454
      %v524 = vunpack.c.l.s4 1983009808
      %v525 = vunpack.c.0.s8 %v524
      %v526 = vlaneseq
      %v527 = vshrl.u32 %v526, 7
      %v528 = vsub.s32 %v525, %v527
      %v529 = vrot.slane %v519, %v528
      %v531 = vunpack.c.l.s4 1983009808
      %v532 = vunpack.c.0.s8 %v531
      %v533 = vlaneseq
      %v534 = vshrl.u32 %v533, 7
      %v535 = vsub.s32 %v532, %v534
      %v536 = vrot.slane %v520, %v535
      %v538 = vunpack.c.l.s4 1983009808
      %v539 = vunpack.c.0.s8 %v538
      %v540 = vlaneseq
      %v541 = vshrl.u32 %v540, 7
      %v542 = vsub.s32 %v539, %v541
      %v543 = vrot.slane %v521, %v542
      %v545 = vunpack.c.l.s4 1983009808
      %v546 = vunpack.c.0.s8 %v545
      %v547 = vlaneseq
      %v548 = vshrl.u32 %v547, 7
      %v549 = vsub.s32 %v546, %v548
      %v550 = vrot.slane %v522, %v549
      %v551 = vcombine.low %v529, %v543
      %v552 = vcombine.high %v529, %v543
      %v553 = vcombine.low %v536, %v550
      %v554 = vcombine.high %v536, %v550
      %v623 = vunpack.c.l.b16 %v455
      %v624 = vunpack.c.l.b16 %v456
      %v625 = vunpack.c.l.b16 %v457
      %v626 = vunpack.c.l.b16 %v458
      %v627 = vunpack.c.l.b16 %v459
      %v628 = vunpack.c.l.b16 %v460
      %v629 = vunpack.c.l.b16 %v461
      %v630 = vunpack.c.l.b16 %v462
      %v631 = vunpack.c.l.b16 %v463
      %v632 = vunpack.c.l.b16 %v464
      %v633 = vunpack.c.l.b16 %v465
      %v634 = vunpack.c.l.b16 %v466
      %v635 = vunpack.c.l.b16 %v467
      %v636 = vunpack.c.l.b16 %v468
      %v637 = vunpack.c.l.b16 %v469
      %v638 = vunpack.c.l.b16 %v470
      %v639 = vunpack.c.l.b16 %v471
      %v640 = vunpack.c.l.b16 %v472
      %v641 = vunpack.c.l.b16 %v473
      %v642 = vunpack.c.l.b16 %v474
      %v643 = vunpack.c.l.b16 %v475
      %v644 = vunpack.c.l.b16 %v476
      %v645 = vunpack.c.l.b16 %v477
      %v646 = vunpack.c.l.b16 %v478
      %v647 = vunpack.c.l.b16 %v479
      %v648 = vunpack.c.l.b16 %v480
      %v649 = vunpack.c.l.b16 %v481
      %v650 = vunpack.c.l.b16 %v482
      %v651 = vunpack.c.l.b16 %v483
      %v652 = vunpack.c.l.b16 %v484
      %v653 = vunpack.c.l.b16 %v485
      %v654 = vunpack.c.l.b16 %v486
      %v655 = vunpack.c.l.b16 %v487
      %v656 = vunpack.c.l.b16 %v488
      %v657 = vunpack.c.l.b16 %v489
      %v658 = vunpack.c.l.b16 %v490
      %v659 = vunpack.c.l.b16 %v491
      %v660 = vunpack.c.l.b16 %v492
      %v661 = vunpack.c.l.b16 %v493
      %v662 = vunpack.c.l.b16 %v494
      %v663 = vunpack.c.l.b16 %v495
      %v664 = vunpack.c.l.b16 %v496
      %v665 = vunpack.c.l.b16 %v497
      %v666 = vunpack.c.l.b16 %v498
      %v667 = vunpack.c.l.b16 %v499
      %v668 = vunpack.c.l.b16 %v500
      %v669 = vunpack.c.l.b16 %v501
      %v670 = vunpack.c.l.b16 %v502
      %v671 = vunpack.c.l.b16 %v503
      %v672 = vunpack.c.l.b16 %v504
      %v673 = vunpack.c.l.b16 %v505
      %v674 = vunpack.c.l.b16 %v506
      %v675 = vunpack.c.l.b16 %v507
      %v676 = vunpack.c.l.b16 %v508
      %v677 = vunpack.c.l.b16 %v509
      %v678 = vunpack.c.l.b16 %v510
      %v679 = vunpack.c.l.b16 %v511
      %v680 = vunpack.c.l.b16 %v512
      %v681 = vunpack.c.l.b16 %v513
      %v682 = vunpack.c.l.b16 %v514
      %v683 = vunpack.c.l.b16 %v515
      %v684 = vunpack.c.l.b16 %v516
      %v685 = vunpack.c.l.b16 %v517
      %v686 = vunpack.c.l.b16 %v518
      %v687 = vpack.c.b16 %v624, %v623
      %v688 = vpack.c.b16 %v626, %v625
      %v689 = vpack.c.b16 %v628, %v627
      %v690 = vpack.c.b16 %v630, %v629
      %v691 = vpack.c.b16 %v632, %v631
      %v692 = vpack.c.b16 %v634, %v633
      %v693 = vpack.c.b16 %v636, %v635
      %v694 = vpack.c.b16 %v638, %v637
      %v695 = vpack.c.b16 %v640, %v639
      %v696 = vpack.c.b16 %v642, %v641
      %v697 = vpack.c.b16 %v644, %v643
      %v698 = vpack.c.b16 %v646, %v645
      %v699 = vpack.c.b16 %v648, %v647
      %v700 = vpack.c.b16 %v650, %v649
      %v701 = vpack.c.b16 %v652, %v651
      %v702 = vpack.c.b16 %v654, %v653
      %v703 = vpack.c.b16 %v656, %v655
      %v704 = vpack.c.b16 %v658, %v657
      %v705 = vpack.c.b16 %v660, %v659
      %v706 = vpack.c.b16 %v662, %v661
      %v707 = vpack.c.b16 %v664, %v663
      %v708 = vpack.c.b16 %v666, %v665
      %v709 = vpack.c.b16 %v668, %v667
      %v710 = vpack.c.b16 %v670, %v669
      %v711 = vpack.c.b16 %v672, %v671
      %v712 = vpack.c.b16 %v674, %v673
      %v713 = vpack.c.b16 %v676, %v675
      %v714 = vpack.c.b16 %v678, %v677
      %v715 = vpack.c.b16 %v680, %v679
      %v716 = vpack.c.b16 %v682, %v681
      %v717 = vpack.c.b16 %v684, %v683
      %v718 = vpack.c.b16 %v686, %v685
      %751 = vmatprep.subr.bf16.mxu0 0
      %752 = vmatpush1.bf16.msra.mxu0 %v687
      %753 = vmatprep.subr.bf16.mxu0 0
      %754 = vmatpush1.bf16.msra.mxu0 %v688
      %755 = vmatprep.subr.bf16.mxu0 0
      %756 = vmatpush1.bf16.msra.mxu0 %v689
      %757 = vmatprep.subr.bf16.mxu0 0
      %758 = vmatpush1.bf16.msra.mxu0 %v690
      %759 = vmatprep.subr.bf16.mxu0 0
      %760 = vmatpush1.bf16.msra.mxu0 %v691
      %761 = vmatprep.subr.bf16.mxu0 0
      %762 = vmatpush1.bf16.msra.mxu0 %v692
      %763 = vmatprep.subr.bf16.mxu0 0
      %764 = vmatpush1.bf16.msra.mxu0 %v693
      %765 = vmatprep.subr.bf16.mxu0 0
      %766 = vmatpush1.bf16.msra.mxu0 %v694
      %767 = vmatprep.subr.bf16.mxu0 0
      %768 = vmatpush1.bf16.msra.mxu0 %v695
      %769 = vmatprep.subr.bf16.mxu0 0
      %770 = vmatpush1.bf16.msra.mxu0 %v696
      %771 = vmatprep.subr.bf16.mxu0 0
      %772 = vmatpush1.bf16.msra.mxu0 %v697
      %773 = vmatprep.subr.bf16.mxu0 0
      %774 = vmatpush1.bf16.msra.mxu0 %v698
      %775 = vmatprep.subr.bf16.mxu0 0
      %776 = vmatpush1.bf16.msra.mxu0 %v699
      %777 = vmatprep.subr.bf16.mxu0 0
      %778 = vmatpush1.bf16.msra.mxu0 %v700
      %779 = vmatprep.subr.bf16.mxu0 0
      %780 = vmatpush1.bf16.msra.mxu0 %v701
      %781 = vmatprep.subr.bf16.mxu0 0
      %782 = vmatpush1.bf16.msra.mxu0 %v702
      %783 = vmatprep.mubr.bf16.mxu0 %v552
      %784 = vmatmul.mubr.bf16.gmra.mrb[0].mxu0 %v551
      %v785 = vpop.f32.mrb[0].mxu0
      %v786 = vadd.f32 0.0, %v785
      %v787 = vpop.f32.mrb[0].mxu0
      %v788 = vpop.f32.mrb[0].mxu0
      %v789 = vadd.f32 0.0, %v788
      %v790 = vpop.f32.mrb[0].mxu0
      %791 = vdwg.mxu0
      %792 = vmatprep.subr.bf16.mxu0 0
      %793 = vmatpush1.bf16.msra.mxu0 %v703
      %794 = vmatprep.subr.bf16.mxu0 0
      %795 = vmatpush1.bf16.msra.mxu0 %v704
      %796 = vmatprep.subr.bf16.mxu0 0
      %797 = vmatpush1.bf16.msra.mxu0 %v705
      %798 = vmatprep.subr.bf16.mxu0 0
      %799 = vmatpush1.bf16.msra.mxu0 %v706
      %800 = vmatprep.subr.bf16.mxu0 0
      %801 = vmatpush1.bf16.msra.mxu0 %v707
      %802 = vmatprep.subr.bf16.mxu0 0
      %803 = vmatpush1.bf16.msra.mxu0 %v708
      %804 = vmatprep.subr.bf16.mxu0 0
      %805 = vmatpush1.bf16.msra.mxu0 %v709
      %806 = vmatprep.subr.bf16.mxu0 0
      %807 = vmatpush1.bf16.msra.mxu0 %v710
      %808 = vmatprep.subr.bf16.mxu0 0
      %809 = vmatpush1.bf16.msra.mxu0 %v711
      %810 = vmatprep.subr.bf16.mxu0 0
      %811 = vmatpush1.bf16.msra.mxu0 %v712
      %812 = vmatprep.subr.bf16.mxu0 0
      %813 = vmatpush1.bf16.msra.mxu0 %v713
      %814 = vmatprep.subr.bf16.mxu0 0
      %815 = vmatpush1.bf16.msra.mxu0 %v714
      %816 = vmatprep.subr.bf16.mxu0 0
      %817 = vmatpush1.bf16.msra.mxu0 %v715
      %818 = vmatprep.subr.bf16.mxu0 0
      %819 = vmatpush1.bf16.msra.mxu0 %v716
      %820 = vmatprep.subr.bf16.mxu0 0
      %821 = vmatpush1.bf16.msra.mxu0 %v717
      %822 = vmatprep.subr.bf16.mxu0 0
      %823 = vmatpush1.bf16.msra.mxu0 %v718
      %824 = vmatprep.mubr.bf16.mxu0 %v554
      %825 = vmatmul.mubr.bf16.gmra.mrb[0].mxu0 %v553
      %v826 = vpop.f32.mrb[0].mxu0
      %v827 = vadd.f32 %v786, %v826
      %v828 = vpop.f32.mrb[0].mxu0
      %v829 = vpop.f32.mrb[0].mxu0
      %v830 = vadd.f32 %v789, %v829
      %v831 = vpop.f32.mrb[0].mxu0
      %832 = vdwg.mxu0
      %v833 = vcombine.low %v202, %v217
      %v834 = vcombine.high %v202, %v217
      %v835 = vcombine.low %v232, %v247
      %v836 = vcombine.high %v232, %v247
      %v838 = vunpack.c.l.s4 1983009808
      %v839 = vunpack.c.0.s8 %v838
      %v840 = vlaneseq
      %v841 = vshrl.u32 %v840, 7
      %v842 = vsub.s32 %v839, %v841
      %v843 = vrot.slane %v833, %v842
      %v845 = vunpack.c.l.s4 1983009808
      %v846 = vunpack.c.0.s8 %v845
      %v847 = vlaneseq
      %v848 = vshrl.u32 %v847, 7
      %v849 = vsub.s32 %v846, %v848
      %v850 = vrot.slane %v834, %v849
      %v852 = vunpack.c.l.s4 1983009808
      %v853 = vunpack.c.0.s8 %v852
      %v854 = vlaneseq
      %v855 = vshrl.u32 %v854, 7
      %v856 = vsub.s32 %v853, %v855
      %v857 = vrot.slane %v835, %v856
      %v859 = vunpack.c.l.s4 1983009808
      %v860 = vunpack.c.0.s8 %v859
      %v861 = vlaneseq
      %v862 = vshrl.u32 %v861, 7
      %v863 = vsub.s32 %v860, %v862
      %v864 = vrot.slane %v836, %v863
      %v865 = vcombine.low %v843, %v857
      %v866 = vcombine.high %v843, %v857
      %v867 = vcombine.low %v850, %v864
      %v868 = vcombine.high %v850, %v864
      %v937 = vunpack.c.l.b16 %v248
      %v938 = vunpack.c.l.b16 %v249
      %v939 = vunpack.c.l.b16 %v250
      %v940 = vunpack.c.l.b16 %v251
      %v941 = vunpack.c.l.b16 %v252
      %v942 = vunpack.c.l.b16 %v253
      %v943 = vunpack.c.l.b16 %v254
      %v944 = vunpack.c.l.b16 %v255
      %v945 = vunpack.c.l.b16 %v256
      %v946 = vunpack.c.l.b16 %v257
      %v947 = vunpack.c.l.b16 %v258
      %v948 = vunpack.c.l.b16 %v259
      %v949 = vunpack.c.l.b16 %v260
      %v950 = vunpack.c.l.b16 %v261
      %v951 = vunpack.c.l.b16 %v262
      %v952 = vunpack.c.l.b16 %v263
      %v953 = vunpack.c.l.b16 %v264
      %v954 = vunpack.c.l.b16 %v265
      %v955 = vunpack.c.l.b16 %v266
      %v956 = vunpack.c.l.b16 %v267
      %v957 = vunpack.c.l.b16 %v268
      %v958 = vunpack.c.l.b16 %v269
      %v959 = vunpack.c.l.b16 %v270
      %v960 = vunpack.c.l.b16 %v271
      %v961 = vunpack.c.l.b16 %v272
      %v962 = vunpack.c.l.b16 %v273
      %v963 = vunpack.c.l.b16 %v274
      %v964 = vunpack.c.l.b16 %v275
      %v965 = vunpack.c.l.b16 %v276
      %v966 = vunpack.c.l.b16 %v277
      %v967 = vunpack.c.l.b16 %v278
      %v968 = vunpack.c.l.b16 %v279
      %v969 = vunpack.c.l.b16 %v280
      %v970 = vunpack.c.l.b16 %v281
      %v971 = vunpack.c.l.b16 %v282
      %v972 = vunpack.c.l.b16 %v283
      %v973 = vunpack.c.l.b16 %v284
      %v974 = vunpack.c.l.b16 %v285
      %v975 = vunpack.c.l.b16 %v286
      %v976 = vunpack.c.l.b16 %v287
      %v977 = vunpack.c.l.b16 %v288
      %v978 = vunpack.c.l.b16 %v289
      %v979 = vunpack.c.l.b16 %v290
      %v980 = vunpack.c.l.b16 %v291
      %v981 = vunpack.c.l.b16 %v292
      %v982 = vunpack.c.l.b16 %v293
      %v983 = vunpack.c.l.b16 %v294
      %v984 = vunpack.c.l.b16 %v295
      %v985 = vunpack.c.l.b16 %v296
      %v986 = vunpack.c.l.b16 %v297
      %v987 = vunpack.c.l.b16 %v298
      %v988 = vunpack.c.l.b16 %v299
      %v989 = vunpack.c.l.b16 %v300
      %v990 = vunpack.c.l.b16 %v301
      %v991 = vunpack.c.l.b16 %v302
      %v992 = vunpack.c.l.b16 %v303
      %v993 = vunpack.c.l.b16 %v304
      %v994 = vunpack.c.l.b16 %v305
      %v995 = vunpack.c.l.b16 %v306
      %v996 = vunpack.c.l.b16 %v307
      %v997 = vunpack.c.l.b16 %v308
      %v998 = vunpack.c.l.b16 %v309
      %v999 = vunpack.c.l.b16 %v310
      %v1000 = vunpack.c.l.b16 %v311
      %v1001 = vpack.c.b16 %v938, %v937
      %v1002 = vpack.c.b16 %v940, %v939
      %v1003 = vpack.c.b16 %v942, %v941
      %v1004 = vpack.c.b16 %v944, %v943
      %v1005 = vpack.c.b16 %v946, %v945
      %v1006 = vpack.c.b16 %v948, %v947
      %v1007 = vpack.c.b16 %v950, %v949
      %v1008 = vpack.c.b16 %v952, %v951
      %v1009 = vpack.c.b16 %v954, %v953
      %v1010 = vpack.c.b16 %v956, %v955
      %v1011 = vpack.c.b16 %v958, %v957
      %v1012 = vpack.c.b16 %v960, %v959
      %v1013 = vpack.c.b16 %v962, %v961
      %v1014 = vpack.c.b16 %v964, %v963
      %v1015 = vpack.c.b16 %v966, %v965
      %v1016 = vpack.c.b16 %v968, %v967
      %v1017 = vpack.c.b16 %v970, %v969
      %v1018 = vpack.c.b16 %v972, %v971
      %v1019 = vpack.c.b16 %v974, %v973
      %v1020 = vpack.c.b16 %v976, %v975
      %v1021 = vpack.c.b16 %v978, %v977
      %v1022 = vpack.c.b16 %v980, %v979
      %v1023 = vpack.c.b16 %v982, %v981
      %v1024 = vpack.c.b16 %v984, %v983
      %v1025 = vpack.c.b16 %v986, %v985
      %v1026 = vpack.c.b16 %v988, %v987
      %v1027 = vpack.c.b16 %v990, %v989
      %v1028 = vpack.c.b16 %v992, %v991
      %v1029 = vpack.c.b16 %v994, %v993
      %v1030 = vpack.c.b16 %v996, %v995
      %v1031 = vpack.c.b16 %v998, %v997
      %v1032 = vpack.c.b16 %v1000, %v999
      %1065 = vmatprep.subr.bf16.mxu0 0
      %1066 = vmatpush1.bf16.msra.mxu0 %v1001
      %1067 = vmatprep.subr.bf16.mxu0 0
      %1068 = vmatpush1.bf16.msra.mxu0 %v1002
      %1069 = vmatprep.subr.bf16.mxu0 0
      %1070 = vmatpush1.bf16.msra.mxu0 %v1003
      %1071 = vmatprep.subr.bf16.mxu0 0
      %1072 = vmatpush1.bf16.msra.mxu0 %v1004
      %1073 = vmatprep.subr.bf16.mxu0 0
      %1074 = vmatpush1.bf16.msra.mxu0 %v1005
      %1075 = vmatprep.subr.bf16.mxu0 0
      %1076 = vmatpush1.bf16.msra.mxu0 %v1006
      %1077 = vmatprep.subr.bf16.mxu0 0
      %1078 = vmatpush1.bf16.msra.mxu0 %v1007
      %1079 = vmatprep.subr.bf16.mxu0 0
      %1080 = vmatpush1.bf16.msra.mxu0 %v1008
      %1081 = vmatprep.subr.bf16.mxu0 0
      %1082 = vmatpush1.bf16.msra.mxu0 %v1009
      %1083 = vmatprep.subr.bf16.mxu0 0
      %1084 = vmatpush1.bf16.msra.mxu0 %v1010
      %1085 = vmatprep.subr.bf16.mxu0 0
      %1086 = vmatpush1.bf16.msra.mxu0 %v1011
      %1087 = vmatprep.subr.bf16.mxu0 0
      %1088 = vmatpush1.bf16.msra.mxu0 %v1012
      %1089 = vmatprep.subr.bf16.mxu0 0
      %1090 = vmatpush1.bf16.msra.mxu0 %v1013
      %1091 = vmatprep.subr.bf16.mxu0 0
      %1092 = vmatpush1.bf16.msra.mxu0 %v1014
      %1093 = vmatprep.subr.bf16.mxu0 0
      %1094 = vmatpush1.bf16.msra.mxu0 %v1015
      %1095 = vmatprep.subr.bf16.mxu0 0
      %1096 = vmatpush1.bf16.msra.mxu0 %v1016
      %1097 = vmatprep.mubr.bf16.mxu0 %v866
      %1098 = vmatmul.mubr.bf16.gmra.mrb[0].mxu0 %v865
      %v1099 = vpop.f32.mrb[0].mxu0
      %v1100 = vadd.f32 %v827, %v1099
      %v1101 = vpop.f32.mrb[0].mxu0
      %v1102 = vpop.f32.mrb[0].mxu0
      %v1103 = vadd.f32 %v830, %v1102
      %v1104 = vpop.f32.mrb[0].mxu0
      %1105 = vdwg.mxu0
      %1106 = vmatprep.subr.bf16.mxu0 0
      %1107 = vmatpush1.bf16.msra.mxu0 %v1017
      %1108 = vmatprep.subr.bf16.mxu0 0
      %1109 = vmatpush1.bf16.msra.mxu0 %v1018
      %1110 = vmatprep.subr.bf16.mxu0 0
      %1111 = vmatpush1.bf16.msra.mxu0 %v1019
      %1112 = vmatprep.subr.bf16.mxu0 0
      %1113 = vmatpush1.bf16.msra.mxu0 %v1020
      %1114 = vmatprep.subr.bf16.mxu0 0
      %1115 = vmatpush1.bf16.msra.mxu0 %v1021
      %1116 = vmatprep.subr.bf16.mxu0 0
      %1117 = vmatpush1.bf16.msra.mxu0 %v1022
      %1118 = vmatprep.subr.bf16.mxu0 0
      %1119 = vmatpush1.bf16.msra.mxu0 %v1023
      %1120 = vmatprep.subr.bf16.mxu0 0
      %1121 = vmatpush1.bf16.msra.mxu0 %v1024
      %1122 = vmatprep.subr.bf16.mxu0 0
      %1123 = vmatpush1.bf16.msra.mxu0 %v1025
      %1124 = vmatprep.subr.bf16.mxu0 0
      %1125 = vmatpush1.bf16.msra.mxu0 %v1026
      %1126 = vmatprep.subr.bf16.mxu0 0
      %1127 = vmatpush1.bf16.msra.mxu0 %v1027
      %1128 = vmatprep.subr.bf16.mxu0 0
      %1129 = vmatpush1.bf16.msra.mxu0 %v1028
      %1130 = vmatprep.subr.bf16.mxu0 0
      %1131 = vmatpush1.bf16.msra.mxu0 %v1029
      %1132 = vmatprep.subr.bf16.mxu0 0
      %1133 = vmatpush1.bf16.msra.mxu0 %v1030
      %1134 = vmatprep.subr.bf16.mxu0 0
      %1135 = vmatpush1.bf16.msra.mxu0 %v1031
      %1136 = vmatprep.subr.bf16.mxu0 0
      %1137 = vmatpush1.bf16.msra.mxu0 %v1032
      %1138 = vmatprep.mubr.bf16.mxu0 %v868
      %1139 = vmatmul.mubr.bf16.gmra.mrb[0].mxu0 %v867
      %v1140 = vpop.f32.mrb[0].mxu0
      %v1141 = vadd.f32 %v1100, %v1140
      %v1142 = vpop.f32.mrb[0].mxu0
      %v1143 = vpop.f32.mrb[0].mxu0
      %v1144 = vadd.f32 %v1103, %v1143
      %v1145 = vpop.f32.mrb[0].mxu0
      %1146 = vdwg.mxu0
      %s1147 = scalar_lea.vmem %s165, 16
      %v1148 = vld [vmem:[%s1147] sm:$0x33]
      %v1149 = vld [vmem:[%s1147 + $0x8] sm:$0x33]
      %v1150 = vld [vmem:[%s1147 + $0x10] sm:$0x33]
      %v1151 = vld [vmem:[%s1147 + $0x18] sm:$0x33]
      %v1152 = vld [vmem:[%s1147 + $0x20] sm:$0x33]
      %v1153 = vld [vmem:[%s1147 + $0x28] sm:$0x33]
      %v1154 = vld [vmem:[%s1147 + $0x30] sm:$0x33]
      %v1155 = vld [vmem:[%s1147 + $0x38] sm:$0x33]
      %v1165 = vunpack.c.l.s4 1983009808
      %v1166 = vunpack.c.0.s8 %v1165
      %v1167 = vlaneseq
      %v1168 = vshrl.u32 %v1167, 7
      %v1169 = vsub.s32 %v1166, %v1168
      %v1170 = vrot.slane %v1148, %v1169
      %v1172 = vunpack.c.l.s4 1983009808
      %v1173 = vunpack.c.0.s8 %v1172
      %v1174 = vlaneseq
      %v1175 = vshrl.u32 %v1174, 7
      %v1176 = vsub.s32 %v1173, %v1175
      %v1177 = vrot.slane %v1149, %v1176
      %v1178 = vcombine.low %v1170, %v1177
      %v1180 = vunpack.c.l.s4 1983009808
      %v1181 = vunpack.c.0.s8 %v1180
      %v1182 = vlaneseq
      %v1183 = vshrl.u32 %v1182, 7
      %v1184 = vsub.s32 %v1181, %v1183
      %v1185 = vrot.slane %v1150, %v1184
      %v1187 = vunpack.c.l.s4 1983009808
      %v1188 = vunpack.c.0.s8 %v1187
      %v1189 = vlaneseq
      %v1190 = vshrl.u32 %v1189, 7
      %v1191 = vsub.s32 %v1188, %v1190
      %v1192 = vrot.slane %v1151, %v1191
      %v1193 = vcombine.low %v1185, %v1192
      %v1195 = vunpack.c.l.s4 1983009808
      %v1196 = vunpack.c.0.s8 %v1195
      %v1197 = vlaneseq
      %v1198 = vshrl.u32 %v1197, 7
      %v1199 = vsub.s32 %v1196, %v1198
      %v1200 = vrot.slane %v1152, %v1199
      %v1202 = vunpack.c.l.s4 1983009808
      %v1203 = vunpack.c.0.s8 %v1202
      %v1204 = vlaneseq
      %v1205 = vshrl.u32 %v1204, 7
      %v1206 = vsub.s32 %v1203, %v1205
      %v1207 = vrot.slane %v1153, %v1206
      %v1208 = vcombine.low %v1200, %v1207
      %v1210 = vunpack.c.l.s4 1983009808
      %v1211 = vunpack.c.0.s8 %v1210
      %v1212 = vlaneseq
      %v1213 = vshrl.u32 %v1212, 7
      %v1214 = vsub.s32 %v1211, %v1213
      %v1215 = vrot.slane %v1154, %v1214
      %v1217 = vunpack.c.l.s4 1983009808
      %v1218 = vunpack.c.0.s8 %v1217
      %v1219 = vlaneseq
      %v1220 = vshrl.u32 %v1219, 7
      %v1221 = vsub.s32 %v1218, %v1220
      %v1222 = vrot.slane %v1155, %v1221
      %v1223 = vcombine.low %v1215, %v1222
      %v1224 = vld [vmem:[%s1 + $0x200] sm:$0xf]
      %v1225 = vld [vmem:[%s1 + $0x204] sm:$0xf]
      %v1226 = vld [vmem:[%s1 + $0x208] sm:$0xf]
      %v1227 = vld [vmem:[%s1 + $0x20c] sm:$0xf]
      %v1228 = vld [vmem:[%s1 + $0x210] sm:$0xf]
      %v1229 = vld [vmem:[%s1 + $0x214] sm:$0xf]
      %v1230 = vld [vmem:[%s1 + $0x218] sm:$0xf]
      %v1231 = vld [vmem:[%s1 + $0x21c] sm:$0xf]
      %v1232 = vld [vmem:[%s1 + $0x220] sm:$0xf]
      %v1233 = vld [vmem:[%s1 + $0x224] sm:$0xf]
      %v1234 = vld [vmem:[%s1 + $0x228] sm:$0xf]
      %v1235 = vld [vmem:[%s1 + $0x22c] sm:$0xf]
      %v1236 = vld [vmem:[%s1 + $0x230] sm:$0xf]
      %v1237 = vld [vmem:[%s1 + $0x234] sm:$0xf]
      %v1238 = vld [vmem:[%s1 + $0x238] sm:$0xf]
      %v1239 = vld [vmem:[%s1 + $0x23c] sm:$0xf]
      %v1240 = vld [vmem:[%s1 + $0x240] sm:$0xf]
      %v1241 = vld [vmem:[%s1 + $0x244] sm:$0xf]
      %v1242 = vld [vmem:[%s1 + $0x248] sm:$0xf]
      %v1243 = vld [vmem:[%s1 + $0x24c] sm:$0xf]
      %v1244 = vld [vmem:[%s1 + $0x250] sm:$0xf]
      %v1245 = vld [vmem:[%s1 + $0x254] sm:$0xf]
      %v1246 = vld [vmem:[%s1 + $0x258] sm:$0xf]
      %v1247 = vld [vmem:[%s1 + $0x25c] sm:$0xf]
      %v1248 = vld [vmem:[%s1 + $0x260] sm:$0xf]
      %v1249 = vld [vmem:[%s1 + $0x264] sm:$0xf]
      %v1250 = vld [vmem:[%s1 + $0x268] sm:$0xf]
      %v1251 = vld [vmem:[%s1 + $0x26c] sm:$0xf]
      %v1252 = vld [vmem:[%s1 + $0x270] sm:$0xf]
      %v1253 = vld [vmem:[%s1 + $0x274] sm:$0xf]
      %v1254 = vld [vmem:[%s1 + $0x278] sm:$0xf]
      %v1255 = vld [vmem:[%s1 + $0x27c] sm:$0xf]
      %v1256 = vld [vmem:[%s1 + $0x280] sm:$0xf]
      %v1257 = vld [vmem:[%s1 + $0x284] sm:$0xf]
      %v1258 = vld [vmem:[%s1 + $0x288] sm:$0xf]
      %v1259 = vld [vmem:[%s1 + $0x28c] sm:$0xf]
      %v1260 = vld [vmem:[%s1 + $0x290] sm:$0xf]
      %v1261 = vld [vmem:[%s1 + $0x294] sm:$0xf]
      %v1262 = vld [vmem:[%s1 + $0x298] sm:$0xf]
      %v1263 = vld [vmem:[%s1 + $0x29c] sm:$0xf]
      %v1264 = vld [vmem:[%s1 + $0x2a0] sm:$0xf]
      %v1265 = vld [vmem:[%s1 + $0x2a4] sm:$0xf]
      %v1266 = vld [vmem:[%s1 + $0x2a8] sm:$0xf]
      %v1267 = vld [vmem:[%s1 + $0x2ac] sm:$0xf]
      %v1268 = vld [vmem:[%s1 + $0x2b0] sm:$0xf]
      %v1269 = vld [vmem:[%s1 + $0x2b4] sm:$0xf]
      %v1270 = vld [vmem:[%s1 + $0x2b8] sm:$0xf]
      %v1271 = vld [vmem:[%s1 + $0x2bc] sm:$0xf]
      %v1272 = vld [vmem:[%s1 + $0x2c0] sm:$0xf]
      %v1273 = vld [vmem:[%s1 + $0x2c4] sm:$0xf]
      %v1274 = vld [vmem:[%s1 + $0x2c8] sm:$0xf]
      %v1275 = vld [vmem:[%s1 + $0x2cc] sm:$0xf]
      %v1276 = vld [vmem:[%s1 + $0x2d0] sm:$0xf]
      %v1277 = vld [vmem:[%s1 + $0x2d4] sm:$0xf]
      %v1278 = vld [vmem:[%s1 + $0x2d8] sm:$0xf]
      %v1279 = vld [vmem:[%s1 + $0x2dc] sm:$0xf]
      %v1280 = vld [vmem:[%s1 + $0x2e0] sm:$0xf]
      %v1281 = vld [vmem:[%s1 + $0x2e4] sm:$0xf]
      %v1282 = vld [vmem:[%s1 + $0x2e8] sm:$0xf]
      %v1283 = vld [vmem:[%s1 + $0x2ec] sm:$0xf]
      %v1284 = vld [vmem:[%s1 + $0x2f0] sm:$0xf]
      %v1285 = vld [vmem:[%s1 + $0x2f4] sm:$0xf]
      %v1286 = vld [vmem:[%s1 + $0x2f8] sm:$0xf]
      %v1287 = vld [vmem:[%s1 + $0x2fc] sm:$0xf]
      %v1288 = vcombine.low %v1178, %v1193
      %v1289 = vcombine.high %v1178, %v1193
      %v1290 = vcombine.low %v1208, %v1223
      %v1291 = vcombine.high %v1208, %v1223
      %v1293 = vunpack.c.l.s4 1983009808
      %v1294 = vunpack.c.0.s8 %v1293
      %v1295 = vlaneseq
      %v1296 = vshrl.u32 %v1295, 7
      %v1297 = vsub.s32 %v1294, %v1296
      %v1298 = vrot.slane %v1288, %v1297
      %v1300 = vunpack.c.l.s4 1983009808
      %v1301 = vunpack.c.0.s8 %v1300
      %v1302 = vlaneseq
      %v1303 = vshrl.u32 %v1302, 7
      %v1304 = vsub.s32 %v1301, %v1303
      %v1305 = vrot.slane %v1289, %v1304
      %v1307 = vunpack.c.l.s4 1983009808
      %v1308 = vunpack.c.0.s8 %v1307
      %v1309 = vlaneseq
      %v1310 = vshrl.u32 %v1309, 7
      %v1311 = vsub.s32 %v1308, %v1310
      %v1312 = vrot.slane %v1290, %v1311
      %v1314 = vunpack.c.l.s4 1983009808
      %v1315 = vunpack.c.0.s8 %v1314
      %v1316 = vlaneseq
      %v1317 = vshrl.u32 %v1316, 7
      %v1318 = vsub.s32 %v1315, %v1317
      %v1319 = vrot.slane %v1291, %v1318
      %v1320 = vcombine.low %v1298, %v1312
      %v1321 = vcombine.high %v1298, %v1312
      %v1322 = vcombine.low %v1305, %v1319
      %v1323 = vcombine.high %v1305, %v1319
      %v1392 = vunpack.c.l.b16 %v1224
      %v1393 = vunpack.c.l.b16 %v1225
      %v1394 = vunpack.c.l.b16 %v1226
      %v1395 = vunpack.c.l.b16 %v1227
      %v1396 = vunpack.c.l.b16 %v1228
      %v1397 = vunpack.c.l.b16 %v1229
      %v1398 = vunpack.c.l.b16 %v1230
      %v1399 = vunpack.c.l.b16 %v1231
      %v1400 = vunpack.c.l.b16 %v1232
      %v1401 = vunpack.c.l.b16 %v1233
      %v1402 = vunpack.c.l.b16 %v1234
      %v1403 = vunpack.c.l.b16 %v1235
      %v1404 = vunpack.c.l.b16 %v1236
      %v1405 = vunpack.c.l.b16 %v1237
      %v1406 = vunpack.c.l.b16 %v1238
      %v1407 = vunpack.c.l.b16 %v1239
      %v1408 = vunpack.c.l.b16 %v1240
      %v1409 = vunpack.c.l.b16 %v1241
      %v1410 = vunpack.c.l.b16 %v1242
      %v1411 = vunpack.c.l.b16 %v1243
      %v1412 = vunpack.c.l.b16 %v1244
      %v1413 = vunpack.c.l.b16 %v1245
      %v1414 = vunpack.c.l.b16 %v1246
      %v1415 = vunpack.c.l.b16 %v1247
      %v1416 = vunpack.c.l.b16 %v1248
      %v1417 = vunpack.c.l.b16 %v1249
      %v1418 = vunpack.c.l.b16 %v1250
      %v1419 = vunpack.c.l.b16 %v1251
      %v1420 = vunpack.c.l.b16 %v1252
      %v1421 = vunpack.c.l.b16 %v1253
      %v1422 = vunpack.c.l.b16 %v1254
      %v1423 = vunpack.c.l.b16 %v1255
      %v1424 = vunpack.c.l.b16 %v1256
      %v1425 = vunpack.c.l.b16 %v1257
      %v1426 = vunpack.c.l.b16 %v1258
      %v1427 = vunpack.c.l.b16 %v1259
      %v1428 = vunpack.c.l.b16 %v1260
      %v1429 = vunpack.c.l.b16 %v1261
      %v1430 = vunpack.c.l.b16 %v1262
      %v1431 = vunpack.c.l.b16 %v1263
      %v1432 = vunpack.c.l.b16 %v1264
      %v1433 = vunpack.c.l.b16 %v1265
      %v1434 = vunpack.c.l.b16 %v1266
      %v1435 = vunpack.c.l.b16 %v1267
      %v1436 = vunpack.c.l.b16 %v1268
      %v1437 = vunpack.c.l.b16 %v1269
      %v1438 = vunpack.c.l.b16 %v1270
      %v1439 = vunpack.c.l.b16 %v1271
      %v1440 = vunpack.c.l.b16 %v1272
      %v1441 = vunpack.c.l.b16 %v1273
      %v1442 = vunpack.c.l.b16 %v1274
      %v1443 = vunpack.c.l.b16 %v1275
      %v1444 = vunpack.c.l.b16 %v1276
      %v1445 = vunpack.c.l.b16 %v1277
      %v1446 = vunpack.c.l.b16 %v1278
      %v1447 = vunpack.c.l.b16 %v1279
      %v1448 = vunpack.c.l.b16 %v1280
      %v1449 = vunpack.c.l.b16 %v1281
      %v1450 = vunpack.c.l.b16 %v1282
      %v1451 = vunpack.c.l.b16 %v1283
      %v1452 = vunpack.c.l.b16 %v1284
      %v1453 = vunpack.c.l.b16 %v1285
      %v1454 = vunpack.c.l.b16 %v1286
      %v1455 = vunpack.c.l.b16 %v1287
      %v1456 = vpack.c.b16 %v1393, %v1392
      %v1457 = vpack.c.b16 %v1395, %v1394
      %v1458 = vpack.c.b16 %v1397, %v1396
      %v1459 = vpack.c.b16 %v1399, %v1398
      %v1460 = vpack.c.b16 %v1401, %v1400
      %v1461 = vpack.c.b16 %v1403, %v1402
      %v1462 = vpack.c.b16 %v1405, %v1404
      %v1463 = vpack.c.b16 %v1407, %v1406
      %v1464 = vpack.c.b16 %v1409, %v1408
      %v1465 = vpack.c.b16 %v1411, %v1410
      %v1466 = vpack.c.b16 %v1413, %v1412
      %v1467 = vpack.c.b16 %v1415, %v1414
      %v1468 = vpack.c.b16 %v1417, %v1416
      %v1469 = vpack.c.b16 %v1419, %v1418
      %v1470 = vpack.c.b16 %v1421, %v1420
      %v1471 = vpack.c.b16 %v1423, %v1422
      %v1472 = vpack.c.b16 %v1425, %v1424
      %v1473 = vpack.c.b16 %v1427, %v1426
      %v1474 = vpack.c.b16 %v1429, %v1428
      %v1475 = vpack.c.b16 %v1431, %v1430
      %v1476 = vpack.c.b16 %v1433, %v1432
      %v1477 = vpack.c.b16 %v1435, %v1434
      %v1478 = vpack.c.b16 %v1437, %v1436
      %v1479 = vpack.c.b16 %v1439, %v1438
      %v1480 = vpack.c.b16 %v1441, %v1440
      %v1481 = vpack.c.b16 %v1443, %v1442
      %v1482 = vpack.c.b16 %v1445, %v1444
      %v1483 = vpack.c.b16 %v1447, %v1446
      %v1484 = vpack.c.b16 %v1449, %v1448
      %v1485 = vpack.c.b16 %v1451, %v1450
      %v1486 = vpack.c.b16 %v1453, %v1452
      %v1487 = vpack.c.b16 %v1455, %v1454
      %1520 = vmatprep.subr.bf16.mxu0 0
      %1521 = vmatpush1.bf16.msra.mxu0 %v1456
      %1522 = vmatprep.subr.bf16.mxu0 0
      %1523 = vmatpush1.bf16.msra.mxu0 %v1457
      %1524 = vmatprep.subr.bf16.mxu0 0
      %1525 = vmatpush1.bf16.msra.mxu0 %v1458
      %1526 = vmatprep.subr.bf16.mxu0 0
      %1527 = vmatpush1.bf16.msra.mxu0 %v1459
      %1528 = vmatprep.subr.bf16.mxu0 0
      %1529 = vmatpush1.bf16.msra.mxu0 %v1460
      %1530 = vmatprep.subr.bf16.mxu0 0
      %1531 = vmatpush1.bf16.msra.mxu0 %v1461
      %1532 = vmatprep.subr.bf16.mxu0 0
      %1533 = vmatpush1.bf16.msra.mxu0 %v1462
      %1534 = vmatprep.subr.bf16.mxu0 0
      %1535 = vmatpush1.bf16.msra.mxu0 %v1463
      %1536 = vmatprep.subr.bf16.mxu0 0
      %1537 = vmatpush1.bf16.msra.mxu0 %v1464
      %1538 = vmatprep.subr.bf16.mxu0 0
      %1539 = vmatpush1.bf16.msra.mxu0 %v1465
      %1540 = vmatprep.subr.bf16.mxu0 0
      %1541 = vmatpush1.bf16.msra.mxu0 %v1466
      %1542 = vmatprep.subr.bf16.mxu0 0
      %1543 = vmatpush1.bf16.msra.mxu0 %v1467
      %1544 = vmatprep.subr.bf16.mxu0 0
      %1545 = vmatpush1.bf16.msra.mxu0 %v1468
      %1546 = vmatprep.subr.bf16.mxu0 0
      %1547 = vmatpush1.bf16.msra.mxu0 %v1469
      %1548 = vmatprep.subr.bf16.mxu0 0
      %1549 = vmatpush1.bf16.msra.mxu0 %v1470
      %1550 = vmatprep.subr.bf16.mxu0 0
      %1551 = vmatpush1.bf16.msra.mxu0 %v1471
      %1552 = vmatprep.mubr.bf16.mxu0 %v1321
      %1553 = vmatmul.mubr.bf16.gmra.mrb[0].mxu0 %v1320
      %v1554 = vpop.f32.mrb[0].mxu0
      %v1555 = vadd.f32 0.0, %v1554
      %v1556 = vpop.f32.mrb[0].mxu0
      %v1557 = vpop.f32.mrb[0].mxu0
      %v1558 = vadd.f32 0.0, %v1557
      %v1559 = vpop.f32.mrb[0].mxu0
      %1560 = vdwg.mxu0
      %1561 = vmatprep.subr.bf16.mxu0 0
      %1562 = vmatpush1.bf16.msra.mxu0 %v1472
      %1563 = vmatprep.subr.bf16.mxu0 0
      %1564 = vmatpush1.bf16.msra.mxu0 %v1473
      %1565 = vmatprep.subr.bf16.mxu0 0
      %1566 = vmatpush1.bf16.msra.mxu0 %v1474
      %1567 = vmatprep.subr.bf16.mxu0 0
      %1568 = vmatpush1.bf16.msra.mxu0 %v1475
      %1569 = vmatprep.subr.bf16.mxu0 0
      %1570 = vmatpush1.bf16.msra.mxu0 %v1476
      %1571 = vmatprep.subr.bf16.mxu0 0
      %1572 = vmatpush1.bf16.msra.mxu0 %v1477
      %1573 = vmatprep.subr.bf16.mxu0 0
      %1574 = vmatpush1.bf16.msra.mxu0 %v1478
      %1575 = vmatprep.subr.bf16.mxu0 0
      %1576 = vmatpush1.bf16.msra.mxu0 %v1479
      %1577 = vmatprep.subr.bf16.mxu0 0
      %1578 = vmatpush1.bf16.msra.mxu0 %v1480
      %1579 = vmatprep.subr.bf16.mxu0 0
      %1580 = vmatpush1.bf16.msra.mxu0 %v1481
      %1581 = vmatprep.subr.bf16.mxu0 0
      %1582 = vmatpush1.bf16.msra.mxu0 %v1482
      %1583 = vmatprep.subr.bf16.mxu0 0
      %1584 = vmatpush1.bf16.msra.mxu0 %v1483
      %1585 = vmatprep.subr.bf16.mxu0 0
      %1586 = vmatpush1.bf16.msra.mxu0 %v1484
      %1587 = vmatprep.subr.bf16.mxu0 0
      %1588 = vmatpush1.bf16.msra.mxu0 %v1485
      %1589 = vmatprep.subr.bf16.mxu0 0
      %1590 = vmatpush1.bf16.msra.mxu0 %v1486
      %1591 = vmatprep.subr.bf16.mxu0 0
      %1592 = vmatpush1.bf16.msra.mxu0 %v1487
      %1593 = vmatprep.mubr.bf16.mxu0 %v1323
      %1594 = vmatmul.mubr.bf16.gmra.mrb[0].mxu0 %v1322
      %v1595 = vpop.f32.mrb[0].mxu0
      %v1596 = vadd.f32 %v1555, %v1595
      %v1597 = vpop.f32.mrb[0].mxu0
      %v1598 = vpop.f32.mrb[0].mxu0
      %v1599 = vadd.f32 %v1558, %v1598
      %v1600 = vpop.f32.mrb[0].mxu0
      %1601 = vdwg.mxu0
      %v1602 = vadd.f32 %v1141, %v1596
      %v1603 = vadd.f32 %v1144, %v1599
      %v1604 = vld [vmem:[%s1147] sm:$0x77]
      %v1605 = vld [vmem:[%s1147 + $0x8] sm:$0x77]
      %v1606 = vld [vmem:[%s1147 + $0x10] sm:$0x77]
      %v1607 = vld [vmem:[%s1147 + $0x18] sm:$0x77]
      %v1608 = vld [vmem:[%s1147 + $0x20] sm:$0x77]
      %v1609 = vld [vmem:[%s1147 + $0x28] sm:$0x77]
      %v1610 = vld [vmem:[%s1147 + $0x30] sm:$0x77]
      %v1611 = vld [vmem:[%s1147 + $0x38] sm:$0x77]
      %v1621 = vunpack.c.l.s4 1983009808
      %v1622 = vunpack.c.0.s8 %v1621
      %v1623 = vlaneseq
      %v1624 = vshrl.u32 %v1623, 7
      %v1625 = vsub.s32 %v1622, %v1624
      %v1626 = vrot.slane %v1604, %v1625
      %v1628 = vunpack.c.l.s4 1983009808
      %v1629 = vunpack.c.0.s8 %v1628
      %v1630 = vlaneseq
      %v1631 = vshrl.u32 %v1630, 7
      %v1632 = vsub.s32 %v1629, %v1631
      %v1633 = vrot.slane %v1605, %v1632
      %v1634 = vcombine.low %v1626, %v1633
      %v1635 = vcombine.high %v1626, %v1633
      %v1637 = vunpack.c.l.s4 1983009808
      %v1638 = vunpack.c.0.s8 %v1637
      %v1639 = vlaneseq
      %v1640 = vshrl.u32 %v1639, 7
      %v1641 = vsub.s32 %v1638, %v1640
      %v1642 = vrot.slane %v1606, %v1641
      %v1644 = vunpack.c.l.s4 1983009808
      %v1645 = vunpack.c.0.s8 %v1644
      %v1646 = vlaneseq
      %v1647 = vshrl.u32 %v1646, 7
      %v1648 = vsub.s32 %v1645, %v1647
      %v1649 = vrot.slane %v1607, %v1648
      %v1650 = vcombine.low %v1642, %v1649
      %v1651 = vcombine.high %v1642, %v1649
      %v1653 = vunpack.c.l.s4 1983009808
      %v1654 = vunpack.c.0.s8 %v1653
      %v1655 = vlaneseq
      %v1656 = vshrl.u32 %v1655, 7
      %v1657 = vsub.s32 %v1654, %v1656
      %v1658 = vrot.slane %v1608, %v1657
      %v1660 = vunpack.c.l.s4 1983009808
      %v1661 = vunpack.c.0.s8 %v1660
      %v1662 = vlaneseq
      %v1663 = vshrl.u32 %v1662, 7
      %v1664 = vsub.s32 %v1661, %v1663
      %v1665 = vrot.slane %v1609, %v1664
      %v1666 = vcombine.low %v1658, %v1665
      %v1667 = vcombine.high %v1658, %v1665
      %v1669 = vunpack.c.l.s4 1983009808
      %v1670 = vunpack.c.0.s8 %v1669
      %v1671 = vlaneseq
      %v1672 = vshrl.u32 %v1671, 7
      %v1673 = vsub.s32 %v1670, %v1672
      %v1674 = vrot.slane %v1610, %v1673
      %v1676 = vunpack.c.l.s4 1983009808
      %v1677 = vunpack.c.0.s8 %v1676
      %v1678 = vlaneseq
      %v1679 = vshrl.u32 %v1678, 7
      %v1680 = vsub.s32 %v1677, %v1679
      %v1681 = vrot.slane %v1611, %v1680
      %v1682 = vcombine.low %v1674, %v1681
      %v1683 = vcombine.high %v1674, %v1681
      %v1685 = vshrl.u32 %v1634, 16
      %v1687 = vrot.slane %v1685, 6
      %v1688 = vshll.u32 %v1634, 16
      %v1690 = vrot.slane %v1688, 7
      %v1691 = vor.u32 %v1687, %v1690
      %v1692 = vrot.slane %v1691, 2
      %v1694 = vshll.u32 %v1635, 16
      %v1696 = vrot.slane %v1694, 7
      %v1697 = vsel %vm398, %v1692, %v1696
      %v1699 = vshrl.u32 %v1650, 16
      %v1701 = vrot.slane %v1699, 6
      %v1702 = vshll.u32 %v1650, 16
      %v1704 = vrot.slane %v1702, 7
      %v1705 = vor.u32 %v1701, %v1704
      %v1706 = vrot.slane %v1705, 2
      %v1708 = vshll.u32 %v1651, 16
      %v1710 = vrot.slane %v1708, 7
      %v1711 = vsel %vm398, %v1706, %v1710
      %v1713 = vshrl.u32 %v1666, 16
      %v1715 = vrot.slane %v1713, 6
      %v1716 = vshll.u32 %v1666, 16
      %v1718 = vrot.slane %v1716, 7
      %v1719 = vor.u32 %v1715, %v1718
      %v1720 = vrot.slane %v1719, 2
      %v1722 = vshll.u32 %v1667, 16
      %v1724 = vrot.slane %v1722, 7
      %v1725 = vsel %vm398, %v1720, %v1724
      %v1727 = vshrl.u32 %v1682, 16
      %v1729 = vrot.slane %v1727, 6
      %v1730 = vshll.u32 %v1682, 16
      %v1732 = vrot.slane %v1730, 7
      %v1733 = vor.u32 %v1729, %v1732
      %v1734 = vrot.slane %v1733, 2
      %v1736 = vshll.u32 %v1683, 16
      %v1738 = vrot.slane %v1736, 7
      %v1739 = vsel %vm398, %v1734, %v1738
      %v1740 = vld [vmem:[%s1 + $0x300] sm:$0xf]
      %v1741 = vld [vmem:[%s1 + $0x304] sm:$0xf]
      %v1742 = vld [vmem:[%s1 + $0x308] sm:$0xf]
      %v1743 = vld [vmem:[%s1 + $0x30c] sm:$0xf]
      %v1744 = vld [vmem:[%s1 + $0x310] sm:$0xf]
      %v1745 = vld [vmem:[%s1 + $0x314] sm:$0xf]
      %v1746 = vld [vmem:[%s1 + $0x318] sm:$0xf]
      %v1747 = vld [vmem:[%s1 + $0x31c] sm:$0xf]
      %v1748 = vld [vmem:[%s1 + $0x320] sm:$0xf]
      %v1749 = vld [vmem:[%s1 + $0x324] sm:$0xf]
      %v1750 = vld [vmem:[%s1 + $0x328] sm:$0xf]
      %v1751 = vld [vmem:[%s1 + $0x32c] sm:$0xf]
      %v1752 = vld [vmem:[%s1 + $0x330] sm:$0xf]
      %v1753 = vld [vmem:[%s1 + $0x334] sm:$0xf]
      %v1754 = vld [vmem:[%s1 + $0x338] sm:$0xf]
      %v1755 = vld [vmem:[%s1 + $0x33c] sm:$0xf]
      %v1756 = vld [vmem:[%s1 + $0x340] sm:$0xf]
      %v1757 = vld [vmem:[%s1 + $0x344] sm:$0xf]
      %v1758 = vld [vmem:[%s1 + $0x348] sm:$0xf]
      %v1759 = vld [vmem:[%s1 + $0x34c] sm:$0xf]
      %v1760 = vld [vmem:[%s1 + $0x350] sm:$0xf]
      %v1761 = vld [vmem:[%s1 + $0x354] sm:$0xf]
      %v1762 = vld [vmem:[%s1 + $0x358] sm:$0xf]
      %v1763 = vld [vmem:[%s1 + $0x35c] sm:$0xf]
      %v1764 = vld [vmem:[%s1 + $0x360] sm:$0xf]
      %v1765 = vld [vmem:[%s1 + $0x364] sm:$0xf]
      %v1766 = vld [vmem:[%s1 + $0x368] sm:$0xf]
      %v1767 = vld [vmem:[%s1 + $0x36c] sm:$0xf]
      %v1768 = vld [vmem:[%s1 + $0x370] sm:$0xf]
      %v1769 = vld [vmem:[%s1 + $0x374] sm:$0xf]
      %v1770 = vld [vmem:[%s1 + $0x378] sm:$0xf]
      %v1771 = vld [vmem:[%s1 + $0x37c] sm:$0xf]
      %v1772 = vld [vmem:[%s1 + $0x380] sm:$0xf]
      %v1773 = vld [vmem:[%s1 + $0x384] sm:$0xf]
      %v1774 = vld [vmem:[%s1 + $0x388] sm:$0xf]
      %v1775 = vld [vmem:[%s1 + $0x38c] sm:$0xf]
      %v1776 = vld [vmem:[%s1 + $0x390] sm:$0xf]
      %v1777 = vld [vmem:[%s1 + $0x394] sm:$0xf]
      %v1778 = vld [vmem:[%s1 + $0x398] sm:$0xf]
      %v1779 = vld [vmem:[%s1 + $0x39c] sm:$0xf]
      %v1780 = vld [vmem:[%s1 + $0x3a0] sm:$0xf]
      %v1781 = vld [vmem:[%s1 + $0x3a4] sm:$0xf]
      %v1782 = vld [vmem:[%s1 + $0x3a8] sm:$0xf]
      %v1783 = vld [vmem:[%s1 + $0x3ac] sm:$0xf]
      %v1784 = vld [vmem:[%s1 + $0x3b0] sm:$0xf]
      %v1785 = vld [vmem:[%s1 + $0x3b4] sm:$0xf]
      %v1786 = vld [vmem:[%s1 + $0x3b8] sm:$0xf]
      %v1787 = vld [vmem:[%s1 + $0x3bc] sm:$0xf]
      %v1788 = vld [vmem:[%s1 + $0x3c0] sm:$0xf]
      %v1789 = vld [vmem:[%s1 + $0x3c4] sm:$0xf]
      %v1790 = vld [vmem:[%s1 + $0x3c8] sm:$0xf]
      %v1791 = vld [vmem:[%s1 + $0x3cc] sm:$0xf]
      %v1792 = vld [vmem:[%s1 + $0x3d0] sm:$0xf]
      %v1793 = vld [vmem:[%s1 + $0x3d4] sm:$0xf]
      %v1794 = vld [vmem:[%s1 + $0x3d8] sm:$0xf]
      %v1795 = vld [vmem:[%s1 + $0x3dc] sm:$0xf]
      %v1796 = vld [vmem:[%s1 + $0x3e0] sm:$0xf]
      %v1797 = vld [vmem:[%s1 + $0x3e4] sm:$0xf]
      %v1798 = vld [vmem:[%s1 + $0x3e8] sm:$0xf]
      %v1799 = vld [vmem:[%s1 + $0x3ec] sm:$0xf]
      %v1800 = vld [vmem:[%s1 + $0x3f0] sm:$0xf]
      %v1801 = vld [vmem:[%s1 + $0x3f4] sm:$0xf]
      %v1802 = vld [vmem:[%s1 + $0x3f8] sm:$0xf]
      %v1803 = vld [vmem:[%s1 + $0x3fc] sm:$0xf]
      %v1804 = vcombine.low %v1697, %v1711
      %v1805 = vcombine.high %v1697, %v1711
      %v1806 = vcombine.low %v1725, %v1739
      %v1807 = vcombine.high %v1725, %v1739
      %v1809 = vunpack.c.l.s4 1983009808
      %v1810 = vunpack.c.0.s8 %v1809
      %v1811 = vlaneseq
      %v1812 = vshrl.u32 %v1811, 7
      %v1813 = vsub.s32 %v1810, %v1812
      %v1814 = vrot.slane %v1804, %v1813
      %v1816 = vunpack.c.l.s4 1983009808
      %v1817 = vunpack.c.0.s8 %v1816
      %v1818 = vlaneseq
      %v1819 = vshrl.u32 %v1818, 7
      %v1820 = vsub.s32 %v1817, %v1819
      %v1821 = vrot.slane %v1805, %v1820
      %v1823 = vunpack.c.l.s4 1983009808
      %v1824 = vunpack.c.0.s8 %v1823
      %v1825 = vlaneseq
      %v1826 = vshrl.u32 %v1825, 7
      %v1827 = vsub.s32 %v1824, %v1826
      %v1828 = vrot.slane %v1806, %v1827
      %v1830 = vunpack.c.l.s4 1983009808
      %v1831 = vunpack.c.0.s8 %v1830
      %v1832 = vlaneseq
      %v1833 = vshrl.u32 %v1832, 7
      %v1834 = vsub.s32 %v1831, %v1833
      %v1835 = vrot.slane %v1807, %v1834
      %v1836 = vcombine.low %v1814, %v1828
      %v1837 = vcombine.high %v1814, %v1828
      %v1838 = vcombine.low %v1821, %v1835
      %v1839 = vcombine.high %v1821, %v1835
      %v1908 = vunpack.c.l.b16 %v1740
      %v1909 = vunpack.c.l.b16 %v1741
      %v1910 = vunpack.c.l.b16 %v1742
      %v1911 = vunpack.c.l.b16 %v1743
      %v1912 = vunpack.c.l.b16 %v1744
      %v1913 = vunpack.c.l.b16 %v1745
      %v1914 = vunpack.c.l.b16 %v1746
      %v1915 = vunpack.c.l.b16 %v1747
      %v1916 = vunpack.c.l.b16 %v1748
      %v1917 = vunpack.c.l.b16 %v1749
      %v1918 = vunpack.c.l.b16 %v1750
      %v1919 = vunpack.c.l.b16 %v1751
      %v1920 = vunpack.c.l.b16 %v1752
      %v1921 = vunpack.c.l.b16 %v1753
      %v1922 = vunpack.c.l.b16 %v1754
      %v1923 = vunpack.c.l.b16 %v1755
      %v1924 = vunpack.c.l.b16 %v1756
      %v1925 = vunpack.c.l.b16 %v1757
      %v1926 = vunpack.c.l.b16 %v1758
      %v1927 = vunpack.c.l.b16 %v1759
      %v1928 = vunpack.c.l.b16 %v1760
      %v1929 = vunpack.c.l.b16 %v1761
      %v1930 = vunpack.c.l.b16 %v1762
      %v1931 = vunpack.c.l.b16 %v1763
      %v1932 = vunpack.c.l.b16 %v1764
      %v1933 = vunpack.c.l.b16 %v1765
      %v1934 = vunpack.c.l.b16 %v1766
      %v1935 = vunpack.c.l.b16 %v1767
      %v1936 = vunpack.c.l.b16 %v1768
      %v1937 = vunpack.c.l.b16 %v1769
      %v1938 = vunpack.c.l.b16 %v1770
      %v1939 = vunpack.c.l.b16 %v1771
      %v1940 = vunpack.c.l.b16 %v1772
      %v1941 = vunpack.c.l.b16 %v1773
      %v1942 = vunpack.c.l.b16 %v1774
      %v1943 = vunpack.c.l.b16 %v1775
      %v1944 = vunpack.c.l.b16 %v1776
      %v1945 = vunpack.c.l.b16 %v1777
      %v1946 = vunpack.c.l.b16 %v1778
      %v1947 = vunpack.c.l.b16 %v1779
      %v1948 = vunpack.c.l.b16 %v1780
      %v1949 = vunpack.c.l.b16 %v1781
      %v1950 = vunpack.c.l.b16 %v1782
      %v1951 = vunpack.c.l.b16 %v1783
      %v1952 = vunpack.c.l.b16 %v1784
      %v1953 = vunpack.c.l.b16 %v1785
      %v1954 = vunpack.c.l.b16 %v1786
      %v1955 = vunpack.c.l.b16 %v1787
      %v1956 = vunpack.c.l.b16 %v1788
      %v1957 = vunpack.c.l.b16 %v1789
      %v1958 = vunpack.c.l.b16 %v1790
      %v1959 = vunpack.c.l.b16 %v1791
      %v1960 = vunpack.c.l.b16 %v1792
      %v1961 = vunpack.c.l.b16 %v1793
      %v1962 = vunpack.c.l.b16 %v1794
      %v1963 = vunpack.c.l.b16 %v1795
      %v1964 = vunpack.c.l.b16 %v1796
      %v1965 = vunpack.c.l.b16 %v1797
      %v1966 = vunpack.c.l.b16 %v1798
      %v1967 = vunpack.c.l.b16 %v1799
      %v1968 = vunpack.c.l.b16 %v1800
      %v1969 = vunpack.c.l.b16 %v1801
      %v1970 = vunpack.c.l.b16 %v1802
      %v1971 = vunpack.c.l.b16 %v1803
      %v1972 = vpack.c.b16 %v1909, %v1908
      %v1973 = vpack.c.b16 %v1911, %v1910
      %v1974 = vpack.c.b16 %v1913, %v1912
      %v1975 = vpack.c.b16 %v1915, %v1914
      %v1976 = vpack.c.b16 %v1917, %v1916
      %v1977 = vpack.c.b16 %v1919, %v1918
      %v1978 = vpack.c.b16 %v1921, %v1920
      %v1979 = vpack.c.b16 %v1923, %v1922
      %v1980 = vpack.c.b16 %v1925, %v1924
      %v1981 = vpack.c.b16 %v1927, %v1926
      %v1982 = vpack.c.b16 %v1929, %v1928
      %v1983 = vpack.c.b16 %v1931, %v1930
      %v1984 = vpack.c.b16 %v1933, %v1932
      %v1985 = vpack.c.b16 %v1935, %v1934
      %v1986 = vpack.c.b16 %v1937, %v1936
      %v1987 = vpack.c.b16 %v1939, %v1938
      %v1988 = vpack.c.b16 %v1941, %v1940
      %v1989 = vpack.c.b16 %v1943, %v1942
      %v1990 = vpack.c.b16 %v1945, %v1944
      %v1991 = vpack.c.b16 %v1947, %v1946
      %v1992 = vpack.c.b16 %v1949, %v1948
      %v1993 = vpack.c.b16 %v1951, %v1950
      %v1994 = vpack.c.b16 %v1953, %v1952
      %v1995 = vpack.c.b16 %v1955, %v1954
      %v1996 = vpack.c.b16 %v1957, %v1956
      %v1997 = vpack.c.b16 %v1959, %v1958
      %v1998 = vpack.c.b16 %v1961, %v1960
      %v1999 = vpack.c.b16 %v1963, %v1962
      %v2000 = vpack.c.b16 %v1965, %v1964
      %v2001 = vpack.c.b16 %v1967, %v1966
      %v2002 = vpack.c.b16 %v1969, %v1968
      %v2003 = vpack.c.b16 %v1971, %v1970
      %2036 = vmatprep.subr.bf16.mxu0 0
      %2037 = vmatpush1.bf16.msra.mxu0 %v1972
      %2038 = vmatprep.subr.bf16.mxu0 0
      %2039 = vmatpush1.bf16.msra.mxu0 %v1973
      %2040 = vmatprep.subr.bf16.mxu0 0
      %2041 = vmatpush1.bf16.msra.mxu0 %v1974
      %2042 = vmatprep.subr.bf16.mxu0 0
      %2043 = vmatpush1.bf16.msra.mxu0 %v1975
      %2044 = vmatprep.subr.bf16.mxu0 0
      %2045 = vmatpush1.bf16.msra.mxu0 %v1976
      %2046 = vmatprep.subr.bf16.mxu0 0
      %2047 = vmatpush1.bf16.msra.mxu0 %v1977
      %2048 = vmatprep.subr.bf16.mxu0 0
      %2049 = vmatpush1.bf16.msra.mxu0 %v1978
      %2050 = vmatprep.subr.bf16.mxu0 0
      %2051 = vmatpush1.bf16.msra.mxu0 %v1979
      %2052 = vmatprep.subr.bf16.mxu0 0
      %2053 = vmatpush1.bf16.msra.mxu0 %v1980
      %2054 = vmatprep.subr.bf16.mxu0 0
      %2055 = vmatpush1.bf16.msra.mxu0 %v1981
      %2056 = vmatprep.subr.bf16.mxu0 0
      %2057 = vmatpush1.bf16.msra.mxu0 %v1982
      %2058 = vmatprep.subr.bf16.mxu0 0
      %2059 = vmatpush1.bf16.msra.mxu0 %v1983
      %2060 = vmatprep.subr.bf16.mxu0 0
      %2061 = vmatpush1.bf16.msra.mxu0 %v1984
      %2062 = vmatprep.subr.bf16.mxu0 0
      %2063 = vmatpush1.bf16.msra.mxu0 %v1985
      %2064 = vmatprep.subr.bf16.mxu0 0
      %2065 = vmatpush1.bf16.msra.mxu0 %v1986
      %2066 = vmatprep.subr.bf16.mxu0 0
      %2067 = vmatpush1.bf16.msra.mxu0 %v1987
      %2068 = vmatprep.mubr.bf16.mxu0 %v1837
      %2069 = vmatmul.mubr.bf16.gmra.mrb[0].mxu0 %v1836
      %v2070 = vpop.f32.mrb[0].mxu0
      %v2071 = vadd.f32 0.0, %v2070
      %v2072 = vpop.f32.mrb[0].mxu0
      %v2073 = vpop.f32.mrb[0].mxu0
      %v2074 = vadd.f32 0.0, %v2073
      %v2075 = vpop.f32.mrb[0].mxu0
      %2076 = vdwg.mxu0
      %2077 = vmatprep.subr.bf16.mxu0 0
      %2078 = vmatpush1.bf16.msra.mxu0 %v1988
      %2079 = vmatprep.subr.bf16.mxu0 0
      %2080 = vmatpush1.bf16.msra.mxu0 %v1989
      %2081 = vmatprep.subr.bf16.mxu0 0
      %2082 = vmatpush1.bf16.msra.mxu0 %v1990
      %2083 = vmatprep.subr.bf16.mxu0 0
      %2084 = vmatpush1.bf16.msra.mxu0 %v1991
      %2085 = vmatprep.subr.bf16.mxu0 0
      %2086 = vmatpush1.bf16.msra.mxu0 %v1992
      %2087 = vmatprep.subr.bf16.mxu0 0
      %2088 = vmatpush1.bf16.msra.mxu0 %v1993
      %2089 = vmatprep.subr.bf16.mxu0 0
      %2090 = vmatpush1.bf16.msra.mxu0 %v1994
      %2091 = vmatprep.subr.bf16.mxu0 0
      %2092 = vmatpush1.bf16.msra.mxu0 %v1995
      %2093 = vmatprep.subr.bf16.mxu0 0
      %2094 = vmatpush1.bf16.msra.mxu0 %v1996
      %2095 = vmatprep.subr.bf16.mxu0 0
      %2096 = vmatpush1.bf16.msra.mxu0 %v1997
      %2097 = vmatprep.subr.bf16.mxu0 0
      %2098 = vmatpush1.bf16.msra.mxu0 %v1998
      %2099 = vmatprep.subr.bf16.mxu0 0
      %2100 = vmatpush1.bf16.msra.mxu0 %v1999
      %2101 = vmatprep.subr.bf16.mxu0 0
      %2102 = vmatpush1.bf16.msra.mxu0 %v2000
      %2103 = vmatprep.subr.bf16.mxu0 0
      %2104 = vmatpush1.bf16.msra.mxu0 %v2001
      %2105 = vmatprep.subr.bf16.mxu0 0
      %2106 = vmatpush1.bf16.msra.mxu0 %v2002
      %2107 = vmatprep.subr.bf16.mxu0 0
      %2108 = vmatpush1.bf16.msra.mxu0 %v2003
      %2109 = vmatprep.mubr.bf16.mxu0 %v1839
      %2110 = vmatmul.mubr.bf16.gmra.mrb[0].mxu0 %v1838
      %v2111 = vpop.f32.mrb[0].mxu0
      %v2112 = vadd.f32 %v2071, %v2111
      %v2113 = vpop.f32.mrb[0].mxu0
      %v2114 = vpop.f32.mrb[0].mxu0
      %v2115 = vadd.f32 %v2074, %v2114
      %v2116 = vpop.f32.mrb[0].mxu0
      %2117 = vdwg.mxu0
      %v2118 = vadd.f32 %v1602, %v2112
      %v2119 = vadd.f32 %v1603, %v2115
      %v2120 = vld [vmem:[%s2] sm:$0x1]
      %v2122 = vlaneseq
      %v2123 = vshrl.u32 %v2122, 7
      %v2124 = vsub.s32 0, %v2123
      %v2125 = vrot.slane %v2120, %v2124
      %v2127 = vadd.f32 %v2118, %v2125
      %v2128 = vadd.f32 %v2119, %v2125
      %v2129 = vmax.f32 %v2127, 0.0
      %v2130 = vmax.f32 %v2128, 0.0
      %v2133 = vcombine.high %v2129, %v2129
      %v2134 = vcombine.high %v2130, %v2130
      %v2137 = vpack.c.bf16 %v2129, %v2129
      %v2138 = vpack.c.bf16 %v2133, %v2133
      %v2139 = vpack.c.bf16 %v2130, %v2130
      %v2140 = vpack.c.bf16 %v2134, %v2134
      %2141 = vst [vmem:[%s170] sm:$0x3] %v2137
      %2142 = vst [vmem:[%s170 + $0x2] sm:$0x3] %v2138
      %2143 = vst [vmem:[%s170 + $0x4] sm:$0x3] %v2139
      %2144 = vst [vmem:[%s170 + $0x6] sm:$0x3] %v2140
      %p2145 = scmp.lt.s32.totalorder %s14, 1
      %s2146 = scalar_select %p2145, %s14, 1
      %s2147 = smul.addr %s2146, 4
      %s2148 = smul.addr %s2147, 2
      %s2149 = scalar_lea.vmem %s3, %s2148
      // Predicated region
      $region33: #{_lambda_.6} parent=31 // pred_check
        %p2150 = pneg %p100
      $region34: #{_lambda_.6} parent=31 // pred_check_branch
        %2152 = sbr.rel (%p2150) target = $region36
      $region35: #{_lambda_.6} parent=31 // pred_region
        _
      $region36: #{_lambda_.6} parent=31 // pred_fallthru
        _
    $region32: #{_lambda_.6} parent=5 // pred_fallthru
      _
    %p2153 = scmp.le.s32.totalorder 2, %s9
    // Predicated region
    $region37: #{_lambda_.6} parent=5 // pred_check
      %p2154 = pneg %p2153
    $region38: #{_lambda_.6} parent=5 // pred_check_branch
      %2156 = sbr.rel (%p2154) target = $region40
    $region39: #{_lambda_.6} parent=5 // pred_region
      %s2157 = ssub.s32 %s9, 2
      // Predicated region
      $region41: #{_lambda_.6} parent=39 // pred_check
        %p2158 = pneg %p106
      $region42: #{_lambda_.6} parent=39 // pred_check_branch
        %2160 = sbr.rel (%p2158) target = $region44
      $region43: #{_lambda_.6} parent=39 // pred_region
        %p2161 = scmp.lt.s32.totalorder %s15, 1
        %s2162 = scalar_select %p2161, %s15, 1
        %s2163 = smul.addr %s2162, 4
        %s2164 = smul.addr %s2163, 2
        %s2165 = scalar_lea.vmem %s3, %s2164
      $region44: #{_lambda_.6} parent=39 // pred_fallthru
        _
    $region40: #{_lambda_.6} parent=5 // pred_fallthru
      _
  $region6: #{_lambda_.6} parent=0 // loop_footer
    %s13 = sadd.s32 1, %s9
  $region7: #{_lambda_.6} parent=0 // loop_footer_branch
    %8 = sbr.rel target = $region3
  $region8: #{_lambda_.6} parent=0 // loop_exit
    _

// kernel: _lambda_.7
$region0: #{_lambda_.7}
  #allocation0 [shape = 'u32[]', space=smem, size = 0x4, offset = 0x4, fixed_abs, tag = 'smem constant byte address 0x4 - core index']
  #allocation1 [shape = 'u32[144,128]{1,0:T(1,128)}', space=vmem, size = 0x12000, scoped, tag = 'internal scratch']
  %s0 = inlined_call_operand.vmem [shape: bf16[2,3,3,512], index: 0, kind: input, shape index: {}]
  %s1 = inlined_call_operand.vmem [shape: bf16[2048,128], index: 1, kind: input, shape index: {}]
  %s2 = inlined_call_operand.vmem [shape: f32[1,128], index: 2, kind: input, shape index: {}]
  %s3 = inlined_call_operand.vmem [shape: bf16[2,2,2,128], index: 3, kind: output, shape index: {}]
  %s4 = sld [smem:[#allocation0]]
  $region45: #{_lambda_.7} parent=0
    _
  %s6 = ssub.s32 1, %s4
  %s7 = scalar_select 0, %s6, %s4
  loop: start=0, step=1, limit=4
  $region2: #{_lambda_.7} parent=0 // loop_pre_header
    _
  $region3: #{_lambda_.7} parent=0 // loop_header
    %s9 = sphi 0, %s13
    %p10 = scmp.ge.s32.totalorder %s9, 4
    %s19 = sphi 0, %s21
    %s22 = sphi 0, %s19
    %s23 = sphi 0, %s22
    %s39 = sphi 0, %s23
    %s43 = sphi 0, %s43
    %s45 = sphi 0, %s43
    %s46 = sphi 0, %s45
    %s60 = sphi 0, %s46
    %s64 = sphi 0, %s64
    %s66 = sphi 0, %s64
    %s67 = sphi 0, %s66
    %s81 = sphi 0, %s67
    %s87 = sphi 0, %s89
    %s90 = sphi 0, %s87
    %s91 = sphi 0, %s90
    %s107 = sphi 0, %s91
  $region4: #{_lambda_.7} parent=0 // loop_header_branch
    %12 = sbr.rel (%p10) target = $region8
  $region5: #{_lambda_.7} parent=0 // loop_body
    %s14 = ssub.s32 %s9, 1
    %s15 = ssub.s32 %s9, 2
    %s16 = sadd.s32 %s9, 1
    %s17 = ssub.s32 %s9, %s16
    %p18 = scmp.eq.s32.totalorder %s17, 0
    %s20 = sadd.s32 %s19, 1
    %s21 = scalar_select %p18, %s19, %s20
    %p24 = pneg %p18
    %p25 = scmp.eq.s32.totalorder %s9, 1
    %p26 = por %p24, %p25
    %p27 = scmp.ne.s32.totalorder %s19, %s22
    %p28 = scmp.eq.s32.totalorder %s9, 0
    %p29 = por %p27, %p28
    %p30 = scmp.ne.s32.totalorder %s19, %s22
    %p31 = scmp.eq.s32.totalorder %s14, 1
    %p32 = por %p30, %p31
    %p33 = scmp.ne.s32.totalorder %s22, %s23
    %p34 = scmp.eq.s32.totalorder %s14, 0
    %p35 = por %p33, %p34
    %p36 = scmp.ne.s32.totalorder %s22, %s23
    %p37 = scmp.eq.s32.totalorder %s15, 1
    %p38 = por %p36, %p37
    %p40 = scmp.ne.s32.totalorder %s23, %s39
    %p41 = scmp.eq.s32.totalorder %s15, 0
    %p42 = por %p40, %p41
    %s44 = sadd.s32 %s43, 1
    %p47 = scmp.eq.s32.totalorder %s9, 1
    %p48 = scmp.ne.s32.totalorder %s43, %s45
    %p49 = scmp.eq.s32.totalorder %s9, 0
    %p50 = por %p48, %p49
    %p51 = scmp.ne.s32.totalorder %s43, %s45
    %p52 = scmp.eq.s32.totalorder %s14, 1
    %p53 = por %p51, %p52
    %p54 = scmp.ne.s32.totalorder %s45, %s46
    %p55 = scmp.eq.s32.totalorder %s14, 0
    %p56 = por %p54, %p55
    %p57 = scmp.ne.s32.totalorder %s45, %s46
    %p58 = scmp.eq.s32.totalorder %s15, 1
    %p59 = por %p57, %p58
    %p61 = scmp.ne.s32.totalorder %s46, %s60
    %p62 = scmp.eq.s32.totalorder %s15, 0
    %p63 = por %p61, %p62
    %s65 = sadd.s32 %s64, 1
    %p68 = scmp.eq.s32.totalorder %s9, 1
    %p69 = scmp.ne.s32.totalorder %s64, %s66
    %p70 = scmp.eq.s32.totalorder %s9, 0
    %p71 = por %p69, %p70
    %p72 = scmp.ne.s32.totalorder %s64, %s66
    %p73 = scmp.eq.s32.totalorder %s14, 1
    %p74 = por %p72, %p73
    %p75 = scmp.ne.s32.totalorder %s66, %s67
    %p76 = scmp.eq.s32.totalorder %s14, 0
    %p77 = por %p75, %p76
    %p78 = scmp.ne.s32.totalorder %s66, %s67
    %p79 = scmp.eq.s32.totalorder %s15, 1
    %p80 = por %p78, %p79
    %p82 = scmp.ne.s32.totalorder %s67, %s81
    %p83 = scmp.eq.s32.totalorder %s15, 0
    %p84 = por %p82, %p83
    %s85 = ssub.s32 %s9, %s16
    %p86 = scmp.eq.s32.totalorder %s85, 0
    %s88 = sadd.s32 %s87, 1
    %s89 = scalar_select %p86, %s87, %s88
    %p92 = pneg %p86
    %p93 = scmp.eq.s32.totalorder %s9, 1
    %p94 = por %p92, %p93
    %p95 = scmp.ne.s32.totalorder %s87, %s90
    %p96 = scmp.eq.s32.totalorder %s9, 0
    %p97 = por %p95, %p96
    %p98 = scmp.ne.s32.totalorder %s87, %s90
    %p99 = scmp.eq.s32.totalorder %s14, 1
    %p100 = por %p98, %p99
    %p101 = scmp.ne.s32.totalorder %s90, %s91
    %p102 = scmp.eq.s32.totalorder %s14, 0
    %p103 = por %p101, %p102
    %p104 = scmp.ne.s32.totalorder %s90, %s91
    %p105 = scmp.eq.s32.totalorder %s15, 1
    %p106 = por %p104, %p105
    %p108 = scmp.ne.s32.totalorder %s91, %s107
    %p109 = scmp.eq.s32.totalorder %s15, 0
    %p110 = por %p108, %p109
    %p111 = scmp.le.s32.totalorder 1, %s9
    %p112 = scmp.lt.s32.totalorder %s9, 3
    %p113 = pnand %p111, %p112
    %p114 = pneg %p113
    // Predicated region
    $region9: #{_lambda_.7} parent=5 // pred_check
      _
    $region10: #{_lambda_.7} parent=5 // pred_check_branch
      %116 = sbr.rel (%p113) target = $region12
    $region11: #{_lambda_.7} parent=5 // pred_region
      %s117 = ssub.s32 %s9, 1
      // Predicated region
      $region13: #{_lambda_.7} parent=11 // pred_check
        %p118 = pneg %p56
      $region14: #{_lambda_.7} parent=11 // pred_check_branch
        %120 = sbr.rel (%p118) target = $region16
      $region15: #{_lambda_.7} parent=11 // pred_region
        _
      $region16: #{_lambda_.7} parent=11 // pred_fallthru
        _
      // Predicated region
      $region17: #{_lambda_.7} parent=11 // pred_check
        %p121 = pneg %p77
      $region18: #{_lambda_.7} parent=11 // pred_check_branch
        %123 = sbr.rel (%p121) target = $region20
      $region19: #{_lambda_.7} parent=11 // pred_region
        _
      $region20: #{_lambda_.7} parent=11 // pred_fallthru
        _
    $region12: #{_lambda_.7} parent=5 // pred_fallthru
      _
    %p124 = scmp.lt.s32.totalorder %s9, 2
    // Predicated region
    $region21: #{_lambda_.7} parent=5 // pred_check
      %p125 = pneg %p124
    $region22: #{_lambda_.7} parent=5 // pred_check_branch
      %127 = sbr.rel (%p125) target = $region24
    $region23: #{_lambda_.7} parent=5 // pred_region
      // Predicated region
      $region25: #{_lambda_.7} parent=23 // pred_check
        %p128 = pneg %p29
      $region26: #{_lambda_.7} parent=23 // pred_check_branch
        %130 = sbr.rel (%p128) target = $region28
      $region27: #{_lambda_.7} parent=23 // pred_region
        %p131 = scmp.lt.s32.totalorder %s9, 1
        %s132 = scalar_select %p131, %s9, 1
        %s133 = smul.addr %s132, 12
        %s134 = smul.addr %s133, 2
        %s135 = scalar_lea.vmem %s0, %s134
      $region28: #{_lambda_.7} parent=23 // pred_fallthru
        _
    $region24: #{_lambda_.7} parent=5 // pred_fallthru
      _
    %p136 = scmp.le.s32.totalorder 1, %s9
    %p137 = scmp.lt.s32.totalorder %s9, 3
    %p138 = pnand %p136, %p137
    %p139 = pneg %p138
    // Predicated region
    $region29: #{_lambda_.7} parent=5 // pred_check
      _
    $region30: #{_lambda_.7} parent=5 // pred_check_branch
      %141 = sbr.rel (%p138) target = $region32
    $region31: #{_lambda_.7} parent=5 // pred_region
      %s142 = ssub.s32 %s9, 1
      %p143 = scmp.lt.s32.totalorder %s14, 1
      %s144 = scalar_select %p143, %s14, 1
      %s145 = smul.addr %s144, 12
      %s146 = smul.addr %s145, 2
      %s147 = scalar_lea.vmem %s0, %s146
      %p148 = pneg %p35
      %p149 = pneg %p32
      %p150 = pneg %p56
      %p151 = pneg %p53
      %p152 = pneg %p77
      %p153 = pneg %p74
      %p154 = pneg %p103
      %p155 = pneg %p100
      %p156 = scmp.lt.s32.totalorder %s14, 1
      %s157 = scalar_select %p156, %s14, 1
      %s158 = smul.addr %s157, 2
      %s159 = scalar_lea.vmem %s3, %s158
      %p160 = scmp.lt.s32.totalorder %s14, 1
      %s161 = scalar_select %p160, %s14, 1
      %s162 = smul.addr %s161, 12
      %s163 = smul.addr %s162, 2
      %s164 = scalar_lea.vmem %s0, %s163
      %p165 = scmp.lt.s32.totalorder %s14, 1
      %s166 = scalar_select %p165, %s14, 1
      %s167 = smul.addr %s166, 2
      %s168 = scalar_lea.vmem %s3, %s167
      %v170 = vld [vmem:[%s164] sm:$0x55]
      %v171 = vld [vmem:[%s164 + $0x8] sm:$0x55]
      %v175 = vunpack.c.l.s4 1966171168
      %v176 = vunpack.c.0.s8 %v175
      %v177 = vlaneseq
      %v178 = vshrl.u32 %v177, 7
      %v179 = vsub.s32 %v176, %v178
      %v180 = vrot.slane %v170, %v179
      %v182 = vunpack.c.l.s4 1966171168
      %v183 = vunpack.c.0.s8 %v182
      %v184 = vlaneseq
      %v185 = vshrl.u32 %v184, 7
      %v186 = vsub.s32 %v183, %v185
      %v187 = vrot.slane %v171, %v186
      %v188 = vld [vmem:[%s1] sm:$0xf]
      %v189 = vld [vmem:[%s1 + $0x4] sm:$0xf]
      %v190 = vld [vmem:[%s1 + $0x8] sm:$0xf]
      %v191 = vld [vmem:[%s1 + $0xc] sm:$0xf]
      %v192 = vld [vmem:[%s1 + $0x10] sm:$0xf]
      %v193 = vld [vmem:[%s1 + $0x14] sm:$0xf]
      %v194 = vld [vmem:[%s1 + $0x18] sm:$0xf]
      %v195 = vld [vmem:[%s1 + $0x1c] sm:$0xf]
      %v196 = vld [vmem:[%s1 + $0x20] sm:$0xf]
      %v197 = vld [vmem:[%s1 + $0x24] sm:$0xf]
      %v198 = vld [vmem:[%s1 + $0x28] sm:$0xf]
      %v199 = vld [vmem:[%s1 + $0x2c] sm:$0xf]
      %v200 = vld [vmem:[%s1 + $0x30] sm:$0xf]
      %v201 = vld [vmem:[%s1 + $0x34] sm:$0xf]
      %v202 = vld [vmem:[%s1 + $0x38] sm:$0xf]
      %v203 = vld [vmem:[%s1 + $0x3c] sm:$0xf]
      %v204 = vld [vmem:[%s1 + $0x40] sm:$0xf]
      %v205 = vld [vmem:[%s1 + $0x44] sm:$0xf]
      %v206 = vld [vmem:[%s1 + $0x48] sm:$0xf]
      %v207 = vld [vmem:[%s1 + $0x4c] sm:$0xf]
      %v208 = vld [vmem:[%s1 + $0x50] sm:$0xf]
      %v209 = vld [vmem:[%s1 + $0x54] sm:$0xf]
      %v210 = vld [vmem:[%s1 + $0x58] sm:$0xf]
      %v211 = vld [vmem:[%s1 + $0x5c] sm:$0xf]
      %v212 = vld [vmem:[%s1 + $0x60] sm:$0xf]
      %v213 = vld [vmem:[%s1 + $0x64] sm:$0xf]
      %v214 = vld [vmem:[%s1 + $0x68] sm:$0xf]
      %v215 = vld [vmem:[%s1 + $0x6c] sm:$0xf]
      %v216 = vld [vmem:[%s1 + $0x70] sm:$0xf]
      %v217 = vld [vmem:[%s1 + $0x74] sm:$0xf]
      %v218 = vld [vmem:[%s1 + $0x78] sm:$0xf]
      %v219 = vld [vmem:[%s1 + $0x7c] sm:$0xf]
      %v220 = vld [vmem:[%s1 + $0x80] sm:$0xf]
      %v221 = vld [vmem:[%s1 + $0x84] sm:$0xf]
      %v222 = vld [vmem:[%s1 + $0x88] sm:$0xf]
      %v223 = vld [vmem:[%s1 + $0x8c] sm:$0xf]
      %v224 = vld [vmem:[%s1 + $0x90] sm:$0xf]
      %v225 = vld [vmem:[%s1 + $0x94] sm:$0xf]
      %v226 = vld [vmem:[%s1 + $0x98] sm:$0xf]
      %v227 = vld [vmem:[%s1 + $0x9c] sm:$0xf]
      %v228 = vld [vmem:[%s1 + $0xa0] sm:$0xf]
      %v229 = vld [vmem:[%s1 + $0xa4] sm:$0xf]
      %v230 = vld [vmem:[%s1 + $0xa8] sm:$0xf]
      %v231 = vld [vmem:[%s1 + $0xac] sm:$0xf]
      %v232 = vld [vmem:[%s1 + $0xb0] sm:$0xf]
      %v233 = vld [vmem:[%s1 + $0xb4] sm:$0xf]
      %v234 = vld [vmem:[%s1 + $0xb8] sm:$0xf]
      %v235 = vld [vmem:[%s1 + $0xbc] sm:$0xf]
      %v236 = vld [vmem:[%s1 + $0xc0] sm:$0xf]
      %v237 = vld [vmem:[%s1 + $0xc4] sm:$0xf]
      %v238 = vld [vmem:[%s1 + $0xc8] sm:$0xf]
      %v239 = vld [vmem:[%s1 + $0xcc] sm:$0xf]
      %v240 = vld [vmem:[%s1 + $0xd0] sm:$0xf]
      %v241 = vld [vmem:[%s1 + $0xd4] sm:$0xf]
      %v242 = vld [vmem:[%s1 + $0xd8] sm:$0xf]
      %v243 = vld [vmem:[%s1 + $0xdc] sm:$0xf]
      %v244 = vld [vmem:[%s1 + $0xe0] sm:$0xf]
      %v245 = vld [vmem:[%s1 + $0xe4] sm:$0xf]
      %v246 = vld [vmem:[%s1 + $0xe8] sm:$0xf]
      %v247 = vld [vmem:[%s1 + $0xec] sm:$0xf]
      %v248 = vld [vmem:[%s1 + $0xf0] sm:$0xf]
      %v249 = vld [vmem:[%s1 + $0xf4] sm:$0xf]
      %v250 = vld [vmem:[%s1 + $0xf8] sm:$0xf]
      %v251 = vld [vmem:[%s1 + $0xfc] sm:$0xf]
      %v252 = vld [vmem:[%s164] sm:$0xff]
      %v253 = vld [vmem:[%s164 + $0x8] sm:$0xff]
      %v257 = vunpack.c.l.s4 1966171168
      %v258 = vunpack.c.0.s8 %v257
      %v259 = vlaneseq
      %v260 = vshrl.u32 %v259, 7
      %v261 = vsub.s32 %v258, %v260
      %v262 = vrot.slane %v252, %v261
      %v263 = vcombine.high %v262, %v262
      %v265 = vunpack.c.l.s4 1966171168
      %v266 = vunpack.c.0.s8 %v265
      %v267 = vlaneseq
      %v268 = vshrl.u32 %v267, 7
      %v269 = vsub.s32 %v266, %v268
      %v270 = vrot.slane %v253, %v269
      %v271 = vcombine.high %v270, %v270
      %vm272 = vsmask.f32 256
      %vm273 = vsmask.f32 1284
      %vm274 = vmor %vm272, %vm273
      %vm275 = vsmask.f32 2312
      %vm276 = vmor %vm274, %vm275
      %vm277 = vsmask.f32 3340
      %vm278 = vmor %vm276, %vm277
      %vm279 = vsmask.f32 4368
      %vm280 = vmor %vm278, %vm279
      %vm281 = vsmask.f32 5396
      %vm282 = vmor %vm280, %vm281
      %vm283 = vsmask.f32 6424
      %vm284 = vmor %vm282, %vm283
      %vm285 = vsmask.f32 7452
      %vm286 = vmor %vm284, %vm285
      %v288 = vshrl.u32 %v262, 16
      %v290 = vrot.slane %v288, 7
      %v291 = vrot.slane %v290, 1
      %v293 = vshll.u32 %v263, 16
      %v295 = vsel %vm286, %v291, %v293
      %v297 = vshrl.u32 %v270, 16
      %v299 = vrot.slane %v297, 7
      %v300 = vrot.slane %v299, 1
      %v302 = vshll.u32 %v271, 16
      %v304 = vsel %vm286, %v300, %v302
      %v305 = vld [vmem:[%s1 + $0x100] sm:$0xf]
      %v306 = vld [vmem:[%s1 + $0x104] sm:$0xf]
      %v307 = vld [vmem:[%s1 + $0x108] sm:$0xf]
      %v308 = vld [vmem:[%s1 + $0x10c] sm:$0xf]
      %v309 = vld [vmem:[%s1 + $0x110] sm:$0xf]
      %v310 = vld [vmem:[%s1 + $0x114] sm:$0xf]
      %v311 = vld [vmem:[%s1 + $0x118] sm:$0xf]
      %v312 = vld [vmem:[%s1 + $0x11c] sm:$0xf]
      %v313 = vld [vmem:[%s1 + $0x120] sm:$0xf]
      %v314 = vld [vmem:[%s1 + $0x124] sm:$0xf]
      %v315 = vld [vmem:[%s1 + $0x128] sm:$0xf]
      %v316 = vld [vmem:[%s1 + $0x12c] sm:$0xf]
      %v317 = vld [vmem:[%s1 + $0x130] sm:$0xf]
      %v318 = vld [vmem:[%s1 + $0x134] sm:$0xf]
      %v319 = vld [vmem:[%s1 + $0x138] sm:$0xf]
      %v320 = vld [vmem:[%s1 + $0x13c] sm:$0xf]
      %v321 = vld [vmem:[%s1 + $0x140] sm:$0xf]
      %v322 = vld [vmem:[%s1 + $0x144] sm:$0xf]
      %v323 = vld [vmem:[%s1 + $0x148] sm:$0xf]
      %v324 = vld [vmem:[%s1 + $0x14c] sm:$0xf]
      %v325 = vld [vmem:[%s1 + $0x150] sm:$0xf]
      %v326 = vld [vmem:[%s1 + $0x154] sm:$0xf]
      %v327 = vld [vmem:[%s1 + $0x158] sm:$0xf]
      %v328 = vld [vmem:[%s1 + $0x15c] sm:$0xf]
      %v329 = vld [vmem:[%s1 + $0x160] sm:$0xf]
      %v330 = vld [vmem:[%s1 + $0x164] sm:$0xf]
      %v331 = vld [vmem:[%s1 + $0x168] sm:$0xf]
      %v332 = vld [vmem:[%s1 + $0x16c] sm:$0xf]
      %v333 = vld [vmem:[%s1 + $0x170] sm:$0xf]
      %v334 = vld [vmem:[%s1 + $0x174] sm:$0xf]
      %v335 = vld [vmem:[%s1 + $0x178] sm:$0xf]
      %v336 = vld [vmem:[%s1 + $0x17c] sm:$0xf]
      %v337 = vld [vmem:[%s1 + $0x180] sm:$0xf]
      %v338 = vld [vmem:[%s1 + $0x184] sm:$0xf]
      %v339 = vld [vmem:[%s1 + $0x188] sm:$0xf]
      %v340 = vld [vmem:[%s1 + $0x18c] sm:$0xf]
      %v341 = vld [vmem:[%s1 + $0x190] sm:$0xf]
      %v342 = vld [vmem:[%s1 + $0x194] sm:$0xf]
      %v343 = vld [vmem:[%s1 + $0x198] sm:$0xf]
      %v344 = vld [vmem:[%s1 + $0x19c] sm:$0xf]
      %v345 = vld [vmem:[%s1 + $0x1a0] sm:$0xf]
      %v346 = vld [vmem:[%s1 + $0x1a4] sm:$0xf]
      %v347 = vld [vmem:[%s1 + $0x1a8] sm:$0xf]
      %v348 = vld [vmem:[%s1 + $0x1ac] sm:$0xf]
      %v349 = vld [vmem:[%s1 + $0x1b0] sm:$0xf]
      %v350 = vld [vmem:[%s1 + $0x1b4] sm:$0xf]
      %v351 = vld [vmem:[%s1 + $0x1b8] sm:$0xf]
      %v352 = vld [vmem:[%s1 + $0x1bc] sm:$0xf]
      %v353 = vld [vmem:[%s1 + $0x1c0] sm:$0xf]
      %v354 = vld [vmem:[%s1 + $0x1c4] sm:$0xf]
      %v355 = vld [vmem:[%s1 + $0x1c8] sm:$0xf]
      %v356 = vld [vmem:[%s1 + $0x1cc] sm:$0xf]
      %v357 = vld [vmem:[%s1 + $0x1d0] sm:$0xf]
      %v358 = vld [vmem:[%s1 + $0x1d4] sm:$0xf]
      %v359 = vld [vmem:[%s1 + $0x1d8] sm:$0xf]
      %v360 = vld [vmem:[%s1 + $0x1dc] sm:$0xf]
      %v361 = vld [vmem:[%s1 + $0x1e0] sm:$0xf]
      %v362 = vld [vmem:[%s1 + $0x1e4] sm:$0xf]
      %v363 = vld [vmem:[%s1 + $0x1e8] sm:$0xf]
      %v364 = vld [vmem:[%s1 + $0x1ec] sm:$0xf]
      %v365 = vld [vmem:[%s1 + $0x1f0] sm:$0xf]
      %v366 = vld [vmem:[%s1 + $0x1f4] sm:$0xf]
      %v367 = vld [vmem:[%s1 + $0x1f8] sm:$0xf]
      %v368 = vld [vmem:[%s1 + $0x1fc] sm:$0xf]
      %v369 = vcombine.low %v295, %v304
      %v371 = vunpack.c.l.s4 1966171168
      %v372 = vunpack.c.0.s8 %v371
      %v373 = vlaneseq
      %v374 = vshrl.u32 %v373, 7
      %v375 = vsub.s32 %v372, %v374
      %v376 = vrot.slane %v369, %v375
      %v377 = vcombine.high %v376, %v376
      %v379 = vunpack.c.l.s4 1966171168
      %v380 = vunpack.c.0.s8 %v379
      %v381 = vlaneseq
      %v382 = vshrl.u32 %v381, 7
      %v383 = vsub.s32 %v380, %v382
      %v384 = vrot.slane %v376, %v383
      %v386 = vunpack.c.l.s4 1966171168
      %v387 = vunpack.c.0.s8 %v386
      %v388 = vlaneseq
      %v389 = vshrl.u32 %v388, 7
      %v390 = vsub.s32 %v387, %v389
      %v391 = vrot.slane %v377, %v390
      %v392 = vcombine.high %v384, %v384
      %v393 = vcombine.high %v391, %v391
      %v462 = vunpack.c.l.b16 %v305
      %v463 = vunpack.c.l.b16 %v306
      %v464 = vunpack.c.l.b16 %v307
      %v465 = vunpack.c.l.b16 %v308
      %v466 = vunpack.c.l.b16 %v309
      %v467 = vunpack.c.l.b16 %v310
      %v468 = vunpack.c.l.b16 %v311
      %v469 = vunpack.c.l.b16 %v312
      %v470 = vunpack.c.l.b16 %v313
      %v471 = vunpack.c.l.b16 %v314
      %v472 = vunpack.c.l.b16 %v315
      %v473 = vunpack.c.l.b16 %v316
      %v474 = vunpack.c.l.b16 %v317
      %v475 = vunpack.c.l.b16 %v318
      %v476 = vunpack.c.l.b16 %v319
      %v477 = vunpack.c.l.b16 %v320
      %v478 = vunpack.c.l.b16 %v321
      %v479 = vunpack.c.l.b16 %v322
      %v480 = vunpack.c.l.b16 %v323
      %v481 = vunpack.c.l.b16 %v324
      %v482 = vunpack.c.l.b16 %v325
      %v483 = vunpack.c.l.b16 %v326
      %v484 = vunpack.c.l.b16 %v327
      %v485 = vunpack.c.l.b16 %v328
      %v486 = vunpack.c.l.b16 %v329
      %v487 = vunpack.c.l.b16 %v330
      %v488 = vunpack.c.l.b16 %v331
      %v489 = vunpack.c.l.b16 %v332
      %v490 = vunpack.c.l.b16 %v333
      %v491 = vunpack.c.l.b16 %v334
      %v492 = vunpack.c.l.b16 %v335
      %v493 = vunpack.c.l.b16 %v336
      %v494 = vunpack.c.l.b16 %v337
      %v495 = vunpack.c.l.b16 %v338
      %v496 = vunpack.c.l.b16 %v339
      %v497 = vunpack.c.l.b16 %v340
      %v498 = vunpack.c.l.b16 %v341
      %v499 = vunpack.c.l.b16 %v342
      %v500 = vunpack.c.l.b16 %v343
      %v501 = vunpack.c.l.b16 %v344
      %v502 = vunpack.c.l.b16 %v345
      %v503 = vunpack.c.l.b16 %v346
      %v504 = vunpack.c.l.b16 %v347
      %v505 = vunpack.c.l.b16 %v348
      %v506 = vunpack.c.l.b16 %v349
      %v507 = vunpack.c.l.b16 %v350
      %v508 = vunpack.c.l.b16 %v351
      %v509 = vunpack.c.l.b16 %v352
      %v510 = vunpack.c.l.b16 %v353
      %v511 = vunpack.c.l.b16 %v354
      %v512 = vunpack.c.l.b16 %v355
      %v513 = vunpack.c.l.b16 %v356
      %v514 = vunpack.c.l.b16 %v357
      %v515 = vunpack.c.l.b16 %v358
      %v516 = vunpack.c.l.b16 %v359
      %v517 = vunpack.c.l.b16 %v360
      %v518 = vunpack.c.l.b16 %v361
      %v519 = vunpack.c.l.b16 %v362
      %v520 = vunpack.c.l.b16 %v363
      %v521 = vunpack.c.l.b16 %v364
      %v522 = vunpack.c.l.b16 %v365
      %v523 = vunpack.c.l.b16 %v366
      %v524 = vunpack.c.l.b16 %v367
      %v525 = vunpack.c.l.b16 %v368
      %v526 = vpack.c.b16 %v463, %v462
      %v527 = vpack.c.b16 %v465, %v464
      %v528 = vpack.c.b16 %v467, %v466
      %v529 = vpack.c.b16 %v469, %v468
      %v530 = vpack.c.b16 %v471, %v470
      %v531 = vpack.c.b16 %v473, %v472
      %v532 = vpack.c.b16 %v475, %v474
      %v533 = vpack.c.b16 %v477, %v476
      %v534 = vpack.c.b16 %v479, %v478
      %v535 = vpack.c.b16 %v481, %v480
      %v536 = vpack.c.b16 %v483, %v482
      %v537 = vpack.c.b16 %v485, %v484
      %v538 = vpack.c.b16 %v487, %v486
      %v539 = vpack.c.b16 %v489, %v488
      %v540 = vpack.c.b16 %v491, %v490
      %v541 = vpack.c.b16 %v493, %v492
      %v542 = vpack.c.b16 %v495, %v494
      %v543 = vpack.c.b16 %v497, %v496
      %v544 = vpack.c.b16 %v499, %v498
      %v545 = vpack.c.b16 %v501, %v500
      %v546 = vpack.c.b16 %v503, %v502
      %v547 = vpack.c.b16 %v505, %v504
      %v548 = vpack.c.b16 %v507, %v506
      %v549 = vpack.c.b16 %v509, %v508
      %v550 = vpack.c.b16 %v511, %v510
      %v551 = vpack.c.b16 %v513, %v512
      %v552 = vpack.c.b16 %v515, %v514
      %v553 = vpack.c.b16 %v517, %v516
      %v554 = vpack.c.b16 %v519, %v518
      %v555 = vpack.c.b16 %v521, %v520
      %v556 = vpack.c.b16 %v523, %v522
      %v557 = vpack.c.b16 %v525, %v524
      %590 = vmatprep.subr.bf16.mxu0 0
      %591 = vmatpush1.bf16.msra.mxu0 %v526
      %592 = vmatprep.subr.bf16.mxu0 0
      %593 = vmatpush1.bf16.msra.mxu0 %v527
      %594 = vmatprep.subr.bf16.mxu0 0
      %595 = vmatpush1.bf16.msra.mxu0 %v528
      %596 = vmatprep.subr.bf16.mxu0 0
      %597 = vmatpush1.bf16.msra.mxu0 %v529
      %598 = vmatprep.subr.bf16.mxu0 0
      %599 = vmatpush1.bf16.msra.mxu0 %v530
      %600 = vmatprep.subr.bf16.mxu0 0
      %601 = vmatpush1.bf16.msra.mxu0 %v531
      %602 = vmatprep.subr.bf16.mxu0 0
      %603 = vmatpush1.bf16.msra.mxu0 %v532
      %604 = vmatprep.subr.bf16.mxu0 0
      %605 = vmatpush1.bf16.msra.mxu0 %v533
      %606 = vmatprep.subr.bf16.mxu0 0
      %607 = vmatpush1.bf16.msra.mxu0 %v534
      %608 = vmatprep.subr.bf16.mxu0 0
      %609 = vmatpush1.bf16.msra.mxu0 %v535
      %610 = vmatprep.subr.bf16.mxu0 0
      %611 = vmatpush1.bf16.msra.mxu0 %v536
      %612 = vmatprep.subr.bf16.mxu0 0
      %613 = vmatpush1.bf16.msra.mxu0 %v537
      %614 = vmatprep.subr.bf16.mxu0 0
      %615 = vmatpush1.bf16.msra.mxu0 %v538
      %616 = vmatprep.subr.bf16.mxu0 0
      %617 = vmatpush1.bf16.msra.mxu0 %v539
      %618 = vmatprep.subr.bf16.mxu0 0
      %619 = vmatpush1.bf16.msra.mxu0 %v540
      %620 = vmatprep.subr.bf16.mxu0 0
      %621 = vmatpush1.bf16.msra.mxu0 %v541
      %622 = vmatprep.mubr.bf16.mxu0 %v391
      %623 = vmatmul.mubr.bf16.gmra.mrb[0].mxu0 %v384
      %v624 = vpop.f32.mrb[0].mxu0
      %v625 = vadd.f32 0.0, %v624
      %v626 = vpop.f32.mrb[0].mxu0
      %v627 = vpop.f32.mrb[0].mxu0
      %v628 = vpop.f32.mrb[0].mxu0
      %629 = vdwg.mxu0
      %630 = vmatprep.subr.bf16.mxu0 0
      %631 = vmatpush1.bf16.msra.mxu0 %v542
      %632 = vmatprep.subr.bf16.mxu0 0
      %633 = vmatpush1.bf16.msra.mxu0 %v543
      %634 = vmatprep.subr.bf16.mxu0 0
      %635 = vmatpush1.bf16.msra.mxu0 %v544
      %636 = vmatprep.subr.bf16.mxu0 0
      %637 = vmatpush1.bf16.msra.mxu0 %v545
      %638 = vmatprep.subr.bf16.mxu0 0
      %639 = vmatpush1.bf16.msra.mxu0 %v546
      %640 = vmatprep.subr.bf16.mxu0 0
      %641 = vmatpush1.bf16.msra.mxu0 %v547
      %642 = vmatprep.subr.bf16.mxu0 0
      %643 = vmatpush1.bf16.msra.mxu0 %v548
      %644 = vmatprep.subr.bf16.mxu0 0
      %645 = vmatpush1.bf16.msra.mxu0 %v549
      %646 = vmatprep.subr.bf16.mxu0 0
      %647 = vmatpush1.bf16.msra.mxu0 %v550
      %648 = vmatprep.subr.bf16.mxu0 0
      %649 = vmatpush1.bf16.msra.mxu0 %v551
      %650 = vmatprep.subr.bf16.mxu0 0
      %651 = vmatpush1.bf16.msra.mxu0 %v552
      %652 = vmatprep.subr.bf16.mxu0 0
      %653 = vmatpush1.bf16.msra.mxu0 %v553
      %654 = vmatprep.subr.bf16.mxu0 0
      %655 = vmatpush1.bf16.msra.mxu0 %v554
      %656 = vmatprep.subr.bf16.mxu0 0
      %657 = vmatpush1.bf16.msra.mxu0 %v555
      %658 = vmatprep.subr.bf16.mxu0 0
      %659 = vmatpush1.bf16.msra.mxu0 %v556
      %660 = vmatprep.subr.bf16.mxu0 0
      %661 = vmatpush1.bf16.msra.mxu0 %v557
      %662 = vmatprep.mubr.bf16.mxu0 %v393
      %663 = vmatmul.mubr.bf16.gmra.mrb[0].mxu0 %v392
      %v664 = vpop.f32.mrb[0].mxu0
      %v665 = vadd.f32 %v625, %v664
      %v666 = vpop.f32.mrb[0].mxu0
      %v667 = vpop.f32.mrb[0].mxu0
      %v668 = vpop.f32.mrb[0].mxu0
      %669 = vdwg.mxu0
      %v670 = vcombine.low %v180, %v187
      %v672 = vunpack.c.l.s4 1966171168
      %v673 = vunpack.c.0.s8 %v672
      %v674 = vlaneseq
      %v675 = vshrl.u32 %v674, 7
      %v676 = vsub.s32 %v673, %v675
      %v677 = vrot.slane %v670, %v676
      %v678 = vcombine.high %v677, %v677
      %v680 = vunpack.c.l.s4 1966171168
      %v681 = vunpack.c.0.s8 %v680
      %v682 = vlaneseq
      %v683 = vshrl.u32 %v682, 7
      %v684 = vsub.s32 %v681, %v683
      %v685 = vrot.slane %v677, %v684
      %v687 = vunpack.c.l.s4 1966171168
      %v688 = vunpack.c.0.s8 %v687
      %v689 = vlaneseq
      %v690 = vshrl.u32 %v689, 7
      %v691 = vsub.s32 %v688, %v690
      %v692 = vrot.slane %v678, %v691
      %v693 = vcombine.high %v685, %v685
      %v694 = vcombine.high %v692, %v692
      %v763 = vunpack.c.l.b16 %v188
      %v764 = vunpack.c.l.b16 %v189
      %v765 = vunpack.c.l.b16 %v190
      %v766 = vunpack.c.l.b16 %v191
      %v767 = vunpack.c.l.b16 %v192
      %v768 = vunpack.c.l.b16 %v193
      %v769 = vunpack.c.l.b16 %v194
      %v770 = vunpack.c.l.b16 %v195
      %v771 = vunpack.c.l.b16 %v196
      %v772 = vunpack.c.l.b16 %v197
      %v773 = vunpack.c.l.b16 %v198
      %v774 = vunpack.c.l.b16 %v199
      %v775 = vunpack.c.l.b16 %v200
      %v776 = vunpack.c.l.b16 %v201
      %v777 = vunpack.c.l.b16 %v202
      %v778 = vunpack.c.l.b16 %v203
      %v779 = vunpack.c.l.b16 %v204
      %v780 = vunpack.c.l.b16 %v205
      %v781 = vunpack.c.l.b16 %v206
      %v782 = vunpack.c.l.b16 %v207
      %v783 = vunpack.c.l.b16 %v208
      %v784 = vunpack.c.l.b16 %v209
      %v785 = vunpack.c.l.b16 %v210
      %v786 = vunpack.c.l.b16 %v211
      %v787 = vunpack.c.l.b16 %v212
      %v788 = vunpack.c.l.b16 %v213
      %v789 = vunpack.c.l.b16 %v214
      %v790 = vunpack.c.l.b16 %v215
      %v791 = vunpack.c.l.b16 %v216
      %v792 = vunpack.c.l.b16 %v217
      %v793 = vunpack.c.l.b16 %v218
      %v794 = vunpack.c.l.b16 %v219
      %v795 = vunpack.c.l.b16 %v220
      %v796 = vunpack.c.l.b16 %v221
      %v797 = vunpack.c.l.b16 %v222
      %v798 = vunpack.c.l.b16 %v223
      %v799 = vunpack.c.l.b16 %v224
      %v800 = vunpack.c.l.b16 %v225
      %v801 = vunpack.c.l.b16 %v226
      %v802 = vunpack.c.l.b16 %v227
      %v803 = vunpack.c.l.b16 %v228
      %v804 = vunpack.c.l.b16 %v229
      %v805 = vunpack.c.l.b16 %v230
      %v806 = vunpack.c.l.b16 %v231
      %v807 = vunpack.c.l.b16 %v232
      %v808 = vunpack.c.l.b16 %v233
      %v809 = vunpack.c.l.b16 %v234
      %v810 = vunpack.c.l.b16 %v235
      %v811 = vunpack.c.l.b16 %v236
      %v812 = vunpack.c.l.b16 %v237
      %v813 = vunpack.c.l.b16 %v238
      %v814 = vunpack.c.l.b16 %v239
      %v815 = vunpack.c.l.b16 %v240
      %v816 = vunpack.c.l.b16 %v241
      %v817 = vunpack.c.l.b16 %v242
      %v818 = vunpack.c.l.b16 %v243
      %v819 = vunpack.c.l.b16 %v244
      %v820 = vunpack.c.l.b16 %v245
      %v821 = vunpack.c.l.b16 %v246
      %v822 = vunpack.c.l.b16 %v247
      %v823 = vunpack.c.l.b16 %v248
      %v824 = vunpack.c.l.b16 %v249
      %v825 = vunpack.c.l.b16 %v250
      %v826 = vunpack.c.l.b16 %v251
      %v827 = vpack.c.b16 %v764, %v763
      %v828 = vpack.c.b16 %v766, %v765
      %v829 = vpack.c.b16 %v768, %v767
      %v830 = vpack.c.b16 %v770, %v769
      %v831 = vpack.c.b16 %v772, %v771
      %v832 = vpack.c.b16 %v774, %v773
      %v833 = vpack.c.b16 %v776, %v775
      %v834 = vpack.c.b16 %v778, %v777
      %v835 = vpack.c.b16 %v780, %v779
      %v836 = vpack.c.b16 %v782, %v781
      %v837 = vpack.c.b16 %v784, %v783
      %v838 = vpack.c.b16 %v786, %v785
      %v839 = vpack.c.b16 %v788, %v787
      %v840 = vpack.c.b16 %v790, %v789
      %v841 = vpack.c.b16 %v792, %v791
      %v842 = vpack.c.b16 %v794, %v793
      %v843 = vpack.c.b16 %v796, %v795
      %v844 = vpack.c.b16 %v798, %v797
      %v845 = vpack.c.b16 %v800, %v799
      %v846 = vpack.c.b16 %v802, %v801
      %v847 = vpack.c.b16 %v804, %v803
      %v848 = vpack.c.b16 %v806, %v805
      %v849 = vpack.c.b16 %v808, %v807
      %v850 = vpack.c.b16 %v810, %v809
      %v851 = vpack.c.b16 %v812, %v811
      %v852 = vpack.c.b16 %v814, %v813
      %v853 = vpack.c.b16 %v816, %v815
      %v854 = vpack.c.b16 %v818, %v817
      %v855 = vpack.c.b16 %v820, %v819
      %v856 = vpack.c.b16 %v822, %v821
      %v857 = vpack.c.b16 %v824, %v823
      %v858 = vpack.c.b16 %v826, %v825
      %891 = vmatprep.subr.bf16.mxu0 0
      %892 = vmatpush1.bf16.msra.mxu0 %v827
      %893 = vmatprep.subr.bf16.mxu0 0
      %894 = vmatpush1.bf16.msra.mxu0 %v828
      %895 = vmatprep.subr.bf16.mxu0 0
      %896 = vmatpush1.bf16.msra.mxu0 %v829
      %897 = vmatprep.subr.bf16.mxu0 0
      %898 = vmatpush1.bf16.msra.mxu0 %v830
      %899 = vmatprep.subr.bf16.mxu0 0
      %900 = vmatpush1.bf16.msra.mxu0 %v831
      %901 = vmatprep.subr.bf16.mxu0 0
      %902 = vmatpush1.bf16.msra.mxu0 %v832
      %903 = vmatprep.subr.bf16.mxu0 0
      %904 = vmatpush1.bf16.msra.mxu0 %v833
      %905 = vmatprep.subr.bf16.mxu0 0
      %906 = vmatpush1.bf16.msra.mxu0 %v834
      %907 = vmatprep.subr.bf16.mxu0 0
      %908 = vmatpush1.bf16.msra.mxu0 %v835
      %909 = vmatprep.subr.bf16.mxu0 0
      %910 = vmatpush1.bf16.msra.mxu0 %v836
      %911 = vmatprep.subr.bf16.mxu0 0
      %912 = vmatpush1.bf16.msra.mxu0 %v837
      %913 = vmatprep.subr.bf16.mxu0 0
      %914 = vmatpush1.bf16.msra.mxu0 %v838
      %915 = vmatprep.subr.bf16.mxu0 0
      %916 = vmatpush1.bf16.msra.mxu0 %v839
      %917 = vmatprep.subr.bf16.mxu0 0
      %918 = vmatpush1.bf16.msra.mxu0 %v840
      %919 = vmatprep.subr.bf16.mxu0 0
      %920 = vmatpush1.bf16.msra.mxu0 %v841
      %921 = vmatprep.subr.bf16.mxu0 0
      %922 = vmatpush1.bf16.msra.mxu0 %v842
      %923 = vmatprep.mubr.bf16.mxu0 %v692
      %924 = vmatmul.mubr.bf16.gmra.mrb[0].mxu0 %v685
      %v925 = vpop.f32.mrb[0].mxu0
      %v926 = vadd.f32 %v665, %v925
      %v927 = vpop.f32.mrb[0].mxu0
      %v928 = vpop.f32.mrb[0].mxu0
      %v929 = vpop.f32.mrb[0].mxu0
      %930 = vdwg.mxu0
      %931 = vmatprep.subr.bf16.mxu0 0
      %932 = vmatpush1.bf16.msra.mxu0 %v843
      %933 = vmatprep.subr.bf16.mxu0 0
      %934 = vmatpush1.bf16.msra.mxu0 %v844
      %935 = vmatprep.subr.bf16.mxu0 0
      %936 = vmatpush1.bf16.msra.mxu0 %v845
      %937 = vmatprep.subr.bf16.mxu0 0
      %938 = vmatpush1.bf16.msra.mxu0 %v846
      %939 = vmatprep.subr.bf16.mxu0 0
      %940 = vmatpush1.bf16.msra.mxu0 %v847
      %941 = vmatprep.subr.bf16.mxu0 0
      %942 = vmatpush1.bf16.msra.mxu0 %v848
      %943 = vmatprep.subr.bf16.mxu0 0
      %944 = vmatpush1.bf16.msra.mxu0 %v849
      %945 = vmatprep.subr.bf16.mxu0 0
      %946 = vmatpush1.bf16.msra.mxu0 %v850
      %947 = vmatprep.subr.bf16.mxu0 0
      %948 = vmatpush1.bf16.msra.mxu0 %v851
      %949 = vmatprep.subr.bf16.mxu0 0
      %950 = vmatpush1.bf16.msra.mxu0 %v852
      %951 = vmatprep.subr.bf16.mxu0 0
      %952 = vmatpush1.bf16.msra.mxu0 %v853
      %953 = vmatprep.subr.bf16.mxu0 0
      %954 = vmatpush1.bf16.msra.mxu0 %v854
      %955 = vmatprep.subr.bf16.mxu0 0
      %956 = vmatpush1.bf16.msra.mxu0 %v855
      %957 = vmatprep.subr.bf16.mxu0 0
      %958 = vmatpush1.bf16.msra.mxu0 %v856
      %959 = vmatprep.subr.bf16.mxu0 0
      %960 = vmatpush1.bf16.msra.mxu0 %v857
      %961 = vmatprep.subr.bf16.mxu0 0
      %962 = vmatpush1.bf16.msra.mxu0 %v858
      %963 = vmatprep.mubr.bf16.mxu0 %v694
      %964 = vmatmul.mubr.bf16.gmra.mrb[0].mxu0 %v693
      %v965 = vpop.f32.mrb[0].mxu0
      %v966 = vadd.f32 %v926, %v965
      %v967 = vpop.f32.mrb[0].mxu0
      %v968 = vpop.f32.mrb[0].mxu0
      %v969 = vpop.f32.mrb[0].mxu0
      %970 = vdwg.mxu0
      %s971 = scalar_lea.vmem %s164, 8
      %v972 = vld [vmem:[%s971] sm:$0x55]
      %v973 = vld [vmem:[%s971 + $0x8] sm:$0x55]
      %v977 = vunpack.c.l.s4 1966171168
      %v978 = vunpack.c.0.s8 %v977
      %v979 = vlaneseq
      %v980 = vshrl.u32 %v979, 7
      %v981 = vsub.s32 %v978, %v980
      %v982 = vrot.slane %v972, %v981
      %v984 = vunpack.c.l.s4 1966171168
      %v985 = vunpack.c.0.s8 %v984
      %v986 = vlaneseq
      %v987 = vshrl.u32 %v986, 7
      %v988 = vsub.s32 %v985, %v987
      %v989 = vrot.slane %v973, %v988
      %v990 = vld [vmem:[%s1 + $0x200] sm:$0xf]
      %v991 = vld [vmem:[%s1 + $0x204] sm:$0xf]
      %v992 = vld [vmem:[%s1 + $0x208] sm:$0xf]
      %v993 = vld [vmem:[%s1 + $0x20c] sm:$0xf]
      %v994 = vld [vmem:[%s1 + $0x210] sm:$0xf]
      %v995 = vld [vmem:[%s1 + $0x214] sm:$0xf]
      %v996 = vld [vmem:[%s1 + $0x218] sm:$0xf]
      %v997 = vld [vmem:[%s1 + $0x21c] sm:$0xf]
      %v998 = vld [vmem:[%s1 + $0x220] sm:$0xf]
      %v999 = vld [vmem:[%s1 + $0x224] sm:$0xf]
      %v1000 = vld [vmem:[%s1 + $0x228] sm:$0xf]
      %v1001 = vld [vmem:[%s1 + $0x22c] sm:$0xf]
      %v1002 = vld [vmem:[%s1 + $0x230] sm:$0xf]
      %v1003 = vld [vmem:[%s1 + $0x234] sm:$0xf]
      %v1004 = vld [vmem:[%s1 + $0x238] sm:$0xf]
      %v1005 = vld [vmem:[%s1 + $0x23c] sm:$0xf]
      %v1006 = vld [vmem:[%s1 + $0x240] sm:$0xf]
      %v1007 = vld [vmem:[%s1 + $0x244] sm:$0xf]
      %v1008 = vld [vmem:[%s1 + $0x248] sm:$0xf]
      %v1009 = vld [vmem:[%s1 + $0x24c] sm:$0xf]
      %v1010 = vld [vmem:[%s1 + $0x250] sm:$0xf]
      %v1011 = vld [vmem:[%s1 + $0x254] sm:$0xf]
      %v1012 = vld [vmem:[%s1 + $0x258] sm:$0xf]
      %v1013 = vld [vmem:[%s1 + $0x25c] sm:$0xf]
      %v1014 = vld [vmem:[%s1 + $0x260] sm:$0xf]
      %v1015 = vld [vmem:[%s1 + $0x264] sm:$0xf]
      %v1016 = vld [vmem:[%s1 + $0x268] sm:$0xf]
      %v1017 = vld [vmem:[%s1 + $0x26c] sm:$0xf]
      %v1018 = vld [vmem:[%s1 + $0x270] sm:$0xf]
      %v1019 = vld [vmem:[%s1 + $0x274] sm:$0xf]
      %v1020 = vld [vmem:[%s1 + $0x278] sm:$0xf]
      %v1021 = vld [vmem:[%s1 + $0x27c] sm:$0xf]
      %v1022 = vld [vmem:[%s1 + $0x280] sm:$0xf]
      %v1023 = vld [vmem:[%s1 + $0x284] sm:$0xf]
      %v1024 = vld [vmem:[%s1 + $0x288] sm:$0xf]
      %v1025 = vld [vmem:[%s1 + $0x28c] sm:$0xf]
      %v1026 = vld [vmem:[%s1 + $0x290] sm:$0xf]
      %v1027 = vld [vmem:[%s1 + $0x294] sm:$0xf]
      %v1028 = vld [vmem:[%s1 + $0x298] sm:$0xf]
      %v1029 = vld [vmem:[%s1 + $0x29c] sm:$0xf]
      %v1030 = vld [vmem:[%s1 + $0x2a0] sm:$0xf]
      %v1031 = vld [vmem:[%s1 + $0x2a4] sm:$0xf]
      %v1032 = vld [vmem:[%s1 + $0x2a8] sm:$0xf]
      %v1033 = vld [vmem:[%s1 + $0x2ac] sm:$0xf]
      %v1034 = vld [vmem:[%s1 + $0x2b0] sm:$0xf]
      %v1035 = vld [vmem:[%s1 + $0x2b4] sm:$0xf]
      %v1036 = vld [vmem:[%s1 + $0x2b8] sm:$0xf]
      %v1037 = vld [vmem:[%s1 + $0x2bc] sm:$0xf]
      %v1038 = vld [vmem:[%s1 + $0x2c0] sm:$0xf]
      %v1039 = vld [vmem:[%s1 + $0x2c4] sm:$0xf]
      %v1040 = vld [vmem:[%s1 + $0x2c8] sm:$0xf]
      %v1041 = vld [vmem:[%s1 + $0x2cc] sm:$0xf]
      %v1042 = vld [vmem:[%s1 + $0x2d0] sm:$0xf]
      %v1043 = vld [vmem:[%s1 + $0x2d4] sm:$0xf]
      %v1044 = vld [vmem:[%s1 + $0x2d8] sm:$0xf]
      %v1045 = vld [vmem:[%s1 + $0x2dc] sm:$0xf]
      %v1046 = vld [vmem:[%s1 + $0x2e0] sm:$0xf]
      %v1047 = vld [vmem:[%s1 + $0x2e4] sm:$0xf]
      %v1048 = vld [vmem:[%s1 + $0x2e8] sm:$0xf]
      %v1049 = vld [vmem:[%s1 + $0x2ec] sm:$0xf]
      %v1050 = vld [vmem:[%s1 + $0x2f0] sm:$0xf]
      %v1051 = vld [vmem:[%s1 + $0x2f4] sm:$0xf]
      %v1052 = vld [vmem:[%s1 + $0x2f8] sm:$0xf]
      %v1053 = vld [vmem:[%s1 + $0x2fc] sm:$0xf]
      %v1054 = vcombine.low %v982, %v989
      %v1056 = vunpack.c.l.s4 1966171168
      %v1057 = vunpack.c.0.s8 %v1056
      %v1058 = vlaneseq
      %v1059 = vshrl.u32 %v1058, 7
      %v1060 = vsub.s32 %v1057, %v1059
      %v1061 = vrot.slane %v1054, %v1060
      %v1062 = vcombine.high %v1061, %v1061
      %v1064 = vunpack.c.l.s4 1966171168
      %v1065 = vunpack.c.0.s8 %v1064
      %v1066 = vlaneseq
      %v1067 = vshrl.u32 %v1066, 7
      %v1068 = vsub.s32 %v1065, %v1067
      %v1069 = vrot.slane %v1061, %v1068
      %v1071 = vunpack.c.l.s4 1966171168
      %v1072 = vunpack.c.0.s8 %v1071
      %v1073 = vlaneseq
      %v1074 = vshrl.u32 %v1073, 7
      %v1075 = vsub.s32 %v1072, %v1074
      %v1076 = vrot.slane %v1062, %v1075
      %v1077 = vcombine.high %v1069, %v1069
      %v1078 = vcombine.high %v1076, %v1076
      %v1147 = vunpack.c.l.b16 %v990
      %v1148 = vunpack.c.l.b16 %v991
      %v1149 = vunpack.c.l.b16 %v992
      %v1150 = vunpack.c.l.b16 %v993
      %v1151 = vunpack.c.l.b16 %v994
      %v1152 = vunpack.c.l.b16 %v995
      %v1153 = vunpack.c.l.b16 %v996
      %v1154 = vunpack.c.l.b16 %v997
      %v1155 = vunpack.c.l.b16 %v998
      %v1156 = vunpack.c.l.b16 %v999
      %v1157 = vunpack.c.l.b16 %v1000
      %v1158 = vunpack.c.l.b16 %v1001
      %v1159 = vunpack.c.l.b16 %v1002
      %v1160 = vunpack.c.l.b16 %v1003
      %v1161 = vunpack.c.l.b16 %v1004
      %v1162 = vunpack.c.l.b16 %v1005
      %v1163 = vunpack.c.l.b16 %v1006
      %v1164 = vunpack.c.l.b16 %v1007
      %v1165 = vunpack.c.l.b16 %v1008
      %v1166 = vunpack.c.l.b16 %v1009
      %v1167 = vunpack.c.l.b16 %v1010
      %v1168 = vunpack.c.l.b16 %v1011
      %v1169 = vunpack.c.l.b16 %v1012
      %v1170 = vunpack.c.l.b16 %v1013
      %v1171 = vunpack.c.l.b16 %v1014
      %v1172 = vunpack.c.l.b16 %v1015
      %v1173 = vunpack.c.l.b16 %v1016
      %v1174 = vunpack.c.l.b16 %v1017
      %v1175 = vunpack.c.l.b16 %v1018
      %v1176 = vunpack.c.l.b16 %v1019
      %v1177 = vunpack.c.l.b16 %v1020
      %v1178 = vunpack.c.l.b16 %v1021
      %v1179 = vunpack.c.l.b16 %v1022
      %v1180 = vunpack.c.l.b16 %v1023
      %v1181 = vunpack.c.l.b16 %v1024
      %v1182 = vunpack.c.l.b16 %v1025
      %v1183 = vunpack.c.l.b16 %v1026
      %v1184 = vunpack.c.l.b16 %v1027
      %v1185 = vunpack.c.l.b16 %v1028
      %v1186 = vunpack.c.l.b16 %v1029
      %v1187 = vunpack.c.l.b16 %v1030
      %v1188 = vunpack.c.l.b16 %v1031
      %v1189 = vunpack.c.l.b16 %v1032
      %v1190 = vunpack.c.l.b16 %v1033
      %v1191 = vunpack.c.l.b16 %v1034
      %v1192 = vunpack.c.l.b16 %v1035
      %v1193 = vunpack.c.l.b16 %v1036
      %v1194 = vunpack.c.l.b16 %v1037
      %v1195 = vunpack.c.l.b16 %v1038
      %v1196 = vunpack.c.l.b16 %v1039
      %v1197 = vunpack.c.l.b16 %v1040
      %v1198 = vunpack.c.l.b16 %v1041
      %v1199 = vunpack.c.l.b16 %v1042
      %v1200 = vunpack.c.l.b16 %v1043
      %v1201 = vunpack.c.l.b16 %v1044
      %v1202 = vunpack.c.l.b16 %v1045
      %v1203 = vunpack.c.l.b16 %v1046
      %v1204 = vunpack.c.l.b16 %v1047
      %v1205 = vunpack.c.l.b16 %v1048
      %v1206 = vunpack.c.l.b16 %v1049
      %v1207 = vunpack.c.l.b16 %v1050
      %v1208 = vunpack.c.l.b16 %v1051
      %v1209 = vunpack.c.l.b16 %v1052
      %v1210 = vunpack.c.l.b16 %v1053
      %v1211 = vpack.c.b16 %v1148, %v1147
      %v1212 = vpack.c.b16 %v1150, %v1149
      %v1213 = vpack.c.b16 %v1152, %v1151
      %v1214 = vpack.c.b16 %v1154, %v1153
      %v1215 = vpack.c.b16 %v1156, %v1155
      %v1216 = vpack.c.b16 %v1158, %v1157
      %v1217 = vpack.c.b16 %v1160, %v1159
      %v1218 = vpack.c.b16 %v1162, %v1161
      %v1219 = vpack.c.b16 %v1164, %v1163
      %v1220 = vpack.c.b16 %v1166, %v1165
      %v1221 = vpack.c.b16 %v1168, %v1167
      %v1222 = vpack.c.b16 %v1170, %v1169
      %v1223 = vpack.c.b16 %v1172, %v1171
      %v1224 = vpack.c.b16 %v1174, %v1173
      %v1225 = vpack.c.b16 %v1176, %v1175
      %v1226 = vpack.c.b16 %v1178, %v1177
      %v1227 = vpack.c.b16 %v1180, %v1179
      %v1228 = vpack.c.b16 %v1182, %v1181
      %v1229 = vpack.c.b16 %v1184, %v1183
      %v1230 = vpack.c.b16 %v1186, %v1185
      %v1231 = vpack.c.b16 %v1188, %v1187
      %v1232 = vpack.c.b16 %v1190, %v1189
      %v1233 = vpack.c.b16 %v1192, %v1191
      %v1234 = vpack.c.b16 %v1194, %v1193
      %v1235 = vpack.c.b16 %v1196, %v1195
      %v1236 = vpack.c.b16 %v1198, %v1197
      %v1237 = vpack.c.b16 %v1200, %v1199
      %v1238 = vpack.c.b16 %v1202, %v1201
      %v1239 = vpack.c.b16 %v1204, %v1203
      %v1240 = vpack.c.b16 %v1206, %v1205
      %v1241 = vpack.c.b16 %v1208, %v1207
      %v1242 = vpack.c.b16 %v1210, %v1209
      %1275 = vmatprep.subr.bf16.mxu0 0
      %1276 = vmatpush1.bf16.msra.mxu0 %v1211
      %1277 = vmatprep.subr.bf16.mxu0 0
      %1278 = vmatpush1.bf16.msra.mxu0 %v1212
      %1279 = vmatprep.subr.bf16.mxu0 0
      %1280 = vmatpush1.bf16.msra.mxu0 %v1213
      %1281 = vmatprep.subr.bf16.mxu0 0
      %1282 = vmatpush1.bf16.msra.mxu0 %v1214
      %1283 = vmatprep.subr.bf16.mxu0 0
      %1284 = vmatpush1.bf16.msra.mxu0 %v1215
      %1285 = vmatprep.subr.bf16.mxu0 0
      %1286 = vmatpush1.bf16.msra.mxu0 %v1216
      %1287 = vmatprep.subr.bf16.mxu0 0
      %1288 = vmatpush1.bf16.msra.mxu0 %v1217
      %1289 = vmatprep.subr.bf16.mxu0 0
      %1290 = vmatpush1.bf16.msra.mxu0 %v1218
      %1291 = vmatprep.subr.bf16.mxu0 0
      %1292 = vmatpush1.bf16.msra.mxu0 %v1219
      %1293 = vmatprep.subr.bf16.mxu0 0
      %1294 = vmatpush1.bf16.msra.mxu0 %v1220
      %1295 = vmatprep.subr.bf16.mxu0 0
      %1296 = vmatpush1.bf16.msra.mxu0 %v1221
      %1297 = vmatprep.subr.bf16.mxu0 0
      %1298 = vmatpush1.bf16.msra.mxu0 %v1222
      %1299 = vmatprep.subr.bf16.mxu0 0
      %1300 = vmatpush1.bf16.msra.mxu0 %v1223
      %1301 = vmatprep.subr.bf16.mxu0 0
      %1302 = vmatpush1.bf16.msra.mxu0 %v1224
      %1303 = vmatprep.subr.bf16.mxu0 0
      %1304 = vmatpush1.bf16.msra.mxu0 %v1225
      %1305 = vmatprep.subr.bf16.mxu0 0
      %1306 = vmatpush1.bf16.msra.mxu0 %v1226
      %1307 = vmatprep.mubr.bf16.mxu0 %v1076
      %1308 = vmatmul.mubr.bf16.gmra.mrb[0].mxu0 %v1069
      %v1309 = vpop.f32.mrb[0].mxu0
      %v1310 = vadd.f32 0.0, %v1309
      %v1311 = vpop.f32.mrb[0].mxu0
      %v1312 = vpop.f32.mrb[0].mxu0
      %v1313 = vpop.f32.mrb[0].mxu0
      %1314 = vdwg.mxu0
      %1315 = vmatprep.subr.bf16.mxu0 0
      %1316 = vmatpush1.bf16.msra.mxu0 %v1227
      %1317 = vmatprep.subr.bf16.mxu0 0
      %1318 = vmatpush1.bf16.msra.mxu0 %v1228
      %1319 = vmatprep.subr.bf16.mxu0 0
      %1320 = vmatpush1.bf16.msra.mxu0 %v1229
      %1321 = vmatprep.subr.bf16.mxu0 0
      %1322 = vmatpush1.bf16.msra.mxu0 %v1230
      %1323 = vmatprep.subr.bf16.mxu0 0
      %1324 = vmatpush1.bf16.msra.mxu0 %v1231
      %1325 = vmatprep.subr.bf16.mxu0 0
      %1326 = vmatpush1.bf16.msra.mxu0 %v1232
      %1327 = vmatprep.subr.bf16.mxu0 0
      %1328 = vmatpush1.bf16.msra.mxu0 %v1233
      %1329 = vmatprep.subr.bf16.mxu0 0
      %1330 = vmatpush1.bf16.msra.mxu0 %v1234
      %1331 = vmatprep.subr.bf16.mxu0 0
      %1332 = vmatpush1.bf16.msra.mxu0 %v1235
      %1333 = vmatprep.subr.bf16.mxu0 0
      %1334 = vmatpush1.bf16.msra.mxu0 %v1236
      %1335 = vmatprep.subr.bf16.mxu0 0
      %1336 = vmatpush1.bf16.msra.mxu0 %v1237
      %1337 = vmatprep.subr.bf16.mxu0 0
      %1338 = vmatpush1.bf16.msra.mxu0 %v1238
      %1339 = vmatprep.subr.bf16.mxu0 0
      %1340 = vmatpush1.bf16.msra.mxu0 %v1239
      %1341 = vmatprep.subr.bf16.mxu0 0
      %1342 = vmatpush1.bf16.msra.mxu0 %v1240
      %1343 = vmatprep.subr.bf16.mxu0 0
      %1344 = vmatpush1.bf16.msra.mxu0 %v1241
      %1345 = vmatprep.subr.bf16.mxu0 0
      %1346 = vmatpush1.bf16.msra.mxu0 %v1242
      %1347 = vmatprep.mubr.bf16.mxu0 %v1078
      %1348 = vmatmul.mubr.bf16.gmra.mrb[0].mxu0 %v1077
      %v1349 = vpop.f32.mrb[0].mxu0
      %v1350 = vadd.f32 %v1310, %v1349
      %v1351 = vpop.f32.mrb[0].mxu0
      %v1352 = vpop.f32.mrb[0].mxu0
      %v1353 = vpop.f32.mrb[0].mxu0
      %1354 = vdwg.mxu0
      %v1355 = vadd.f32 %v966, %v1350
      %v1356 = vld [vmem:[%s971] sm:$0xff]
      %v1357 = vld [vmem:[%s971 + $0x8] sm:$0xff]
      %v1361 = vunpack.c.l.s4 1966171168
      %v1362 = vunpack.c.0.s8 %v1361
      %v1363 = vlaneseq
      %v1364 = vshrl.u32 %v1363, 7
      %v1365 = vsub.s32 %v1362, %v1364
      %v1366 = vrot.slane %v1356, %v1365
      %v1367 = vcombine.high %v1366, %v1366
      %v1369 = vunpack.c.l.s4 1966171168
      %v1370 = vunpack.c.0.s8 %v1369
      %v1371 = vlaneseq
      %v1372 = vshrl.u32 %v1371, 7
      %v1373 = vsub.s32 %v1370, %v1372
      %v1374 = vrot.slane %v1357, %v1373
      %v1375 = vcombine.high %v1374, %v1374
      %v1377 = vshrl.u32 %v1366, 16
      %v1379 = vrot.slane %v1377, 7
      %v1380 = vrot.slane %v1379, 1
      %v1382 = vshll.u32 %v1367, 16
      %v1384 = vsel %vm286, %v1380, %v1382
      %v1386 = vshrl.u32 %v1374, 16
      %v1388 = vrot.slane %v1386, 7
      %v1389 = vrot.slane %v1388, 1
      %v1391 = vshll.u32 %v1375, 16
      %v1393 = vsel %vm286, %v1389, %v1391
      %v1394 = vld [vmem:[%s1 + $0x300] sm:$0xf]
      %v1395 = vld [vmem:[%s1 + $0x304] sm:$0xf]
      %v1396 = vld [vmem:[%s1 + $0x308] sm:$0xf]
      %v1397 = vld [vmem:[%s1 + $0x30c] sm:$0xf]
      %v1398 = vld [vmem:[%s1 + $0x310] sm:$0xf]
      %v1399 = vld [vmem:[%s1 + $0x314] sm:$0xf]
      %v1400 = vld [vmem:[%s1 + $0x318] sm:$0xf]
      %v1401 = vld [vmem:[%s1 + $0x31c] sm:$0xf]
      %v1402 = vld [vmem:[%s1 + $0x320] sm:$0xf]
      %v1403 = vld [vmem:[%s1 + $0x324] sm:$0xf]
      %v1404 = vld [vmem:[%s1 + $0x328] sm:$0xf]
      %v1405 = vld [vmem:[%s1 + $0x32c] sm:$0xf]
      %v1406 = vld [vmem:[%s1 + $0x330] sm:$0xf]
      %v1407 = vld [vmem:[%s1 + $0x334] sm:$0xf]
      %v1408 = vld [vmem:[%s1 + $0x338] sm:$0xf]
      %v1409 = vld [vmem:[%s1 + $0x33c] sm:$0xf]
      %v1410 = vld [vmem:[%s1 + $0x340] sm:$0xf]
      %v1411 = vld [vmem:[%s1 + $0x344] sm:$0xf]
      %v1412 = vld [vmem:[%s1 + $0x348] sm:$0xf]
      %v1413 = vld [vmem:[%s1 + $0x34c] sm:$0xf]
      %v1414 = vld [vmem:[%s1 + $0x350] sm:$0xf]
      %v1415 = vld [vmem:[%s1 + $0x354] sm:$0xf]
      %v1416 = vld [vmem:[%s1 + $0x358] sm:$0xf]
      %v1417 = vld [vmem:[%s1 + $0x35c] sm:$0xf]
      %v1418 = vld [vmem:[%s1 + $0x360] sm:$0xf]
      %v1419 = vld [vmem:[%s1 + $0x364] sm:$0xf]
      %v1420 = vld [vmem:[%s1 + $0x368] sm:$0xf]
      %v1421 = vld [vmem:[%s1 + $0x36c] sm:$0xf]
      %v1422 = vld [vmem:[%s1 + $0x370] sm:$0xf]
      %v1423 = vld [vmem:[%s1 + $0x374] sm:$0xf]
      %v1424 = vld [vmem:[%s1 + $0x378] sm:$0xf]
      %v1425 = vld [vmem:[%s1 + $0x37c] sm:$0xf]
      %v1426 = vld [vmem:[%s1 + $0x380] sm:$0xf]
      %v1427 = vld [vmem:[%s1 + $0x384] sm:$0xf]
      %v1428 = vld [vmem:[%s1 + $0x388] sm:$0xf]
      %v1429 = vld [vmem:[%s1 + $0x38c] sm:$0xf]
      %v1430 = vld [vmem:[%s1 + $0x390] sm:$0xf]
      %v1431 = vld [vmem:[%s1 + $0x394] sm:$0xf]
      %v1432 = vld [vmem:[%s1 + $0x398] sm:$0xf]
      %v1433 = vld [vmem:[%s1 + $0x39c] sm:$0xf]
      %v1434 = vld [vmem:[%s1 + $0x3a0] sm:$0xf]
      %v1435 = vld [vmem:[%s1 + $0x3a4] sm:$0xf]
      %v1436 = vld [vmem:[%s1 + $0x3a8] sm:$0xf]
      %v1437 = vld [vmem:[%s1 + $0x3ac] sm:$0xf]
      %v1438 = vld [vmem:[%s1 + $0x3b0] sm:$0xf]
      %v1439 = vld [vmem:[%s1 + $0x3b4] sm:$0xf]
      %v1440 = vld [vmem:[%s1 + $0x3b8] sm:$0xf]
      %v1441 = vld [vmem:[%s1 + $0x3bc] sm:$0xf]
      %v1442 = vld [vmem:[%s1 + $0x3c0] sm:$0xf]
      %v1443 = vld [vmem:[%s1 + $0x3c4] sm:$0xf]
      %v1444 = vld [vmem:[%s1 + $0x3c8] sm:$0xf]
      %v1445 = vld [vmem:[%s1 + $0x3cc] sm:$0xf]
      %v1446 = vld [vmem:[%s1 + $0x3d0] sm:$0xf]
      %v1447 = vld [vmem:[%s1 + $0x3d4] sm:$0xf]
      %v1448 = vld [vmem:[%s1 + $0x3d8] sm:$0xf]
      %v1449 = vld [vmem:[%s1 + $0x3dc] sm:$0xf]
      %v1450 = vld [vmem:[%s1 + $0x3e0] sm:$0xf]
      %v1451 = vld [vmem:[%s1 + $0x3e4] sm:$0xf]
      %v1452 = vld [vmem:[%s1 + $0x3e8] sm:$0xf]
      %v1453 = vld [vmem:[%s1 + $0x3ec] sm:$0xf]
      %v1454 = vld [vmem:[%s1 + $0x3f0] sm:$0xf]
      %v1455 = vld [vmem:[%s1 + $0x3f4] sm:$0xf]
      %v1456 = vld [vmem:[%s1 + $0x3f8] sm:$0xf]
      %v1457 = vld [vmem:[%s1 + $0x3fc] sm:$0xf]
      %v1458 = vcombine.low %v1384, %v1393
      %v1460 = vunpack.c.l.s4 1966171168
      %v1461 = vunpack.c.0.s8 %v1460
      %v1462 = vlaneseq
      %v1463 = vshrl.u32 %v1462, 7
      %v1464 = vsub.s32 %v1461, %v1463
      %v1465 = vrot.slane %v1458, %v1464
      %v1466 = vcombine.high %v1465, %v1465
      %v1468 = vunpack.c.l.s4 1966171168
      %v1469 = vunpack.c.0.s8 %v1468
      %v1470 = vlaneseq
      %v1471 = vshrl.u32 %v1470, 7
      %v1472 = vsub.s32 %v1469, %v1471
      %v1473 = vrot.slane %v1465, %v1472
      %v1475 = vunpack.c.l.s4 1966171168
      %v1476 = vunpack.c.0.s8 %v1475
      %v1477 = vlaneseq
      %v1478 = vshrl.u32 %v1477, 7
      %v1479 = vsub.s32 %v1476, %v1478
      %v1480 = vrot.slane %v1466, %v1479
      %v1481 = vcombine.high %v1473, %v1473
      %v1482 = vcombine.high %v1480, %v1480
      %v1551 = vunpack.c.l.b16 %v1394
      %v1552 = vunpack.c.l.b16 %v1395
      %v1553 = vunpack.c.l.b16 %v1396
      %v1554 = vunpack.c.l.b16 %v1397
      %v1555 = vunpack.c.l.b16 %v1398
      %v1556 = vunpack.c.l.b16 %v1399
      %v1557 = vunpack.c.l.b16 %v1400
      %v1558 = vunpack.c.l.b16 %v1401
      %v1559 = vunpack.c.l.b16 %v1402
      %v1560 = vunpack.c.l.b16 %v1403
      %v1561 = vunpack.c.l.b16 %v1404
      %v1562 = vunpack.c.l.b16 %v1405
      %v1563 = vunpack.c.l.b16 %v1406
      %v1564 = vunpack.c.l.b16 %v1407
      %v1565 = vunpack.c.l.b16 %v1408
      %v1566 = vunpack.c.l.b16 %v1409
      %v1567 = vunpack.c.l.b16 %v1410
      %v1568 = vunpack.c.l.b16 %v1411
      %v1569 = vunpack.c.l.b16 %v1412
      %v1570 = vunpack.c.l.b16 %v1413
      %v1571 = vunpack.c.l.b16 %v1414
      %v1572 = vunpack.c.l.b16 %v1415
      %v1573 = vunpack.c.l.b16 %v1416
      %v1574 = vunpack.c.l.b16 %v1417
      %v1575 = vunpack.c.l.b16 %v1418
      %v1576 = vunpack.c.l.b16 %v1419
      %v1577 = vunpack.c.l.b16 %v1420
      %v1578 = vunpack.c.l.b16 %v1421
      %v1579 = vunpack.c.l.b16 %v1422
      %v1580 = vunpack.c.l.b16 %v1423
      %v1581 = vunpack.c.l.b16 %v1424
      %v1582 = vunpack.c.l.b16 %v1425
      %v1583 = vunpack.c.l.b16 %v1426
      %v1584 = vunpack.c.l.b16 %v1427
      %v1585 = vunpack.c.l.b16 %v1428
      %v1586 = vunpack.c.l.b16 %v1429
      %v1587 = vunpack.c.l.b16 %v1430
      %v1588 = vunpack.c.l.b16 %v1431
      %v1589 = vunpack.c.l.b16 %v1432
      %v1590 = vunpack.c.l.b16 %v1433
      %v1591 = vunpack.c.l.b16 %v1434
      %v1592 = vunpack.c.l.b16 %v1435
      %v1593 = vunpack.c.l.b16 %v1436
      %v1594 = vunpack.c.l.b16 %v1437
      %v1595 = vunpack.c.l.b16 %v1438
      %v1596 = vunpack.c.l.b16 %v1439
      %v1597 = vunpack.c.l.b16 %v1440
      %v1598 = vunpack.c.l.b16 %v1441
      %v1599 = vunpack.c.l.b16 %v1442
      %v1600 = vunpack.c.l.b16 %v1443
      %v1601 = vunpack.c.l.b16 %v1444
      %v1602 = vunpack.c.l.b16 %v1445
      %v1603 = vunpack.c.l.b16 %v1446
      %v1604 = vunpack.c.l.b16 %v1447
      %v1605 = vunpack.c.l.b16 %v1448
      %v1606 = vunpack.c.l.b16 %v1449
      %v1607 = vunpack.c.l.b16 %v1450
      %v1608 = vunpack.c.l.b16 %v1451
      %v1609 = vunpack.c.l.b16 %v1452
      %v1610 = vunpack.c.l.b16 %v1453
      %v1611 = vunpack.c.l.b16 %v1454
      %v1612 = vunpack.c.l.b16 %v1455
      %v1613 = vunpack.c.l.b16 %v1456
      %v1614 = vunpack.c.l.b16 %v1457
      %v1615 = vpack.c.b16 %v1552, %v1551
      %v1616 = vpack.c.b16 %v1554, %v1553
      %v1617 = vpack.c.b16 %v1556, %v1555
      %v1618 = vpack.c.b16 %v1558, %v1557
      %v1619 = vpack.c.b16 %v1560, %v1559
      %v1620 = vpack.c.b16 %v1562, %v1561
      %v1621 = vpack.c.b16 %v1564, %v1563
      %v1622 = vpack.c.b16 %v1566, %v1565
      %v1623 = vpack.c.b16 %v1568, %v1567
      %v1624 = vpack.c.b16 %v1570, %v1569
      %v1625 = vpack.c.b16 %v1572, %v1571
      %v1626 = vpack.c.b16 %v1574, %v1573
      %v1627 = vpack.c.b16 %v1576, %v1575
      %v1628 = vpack.c.b16 %v1578, %v1577
      %v1629 = vpack.c.b16 %v1580, %v1579
      %v1630 = vpack.c.b16 %v1582, %v1581
      %v1631 = vpack.c.b16 %v1584, %v1583
      %v1632 = vpack.c.b16 %v1586, %v1585
      %v1633 = vpack.c.b16 %v1588, %v1587
      %v1634 = vpack.c.b16 %v1590, %v1589
      %v1635 = vpack.c.b16 %v1592, %v1591
      %v1636 = vpack.c.b16 %v1594, %v1593
      %v1637 = vpack.c.b16 %v1596, %v1595
      %v1638 = vpack.c.b16 %v1598, %v1597
      %v1639 = vpack.c.b16 %v1600, %v1599
      %v1640 = vpack.c.b16 %v1602, %v1601
      %v1641 = vpack.c.b16 %v1604, %v1603
      %v1642 = vpack.c.b16 %v1606, %v1605
      %v1643 = vpack.c.b16 %v1608, %v1607
      %v1644 = vpack.c.b16 %v1610, %v1609
      %v1645 = vpack.c.b16 %v1612, %v1611
      %v1646 = vpack.c.b16 %v1614, %v1613
      %1679 = vmatprep.subr.bf16.mxu0 0
      %1680 = vmatpush1.bf16.msra.mxu0 %v1615
      %1681 = vmatprep.subr.bf16.mxu0 0
      %1682 = vmatpush1.bf16.msra.mxu0 %v1616
      %1683 = vmatprep.subr.bf16.mxu0 0
      %1684 = vmatpush1.bf16.msra.mxu0 %v1617
      %1685 = vmatprep.subr.bf16.mxu0 0
      %1686 = vmatpush1.bf16.msra.mxu0 %v1618
      %1687 = vmatprep.subr.bf16.mxu0 0
      %1688 = vmatpush1.bf16.msra.mxu0 %v1619
      %1689 = vmatprep.subr.bf16.mxu0 0
      %1690 = vmatpush1.bf16.msra.mxu0 %v1620
      %1691 = vmatprep.subr.bf16.mxu0 0
      %1692 = vmatpush1.bf16.msra.mxu0 %v1621
      %1693 = vmatprep.subr.bf16.mxu0 0
      %1694 = vmatpush1.bf16.msra.mxu0 %v1622
      %1695 = vmatprep.subr.bf16.mxu0 0
      %1696 = vmatpush1.bf16.msra.mxu0 %v1623
      %1697 = vmatprep.subr.bf16.mxu0 0
      %1698 = vmatpush1.bf16.msra.mxu0 %v1624
      %1699 = vmatprep.subr.bf16.mxu0 0
      %1700 = vmatpush1.bf16.msra.mxu0 %v1625
      %1701 = vmatprep.subr.bf16.mxu0 0
      %1702 = vmatpush1.bf16.msra.mxu0 %v1626
      %1703 = vmatprep.subr.bf16.mxu0 0
      %1704 = vmatpush1.bf16.msra.mxu0 %v1627
      %1705 = vmatprep.subr.bf16.mxu0 0
      %1706 = vmatpush1.bf16.msra.mxu0 %v1628
      %1707 = vmatprep.subr.bf16.mxu0 0
      %1708 = vmatpush1.bf16.msra.mxu0 %v1629
      %1709 = vmatprep.subr.bf16.mxu0 0
      %1710 = vmatpush1.bf16.msra.mxu0 %v1630
      %1711 = vmatprep.mubr.bf16.mxu0 %v1480
      %1712 = vmatmul.mubr.bf16.gmra.mrb[0].mxu0 %v1473
      %v1713 = vpop.f32.mrb[0].mxu0
      %v1714 = vadd.f32 0.0, %v1713
      %v1715 = vpop.f32.mrb[0].mxu0
      %v1716 = vpop.f32.mrb[0].mxu0
      %v1717 = vpop.f32.mrb[0].mxu0
      %1718 = vdwg.mxu0
      %1719 = vmatprep.subr.bf16.mxu0 0
      %1720 = vmatpush1.bf16.msra.mxu0 %v1631
      %1721 = vmatprep.subr.bf16.mxu0 0
      %1722 = vmatpush1.bf16.msra.mxu0 %v1632
      %1723 = vmatprep.subr.bf16.mxu0 0
      %1724 = vmatpush1.bf16.msra.mxu0 %v1633
      %1725 = vmatprep.subr.bf16.mxu0 0
      %1726 = vmatpush1.bf16.msra.mxu0 %v1634
      %1727 = vmatprep.subr.bf16.mxu0 0
      %1728 = vmatpush1.bf16.msra.mxu0 %v1635
      %1729 = vmatprep.subr.bf16.mxu0 0
      %1730 = vmatpush1.bf16.msra.mxu0 %v1636
      %1731 = vmatprep.subr.bf16.mxu0 0
      %1732 = vmatpush1.bf16.msra.mxu0 %v1637
      %1733 = vmatprep.subr.bf16.mxu0 0
      %1734 = vmatpush1.bf16.msra.mxu0 %v1638
      %1735 = vmatprep.subr.bf16.mxu0 0
      %1736 = vmatpush1.bf16.msra.mxu0 %v1639
      %1737 = vmatprep.subr.bf16.mxu0 0
      %1738 = vmatpush1.bf16.msra.mxu0 %v1640
      %1739 = vmatprep.subr.bf16.mxu0 0
      %1740 = vmatpush1.bf16.msra.mxu0 %v1641
      %1741 = vmatprep.subr.bf16.mxu0 0
      %1742 = vmatpush1.bf16.msra.mxu0 %v1642
      %1743 = vmatprep.subr.bf16.mxu0 0
      %1744 = vmatpush1.bf16.msra.mxu0 %v1643
      %1745 = vmatprep.subr.bf16.mxu0 0
      %1746 = vmatpush1.bf16.msra.mxu0 %v1644
      %1747 = vmatprep.subr.bf16.mxu0 0
      %1748 = vmatpush1.bf16.msra.mxu0 %v1645
      %1749 = vmatprep.subr.bf16.mxu0 0
      %1750 = vmatpush1.bf16.msra.mxu0 %v1646
      %1751 = vmatprep.mubr.bf16.mxu0 %v1482
      %1752 = vmatmul.mubr.bf16.gmra.mrb[0].mxu0 %v1481
      %v1753 = vpop.f32.mrb[0].mxu0
      %v1754 = vadd.f32 %v1714, %v1753
      %v1755 = vpop.f32.mrb[0].mxu0
      %v1756 = vpop.f32.mrb[0].mxu0
      %v1757 = vpop.f32.mrb[0].mxu0
      %1758 = vdwg.mxu0
      %v1759 = vadd.f32 %v1355, %v1754
      %v1760 = vld [vmem:[%s2] sm:$0x1]
      %v1762 = vlaneseq
      %v1763 = vshrl.u32 %v1762, 7
      %v1764 = vsub.s32 0, %v1763
      %v1765 = vrot.slane %v1760, %v1764
      %v1767 = vadd.f32 %v1759, %v1765
      %v1768 = vmax.f32 %v1767, 0.0
      %v1771 = vunpack.c.l.s4 1983009808
      %v1772 = vunpack.c.0.s8 %v1771
      %v1773 = vlaneseq
      %v1774 = vshrl.u32 %v1773, 7
      %v1775 = vsub.s32 %v1772, %v1774
      %v1776 = vrot.slane %v1768, %v1775
      %v1777 = vcombine.high %v1776, %v1776
      %v1780 = vpack.c.bf16 %v1776, %v1776
      %v1781 = vpack.c.bf16 %v1777, %v1777
      %1782 = vst [vmem:[%s168] sm:$0x1] %v1780
      %1783 = vst [vmem:[%s168 + $0x1] sm:$0x1] %v1781
      %p1784 = scmp.lt.s32.totalorder %s14, 1
      %s1785 = scalar_select %p1784, %s14, 1
      %s1786 = smul.addr %s1785, 2
      %s1787 = scalar_lea.vmem %s3, %s1786
      // Predicated region
      $region33: #{_lambda_.7} parent=31 // pred_check
        %p1788 = pneg %p100
      $region34: #{_lambda_.7} parent=31 // pred_check_branch
        %1790 = sbr.rel (%p1788) target = $region36
      $region35: #{_lambda_.7} parent=31 // pred_region
        _
      $region36: #{_lambda_.7} parent=31 // pred_fallthru
        _
    $region32: #{_lambda_.7} parent=5 // pred_fallthru
      _
    %p1791 = scmp.le.s32.totalorder 2, %s9
    // Predicated region
    $region37: #{_lambda_.7} parent=5 // pred_check
      %p1792 = pneg %p1791
    $region38: #{_lambda_.7} parent=5 // pred_check_branch
      %1794 = sbr.rel (%p1792) target = $region40
    $region39: #{_lambda_.7} parent=5 // pred_region
      %s1795 = ssub.s32 %s9, 2
      // Predicated region
      $region41: #{_lambda_.7} parent=39 // pred_check
        %p1796 = pneg %p106
      $region42: #{_lambda_.7} parent=39 // pred_check_branch
        %1798 = sbr.rel (%p1796) target = $region44
      $region43: #{_lambda_.7} parent=39 // pred_region
        %p1799 = scmp.lt.s32.totalorder %s15, 1
        %s1800 = scalar_select %p1799, %s15, 1
        %s1801 = smul.addr %s1800, 2
        %s1802 = scalar_lea.vmem %s3, %s1801
      $region44: #{_lambda_.7} parent=39 // pred_fallthru
        _
    $region40: #{_lambda_.7} parent=5 // pred_fallthru
      _
  $region6: #{_lambda_.7} parent=0 // loop_footer
    %s13 = sadd.s32 1, %s9
  $region7: #{_lambda_.7} parent=0 // loop_footer_branch
    %8 = sbr.rel target = $region3
  $region8: #{_lambda_.7} parent=0 // loop_exit
    _

// kernel: _lambda_.9
$region0: #{_lambda_.9}
  #allocation0 [shape = 'u32[]', space=smem, size = 0x4, offset = 0x4, fixed_abs, tag = 'smem constant byte address 0x4 - core index']
  #allocation1 [shape = 'u32[144,128]{1,0:T(1,128)}', space=vmem, size = 0x12000, scoped, tag = 'internal scratch']
  %s0 = inlined_call_operand.vmem [shape: bf16[2,4,4,128], index: 0, kind: input, shape index: {}]
  %s1 = inlined_call_operand.vmem [shape: f32[2,8,128], index: 1, kind: input, shape index: {}]
  %s2 = inlined_call_operand.vmem [shape: bf16[128,128], index: 2, kind: input, shape index: {}]
  %s3 = inlined_call_operand.vmem [shape: f32[1,128], index: 3, kind: input, shape index: {}]
  %s4 = inlined_call_operand.vmem [shape: bf16[1152,128], index: 4, kind: input, shape index: {}]
  %s5 = inlined_call_operand.vmem [shape: f32[1,128], index: 5, kind: input, shape index: {}]
  %s6 = inlined_call_operand.vmem [shape: bf16[128,128], index: 6, kind: input, shape index: {}]
  %s7 = inlined_call_operand.vmem [shape: f32[1,128], index: 7, kind: input, shape index: {}]
  %s8 = inlined_call_operand.vmem [shape: f32[2,4,128], index: 8, kind: output, shape index: {}]
  %s9 = sld [smem:[#allocation0]]
  $region65: #{_lambda_.9} parent=0
    _
  %s11 = ssub.s32 1, %s9
  %s12 = scalar_select 0, %s11, %s9
  loop: start=0, step=1, limit=4
  $region2: #{_lambda_.9} parent=0 // loop_pre_header
    _
  $region3: #{_lambda_.9} parent=0 // loop_header
    %s14 = sphi 0, %s18
    %p15 = scmp.ge.s32.totalorder %s14, 4
    %s24 = sphi 0, %s26
    %s27 = sphi 0, %s24
    %s28 = sphi 0, %s27
    %s44 = sphi 0, %s28
    %s50 = sphi 0, %s52
    %s53 = sphi 0, %s50
    %s54 = sphi 0, %s53
    %s70 = sphi 0, %s54
    %s74 = sphi 0, %s74
    %s76 = sphi 0, %s74
    %s77 = sphi 0, %s76
    %s91 = sphi 0, %s77
    %s95 = sphi 0, %s95
    %s97 = sphi 0, %s95
    %s98 = sphi 0, %s97
    %s112 = sphi 0, %s98
    %s116 = sphi 0, %s116
    %s118 = sphi 0, %s116
    %s119 = sphi 0, %s118
    %s133 = sphi 0, %s119
    %s137 = sphi 0, %s137
    %s139 = sphi 0, %s137
    %s140 = sphi 0, %s139
    %s154 = sphi 0, %s140
    %s158 = sphi 0, %s158
    %s160 = sphi 0, %s158
    %s161 = sphi 0, %s160
    %s175 = sphi 0, %s161
    %s179 = sphi 0, %s179
    %s181 = sphi 0, %s179
    %s182 = sphi 0, %s181
    %s196 = sphi 0, %s182
    %s202 = sphi 0, %s204
    %s205 = sphi 0, %s202
    %s206 = sphi 0, %s205
    %s222 = sphi 0, %s206
  $region4: #{_lambda_.9} parent=0 // loop_header_branch
    %17 = sbr.rel (%p15) target = $region8
  $region5: #{_lambda_.9} parent=0 // loop_body
    %s19 = ssub.s32 %s14, 1
    %s20 = ssub.s32 %s14, 2
    %s21 = sadd.s32 %s14, 1
    %s22 = ssub.s32 %s14, %s21
    %p23 = scmp.eq.s32.totalorder %s22, 0
    %s25 = sadd.s32 %s24, 1
    %s26 = scalar_select %p23, %s24, %s25
    %p29 = pneg %p23
    %p30 = scmp.eq.s32.totalorder %s14, 1
    %p31 = por %p29, %p30
    %p32 = scmp.ne.s32.totalorder %s24, %s27
    %p33 = scmp.eq.s32.totalorder %s14, 0
    %p34 = por %p32, %p33
    %p35 = scmp.ne.s32.totalorder %s24, %s27
    %p36 = scmp.eq.s32.totalorder %s19, 1
    %p37 = por %p35, %p36
    %p38 = scmp.ne.s32.totalorder %s27, %s28
    %p39 = scmp.eq.s32.totalorder %s19, 0
    %p40 = por %p38, %p39
    %p41 = scmp.ne.s32.totalorder %s27, %s28
    %p42 = scmp.eq.s32.totalorder %s20, 1
    %p43 = por %p41, %p42
    %p45 = scmp.ne.s32.totalorder %s28, %s44
    %p46 = scmp.eq.s32.totalorder %s20, 0
    %p47 = por %p45, %p46
    %s48 = ssub.s32 %s14, %s21
    %p49 = scmp.eq.s32.totalorder %s48, 0
    %s51 = sadd.s32 %s50, 1
    %s52 = scalar_select %p49, %s50, %s51
    %p55 = pneg %p49
    %p56 = scmp.eq.s32.totalorder %s14, 1
    %p57 = por %p55, %p56
    %p58 = scmp.ne.s32.totalorder %s50, %s53
    %p59 = scmp.eq.s32.totalorder %s14, 0
    %p60 = por %p58, %p59
    %p61 = scmp.ne.s32.totalorder %s50, %s53
    %p62 = scmp.eq.s32.totalorder %s19, 1
    %p63 = por %p61, %p62
    %p64 = scmp.ne.s32.totalorder %s53, %s54
    %p65 = scmp.eq.s32.totalorder %s19, 0
    %p66 = por %p64, %p65
    %p67 = scmp.ne.s32.totalorder %s53, %s54
    %p68 = scmp.eq.s32.totalorder %s20, 1
    %p69 = por %p67, %p68
    %p71 = scmp.ne.s32.totalorder %s54, %s70
    %p72 = scmp.eq.s32.totalorder %s20, 0
    %p73 = por %p71, %p72
    %s75 = sadd.s32 %s74, 1
    %p78 = scmp.eq.s32.totalorder %s14, 1
    %p79 = scmp.ne.s32.totalorder %s74, %s76
    %p80 = scmp.eq.s32.totalorder %s14, 0
    %p81 = por %p79, %p80
    %p82 = scmp.ne.s32.totalorder %s74, %s76
    %p83 = scmp.eq.s32.totalorder %s19, 1
    %p84 = por %p82, %p83
    %p85 = scmp.ne.s32.totalorder %s76, %s77
    %p86 = scmp.eq.s32.totalorder %s19, 0
    %p87 = por %p85, %p86
    %p88 = scmp.ne.s32.totalorder %s76, %s77
    %p89 = scmp.eq.s32.totalorder %s20, 1
    %p90 = por %p88, %p89
    %p92 = scmp.ne.s32.totalorder %s77, %s91
    %p93 = scmp.eq.s32.totalorder %s20, 0
    %p94 = por %p92, %p93
    %s96 = sadd.s32 %s95, 1
    %p99 = scmp.eq.s32.totalorder %s14, 1
    %p100 = scmp.ne.s32.totalorder %s95, %s97
    %p101 = scmp.eq.s32.totalorder %s14, 0
    %p102 = por %p100, %p101
    %p103 = scmp.ne.s32.totalorder %s95, %s97
    %p104 = scmp.eq.s32.totalorder %s19, 1
    %p105 = por %p103, %p104
    %p106 = scmp.ne.s32.totalorder %s97, %s98
    %p107 = scmp.eq.s32.totalorder %s19, 0
    %p108 = por %p106, %p107
    %p109 = scmp.ne.s32.totalorder %s97, %s98
    %p110 = scmp.eq.s32.totalorder %s20, 1
    %p111 = por %p109, %p110
    %p113 = scmp.ne.s32.totalorder %s98, %s112
    %p114 = scmp.eq.s32.totalorder %s20, 0
    %p115 = por %p113, %p114
    %s117 = sadd.s32 %s116, 1
    %p120 = scmp.eq.s32.totalorder %s14, 1
    %p121 = scmp.ne.s32.totalorder %s116, %s118
    %p122 = scmp.eq.s32.totalorder %s14, 0
    %p123 = por %p121, %p122
    %p124 = scmp.ne.s32.totalorder %s116, %s118
    %p125 = scmp.eq.s32.totalorder %s19, 1
    %p126 = por %p124, %p125
    %p127 = scmp.ne.s32.totalorder %s118, %s119
    %p128 = scmp.eq.s32.totalorder %s19, 0
    %p129 = por %p127, %p128
    %p130 = scmp.ne.s32.totalorder %s118, %s119
    %p131 = scmp.eq.s32.totalorder %s20, 1
    %p132 = por %p130, %p131
    %p134 = scmp.ne.s32.totalorder %s119, %s133
    %p135 = scmp.eq.s32.totalorder %s20, 0
    %p136 = por %p134, %p135
    %s138 = sadd.s32 %s137, 1
    %p141 = scmp.eq.s32.totalorder %s14, 1
    %p142 = scmp.ne.s32.totalorder %s137, %s139
    %p143 = scmp.eq.s32.totalorder %s14, 0
    %p144 = por %p142, %p143
    %p145 = scmp.ne.s32.totalorder %s137, %s139
    %p146 = scmp.eq.s32.totalorder %s19, 1
    %p147 = por %p145, %p146
    %p148 = scmp.ne.s32.totalorder %s139, %s140
    %p149 = scmp.eq.s32.totalorder %s19, 0
    %p150 = por %p148, %p149
    %p151 = scmp.ne.s32.totalorder %s139, %s140
    %p152 = scmp.eq.s32.totalorder %s20, 1
    %p153 = por %p151, %p152
    %p155 = scmp.ne.s32.totalorder %s140, %s154
    %p156 = scmp.eq.s32.totalorder %s20, 0
    %p157 = por %p155, %p156
    %s159 = sadd.s32 %s158, 1
    %p162 = scmp.eq.s32.totalorder %s14, 1
    %p163 = scmp.ne.s32.totalorder %s158, %s160
    %p164 = scmp.eq.s32.totalorder %s14, 0
    %p165 = por %p163, %p164
    %p166 = scmp.ne.s32.totalorder %s158, %s160
    %p167 = scmp.eq.s32.totalorder %s19, 1
    %p168 = por %p166, %p167
    %p169 = scmp.ne.s32.totalorder %s160, %s161
    %p170 = scmp.eq.s32.totalorder %s19, 0
    %p171 = por %p169, %p170
    %p172 = scmp.ne.s32.totalorder %s160, %s161
    %p173 = scmp.eq.s32.totalorder %s20, 1
    %p174 = por %p172, %p173
    %p176 = scmp.ne.s32.totalorder %s161, %s175
    %p177 = scmp.eq.s32.totalorder %s20, 0
    %p178 = por %p176, %p177
    %s180 = sadd.s32 %s179, 1
    %p183 = scmp.eq.s32.totalorder %s14, 1
    %p184 = scmp.ne.s32.totalorder %s179, %s181
    %p185 = scmp.eq.s32.totalorder %s14, 0
    %p186 = por %p184, %p185
    %p187 = scmp.ne.s32.totalorder %s179, %s181
    %p188 = scmp.eq.s32.totalorder %s19, 1
    %p189 = por %p187, %p188
    %p190 = scmp.ne.s32.totalorder %s181, %s182
    %p191 = scmp.eq.s32.totalorder %s19, 0
    %p192 = por %p190, %p191
    %p193 = scmp.ne.s32.totalorder %s181, %s182
    %p194 = scmp.eq.s32.totalorder %s20, 1
    %p195 = por %p193, %p194
    %p197 = scmp.ne.s32.totalorder %s182, %s196
    %p198 = scmp.eq.s32.totalorder %s20, 0
    %p199 = por %p197, %p198
    %s200 = ssub.s32 %s14, %s21
    %p201 = scmp.eq.s32.totalorder %s200, 0
    %s203 = sadd.s32 %s202, 1
    %s204 = scalar_select %p201, %s202, %s203
    %p207 = pneg %p201
    %p208 = scmp.eq.s32.totalorder %s14, 1
    %p209 = por %p207, %p208
    %p210 = scmp.ne.s32.totalorder %s202, %s205
    %p211 = scmp.eq.s32.totalorder %s14, 0
    %p212 = por %p210, %p211
    %p213 = scmp.ne.s32.totalorder %s202, %s205
    %p214 = scmp.eq.s32.totalorder %s19, 1
    %p215 = por %p213, %p214
    %p216 = scmp.ne.s32.totalorder %s205, %s206
    %p217 = scmp.eq.s32.totalorder %s19, 0
    %p218 = por %p216, %p217
    %p219 = scmp.ne.s32.totalorder %s205, %s206
    %p220 = scmp.eq.s32.totalorder %s20, 1
    %p221 = por %p219, %p220
    %p223 = scmp.ne.s32.totalorder %s206, %s222
    %p224 = scmp.eq.s32.totalorder %s20, 0
    %p225 = por %p223, %p224
    %p226 = scmp.le.s32.totalorder 1, %s14
    %p227 = scmp.lt.s32.totalorder %s14, 3
    %p228 = pnand %p226, %p227
    %p229 = pneg %p228
    // Predicated region
    $region9: #{_lambda_.9} parent=5 // pred_check
      _
    $region10: #{_lambda_.9} parent=5 // pred_check_branch
      %231 = sbr.rel (%p228) target = $region12
    $region11: #{_lambda_.9} parent=5 // pred_region
      %s232 = ssub.s32 %s14, 1
      // Predicated region
      $region13: #{_lambda_.9} parent=11 // pred_check
        %p233 = pneg %p87
      $region14: #{_lambda_.9} parent=11 // pred_check_branch
        %235 = sbr.rel (%p233) target = $region16
      $region15: #{_lambda_.9} parent=11 // pred_region
        _
      $region16: #{_lambda_.9} parent=11 // pred_fallthru
        _
      // Predicated region
      $region17: #{_lambda_.9} parent=11 // pred_check
        %p236 = pneg %p108
      $region18: #{_lambda_.9} parent=11 // pred_check_branch
        %238 = sbr.rel (%p236) target = $region20
      $region19: #{_lambda_.9} parent=11 // pred_region
        _
      $region20: #{_lambda_.9} parent=11 // pred_fallthru
        _
      // Predicated region
      $region21: #{_lambda_.9} parent=11 // pred_check
        %p239 = pneg %p129
      $region22: #{_lambda_.9} parent=11 // pred_check_branch
        %241 = sbr.rel (%p239) target = $region24
      $region23: #{_lambda_.9} parent=11 // pred_region
        _
      $region24: #{_lambda_.9} parent=11 // pred_fallthru
        _
      // Predicated region
      $region25: #{_lambda_.9} parent=11 // pred_check
        %p242 = pneg %p150
      $region26: #{_lambda_.9} parent=11 // pred_check_branch
        %244 = sbr.rel (%p242) target = $region28
      $region27: #{_lambda_.9} parent=11 // pred_region
        _
      $region28: #{_lambda_.9} parent=11 // pred_fallthru
        _
      // Predicated region
      $region29: #{_lambda_.9} parent=11 // pred_check
        %p245 = pneg %p171
      $region30: #{_lambda_.9} parent=11 // pred_check_branch
        %247 = sbr.rel (%p245) target = $region32
      $region31: #{_lambda_.9} parent=11 // pred_region
        _
      $region32: #{_lambda_.9} parent=11 // pred_fallthru
        _
      // Predicated region
      $region33: #{_lambda_.9} parent=11 // pred_check
        %p248 = pneg %p192
      $region34: #{_lambda_.9} parent=11 // pred_check_branch
        %250 = sbr.rel (%p248) target = $region36
      $region35: #{_lambda_.9} parent=11 // pred_region
        _
      $region36: #{_lambda_.9} parent=11 // pred_fallthru
        _
    $region12: #{_lambda_.9} parent=5 // pred_fallthru
      _
    %p251 = scmp.lt.s32.totalorder %s14, 2
    // Predicated region
    $region37: #{_lambda_.9} parent=5 // pred_check
      %p252 = pneg %p251
    $region38: #{_lambda_.9} parent=5 // pred_check_branch
      %254 = sbr.rel (%p252) target = $region40
    $region39: #{_lambda_.9} parent=5 // pred_region
      // Predicated region
      $region41: #{_lambda_.9} parent=39 // pred_check
        %p255 = pneg %p34
      $region42: #{_lambda_.9} parent=39 // pred_check_branch
        %257 = sbr.rel (%p255) target = $region44
      $region43: #{_lambda_.9} parent=39 // pred_region
        %p258 = scmp.lt.s32.totalorder %s14, 1
        %s259 = scalar_select %p258, %s14, 1
        %s260 = smul.addr %s259, 4
        %s261 = smul.addr %s260, 2
        %s262 = scalar_lea.vmem %s0, %s261
      $region44: #{_lambda_.9} parent=39 // pred_fallthru
        _
      // Predicated region
      $region45: #{_lambda_.9} parent=39 // pred_check
        %p263 = pneg %p60
      $region46: #{_lambda_.9} parent=39 // pred_check_branch
        %265 = sbr.rel (%p263) target = $region48
      $region47: #{_lambda_.9} parent=39 // pred_region
        %p266 = scmp.lt.s32.totalorder %s14, 1
        %s267 = scalar_select %p266, %s14, 1
        %s268 = smul.addr %s267, 8
        %s269 = scalar_lea.vmem %s1, %s268
      $region48: #{_lambda_.9} parent=39 // pred_fallthru
        _
    $region40: #{_lambda_.9} parent=5 // pred_fallthru
      _
    %p270 = scmp.le.s32.totalorder 1, %s14
    %p271 = scmp.lt.s32.totalorder %s14, 3
    %p272 = pnand %p270, %p271
    %p273 = pneg %p272
    // Predicated region
    $region49: #{_lambda_.9} parent=5 // pred_check
      _
    $region50: #{_lambda_.9} parent=5 // pred_check_branch
      %275 = sbr.rel (%p272) target = $region52
    $region51: #{_lambda_.9} parent=5 // pred_region
      %s276 = ssub.s32 %s14, 1
      %p277 = scmp.lt.s32.totalorder %s19, 1
      %s278 = scalar_select %p277, %s19, 1
      %s279 = smul.addr %s278, 4
      %s280 = smul.addr %s279, 2
      %s281 = scalar_lea.vmem %s0, %s280
      %p282 = pneg %p40
      %p283 = pneg %p37
      %p284 = scmp.lt.s32.totalorder %s19, 1
      %s285 = scalar_select %p284, %s19, 1
      %s286 = smul.addr %s285, 8
      %s287 = scalar_lea.vmem %s1, %s286
      %p288 = pneg %p66
      %p289 = pneg %p63
      %p290 = pneg %p87
      %p291 = pneg %p84
      %p292 = pneg %p108
      %p293 = pneg %p105
      %p294 = pneg %p129
      %p295 = pneg %p126
      %p296 = pneg %p150
      %p297 = pneg %p147
      %p298 = pneg %p171
      %p299 = pneg %p168
      %p300 = pneg %p192
      %p301 = pneg %p189
      %p302 = pneg %p218
      %p303 = pneg %p215
      %p304 = scmp.lt.s32.totalorder %s19, 1
      %s305 = scalar_select %p304, %s19, 1
      %s306 = smul.addr %s305, 4
      %s307 = scalar_lea.vmem %s8, %s306
      %p308 = scmp.lt.s32.totalorder %s19, 1
      %s309 = scalar_select %p308, %s19, 1
      %s310 = smul.addr %s309, 4
      %s311 = smul.addr %s310, 2
      %s312 = scalar_lea.vmem %s0, %s311
      %p313 = scmp.lt.s32.totalorder %s19, 1
      %s314 = scalar_select %p313, %s19, 1
      %s315 = smul.addr %s314, 8
      %s316 = scalar_lea.vmem %s1, %s315
      %p317 = scmp.lt.s32.totalorder %s19, 1
      %s318 = scalar_select %p317, %s19, 1
      %s319 = smul.addr %s318, 4
      %s320 = scalar_lea.vmem %s8, %s319
      %v322 = vld [vmem:[%s316] sm:$0x1]
      %v323 = vpack.c.bf16 %v322, %v322
      %v324 = vld [vmem:[%s2] sm:$0xf]
      %v325 = vld [vmem:[%s2 + $0x4] sm:$0xf]
      %v326 = vld [vmem:[%s2 + $0x8] sm:$0xf]
      %v327 = vld [vmem:[%s2 + $0xc] sm:$0xf]
      %v328 = vld [vmem:[%s2 + $0x10] sm:$0xf]
      %v329 = vld [vmem:[%s2 + $0x14] sm:$0xf]
      %v330 = vld [vmem:[%s2 + $0x18] sm:$0xf]
      %v331 = vld [vmem:[%s2 + $0x1c] sm:$0xf]
      %v332 = vld [vmem:[%s2 + $0x20] sm:$0xf]
      %v333 = vld [vmem:[%s2 + $0x24] sm:$0xf]
      %v334 = vld [vmem:[%s2 + $0x28] sm:$0xf]
      %v335 = vld [vmem:[%s2 + $0x2c] sm:$0xf]
      %v336 = vld [vmem:[%s2 + $0x30] sm:$0xf]
      %v337 = vld [vmem:[%s2 + $0x34] sm:$0xf]
      %v338 = vld [vmem:[%s2 + $0x38] sm:$0xf]
      %v339 = vld [vmem:[%s2 + $0x3c] sm:$0xf]
      %v340 = vld [vmem:[%s3] sm:$0x1]
      %v357 = vunpack.c.l.b16 %v324
      %v358 = vunpack.c.l.b16 %v325
      %v359 = vunpack.c.l.b16 %v326
      %v360 = vunpack.c.l.b16 %v327
      %v361 = vunpack.c.l.b16 %v328
      %v362 = vunpack.c.l.b16 %v329
      %v363 = vunpack.c.l.b16 %v330
      %v364 = vunpack.c.l.b16 %v331
      %v365 = vunpack.c.l.b16 %v332
      %v366 = vunpack.c.l.b16 %v333
      %v367 = vunpack.c.l.b16 %v334
      %v368 = vunpack.c.l.b16 %v335
      %v369 = vunpack.c.l.b16 %v336
      %v370 = vunpack.c.l.b16 %v337
      %v371 = vunpack.c.l.b16 %v338
      %v372 = vunpack.c.l.b16 %v339
      %v373 = vpack.c.b16 %v358, %v357
      %v374 = vpack.c.b16 %v360, %v359
      %v375 = vpack.c.b16 %v362, %v361
      %v376 = vpack.c.b16 %v364, %v363
      %v377 = vpack.c.b16 %v366, %v365
      %v378 = vpack.c.b16 %v368, %v367
      %v379 = vpack.c.b16 %v370, %v369
      %v380 = vpack.c.b16 %v372, %v371
      %389 = vmatprep.subr.bf16.mxu0 0
      %390 = vmatpush1.bf16.msra.mxu0 %v373
      %391 = vmatprep.subr.bf16.mxu0 0
      %392 = vmatpush1.bf16.msra.mxu0 %v374
      %393 = vmatprep.subr.bf16.mxu0 0
      %394 = vmatpush1.bf16.msra.mxu0 %v375
      %395 = vmatprep.subr.bf16.mxu0 0
      %396 = vmatpush1.bf16.msra.mxu0 %v376
      %397 = vmatprep.subr.bf16.mxu0 0
      %398 = vmatpush1.bf16.msra.mxu0 %v377
      %399 = vmatprep.subr.bf16.mxu0 0
      %400 = vmatpush1.bf16.msra.mxu0 %v378
      %401 = vmatprep.subr.bf16.mxu0 0
      %402 = vmatpush1.bf16.msra.mxu0 %v379
      %403 = vmatprep.subr.bf16.mxu0 0
      %404 = vmatpush1.bf16.msra.mxu0 %v380
      %405 = vmatprep.subr.bf16.mxu0 0
      %406 = vmatpush1.bf16.msra.mxu0 0
      %407 = vmatprep.subr.bf16.mxu0 0
      %408 = vmatpush1.bf16.msra.mxu0 0
      %409 = vmatprep.subr.bf16.mxu0 0
      %410 = vmatpush1.bf16.msra.mxu0 0
      %411 = vmatprep.subr.bf16.mxu0 0
      %412 = vmatpush1.bf16.msra.mxu0 0
      %413 = vmatprep.subr.bf16.mxu0 0
      %414 = vmatpush1.bf16.msra.mxu0 0
      %415 = vmatprep.subr.bf16.mxu0 0
      %416 = vmatpush1.bf16.msra.mxu0 0
      %417 = vmatprep.subr.bf16.mxu0 0
      %418 = vmatpush1.bf16.msra.mxu0 0
      %419 = vmatprep.subr.bf16.mxu0 0
      %420 = vmatpush1.bf16.msra.mxu0 0
      %421 = vmatprep.mubr.bf16.mxu0 0
      %422 = vmatmul.mubr.bf16.gmra.mrb[0].mxu0 %v323
      %v423 = vpop.f32.mrb[0].mxu0
      %v424 = vadd.f32 %v340, %v423
      %v425 = vpop.f32.mrb[0].mxu0
      %v426 = vpop.f32.mrb[0].mxu0
      %v427 = vpop.f32.mrb[0].mxu0
      %428 = vdwg.mxu0
      %v429 = vxor.u32 %v424, 2147483648
      %v430 = vmul.f32 %v429, 1.442695
      %v431 = vpow.pop %v430
      %v432 = vadd.f32 %v431, 1.0
      %v433 = vrcp.pop %v432
      %v434 = vmul.f32 1.0, %v433
      %v435 = vld [vmem:[%s312] sm:$0x3]
      %v436 = vld [vmem:[%s312 + $0x2] sm:$0x3]
      %v437 = vld [vmem:[%s312 + $0x4] sm:$0x3]
      %v438 = vld [vmem:[%s312 + $0x6] sm:$0x3]
      %v439 = vpack.c.bf16 %v434, %v434
      %v441 = vpack.i.b16 %v439, %v439
      %v443 = vlaneseq
      %v444 = vshrl.u32 %v443, 7
      %v445 = vsub.s32 0, %v444
      %v446 = vrot.slane %v441, %v445
      %v447 = vmul.bf16 %v435, %v446
      %v448 = vmul.bf16 %v436, %v446
      %v449 = vmul.bf16 %v437, %v446
      %v450 = vmul.bf16 %v438, %v446
      %v454 = vunpack.c.l.s4 1966171168
      %v455 = vunpack.c.0.s8 %v454
      %v456 = vlaneseq
      %v457 = vshrl.u32 %v456, 7
      %v458 = vsub.s32 %v455, %v457
      %v459 = vrot.slane %v447, %v458
      %v460 = vcombine.high %v459, %v459
      %v462 = vunpack.c.l.s4 1966171168
      %v463 = vunpack.c.0.s8 %v462
      %v464 = vlaneseq
      %v465 = vshrl.u32 %v464, 7
      %v466 = vsub.s32 %v463, %v465
      %v467 = vrot.slane %v448, %v466
      %v468 = vcombine.high %v467, %v467
      %vm469 = vsmask.f32 256
      %vm470 = vsmask.f32 1284
      %vm471 = vmor %vm469, %vm470
      %vm472 = vsmask.f32 2312
      %vm473 = vmor %vm471, %vm472
      %vm474 = vsmask.f32 3340
      %vm475 = vmor %vm473, %vm474
      %vm476 = vsmask.f32 4368
      %vm477 = vmor %vm475, %vm476
      %vm478 = vsmask.f32 5396
      %vm479 = vmor %vm477, %vm478
      %vm480 = vsmask.f32 6424
      %vm481 = vmor %vm479, %vm480
      %vm482 = vsmask.f32 7452
      %vm483 = vmor %vm481, %vm482
      %v485 = vshrl.u32 %v459, 16
      %v487 = vrot.slane %v485, 7
      %v488 = vrot.slane %v487, 1
      %v490 = vshll.u32 %v460, 16
      %v492 = vsel %vm483, %v488, %v490
      %v494 = vshrl.u32 %v467, 16
      %v496 = vrot.slane %v494, 7
      %v497 = vrot.slane %v496, 1
      %v499 = vshll.u32 %v468, 16
      %v501 = vsel %vm483, %v497, %v499
      %v504 = vunpack.c.l.s4 1966171168
      %v505 = vunpack.c.0.s8 %v504
      %v506 = vlaneseq
      %v507 = vshrl.u32 %v506, 7
      %v508 = vsub.s32 %v505, %v507
      %v509 = vrot.slane %v449, %v508
      %v510 = vcombine.high %v509, %v509
      %v512 = vshrl.u32 %v509, 16
      %v514 = vrot.slane %v512, 7
      %v515 = vrot.slane %v514, 1
      %v517 = vshll.u32 %v510, 16
      %v519 = vsel %vm483, %v515, %v517
      %v522 = vunpack.c.l.s4 1966171168
      %v523 = vunpack.c.0.s8 %v522
      %v524 = vlaneseq
      %v525 = vshrl.u32 %v524, 7
      %v526 = vsub.s32 %v523, %v525
      %v527 = vrot.slane %v450, %v526
      %v528 = vcombine.high %v527, %v527
      %v530 = vshrl.u32 %v527, 16
      %v532 = vrot.slane %v530, 7
      %v533 = vrot.slane %v532, 1
      %v535 = vshll.u32 %v528, 16
      %v537 = vsel %vm483, %v533, %v535
      %v538 = vcombine.low %v447, %v448
      %v540 = vunpack.c.l.s4 1966171168
      %v541 = vunpack.c.0.s8 %v540
      %v542 = vlaneseq
      %v543 = vshrl.u32 %v542, 7
      %v544 = vsub.s32 %v541, %v543
      %v545 = vrot.slane %v538, %v544
      %v547 = vunpack.c.l.s4 1966171168
      %v548 = vunpack.c.0.s8 %v547
      %v549 = vlaneseq
      %v550 = vshrl.u32 %v549, 7
      %v551 = vsub.s32 %v548, %v550
      %v552 = vrot.slane %v545, %v551
      %v554 = vcombine.low %v492, %v501
      %v556 = vunpack.c.l.s4 1966171168
      %v557 = vunpack.c.0.s8 %v556
      %v558 = vlaneseq
      %v559 = vshrl.u32 %v558, 7
      %v560 = vsub.s32 %v557, %v559
      %v561 = vrot.slane %v554, %v560
      %v563 = vunpack.c.l.s4 1966171168
      %v564 = vunpack.c.0.s8 %v563
      %v565 = vlaneseq
      %v566 = vshrl.u32 %v565, 7
      %v567 = vsub.s32 %v564, %v566
      %v568 = vrot.slane %v561, %v567
      %v570 = vcombine.low %v460, %v468
      %v572 = vunpack.c.l.s4 1966171168
      %v573 = vunpack.c.0.s8 %v572
      %v574 = vlaneseq
      %v575 = vshrl.u32 %v574, 7
      %v576 = vsub.s32 %v573, %v575
      %v577 = vrot.slane %v570, %v576
      %v579 = vunpack.c.l.s4 1966171168
      %v580 = vunpack.c.0.s8 %v579
      %v581 = vlaneseq
      %v582 = vshrl.u32 %v581, 7
      %v583 = vsub.s32 %v580, %v582
      %v584 = vrot.slane %v577, %v583
      %v586 = vcombine.low %v448, %v449
      %v588 = vunpack.c.l.s4 1966171168
      %v589 = vunpack.c.0.s8 %v588
      %v590 = vlaneseq
      %v591 = vshrl.u32 %v590, 7
      %v592 = vsub.s32 %v589, %v591
      %v593 = vrot.slane %v586, %v592
      %v595 = vunpack.c.l.s4 1966171168
      %v596 = vunpack.c.0.s8 %v595
      %v597 = vlaneseq
      %v598 = vshrl.u32 %v597, 7
      %v599 = vsub.s32 %v596, %v598
      %v600 = vrot.slane %v593, %v599
      %v602 = vcombine.low %v501, %v519
      %v604 = vunpack.c.l.s4 1966171168
      %v605 = vunpack.c.0.s8 %v604
      %v606 = vlaneseq
      %v607 = vshrl.u32 %v606, 7
      %v608 = vsub.s32 %v605, %v607
      %v609 = vrot.slane %v602, %v608
      %v611 = vunpack.c.l.s4 1966171168
      %v612 = vunpack.c.0.s8 %v611
      %v613 = vlaneseq
      %v614 = vshrl.u32 %v613, 7
      %v615 = vsub.s32 %v612, %v614
      %v616 = vrot.slane %v609, %v615
      %v618 = vcombine.low %v468, %v510
      %v620 = vunpack.c.l.s4 1966171168
      %v621 = vunpack.c.0.s8 %v620
      %v622 = vlaneseq
      %v623 = vshrl.u32 %v622, 7
      %v624 = vsub.s32 %v621, %v623
      %v625 = vrot.slane %v618, %v624
      %v627 = vunpack.c.l.s4 1966171168
      %v628 = vunpack.c.0.s8 %v627
      %v629 = vlaneseq
      %v630 = vshrl.u32 %v629, 7
      %v631 = vsub.s32 %v628, %v630
      %v632 = vrot.slane %v625, %v631
      %v634 = vcombine.low %v449, %v450
      %v636 = vunpack.c.l.s4 1966171168
      %v637 = vunpack.c.0.s8 %v636
      %v638 = vlaneseq
      %v639 = vshrl.u32 %v638, 7
      %v640 = vsub.s32 %v637, %v639
      %v641 = vrot.slane %v634, %v640
      %v643 = vunpack.c.l.s4 1966171168
      %v644 = vunpack.c.0.s8 %v643
      %v645 = vlaneseq
      %v646 = vshrl.u32 %v645, 7
      %v647 = vsub.s32 %v644, %v646
      %v648 = vrot.slane %v641, %v647
      %v650 = vcombine.low %v519, %v537
      %v652 = vunpack.c.l.s4 1966171168
      %v653 = vunpack.c.0.s8 %v652
      %v654 = vlaneseq
      %v655 = vshrl.u32 %v654, 7
      %v656 = vsub.s32 %v653, %v655
      %v657 = vrot.slane %v650, %v656
      %v659 = vunpack.c.l.s4 1966171168
      %v660 = vunpack.c.0.s8 %v659
      %v661 = vlaneseq
      %v662 = vshrl.u32 %v661, 7
      %v663 = vsub.s32 %v660, %v662
      %v664 = vrot.slane %v657, %v663
      %v666 = vcombine.low %v510, %v528
      %v668 = vunpack.c.l.s4 1966171168
      %v669 = vunpack.c.0.s8 %v668
      %v670 = vlaneseq
      %v671 = vshrl.u32 %v670, 7
      %v672 = vsub.s32 %v669, %v671
      %v673 = vrot.slane %v666, %v672
      %v675 = vunpack.c.l.s4 1966171168
      %v676 = vunpack.c.0.s8 %v675
      %v677 = vlaneseq
      %v678 = vshrl.u32 %v677, 7
      %v679 = vsub.s32 %v676, %v678
      %v680 = vrot.slane %v673, %v679
      %v682 = vld [vmem:[%s4] sm:$0xf]
      %v683 = vld [vmem:[%s4 + $0x4] sm:$0xf]
      %v684 = vld [vmem:[%s4 + $0x8] sm:$0xf]
      %v685 = vld [vmem:[%s4 + $0xc] sm:$0xf]
      %v686 = vld [vmem:[%s4 + $0x10] sm:$0xf]
      %v687 = vld [vmem:[%s4 + $0x14] sm:$0xf]
      %v688 = vld [vmem:[%s4 + $0x18] sm:$0xf]
      %v689 = vld [vmem:[%s4 + $0x1c] sm:$0xf]
      %v690 = vld [vmem:[%s4 + $0x20] sm:$0xf]
      %v691 = vld [vmem:[%s4 + $0x24] sm:$0xf]
      %v692 = vld [vmem:[%s4 + $0x28] sm:$0xf]
      %v693 = vld [vmem:[%s4 + $0x2c] sm:$0xf]
      %v694 = vld [vmem:[%s4 + $0x30] sm:$0xf]
      %v695 = vld [vmem:[%s4 + $0x34] sm:$0xf]
      %v696 = vld [vmem:[%s4 + $0x38] sm:$0xf]
      %v697 = vld [vmem:[%s4 + $0x3c] sm:$0xf]
      %v698 = vld [vmem:[%s4 + $0x40] sm:$0xf]
      %v699 = vld [vmem:[%s4 + $0x44] sm:$0xf]
      %v700 = vld [vmem:[%s4 + $0x48] sm:$0xf]
      %v701 = vld [vmem:[%s4 + $0x4c] sm:$0xf]
      %v702 = vld [vmem:[%s4 + $0x50] sm:$0xf]
      %v703 = vld [vmem:[%s4 + $0x54] sm:$0xf]
      %v704 = vld [vmem:[%s4 + $0x58] sm:$0xf]
      %v705 = vld [vmem:[%s4 + $0x5c] sm:$0xf]
      %v706 = vld [vmem:[%s4 + $0x60] sm:$0xf]
      %v707 = vld [vmem:[%s4 + $0x64] sm:$0xf]
      %v708 = vld [vmem:[%s4 + $0x68] sm:$0xf]
      %v709 = vld [vmem:[%s4 + $0x6c] sm:$0xf]
      %v710 = vld [vmem:[%s4 + $0x70] sm:$0xf]
      %v711 = vld [vmem:[%s4 + $0x74] sm:$0xf]
      %v712 = vld [vmem:[%s4 + $0x78] sm:$0xf]
      %v713 = vld [vmem:[%s4 + $0x7c] sm:$0xf]
      %v714 = vld [vmem:[%s4 + $0x80] sm:$0xf]
      %v715 = vld [vmem:[%s4 + $0x84] sm:$0xf]
      %v716 = vld [vmem:[%s4 + $0x88] sm:$0xf]
      %v717 = vld [vmem:[%s4 + $0x8c] sm:$0xf]
      %v718 = vld [vmem:[%s4 + $0x90] sm:$0xf]
      %v719 = vld [vmem:[%s4 + $0x94] sm:$0xf]
      %v720 = vld [vmem:[%s4 + $0x98] sm:$0xf]
      %v721 = vld [vmem:[%s4 + $0x9c] sm:$0xf]
      %v722 = vld [vmem:[%s4 + $0xa0] sm:$0xf]
      %v723 = vld [vmem:[%s4 + $0xa4] sm:$0xf]
      %v724 = vld [vmem:[%s4 + $0xa8] sm:$0xf]
      %v725 = vld [vmem:[%s4 + $0xac] sm:$0xf]
      %v726 = vld [vmem:[%s4 + $0xb0] sm:$0xf]
      %v727 = vld [vmem:[%s4 + $0xb4] sm:$0xf]
      %v728 = vld [vmem:[%s4 + $0xb8] sm:$0xf]
      %v729 = vld [vmem:[%s4 + $0xbc] sm:$0xf]
      %v730 = vld [vmem:[%s4 + $0xc0] sm:$0xf]
      %v731 = vld [vmem:[%s4 + $0xc4] sm:$0xf]
      %v732 = vld [vmem:[%s4 + $0xc8] sm:$0xf]
      %v733 = vld [vmem:[%s4 + $0xcc] sm:$0xf]
      %v734 = vld [vmem:[%s4 + $0xd0] sm:$0xf]
      %v735 = vld [vmem:[%s4 + $0xd4] sm:$0xf]
      %v736 = vld [vmem:[%s4 + $0xd8] sm:$0xf]
      %v737 = vld [vmem:[%s4 + $0xdc] sm:$0xf]
      %v738 = vld [vmem:[%s4 + $0xe0] sm:$0xf]
      %v739 = vld [vmem:[%s4 + $0xe4] sm:$0xf]
      %v740 = vld [vmem:[%s4 + $0xe8] sm:$0xf]
      %v741 = vld [vmem:[%s4 + $0xec] sm:$0xf]
      %v742 = vld [vmem:[%s4 + $0xf0] sm:$0xf]
      %v743 = vld [vmem:[%s4 + $0xf4] sm:$0xf]
      %v744 = vld [vmem:[%s4 + $0xf8] sm:$0xf]
      %v745 = vld [vmem:[%s4 + $0xfc] sm:$0xf]
      %v746 = vld [vmem:[%s4 + $0x100] sm:$0xf]
      %v747 = vld [vmem:[%s4 + $0x104] sm:$0xf]
      %v748 = vld [vmem:[%s4 + $0x108] sm:$0xf]
      %v749 = vld [vmem:[%s4 + $0x10c] sm:$0xf]
      %v750 = vld [vmem:[%s4 + $0x110] sm:$0xf]
      %v751 = vld [vmem:[%s4 + $0x114] sm:$0xf]
      %v752 = vld [vmem:[%s4 + $0x118] sm:$0xf]
      %v753 = vld [vmem:[%s4 + $0x11c] sm:$0xf]
      %v754 = vld [vmem:[%s4 + $0x120] sm:$0xf]
      %v755 = vld [vmem:[%s4 + $0x124] sm:$0xf]
      %v756 = vld [vmem:[%s4 + $0x128] sm:$0xf]
      %v757 = vld [vmem:[%s4 + $0x12c] sm:$0xf]
      %v758 = vld [vmem:[%s4 + $0x130] sm:$0xf]
      %v759 = vld [vmem:[%s4 + $0x134] sm:$0xf]
      %v760 = vld [vmem:[%s4 + $0x138] sm:$0xf]
      %v761 = vld [vmem:[%s4 + $0x13c] sm:$0xf]
      %v762 = vld [vmem:[%s4 + $0x140] sm:$0xf]
      %v763 = vld [vmem:[%s4 + $0x144] sm:$0xf]
      %v764 = vld [vmem:[%s4 + $0x148] sm:$0xf]
      %v765 = vld [vmem:[%s4 + $0x14c] sm:$0xf]
      %v766 = vld [vmem:[%s4 + $0x150] sm:$0xf]
      %v767 = vld [vmem:[%s4 + $0x154] sm:$0xf]
      %v768 = vld [vmem:[%s4 + $0x158] sm:$0xf]
      %v769 = vld [vmem:[%s4 + $0x15c] sm:$0xf]
      %v770 = vld [vmem:[%s4 + $0x160] sm:$0xf]
      %v771 = vld [vmem:[%s4 + $0x164] sm:$0xf]
      %v772 = vld [vmem:[%s4 + $0x168] sm:$0xf]
      %v773 = vld [vmem:[%s4 + $0x16c] sm:$0xf]
      %v774 = vld [vmem:[%s4 + $0x170] sm:$0xf]
      %v775 = vld [vmem:[%s4 + $0x174] sm:$0xf]
      %v776 = vld [vmem:[%s4 + $0x178] sm:$0xf]
      %v777 = vld [vmem:[%s4 + $0x17c] sm:$0xf]
      %v778 = vld [vmem:[%s4 + $0x180] sm:$0xf]
      %v779 = vld [vmem:[%s4 + $0x184] sm:$0xf]
      %v780 = vld [vmem:[%s4 + $0x188] sm:$0xf]
      %v781 = vld [vmem:[%s4 + $0x18c] sm:$0xf]
      %v782 = vld [vmem:[%s4 + $0x190] sm:$0xf]
      %v783 = vld [vmem:[%s4 + $0x194] sm:$0xf]
      %v784 = vld [vmem:[%s4 + $0x198] sm:$0xf]
      %v785 = vld [vmem:[%s4 + $0x19c] sm:$0xf]
      %v786 = vld [vmem:[%s4 + $0x1a0] sm:$0xf]
      %v787 = vld [vmem:[%s4 + $0x1a4] sm:$0xf]
      %v788 = vld [vmem:[%s4 + $0x1a8] sm:$0xf]
      %v789 = vld [vmem:[%s4 + $0x1ac] sm:$0xf]
      %v790 = vld [vmem:[%s4 + $0x1b0] sm:$0xf]
      %v791 = vld [vmem:[%s4 + $0x1b4] sm:$0xf]
      %v792 = vld [vmem:[%s4 + $0x1b8] sm:$0xf]
      %v793 = vld [vmem:[%s4 + $0x1bc] sm:$0xf]
      %v794 = vld [vmem:[%s4 + $0x1c0] sm:$0xf]
      %v795 = vld [vmem:[%s4 + $0x1c4] sm:$0xf]
      %v796 = vld [vmem:[%s4 + $0x1c8] sm:$0xf]
      %v797 = vld [vmem:[%s4 + $0x1cc] sm:$0xf]
      %v798 = vld [vmem:[%s4 + $0x1d0] sm:$0xf]
      %v799 = vld [vmem:[%s4 + $0x1d4] sm:$0xf]
      %v800 = vld [vmem:[%s4 + $0x1d8] sm:$0xf]
      %v801 = vld [vmem:[%s4 + $0x1dc] sm:$0xf]
      %v802 = vld [vmem:[%s4 + $0x1e0] sm:$0xf]
      %v803 = vld [vmem:[%s4 + $0x1e4] sm:$0xf]
      %v804 = vld [vmem:[%s4 + $0x1e8] sm:$0xf]
      %v805 = vld [vmem:[%s4 + $0x1ec] sm:$0xf]
      %v806 = vld [vmem:[%s4 + $0x1f0] sm:$0xf]
      %v807 = vld [vmem:[%s4 + $0x1f4] sm:$0xf]
      %v808 = vld [vmem:[%s4 + $0x1f8] sm:$0xf]
      %v809 = vld [vmem:[%s4 + $0x1fc] sm:$0xf]
      %v810 = vld [vmem:[%s4 + $0x200] sm:$0xf]
      %v811 = vld [vmem:[%s4 + $0x204] sm:$0xf]
      %v812 = vld [vmem:[%s4 + $0x208] sm:$0xf]
      %v813 = vld [vmem:[%s4 + $0x20c] sm:$0xf]
      %v814 = vld [vmem:[%s4 + $0x210] sm:$0xf]
      %v815 = vld [vmem:[%s4 + $0x214] sm:$0xf]
      %v816 = vld [vmem:[%s4 + $0x218] sm:$0xf]
      %v817 = vld [vmem:[%s4 + $0x21c] sm:$0xf]
      %v818 = vld [vmem:[%s4 + $0x220] sm:$0xf]
      %v819 = vld [vmem:[%s4 + $0x224] sm:$0xf]
      %v820 = vld [vmem:[%s4 + $0x228] sm:$0xf]
      %v821 = vld [vmem:[%s4 + $0x22c] sm:$0xf]
      %v822 = vld [vmem:[%s4 + $0x230] sm:$0xf]
      %v823 = vld [vmem:[%s4 + $0x234] sm:$0xf]
      %v824 = vld [vmem:[%s4 + $0x238] sm:$0xf]
      %v825 = vld [vmem:[%s4 + $0x23c] sm:$0xf]
      %v826 = vld [vmem:[%s5] sm:$0x1]
      %v828 = vlaneseq
      %v829 = vshrl.u32 %v828, 7
      %v830 = vsub.s32 0, %v829
      %v831 = vrot.slane %v826, %v830
      %v977 = vunpack.c.l.b16 %v682
      %v978 = vunpack.c.l.b16 %v683
      %v979 = vunpack.c.l.b16 %v684
      %v980 = vunpack.c.l.b16 %v685
      %v981 = vunpack.c.l.b16 %v686
      %v982 = vunpack.c.l.b16 %v687
      %v983 = vunpack.c.l.b16 %v688
      %v984 = vunpack.c.l.b16 %v689
      %v985 = vunpack.c.l.b16 %v690
      %v986 = vunpack.c.l.b16 %v691
      %v987 = vunpack.c.l.b16 %v692
      %v988 = vunpack.c.l.b16 %v693
      %v989 = vunpack.c.l.b16 %v694
      %v990 = vunpack.c.l.b16 %v695
      %v991 = vunpack.c.l.b16 %v696
      %v992 = vunpack.c.l.b16 %v697
      %v993 = vunpack.c.l.b16 %v698
      %v994 = vunpack.c.l.b16 %v699
      %v995 = vunpack.c.l.b16 %v700
      %v996 = vunpack.c.l.b16 %v701
      %v997 = vunpack.c.l.b16 %v702
      %v998 = vunpack.c.l.b16 %v703
      %v999 = vunpack.c.l.b16 %v704
      %v1000 = vunpack.c.l.b16 %v705
      %v1001 = vunpack.c.l.b16 %v706
      %v1002 = vunpack.c.l.b16 %v707
      %v1003 = vunpack.c.l.b16 %v708
      %v1004 = vunpack.c.l.b16 %v709
      %v1005 = vunpack.c.l.b16 %v710
      %v1006 = vunpack.c.l.b16 %v711
      %v1007 = vunpack.c.l.b16 %v712
      %v1008 = vunpack.c.l.b16 %v713
      %v1009 = vunpack.c.l.b16 %v714
      %v1010 = vunpack.c.l.b16 %v715
      %v1011 = vunpack.c.l.b16 %v716
      %v1012 = vunpack.c.l.b16 %v717
      %v1013 = vunpack.c.l.b16 %v718
      %v1014 = vunpack.c.l.b16 %v719
      %v1015 = vunpack.c.l.b16 %v720
      %v1016 = vunpack.c.l.b16 %v721
      %v1017 = vunpack.c.l.b16 %v722
      %v1018 = vunpack.c.l.b16 %v723
      %v1019 = vunpack.c.l.b16 %v724
      %v1020 = vunpack.c.l.b16 %v725
      %v1021 = vunpack.c.l.b16 %v726
      %v1022 = vunpack.c.l.b16 %v727
      %v1023 = vunpack.c.l.b16 %v728
      %v1024 = vunpack.c.l.b16 %v729
      %v1025 = vunpack.c.l.b16 %v730
      %v1026 = vunpack.c.l.b16 %v731
      %v1027 = vunpack.c.l.b16 %v732
      %v1028 = vunpack.c.l.b16 %v733
      %v1029 = vunpack.c.l.b16 %v734
      %v1030 = vunpack.c.l.b16 %v735
      %v1031 = vunpack.c.l.b16 %v736
      %v1032 = vunpack.c.l.b16 %v737
      %v1033 = vunpack.c.l.b16 %v738
      %v1034 = vunpack.c.l.b16 %v739
      %v1035 = vunpack.c.l.b16 %v740
      %v1036 = vunpack.c.l.b16 %v741
      %v1037 = vunpack.c.l.b16 %v742
      %v1038 = vunpack.c.l.b16 %v743
      %v1039 = vunpack.c.l.b16 %v744
      %v1040 = vunpack.c.l.b16 %v745
      %v1041 = vunpack.c.l.b16 %v746
      %v1042 = vunpack.c.l.b16 %v747
      %v1043 = vunpack.c.l.b16 %v748
      %v1044 = vunpack.c.l.b16 %v749
      %v1045 = vunpack.c.l.b16 %v750
      %v1046 = vunpack.c.l.b16 %v751
      %v1047 = vunpack.c.l.b16 %v752
      %v1048 = vunpack.c.l.b16 %v753
      %v1049 = vunpack.c.l.b16 %v754
      %v1050 = vunpack.c.l.b16 %v755
      %v1051 = vunpack.c.l.b16 %v756
      %v1052 = vunpack.c.l.b16 %v757
      %v1053 = vunpack.c.l.b16 %v758
      %v1054 = vunpack.c.l.b16 %v759
      %v1055 = vunpack.c.l.b16 %v760
      %v1056 = vunpack.c.l.b16 %v761
      %v1057 = vunpack.c.l.b16 %v762
      %v1058 = vunpack.c.l.b16 %v763
      %v1059 = vunpack.c.l.b16 %v764
      %v1060 = vunpack.c.l.b16 %v765
      %v1061 = vunpack.c.l.b16 %v766
      %v1062 = vunpack.c.l.b16 %v767
      %v1063 = vunpack.c.l.b16 %v768
      %v1064 = vunpack.c.l.b16 %v769
      %v1065 = vunpack.c.l.b16 %v770
      %v1066 = vunpack.c.l.b16 %v771
      %v1067 = vunpack.c.l.b16 %v772
      %v1068 = vunpack.c.l.b16 %v773
      %v1069 = vunpack.c.l.b16 %v774
      %v1070 = vunpack.c.l.b16 %v775
      %v1071 = vunpack.c.l.b16 %v776
      %v1072 = vunpack.c.l.b16 %v777
      %v1073 = vunpack.c.l.b16 %v778
      %v1074 = vunpack.c.l.b16 %v779
      %v1075 = vunpack.c.l.b16 %v780
      %v1076 = vunpack.c.l.b16 %v781
      %v1077 = vunpack.c.l.b16 %v782
      %v1078 = vunpack.c.l.b16 %v783
      %v1079 = vunpack.c.l.b16 %v784
      %v1080 = vunpack.c.l.b16 %v785
      %v1081 = vunpack.c.l.b16 %v786
      %v1082 = vunpack.c.l.b16 %v787
      %v1083 = vunpack.c.l.b16 %v788
      %v1084 = vunpack.c.l.b16 %v789
      %v1085 = vunpack.c.l.b16 %v790
      %v1086 = vunpack.c.l.b16 %v791
      %v1087 = vunpack.c.l.b16 %v792
      %v1088 = vunpack.c.l.b16 %v793
      %v1089 = vunpack.c.l.b16 %v794
      %v1090 = vunpack.c.l.b16 %v795
      %v1091 = vunpack.c.l.b16 %v796
      %v1092 = vunpack.c.l.b16 %v797
      %v1093 = vunpack.c.l.b16 %v798
      %v1094 = vunpack.c.l.b16 %v799
      %v1095 = vunpack.c.l.b16 %v800
      %v1096 = vunpack.c.l.b16 %v801
      %v1097 = vunpack.c.l.b16 %v802
      %v1098 = vunpack.c.l.b16 %v803
      %v1099 = vunpack.c.l.b16 %v804
      %v1100 = vunpack.c.l.b16 %v805
      %v1101 = vunpack.c.l.b16 %v806
      %v1102 = vunpack.c.l.b16 %v807
      %v1103 = vunpack.c.l.b16 %v808
      %v1104 = vunpack.c.l.b16 %v809
      %v1105 = vunpack.c.l.b16 %v810
      %v1106 = vunpack.c.l.b16 %v811
      %v1107 = vunpack.c.l.b16 %v812
      %v1108 = vunpack.c.l.b16 %v813
      %v1109 = vunpack.c.l.b16 %v814
      %v1110 = vunpack.c.l.b16 %v815
      %v1111 = vunpack.c.l.b16 %v816
      %v1112 = vunpack.c.l.b16 %v817
      %v1113 = vunpack.c.l.b16 %v818
      %v1114 = vunpack.c.l.b16 %v819
      %v1115 = vunpack.c.l.b16 %v820
      %v1116 = vunpack.c.l.b16 %v821
      %v1117 = vunpack.c.l.b16 %v822
      %v1118 = vunpack.c.l.b16 %v823
      %v1119 = vunpack.c.l.b16 %v824
      %v1120 = vunpack.c.l.b16 %v825
      %v1121 = vpack.c.b16 %v978, %v977
      %v1122 = vpack.c.b16 %v980, %v979
      %v1123 = vpack.c.b16 %v982, %v981
      %v1124 = vpack.c.b16 %v984, %v983
      %v1125 = vpack.c.b16 %v986, %v985
      %v1126 = vpack.c.b16 %v988, %v987
      %v1127 = vpack.c.b16 %v990, %v989
      %v1128 = vpack.c.b16 %v992, %v991
      %v1129 = vpack.c.b16 %v994, %v993
      %v1130 = vpack.c.b16 %v996, %v995
      %v1131 = vpack.c.b16 %v998, %v997
      %v1132 = vpack.c.b16 %v1000, %v999
      %v1133 = vpack.c.b16 %v1002, %v1001
      %v1134 = vpack.c.b16 %v1004, %v1003
      %v1135 = vpack.c.b16 %v1006, %v1005
      %v1136 = vpack.c.b16 %v1008, %v1007
      %v1137 = vpack.c.b16 %v1010, %v1009
      %v1138 = vpack.c.b16 %v1012, %v1011
      %v1139 = vpack.c.b16 %v1014, %v1013
      %v1140 = vpack.c.b16 %v1016, %v1015
      %v1141 = vpack.c.b16 %v1018, %v1017
      %v1142 = vpack.c.b16 %v1020, %v1019
      %v1143 = vpack.c.b16 %v1022, %v1021
      %v1144 = vpack.c.b16 %v1024, %v1023
      %v1145 = vpack.c.b16 %v1026, %v1025
      %v1146 = vpack.c.b16 %v1028, %v1027
      %v1147 = vpack.c.b16 %v1030, %v1029
      %v1148 = vpack.c.b16 %v1032, %v1031
      %v1149 = vpack.c.b16 %v1034, %v1033
      %v1150 = vpack.c.b16 %v1036, %v1035
      %v1151 = vpack.c.b16 %v1038, %v1037
      %v1152 = vpack.c.b16 %v1040, %v1039
      %v1153 = vpack.c.b16 %v1042, %v1041
      %v1154 = vpack.c.b16 %v1044, %v1043
      %v1155 = vpack.c.b16 %v1046, %v1045
      %v1156 = vpack.c.b16 %v1048, %v1047
      %v1157 = vpack.c.b16 %v1050, %v1049
      %v1158 = vpack.c.b16 %v1052, %v1051
      %v1159 = vpack.c.b16 %v1054, %v1053
      %v1160 = vpack.c.b16 %v1056, %v1055
      %v1161 = vpack.c.b16 %v1058, %v1057
      %v1162 = vpack.c.b16 %v1060, %v1059
      %v1163 = vpack.c.b16 %v1062, %v1061
      %v1164 = vpack.c.b16 %v1064, %v1063
      %v1165 = vpack.c.b16 %v1066, %v1065
      %v1166 = vpack.c.b16 %v1068, %v1067
      %v1167 = vpack.c.b16 %v1070, %v1069
      %v1168 = vpack.c.b16 %v1072, %v1071
      %v1169 = vpack.c.b16 %v1074, %v1073
      %v1170 = vpack.c.b16 %v1076, %v1075
      %v1171 = vpack.c.b16 %v1078, %v1077
      %v1172 = vpack.c.b16 %v1080, %v1079
      %v1173 = vpack.c.b16 %v1082, %v1081
      %v1174 = vpack.c.b16 %v1084, %v1083
      %v1175 = vpack.c.b16 %v1086, %v1085
      %v1176 = vpack.c.b16 %v1088, %v1087
      %v1177 = vpack.c.b16 %v1090, %v1089
      %v1178 = vpack.c.b16 %v1092, %v1091
      %v1179 = vpack.c.b16 %v1094, %v1093
      %v1180 = vpack.c.b16 %v1096, %v1095
      %v1181 = vpack.c.b16 %v1098, %v1097
      %v1182 = vpack.c.b16 %v1100, %v1099
      %v1183 = vpack.c.b16 %v1102, %v1101
      %v1184 = vpack.c.b16 %v1104, %v1103
      %v1185 = vpack.c.b16 %v1106, %v1105
      %v1186 = vpack.c.b16 %v1108, %v1107
      %v1187 = vpack.c.b16 %v1110, %v1109
      %v1188 = vpack.c.b16 %v1112, %v1111
      %v1189 = vpack.c.b16 %v1114, %v1113
      %v1190 = vpack.c.b16 %v1116, %v1115
      %v1191 = vpack.c.b16 %v1118, %v1117
      %v1192 = vpack.c.b16 %v1120, %v1119
      %1265 = vmatprep.subr.bf16.mxu0 0
      %1266 = vmatpush1.bf16.msra.mxu0 %v1121
      %1267 = vmatprep.subr.bf16.mxu0 0
      %1268 = vmatpush1.bf16.msra.mxu0 %v1122
      %1269 = vmatprep.subr.bf16.mxu0 0
      %1270 = vmatpush1.bf16.msra.mxu0 %v1123
      %1271 = vmatprep.subr.bf16.mxu0 0
      %1272 = vmatpush1.bf16.msra.mxu0 %v1124
      %1273 = vmatprep.subr.bf16.mxu0 0
      %1274 = vmatpush1.bf16.msra.mxu0 %v1125
      %1275 = vmatprep.subr.bf16.mxu0 0
      %1276 = vmatpush1.bf16.msra.mxu0 %v1126
      %1277 = vmatprep.subr.bf16.mxu0 0
      %1278 = vmatpush1.bf16.msra.mxu0 %v1127
      %1279 = vmatprep.subr.bf16.mxu0 0
      %1280 = vmatpush1.bf16.msra.mxu0 %v1128
      %1281 = vmatprep.subr.bf16.mxu0 0
      %1282 = vmatpush1.bf16.msra.mxu0 %v1129
      %1283 = vmatprep.subr.bf16.mxu0 0
      %1284 = vmatpush1.bf16.msra.mxu0 %v1130
      %1285 = vmatprep.subr.bf16.mxu0 0
      %1286 = vmatpush1.bf16.msra.mxu0 %v1131
      %1287 = vmatprep.subr.bf16.mxu0 0
      %1288 = vmatpush1.bf16.msra.mxu0 %v1132
      %1289 = vmatprep.subr.bf16.mxu0 0
      %1290 = vmatpush1.bf16.msra.mxu0 %v1133
      %1291 = vmatprep.subr.bf16.mxu0 0
      %1292 = vmatpush1.bf16.msra.mxu0 %v1134
      %1293 = vmatprep.subr.bf16.mxu0 0
      %1294 = vmatpush1.bf16.msra.mxu0 %v1135
      %1295 = vmatprep.subr.bf16.mxu0 0
      %1296 = vmatpush1.bf16.msra.mxu0 %v1136
      %1297 = vmatprep.mubr.bf16.mxu0 %v568
      %1298 = vmatmul.mubr.bf16.gmra.mrb[0].mxu0 %v552
      %v1299 = vpop.f32.mrb[0].mxu0
      %v1300 = vadd.f32 %v831, %v1299
      %v1301 = vpop.f32.mrb[0].mxu0
      %v1302 = vpop.f32.mrb[0].mxu0
      %v1303 = vpop.f32.mrb[0].mxu0
      %1304 = vdwg.mxu0
      %1305 = vmatprep.subr.bf16.mxu0 0
      %1306 = vmatpush1.bf16.msra.mxu0 %v1137
      %1307 = vmatprep.subr.bf16.mxu0 0
      %1308 = vmatpush1.bf16.msra.mxu0 %v1138
      %1309 = vmatprep.subr.bf16.mxu0 0
      %1310 = vmatpush1.bf16.msra.mxu0 %v1139
      %1311 = vmatprep.subr.bf16.mxu0 0
      %1312 = vmatpush1.bf16.msra.mxu0 %v1140
      %1313 = vmatprep.subr.bf16.mxu0 0
      %1314 = vmatpush1.bf16.msra.mxu0 %v1141
      %1315 = vmatprep.subr.bf16.mxu0 0
      %1316 = vmatpush1.bf16.msra.mxu0 %v1142
      %1317 = vmatprep.subr.bf16.mxu0 0
      %1318 = vmatpush1.bf16.msra.mxu0 %v1143
      %1319 = vmatprep.subr.bf16.mxu0 0
      %1320 = vmatpush1.bf16.msra.mxu0 %v1144
      %1321 = vmatprep.subr.bf16.mxu0 0
      %1322 = vmatpush1.bf16.msra.mxu0 %v1145
      %1323 = vmatprep.subr.bf16.mxu0 0
      %1324 = vmatpush1.bf16.msra.mxu0 %v1146
      %1325 = vmatprep.subr.bf16.mxu0 0
      %1326 = vmatpush1.bf16.msra.mxu0 %v1147
      %1327 = vmatprep.subr.bf16.mxu0 0
      %1328 = vmatpush1.bf16.msra.mxu0 %v1148
      %1329 = vmatprep.subr.bf16.mxu0 0
      %1330 = vmatpush1.bf16.msra.mxu0 %v1149
      %1331 = vmatprep.subr.bf16.mxu0 0
      %1332 = vmatpush1.bf16.msra.mxu0 %v1150
      %1333 = vmatprep.subr.bf16.mxu0 0
      %1334 = vmatpush1.bf16.msra.mxu0 %v1151
      %1335 = vmatprep.subr.bf16.mxu0 0
      %1336 = vmatpush1.bf16.msra.mxu0 %v1152
      %1337 = vmatprep.mubr.bf16.mxu0 %v600
      %1338 = vmatmul.mubr.bf16.gmra.mrb[0].mxu0 %v584
      %v1339 = vpop.f32.mrb[0].mxu0
      %v1340 = vadd.f32 %v1300, %v1339
      %v1341 = vpop.f32.mrb[0].mxu0
      %v1342 = vpop.f32.mrb[0].mxu0
      %v1343 = vpop.f32.mrb[0].mxu0
      %1344 = vdwg.mxu0
      %1345 = vmatprep.subr.bf16.mxu0 0
      %1346 = vmatpush1.bf16.msra.mxu0 %v1153
      %1347 = vmatprep.subr.bf16.mxu0 0
      %1348 = vmatpush1.bf16.msra.mxu0 %v1154
      %1349 = vmatprep.subr.bf16.mxu0 0
      %1350 = vmatpush1.bf16.msra.mxu0 %v1155
      %1351 = vmatprep.subr.bf16.mxu0 0
      %1352 = vmatpush1.bf16.msra.mxu0 %v1156
      %1353 = vmatprep.subr.bf16.mxu0 0
      %1354 = vmatpush1.bf16.msra.mxu0 %v1157
      %1355 = vmatprep.subr.bf16.mxu0 0
      %1356 = vmatpush1.bf16.msra.mxu0 %v1158
      %1357 = vmatprep.subr.bf16.mxu0 0
      %1358 = vmatpush1.bf16.msra.mxu0 %v1159
      %1359 = vmatprep.subr.bf16.mxu0 0
      %1360 = vmatpush1.bf16.msra.mxu0 %v1160
      %1361 = vmatprep.subr.bf16.mxu0 0
      %1362 = vmatpush1.bf16.msra.mxu0 %v1161
      %1363 = vmatprep.subr.bf16.mxu0 0
      %1364 = vmatpush1.bf16.msra.mxu0 %v1162
      %1365 = vmatprep.subr.bf16.mxu0 0
      %1366 = vmatpush1.bf16.msra.mxu0 %v1163
      %1367 = vmatprep.subr.bf16.mxu0 0
      %1368 = vmatpush1.bf16.msra.mxu0 %v1164
      %1369 = vmatprep.subr.bf16.mxu0 0
      %1370 = vmatpush1.bf16.msra.mxu0 %v1165
      %1371 = vmatprep.subr.bf16.mxu0 0
      %1372 = vmatpush1.bf16.msra.mxu0 %v1166
      %1373 = vmatprep.subr.bf16.mxu0 0
      %1374 = vmatpush1.bf16.msra.mxu0 %v1167
      %1375 = vmatprep.subr.bf16.mxu0 0
      %1376 = vmatpush1.bf16.msra.mxu0 %v1168
      %1377 = vmatprep.mubr.bf16.mxu0 %v632
      %1378 = vmatmul.mubr.bf16.gmra.mrb[0].mxu0 %v616
      %v1379 = vpop.f32.mrb[0].mxu0
      %v1380 = vadd.f32 %v1340, %v1379
      %v1381 = vpop.f32.mrb[0].mxu0
      %v1382 = vpop.f32.mrb[0].mxu0
      %v1383 = vpop.f32.mrb[0].mxu0
      %1384 = vdwg.mxu0
      %1385 = vmatprep.subr.bf16.mxu0 0
      %1386 = vmatpush1.bf16.msra.mxu0 %v1169
      %1387 = vmatprep.subr.bf16.mxu0 0
      %1388 = vmatpush1.bf16.msra.mxu0 %v1170
      %1389 = vmatprep.subr.bf16.mxu0 0
      %1390 = vmatpush1.bf16.msra.mxu0 %v1171
      %1391 = vmatprep.subr.bf16.mxu0 0
      %1392 = vmatpush1.bf16.msra.mxu0 %v1172
      %1393 = vmatprep.subr.bf16.mxu0 0
      %1394 = vmatpush1.bf16.msra.mxu0 %v1173
      %1395 = vmatprep.subr.bf16.mxu0 0
      %1396 = vmatpush1.bf16.msra.mxu0 %v1174
      %1397 = vmatprep.subr.bf16.mxu0 0
      %1398 = vmatpush1.bf16.msra.mxu0 %v1175
      %1399 = vmatprep.subr.bf16.mxu0 0
      %1400 = vmatpush1.bf16.msra.mxu0 %v1176
      %1401 = vmatprep.subr.bf16.mxu0 0
      %1402 = vmatpush1.bf16.msra.mxu0 %v1177
      %1403 = vmatprep.subr.bf16.mxu0 0
      %1404 = vmatpush1.bf16.msra.mxu0 %v1178
      %1405 = vmatprep.subr.bf16.mxu0 0
      %1406 = vmatpush1.bf16.msra.mxu0 %v1179
      %1407 = vmatprep.subr.bf16.mxu0 0
      %1408 = vmatpush1.bf16.msra.mxu0 %v1180
      %1409 = vmatprep.subr.bf16.mxu0 0
      %1410 = vmatpush1.bf16.msra.mxu0 %v1181
      %1411 = vmatprep.subr.bf16.mxu0 0
      %1412 = vmatpush1.bf16.msra.mxu0 %v1182
      %1413 = vmatprep.subr.bf16.mxu0 0
      %1414 = vmatpush1.bf16.msra.mxu0 %v1183
      %1415 = vmatprep.subr.bf16.mxu0 0
      %1416 = vmatpush1.bf16.msra.mxu0 %v1184
      %1417 = vmatprep.mubr.bf16.mxu0 %v664
      %1418 = vmatmul.mubr.bf16.gmra.mrb[0].mxu0 %v648
      %v1419 = vpop.f32.mrb[0].mxu0
      %v1420 = vadd.f32 %v1380, %v1419
      %v1421 = vpop.f32.mrb[0].mxu0
      %v1422 = vpop.f32.mrb[0].mxu0
      %v1423 = vpop.f32.mrb[0].mxu0
      %1424 = vdwg.mxu0
      %1425 = vmatprep.subr.bf16.mxu0 0
      %1426 = vmatpush1.bf16.msra.mxu0 %v1185
      %1427 = vmatprep.subr.bf16.mxu0 0
      %1428 = vmatpush1.bf16.msra.mxu0 %v1186
      %1429 = vmatprep.subr.bf16.mxu0 0
      %1430 = vmatpush1.bf16.msra.mxu0 %v1187
      %1431 = vmatprep.subr.bf16.mxu0 0
      %1432 = vmatpush1.bf16.msra.mxu0 %v1188
      %1433 = vmatprep.subr.bf16.mxu0 0
      %1434 = vmatpush1.bf16.msra.mxu0 %v1189
      %1435 = vmatprep.subr.bf16.mxu0 0
      %1436 = vmatpush1.bf16.msra.mxu0 %v1190
      %1437 = vmatprep.subr.bf16.mxu0 0
      %1438 = vmatpush1.bf16.msra.mxu0 %v1191
      %1439 = vmatprep.subr.bf16.mxu0 0
      %1440 = vmatpush1.bf16.msra.mxu0 %v1192
      %1441 = vmatprep.subr.bf16.mxu0 0
      %1442 = vmatpush1.bf16.msra.mxu0 0
      %1443 = vmatprep.subr.bf16.mxu0 0
      %1444 = vmatpush1.bf16.msra.mxu0 0
      %1445 = vmatprep.subr.bf16.mxu0 0
      %1446 = vmatpush1.bf16.msra.mxu0 0
      %1447 = vmatprep.subr.bf16.mxu0 0
      %1448 = vmatpush1.bf16.msra.mxu0 0
      %1449 = vmatprep.subr.bf16.mxu0 0
      %1450 = vmatpush1.bf16.msra.mxu0 0
      %1451 = vmatprep.subr.bf16.mxu0 0
      %1452 = vmatpush1.bf16.msra.mxu0 0
      %1453 = vmatprep.subr.bf16.mxu0 0
      %1454 = vmatpush1.bf16.msra.mxu0 0
      %1455 = vmatprep.subr.bf16.mxu0 0
      %1456 = vmatpush1.bf16.msra.mxu0 0
      %1457 = vmatprep.mubr.bf16.mxu0 0
      %1458 = vmatmul.mubr.bf16.gmra.mrb[0].mxu0 %v680
      %v1459 = vpop.f32.mrb[0].mxu0
      %v1460 = vadd.f32 %v1420, %v1459
      %v1461 = vpop.f32.mrb[0].mxu0
      %v1462 = vpop.f32.mrb[0].mxu0
      %v1463 = vpop.f32.mrb[0].mxu0
      %1464 = vdwg.mxu0
      %v1465 = vmax.f32 %v1460, 0.0
      %v1466 = vpack.c.bf16 %v1465, %v1465
      %v1467 = vld [vmem:[%s6] sm:$0xf]
      %v1468 = vld [vmem:[%s6 + $0x4] sm:$0xf]
      %v1469 = vld [vmem:[%s6 + $0x8] sm:$0xf]
      %v1470 = vld [vmem:[%s6 + $0xc] sm:$0xf]
      %v1471 = vld [vmem:[%s6 + $0x10] sm:$0xf]
      %v1472 = vld [vmem:[%s6 + $0x14] sm:$0xf]
      %v1473 = vld [vmem:[%s6 + $0x18] sm:$0xf]
      %v1474 = vld [vmem:[%s6 + $0x1c] sm:$0xf]
      %v1475 = vld [vmem:[%s6 + $0x20] sm:$0xf]
      %v1476 = vld [vmem:[%s6 + $0x24] sm:$0xf]
      %v1477 = vld [vmem:[%s6 + $0x28] sm:$0xf]
      %v1478 = vld [vmem:[%s6 + $0x2c] sm:$0xf]
      %v1479 = vld [vmem:[%s6 + $0x30] sm:$0xf]
      %v1480 = vld [vmem:[%s6 + $0x34] sm:$0xf]
      %v1481 = vld [vmem:[%s6 + $0x38] sm:$0xf]
      %v1482 = vld [vmem:[%s6 + $0x3c] sm:$0xf]
      %v1483 = vld [vmem:[%s7] sm:$0x1]
      %v1485 = vlaneseq
      %v1486 = vshrl.u32 %v1485, 7
      %v1487 = vsub.s32 0, %v1486
      %v1488 = vrot.slane %v1483, %v1487
      %v1506 = vunpack.c.l.b16 %v1467
      %v1507 = vunpack.c.l.b16 %v1468
      %v1508 = vunpack.c.l.b16 %v1469
      %v1509 = vunpack.c.l.b16 %v1470
      %v1510 = vunpack.c.l.b16 %v1471
      %v1511 = vunpack.c.l.b16 %v1472
      %v1512 = vunpack.c.l.b16 %v1473
      %v1513 = vunpack.c.l.b16 %v1474
      %v1514 = vunpack.c.l.b16 %v1475
      %v1515 = vunpack.c.l.b16 %v1476
      %v1516 = vunpack.c.l.b16 %v1477
      %v1517 = vunpack.c.l.b16 %v1478
      %v1518 = vunpack.c.l.b16 %v1479
      %v1519 = vunpack.c.l.b16 %v1480
      %v1520 = vunpack.c.l.b16 %v1481
      %v1521 = vunpack.c.l.b16 %v1482
      %v1522 = vpack.c.b16 %v1507, %v1506
      %v1523 = vpack.c.b16 %v1509, %v1508
      %v1524 = vpack.c.b16 %v1511, %v1510
      %v1525 = vpack.c.b16 %v1513, %v1512
      %v1526 = vpack.c.b16 %v1515, %v1514
      %v1527 = vpack.c.b16 %v1517, %v1516
      %v1528 = vpack.c.b16 %v1519, %v1518
      %v1529 = vpack.c.b16 %v1521, %v1520
      %1538 = vmatprep.subr.bf16.mxu0 0
      %1539 = vmatpush1.bf16.msra.mxu0 %v1522
      %1540 = vmatprep.subr.bf16.mxu0 0
      %1541 = vmatpush1.bf16.msra.mxu0 %v1523
      %1542 = vmatprep.subr.bf16.mxu0 0
      %1543 = vmatpush1.bf16.msra.mxu0 %v1524
      %1544 = vmatprep.subr.bf16.mxu0 0
      %1545 = vmatpush1.bf16.msra.mxu0 %v1525
      %1546 = vmatprep.subr.bf16.mxu0 0
      %1547 = vmatpush1.bf16.msra.mxu0 %v1526
      %1548 = vmatprep.subr.bf16.mxu0 0
      %1549 = vmatpush1.bf16.msra.mxu0 %v1527
      %1550 = vmatprep.subr.bf16.mxu0 0
      %1551 = vmatpush1.bf16.msra.mxu0 %v1528
      %1552 = vmatprep.subr.bf16.mxu0 0
      %1553 = vmatpush1.bf16.msra.mxu0 %v1529
      %1554 = vmatprep.subr.bf16.mxu0 0
      %1555 = vmatpush1.bf16.msra.mxu0 0
      %1556 = vmatprep.subr.bf16.mxu0 0
      %1557 = vmatpush1.bf16.msra.mxu0 0
      %1558 = vmatprep.subr.bf16.mxu0 0
      %1559 = vmatpush1.bf16.msra.mxu0 0
      %1560 = vmatprep.subr.bf16.mxu0 0
      %1561 = vmatpush1.bf16.msra.mxu0 0
      %1562 = vmatprep.subr.bf16.mxu0 0
      %1563 = vmatpush1.bf16.msra.mxu0 0
      %1564 = vmatprep.subr.bf16.mxu0 0
      %1565 = vmatpush1.bf16.msra.mxu0 0
      %1566 = vmatprep.subr.bf16.mxu0 0
      %1567 = vmatpush1.bf16.msra.mxu0 0
      %1568 = vmatprep.subr.bf16.mxu0 0
      %1569 = vmatpush1.bf16.msra.mxu0 0
      %1570 = vmatprep.mubr.bf16.mxu0 0
      %1571 = vmatmul.mubr.bf16.gmra.mrb[0].mxu0 %v1466
      %v1572 = vpop.f32.mrb[0].mxu0
      %v1573 = vadd.f32 %v1488, %v1572
      %v1574 = vpop.f32.mrb[0].mxu0
      %v1575 = vpop.f32.mrb[0].mxu0
      %v1576 = vpop.f32.mrb[0].mxu0
      %1577 = vdwg.mxu0
      %1578 = vst [vmem:[%s320] sm:$0xf] %v1573
      %p1579 = scmp.lt.s32.totalorder %s19, 1
      %s1580 = scalar_select %p1579, %s19, 1
      %s1581 = smul.addr %s1580, 4
      %s1582 = scalar_lea.vmem %s8, %s1581
      // Predicated region
      $region53: #{_lambda_.9} parent=51 // pred_check
        %p1583 = pneg %p215
      $region54: #{_lambda_.9} parent=51 // pred_check_branch
        %1585 = sbr.rel (%p1583) target = $region56
      $region55: #{_lambda_.9} parent=51 // pred_region
        _
      $region56: #{_lambda_.9} parent=51 // pred_fallthru
        _
    $region52: #{_lambda_.9} parent=5 // pred_fallthru
      _
    %p1586 = scmp.le.s32.totalorder 2, %s14
    // Predicated region
    $region57: #{_lambda_.9} parent=5 // pred_check
      %p1587 = pneg %p1586
    $region58: #{_lambda_.9} parent=5 // pred_check_branch
      %1589 = sbr.rel (%p1587) target = $region60
    $region59: #{_lambda_.9} parent=5 // pred_region
      %s1590 = ssub.s32 %s14, 2
      // Predicated region
      $region61: #{_lambda_.9} parent=59 // pred_check
        %p1591 = pneg %p221
      $region62: #{_lambda_.9} parent=59 // pred_check_branch
        %1593 = sbr.rel (%p1591) target = $region64
      $region63: #{_lambda_.9} parent=59 // pred_region
        %p1594 = scmp.lt.s32.totalorder %s20, 1
        %s1595 = scalar_select %p1594, %s20, 1
        %s1596 = smul.addr %s1595, 4
        %s1597 = scalar_lea.vmem %s8, %s1596
      $region64: #{_lambda_.9} parent=59 // pred_fallthru
        _
    $region60: #{_lambda_.9} parent=5 // pred_fallthru
      _
  $region6: #{_lambda_.9} parent=0 // loop_footer
    %s18 = sadd.s32 1, %s14
  $region7: #{_lambda_.9} parent=0 // loop_footer_branch
    %13 = sbr.rel target = $region3
  $region8: #{_lambda_.9} parent=0 // loop_exit
    _

</llo_original>
